<compile_context>
chip_gen: v6e
topology: v6e:2x2x1
jax: 0.10.0
libtpu: 0.0.40
codegen_flags: <defaults>
</compile_context>

<pallas_src>
import functools

import numpy as np
import jax
import jax.numpy as jnp
from jax import lax
from jax.experimental import pallas as pl
from jax.experimental.pallas import tpu as pltpu


def _round_up(x, m):
    return (x + m - 1) // m * m


def _transducer_kernel(e_ref, p_ref, lab_ref, ilen_ref, llen_ref,   # VMEM inputs
                       cost_ref,                                    # VMEM output (1,1,Bt)
                       bsc_ref, esc_ref,                            # VMEM scratch
                       *, blank: int):
    Bt, T, V = e_ref.shape
    U = p_ref.shape[1]

    # ---------------- phase 1: per-cell transition scores (MXU) ----------------
    e = e_ref[...]                        # (Bt, T, V)
    p = p_ref[...]                        # (Bt, U, V)
    labels = lab_ref[...]                 # (Bt, U-1) int32

    max_e = jnp.max(e, axis=2)            # (Bt, T)
    max_p = jnp.max(p, axis=2)            # (Bt, U)
    exp_e = jnp.exp(e - max_e[:, :, None])
    exp_p = jnp.exp(p - max_p[:, :, None])
    # shifted joint log-normalizer: lse = log_norms - max_e - max_p
    # (HIGHEST precision: feeds a log; HIGH is a possible future speed knob.)
    exp_ln = jnp.einsum('btv,buv->btu', exp_e, exp_p,
                        preferred_element_type=jnp.float32,
                        precision=lax.Precision.HIGHEST)            # (Bt, T, U)
    lse = jnp.log(exp_ln)

    # blank transition scores: e[t,blank] + p[u,blank] - log_norms
    eb = e[:, :, blank] - max_e           # (Bt, T)
    pb = p[:, :, blank] - max_p           # (Bt, U)
    bsc_ref[...] = eb[:, :, None] + pb[:, None, :] - lse

    # emit transition scores: gather e[t, labels[u]] / p[u, labels[u]] with an
    # in-kernel one-hot (exact gather, no HBM one-hot, no exp/log round trip).
    v_iota = lax.broadcasted_iota(jnp.int32, (Bt, U - 1, V), 2)
    onehot = (labels[:, :, None] == v_iota).astype(jnp.float32)     # (Bt, U-1, V)
    ge = jnp.einsum('btv,buv->btu', e, onehot,
                    preferred_element_type=jnp.float32,
                    precision=lax.Precision.HIGHEST)                # (Bt, T, U-1)
    gp = jnp.sum(p[:, :U - 1, :] * onehot, axis=2)                  # (Bt, U-1)
    esc_ref[...] = ((ge - max_e[:, :, None])
                    + (gp - max_p[:, :U - 1])[:, None, :]
                    - lse[:, :, :U - 1])

    # ---------------- phase 2: forward DP, batch on lanes ----------------
    tb = ilen_ref[0] - 1                  # (1, Bt)  == T_b - 1
    ub = llen_ref[0]                      # (1, Bt)  == U_b - 1
    u_iota = lax.broadcasted_iota(jnp.int32, (U, Bt), 0)

    def row_t(ref, t, ncols):
        # Row t of a (Bt, T, ncols) scratch, transposed to (ncols, Bt): batch
        # ends up on the lane axis so each per-u update is a full-lane vector op.
        r = ref[:, pl.ds(t, 1), :]                    # (Bt, 1, ncols)
        return jnp.transpose(r.reshape(Bt, ncols))    # (ncols, Bt)

    def extract(t, alpha_row, bsc_row, cost):
        # Accumulate cost contribution for lanes whose final cell is (t, ub).
        sel = (tb == t) & (u_iota == ub)              # (U, Bt)
        return cost + jnp.sum(jnp.where(sel, alpha_row + bsc_row, 0.0),
                              axis=0, keepdims=True)  # (1, Bt)

    # row t = 0: alpha[0,0] = 0; alpha[0,u] = alpha[0,u-1] + emit(0,u-1)
    bsc0 = row_t(bsc_ref, 0, U)           # (U, Bt)
    esc0 = row_t(esc_ref, 0, U - 1)       # (U-1, Bt)
    a = jnp.zeros((1, Bt), jnp.float32)
    rows = [a]
    for u in range(1, U):                 # U is small & static -> unrolled adds
        a = a + esc0[u - 1:u, :]
        rows.append(a)
    alpha0 = jnp.concatenate(rows, axis=0)            # (U, Bt)
    cost0 = extract(0, alpha0, bsc0, jnp.zeros((1, Bt), jnp.float32))

    def body(t, carry):
        alpha_prev, bsc_prev, cost = carry            # bsc_prev == blank row t-1
        bsc_t = row_t(bsc_ref, t, U)
        esc_t = row_t(esc_ref, t, U - 1)
        no_emit = alpha_prev + bsc_prev               # (U, Bt)
        a = no_emit[0:1, :]                           # alpha[t, 0]
        rows = [a]
        for u in range(1, U):                         # serial in u, full-lane in batch
            emit = a + esc_t[u - 1:u, :]
            ne = no_emit[u:u + 1, :]
            m = jnp.maximum(ne, emit)
            a = m + jnp.log(jnp.exp(ne - m) + jnp.exp(emit - m))
            rows.append(a)
        alpha_t = jnp.concatenate(rows, axis=0)       # (U, Bt), stays in vregs
        cost = extract(t, alpha_t, bsc_t, cost)
        return alpha_t, bsc_t, cost

    _, _, cost = lax.fori_loop(1, T, body, (alpha0, bsc0, cost0))
    cost_ref[...] = (-cost).reshape(1, 1, Bt)


def transducer_loss(emissions, predictions, labels, input_lengths, label_lengths,
                    blank: int = 0, batch_tile=None):
    """Forward pass of TransducerLoss. Returns costs with shape (B,), float32."""
    emissions = jnp.asarray(emissions, jnp.float32)
    predictions = jnp.asarray(predictions, jnp.float32)
    labels = jnp.asarray(labels, jnp.int32)
    input_lengths = jnp.asarray(input_lengths, jnp.int32)
    label_lengths = jnp.asarray(label_lengths, jnp.int32)

    B, T, V = emissions.shape
    U = predictions.shape[1]
    if predictions.shape != (B, U, V):
        raise ValueError('vocab size / batch mismatch.')
    if labels.shape != (B, U - 1):
        raise ValueError('labels must be padded to maximum label length.')
    if input_lengths.shape != (B,) or label_lengths.shape != (B,):
        raise ValueError('must have a length per example.')
    if U < 2:
        raise ValueError('need max label length >= 1 (U >= 2).')
    # NOTE: assumes 1 <= input_lengths[b] <= T and label_lengths[b] <= U-1
    # (same contract the torch binding's certify_inputs enforces).

    # --- batch tile: as many lanes as possible under a rough VMEM budget ---
    if batch_tile is None:
        bt = min(128, _round_up(B, 8))
    else:
        bt = max(8, min(_round_up(int(batch_tile), 8), _round_up(B, 8), 128))

    def vmem_est(b):
        io = 4 * b * 2 * (T * V + U * V)               # double-buffered inputs
        scr = 4 * b * _round_up(T, 8) * 128 * 2        # bsc + esc scratch (lane padded)
        work = 4 * b * (2 * T * V + 2 * U * V + 3 * T * U)  # in-kernel temporaries
        return io + scr + work

    while bt > 8 and vmem_est(bt) > 40 * 1024 * 1024:
        bt = max(8, _round_up(bt // 2, 8))

    B_pad = _round_up(B, bt)
    nt = B_pad // bt
    if B_pad != B:
        padn = B_pad - B
        emissions = jnp.pad(emissions, ((0, padn), (0, 0), (0, 0)))
        predictions = jnp.pad(predictions, ((0, padn), (0, 0), (0, 0)))
        labels = jnp.pad(labels, ((0, padn), (0, 0)))
        input_lengths = jnp.pad(input_lengths, (0, padn), constant_values=1)
        label_lengths = jnp.pad(label_lengths, (0, padn), constant_values=0)
    ilen = input_lengths.reshape(nt, 1, bt)
    llen = label_lengths.reshape(nt, 1, bt)

    costs = pl.pallas_call(
        functools.partial(_transducer_kernel, blank=blank),
        out_shape=jax.ShapeDtypeStruct((nt, 1, bt), jnp.float32),
        grid=(nt,),
        in_specs=[
            pl.BlockSpec((bt, T, V), lambda i: (i, 0, 0)),
            pl.BlockSpec((bt, U, V), lambda i: (i, 0, 0)),
            pl.BlockSpec((bt, U - 1), lambda i: (i, 0)),
            pl.BlockSpec((1, 1, bt), lambda i: (i, 0, 0)),
            pl.BlockSpec((1, 1, bt), lambda i: (i, 0, 0)),
        ],
        out_specs=pl.BlockSpec((1, 1, bt), lambda i: (i, 0, 0)),
        scratch_shapes=[
            pltpu.VMEM((bt, T, U), jnp.float32),       # blank scores
            pltpu.VMEM((bt, T, U - 1), jnp.float32),   # emit scores
        ],
        compiler_params=pltpu.CompilerParams(
            dimension_semantics=("parallel",),         # disjoint outputs per tile
            vmem_limit_bytes=64 * 1024 * 1024,
        ),
    )(emissions, predictions, labels, ilen, llen)
    return costs.reshape(B_pad)[:B]


def _reference_costs(e, p, labels, ilens, llens, blank=0):
    """Pure-numpy float64 reference of the transducer forward recursion."""
    e = e.astype(np.float64)
    p = p.astype(np.float64)
    B, T, V = e.shape
    out = np.zeros(B)
    for b in range(B):
        Tb = int(ilens[b])
        Ub = int(llens[b]) + 1
        s = e[b][:, None, :] + p[b][None, :, :]            # (T, U, V)
        m = s.max(-1)
        ln = np.log(np.exp(s - m[..., None]).sum(-1)) + m  # (T, U)

        def blk(t, u):
            return e[b, t, blank] + p[b, u, blank] - ln[t, u]

        def emt(t, u):
            l = int(labels[b, u])
            return e[b, t, l] + p[b, u, l] - ln[t, u]

        alpha = np.zeros((Tb, Ub))
        for t in range(1, Tb):
            alpha[t, 0] = alpha[t - 1, 0] + blk(t - 1, 0)
        for u in range(1, Ub):
            alpha[0, u] = alpha[0, u - 1] + emt(0, u - 1)
        for t in range(1, Tb):
            for u in range(1, Ub):
                a = alpha[t - 1, u] + blk(t - 1, u)
                c = alpha[t, u - 1] + emt(t, u - 1)
                alpha[t, u] = np.logaddexp(a, c)
        out[b] = -(alpha[Tb - 1, Ub - 1] + blk(Tb - 1, Ub - 1))
    return out


if __name__ == "__main__":
    key = jax.random.PRNGKey(0)
    B, T, U, V = 2, 8, 5, 32   # U = max label length + 1
    k1, k2, k3 = jax.random.split(key, 3)
    emissions = jax.random.normal(k1, (B, T, V), dtype=jnp.float32)
    predictions = jax.random.normal(k2, (B, U, V), dtype=jnp.float32)
    labels = jax.random.randint(k3, (B, U - 1), 1, V).astype(jnp.int32)
    input_lengths = jnp.array([T, T - 2], dtype=jnp.int32)
    label_lengths = jnp.array([U - 1, U - 2], dtype=jnp.int32)

    costs = transducer_loss(emissions, predictions, labels,
                            input_lengths, label_lengths, blank=0)
    costs = jax.block_until_ready(costs)

    ref = _reference_costs(np.asarray(emissions), np.asarray(predictions),
                           np.asarray(labels), np.asarray(input_lengths),
                           np.asarray(label_lengths), blank=0)
    if not np.allclose(np.asarray(costs), ref, rtol=1e-3, atol=5e-3):
        raise AssertionError(f"mismatch: kernel={np.asarray(costs)} ref={ref}")
    print("KERNEL_OK")
</pallas_src>

<mosaic_0001>
module attributes {stable_mosaic.version = 11 : i64} {
  func.func @_transducer_kernel(%arg0: i32, %arg1: memref<8x8x32xf32, #tpu.memory_space<vmem>>, %arg2: memref<8x5x32xf32, #tpu.memory_space<vmem>>, %arg3: memref<8x4xi32, #tpu.memory_space<vmem>>, %arg4: memref<1x1x8xi32, #tpu.memory_space<vmem>>, %arg5: memref<1x1x8xi32, #tpu.memory_space<vmem>>, %arg6: memref<1x1x8xf32, #tpu.memory_space<vmem>>, %arg7: memref<8x8x5xf32, #tpu.memory_space<vmem>>, %arg8: memref<8x8x4xf32, #tpu.memory_space<vmem>>) attributes {dimension_semantics = [#tpu.dimension_semantics<parallel>], iteration_bounds = array<i64: 1>, scalar_prefetch = 0 : i64, scratch_operands = 2 : i64, tpu.core_type = #tpu.core_type<tc>, window_params = [{transform_indices = @transform_0, window_bounds = array<i64: 8, 8, 32>}, {transform_indices = @transform_1, window_bounds = array<i64: 8, 5, 32>}, {transform_indices = @transform_2, window_bounds = array<i64: 8, 4>}, {transform_indices = @transform_3, window_bounds = array<i64: 1, 1, 8>}, {transform_indices = @transform_4, window_bounds = array<i64: 1, 1, 8>}, {transform_indices = @transform_5, window_bounds = array<i64: 1, 1, 8>}]} {
    %c0 = arith.constant 0 : index
    %c0_0 = arith.constant 0 : index
    %c0_1 = arith.constant 0 : index
    %0 = vector.load %arg1[%c0, %c0_0, %c0_1] : memref<8x8x32xf32, #tpu.memory_space<vmem>>, vector<8x8x32xf32>
    %c0_2 = arith.constant 0 : index
    %c0_3 = arith.constant 0 : index
    %c0_4 = arith.constant 0 : index
    %1 = vector.load %arg2[%c0_2, %c0_3, %c0_4] : memref<8x5x32xf32, #tpu.memory_space<vmem>>, vector<8x5x32xf32>
    %c0_5 = arith.constant 0 : index
    %c0_6 = arith.constant 0 : index
    %2 = vector.load %arg3[%c0_5, %c0_6] : memref<8x4xi32, #tpu.memory_space<vmem>>, vector<8x4xi32>
    %cst = arith.constant dense<0xFF800000> : vector<8x8xf32>
    %3 = vector.multi_reduction <maximumf>, %0, %cst [2] : vector<8x8x32xf32> to vector<8x8xf32>
    %cst_7 = arith.constant dense<0xFF800000> : vector<8x5xf32>
    %4 = vector.multi_reduction <maximumf>, %1, %cst_7 [2] : vector<8x5x32xf32> to vector<8x5xf32>
    %5 = vector.shape_cast %3 : vector<8x8xf32> to vector<8x8x1xf32>
    %6 = vector.broadcast %5 : vector<8x8x1xf32> to vector<8x8x32xf32>
    %7 = arith.subf %0, %6 : vector<8x8x32xf32>
    %8 = math.exp %7 : vector<8x8x32xf32>
    %9 = vector.shape_cast %4 : vector<8x5xf32> to vector<8x5x1xf32>
    %10 = vector.broadcast %9 : vector<8x5x1xf32> to vector<8x5x32xf32>
    %11 = arith.subf %1, %10 : vector<8x5x32xf32>
    %12 = math.exp %11 : vector<8x5x32xf32>
    "tpu.trace_start"() <{level = 10 : i32, message = "btv,buv->btu"}> : () -> ()
    %cst_8 = arith.constant dense<0.000000e+00> : vector<8x8x5xf32>
    %13 = tpu.matmul %8, %12, %cst_8 {dimension_numbers = #tpu.dot_dimension_numbers<[2], [2], [1], [1], [0, 0, 0, 1, 1, 1], [0], [0]>, precision = #tpu.contract_precision<fp32>} : vector<8x8x32xf32>, vector<8x5x32xf32>, vector<8x8x5xf32> -> vector<8x8x5xf32>
    "tpu.trace_stop"() : () -> ()
    %14 = math.log %13 : vector<8x8x5xf32>
    %15 = vector.extract_strided_slice %0 {offsets = [0, 0, 0], sizes = [8, 8, 1], strides = [1, 1, 1]} : vector<8x8x32xf32> to vector<8x8x1xf32>
    %16 = vector.shape_cast %15 : vector<8x8x1xf32> to vector<8x8xf32>
    %17 = arith.subf %16, %3 : vector<8x8xf32>
    %18 = vector.extract_strided_slice %1 {offsets = [0, 0, 0], sizes = [8, 5, 1], strides = [1, 1, 1]} : vector<8x5x32xf32> to vector<8x5x1xf32>
    %19 = vector.shape_cast %18 : vector<8x5x1xf32> to vector<8x5xf32>
    %20 = arith.subf %19, %4 : vector<8x5xf32>
    %21 = vector.shape_cast %17 : vector<8x8xf32> to vector<8x8x1xf32>
    %22 = vector.shape_cast %20 : vector<8x5xf32> to vector<8x1x5xf32>
    %23 = vector.broadcast %21 : vector<8x8x1xf32> to vector<8x8x5xf32>
    %24 = vector.broadcast %22 : vector<8x1x5xf32> to vector<8x8x5xf32>
    %25 = arith.addf %23, %24 : vector<8x8x5xf32>
    %26 = arith.subf %25, %14 : vector<8x8x5xf32>
    %c0_9 = arith.constant 0 : index
    %c0_10 = arith.constant 0 : index
    %c0_11 = arith.constant 0 : index
    %27 = vector.load %arg7[%c0_9, %c0_10, %c0_11] : memref<8x8x5xf32, #tpu.memory_space<vmem>>, vector<8x8x5xf32>
    tpu.vector_store %arg7[%c0_9, %c0_10, %c0_11], %26 {strides = array<i32>} : memref<8x8x5xf32, #tpu.memory_space<vmem>>, vector<8x8x5xf32>,
    %28 = tpu.iota {dimensions = array<i32: 2>} : vector<8x4x32xi32>
    %29 = vector.shape_cast %2 : vector<8x4xi32> to vector<8x4x1xi32>
    %30 = vector.broadcast %29 : vector<8x4x1xi32> to vector<8x4x32xi32>
    %31 = arith.cmpi eq, %30, %28 : vector<8x4x32xi32>
    %32 = arith.extui %31 : vector<8x4x32xi1> to vector<8x4x32xi32>
    %33 = arith.sitofp %32 : vector<8x4x32xi32> to vector<8x4x32xf32>
    "tpu.trace_start"() <{level = 10 : i32, message = "btv,buv->btu"}> : () -> ()
    %cst_12 = arith.constant dense<0.000000e+00> : vector<8x8x4xf32>
    %34 = tpu.matmul %0, %33, %cst_12 {dimension_numbers = #tpu.dot_dimension_numbers<[2], [2], [1], [1], [0, 0, 0, 1, 1, 1], [0], [0]>, precision = #tpu.contract_precision<fp32>} : vector<8x8x32xf32>, vector<8x4x32xf32>, vector<8x8x4xf32> -> vector<8x8x4xf32>
    "tpu.trace_stop"() : () -> ()
    %35 = vector.extract_strided_slice %1 {offsets = [0, 0, 0], sizes = [8, 4, 32], strides = [1, 1, 1]} : vector<8x5x32xf32> to vector<8x4x32xf32>
    %36 = arith.mulf %35, %33 : vector<8x4x32xf32>
    %cst_13 = arith.constant dense<0.000000e+00> : vector<8x4xf32>
    %37 = vector.multi_reduction <add>, %36, %cst_13 [2] : vector<8x4x32xf32> to vector<8x4xf32>
    %38 = vector.shape_cast %3 : vector<8x8xf32> to vector<8x8x1xf32>
    %39 = vector.broadcast %38 : vector<8x8x1xf32> to vector<8x8x4xf32>
    %40 = arith.subf %34, %39 : vector<8x8x4xf32>
    %41 = vector.extract_strided_slice %4 {offsets = [0, 0], sizes = [8, 4], strides = [1, 1]} : vector<8x5xf32> to vector<8x4xf32>
    %42 = arith.subf %37, %41 : vector<8x4xf32>
    %43 = vector.shape_cast %42 : vector<8x4xf32> to vector<8x1x4xf32>
    %44 = vector.broadcast %43 : vector<8x1x4xf32> to vector<8x8x4xf32>
    %45 = arith.addf %40, %44 : vector<8x8x4xf32>
    %46 = vector.extract_strided_slice %14 {offsets = [0, 0, 0], sizes = [8, 8, 4], strides = [1, 1, 1]} : vector<8x8x5xf32> to vector<8x8x4xf32>
    %47 = arith.subf %45, %46 : vector<8x8x4xf32>
    %c0_14 = arith.constant 0 : index
    %c0_15 = arith.constant 0 : index
    %c0_16 = arith.constant 0 : index
    %48 = vector.load %arg8[%c0_14, %c0_15, %c0_16] : memref<8x8x4xf32, #tpu.memory_space<vmem>>, vector<8x8x4xf32>
    tpu.vector_store %arg8[%c0_14, %c0_15, %c0_16], %47 {strides = array<i32>} : memref<8x8x4xf32, #tpu.memory_space<vmem>>, vector<8x8x4xf32>,
    %c0_17 = arith.constant 0 : index
    %c0_18 = arith.constant 0 : index
    %c0_19 = arith.constant 0 : index
    %49 = vector.load %arg4[%c0_17, %c0_18, %c0_19] : memref<1x1x8xi32, #tpu.memory_space<vmem>>, vector<1x1x8xi32>
    %50 = vector.shape_cast %49 : vector<1x1x8xi32> to vector<1x8xi32>
    %c1_i32 = arith.constant 1 : i32
    %51 = vector.broadcast %c1_i32 : i32 to vector<1x8xi32>
    %52 = arith.subi %50, %51 : vector<1x8xi32>
    %c0_20 = arith.constant 0 : index
    %c0_21 = arith.constant 0 : index
    %c0_22 = arith.constant 0 : index
    %53 = vector.load %arg5[%c0_20, %c0_21, %c0_22] : memref<1x1x8xi32, #tpu.memory_space<vmem>>, vector<1x1x8xi32>
    %54 = vector.shape_cast %53 : vector<1x1x8xi32> to vector<1x8xi32>
    %55 = tpu.iota {dimensions = array<i32: 0>} : vector<5x8xi32>
    %c0_23 = arith.constant 0 : index
    %c0_24 = arith.constant 0 : index
    %c0_25 = arith.constant 0 : index
    %56 = vector.load %arg7[%c0_23, %c0_24, %c0_25] : memref<8x8x5xf32, #tpu.memory_space<vmem>>, vector<8x1x5xf32>
    %57 = vector.shape_cast %56 : vector<8x1x5xf32> to vector<8x5xf32>
    %58 = tpu.transpose %57, [1, 0] : vector<8x5xf32> -> vector<5x8xf32>
    %c0_26 = arith.constant 0 : index
    %c0_27 = arith.constant 0 : index
    %c0_28 = arith.constant 0 : index
    %59 = vector.load %arg8[%c0_26, %c0_27, %c0_28] : memref<8x8x4xf32, #tpu.memory_space<vmem>>, vector<8x1x4xf32>
    %60 = vector.shape_cast %59 : vector<8x1x4xf32> to vector<8x4xf32>
    %61 = tpu.transpose %60, [1, 0] : vector<8x4xf32> -> vector<4x8xf32>
    %cst_29 = arith.constant 0.000000e+00 : f32
    %62 = vector.broadcast %cst_29 : f32 to vector<1x8xf32>
    %63 = vector.extract_strided_slice %61 {offsets = [0, 0], sizes = [1, 8], strides = [1, 1]} : vector<4x8xf32> to vector<1x8xf32>
    %64 = arith.addf %62, %63 : vector<1x8xf32>
    %65 = vector.extract_strided_slice %61 {offsets = [1, 0], sizes = [1, 8], strides = [1, 1]} : vector<4x8xf32> to vector<1x8xf32>
    %66 = arith.addf %64, %65 : vector<1x8xf32>
    %67 = vector.extract_strided_slice %61 {offsets = [2, 0], sizes = [1, 8], strides = [1, 1]} : vector<4x8xf32> to vector<1x8xf32>
    %68 = arith.addf %66, %67 : vector<1x8xf32>
    %69 = vector.extract_strided_slice %61 {offsets = [3, 0], sizes = [1, 8], strides = [1, 1]} : vector<4x8xf32> to vector<1x8xf32>
    %70 = arith.addf %68, %69 : vector<1x8xf32>
    %71 = tpu.concatenate %62, %64, %66, %68, %70 in 0 : vector<1x8xf32>, vector<1x8xf32>, vector<1x8xf32>, vector<1x8xf32>, vector<1x8xf32> -> vector<5x8xf32>
    %cst_30 = arith.constant 0.000000e+00 : f32
    %72 = vector.broadcast %cst_30 : f32 to vector<1x8xf32>
    %c0_i32 = arith.constant 0 : i32
    %73 = vector.broadcast %c0_i32 : i32 to vector<1x8xi32>
    %74 = arith.cmpi eq, %52, %73 : vector<1x8xi32>
    %75 = vector.broadcast %54 : vector<1x8xi32> to vector<5x8xi32>
    %76 = arith.cmpi eq, %55, %75 : vector<5x8xi32>
    %77 = vector.broadcast %74 : vector<1x8xi1> to vector<5x8xi1>
    %78 = arith.andi %77, %76 : vector<5x8xi1>
    %79 = arith.addf %71, %58 : vector<5x8xf32>
    %cst_31 = arith.constant 0.000000e+00 : f32
    %80 = vector.broadcast %cst_31 : f32 to vector<5x8xf32>
    %81 = arith.select %78, %79, %80 : vector<5x8xi1>, vector<5x8xf32>
    %cst_32 = arith.constant dense<0.000000e+00> : vector<8xf32>
    %82 = vector.multi_reduction <add>, %81, %cst_32 [0] : vector<5x8xf32> to vector<8xf32>
    %83 = vector.shape_cast %82 : vector<8xf32> to vector<1x8xf32>
    %84 = arith.addf %72, %83 : vector<1x8xf32>
    %c1_i32_33 = arith.constant 1 : i32
    %c7_i32 = arith.constant 7 : i32
    %85 = arith.addi %c1_i32_33, %c7_i32 : i32
    %c1_i32_34 = arith.constant 1 : i32
    %86:3 = scf.for %arg9 = %c1_i32_33 to %85 step %c1_i32_34 iter_args(%arg10 = %71, %arg11 = %58, %arg12 = %84) -> (vector<5x8xf32>, vector<5x8xf32>, vector<1x8xf32>)  : i32 {
      %c0_40 = arith.constant 0 : index
      %91 = arith.index_cast %arg9 : i32 to index
      %c0_41 = arith.constant 0 : index
      %92 = vector.load %arg7[%c0_40, %91, %c0_41] : memref<8x8x5xf32, #tpu.memory_space<vmem>>, vector<8x1x5xf32>
      %93 = vector.shape_cast %92 : vector<8x1x5xf32> to vector<8x5xf32>
      %94 = tpu.transpose %93, [1, 0] : vector<8x5xf32> -> vector<5x8xf32>
      %c0_42 = arith.constant 0 : index
      %95 = arith.index_cast %arg9 : i32 to index
      %c0_43 = arith.constant 0 : index
      %96 = vector.load %arg8[%c0_42, %95, %c0_43] : memref<8x8x4xf32, #tpu.memory_space<vmem>>, vector<8x1x4xf32>
      %97 = vector.shape_cast %96 : vector<8x1x4xf32> to vector<8x4xf32>
      %98 = tpu.transpose %97, [1, 0] : vector<8x4xf32> -> vector<4x8xf32>
      %99 = arith.addf %arg10, %arg11 : vector<5x8xf32>
      %100 = vector.extract_strided_slice %99 {offsets = [0, 0], sizes = [1, 8], strides = [1, 1]} : vector<5x8xf32> to vector<1x8xf32>
      %101 = vector.extract_strided_slice %98 {offsets = [0, 0], sizes = [1, 8], strides = [1, 1]} : vector<4x8xf32> to vector<1x8xf32>
      %102 = arith.addf %100, %101 : vector<1x8xf32>
      %103 = vector.extract_strided_slice %99 {offsets = [1, 0], sizes = [1, 8], strides = [1, 1]} : vector<5x8xf32> to vector<1x8xf32>
      %104 = arith.maximumf %103, %102 : vector<1x8xf32>
      %105 = arith.subf %103, %104 : vector<1x8xf32>
      %106 = math.exp %105 : vector<1x8xf32>
      %107 = arith.subf %102, %104 : vector<1x8xf32>
      %108 = math.exp %107 : vector<1x8xf32>
      %109 = arith.addf %106, %108 : vector<1x8xf32>
      %110 = math.log %109 : vector<1x8xf32>
      %111 = arith.addf %104, %110 : vector<1x8xf32>
      %112 = vector.extract_strided_slice %98 {offsets = [1, 0], sizes = [1, 8], strides = [1, 1]} : vector<4x8xf32> to vector<1x8xf32>
      %113 = arith.addf %111, %112 : vector<1x8xf32>
      %114 = vector.extract_strided_slice %99 {offsets = [2, 0], sizes = [1, 8], strides = [1, 1]} : vector<5x8xf32> to vector<1x8xf32>
      %115 = arith.maximumf %114, %113 : vector<1x8xf32>
      %116 = arith.subf %114, %115 : vector<1x8xf32>
      %117 = math.exp %116 : vector<1x8xf32>
      %118 = arith.subf %113, %115 : vector<1x8xf32>
      %119 = math.exp %118 : vector<1x8xf32>
      %120 = arith.addf %117, %119 : vector<1x8xf32>
      %121 = math.log %120 : vector<1x8xf32>
      %122 = arith.addf %115, %121 : vector<1x8xf32>
      %123 = vector.extract_strided_slice %98 {offsets = [2, 0], sizes = [1, 8], strides = [1, 1]} : vector<4x8xf32> to vector<1x8xf32>
      %124 = arith.addf %122, %123 : vector<1x8xf32>
      %125 = vector.extract_strided_slice %99 {offsets = [3, 0], sizes = [1, 8], strides = [1, 1]} : vector<5x8xf32> to vector<1x8xf32>
      %126 = arith.maximumf %125, %124 : vector<1x8xf32>
      %127 = arith.subf %125, %126 : vector<1x8xf32>
      %128 = math.exp %127 : vector<1x8xf32>
      %129 = arith.subf %124, %126 : vector<1x8xf32>
      %130 = math.exp %129 : vector<1x8xf32>
      %131 = arith.addf %128, %130 : vector<1x8xf32>
      %132 = math.log %131 : vector<1x8xf32>
      %133 = arith.addf %126, %132 : vector<1x8xf32>
      %134 = vector.extract_strided_slice %98 {offsets = [3, 0], sizes = [1, 8], strides = [1, 1]} : vector<4x8xf32> to vector<1x8xf32>
      %135 = arith.addf %133, %134 : vector<1x8xf32>
      %136 = vector.extract_strided_slice %99 {offsets = [4, 0], sizes = [1, 8], strides = [1, 1]} : vector<5x8xf32> to vector<1x8xf32>
      %137 = arith.maximumf %136, %135 : vector<1x8xf32>
      %138 = arith.subf %136, %137 : vector<1x8xf32>
      %139 = math.exp %138 : vector<1x8xf32>
      %140 = arith.subf %135, %137 : vector<1x8xf32>
      %141 = math.exp %140 : vector<1x8xf32>
      %142 = arith.addf %139, %141 : vector<1x8xf32>
      %143 = math.log %142 : vector<1x8xf32>
      %144 = arith.addf %137, %143 : vector<1x8xf32>
      %145 = tpu.concatenate %100, %111, %122, %133, %144 in 0 : vector<1x8xf32>, vector<1x8xf32>, vector<1x8xf32>, vector<1x8xf32>, vector<1x8xf32> -> vector<5x8xf32>
      %146 = vector.broadcast %arg9 : i32 to vector<1x8xi32>
      %147 = arith.cmpi eq, %52, %146 : vector<1x8xi32>
      %148 = vector.broadcast %54 : vector<1x8xi32> to vector<5x8xi32>
      %149 = arith.cmpi eq, %55, %148 : vector<5x8xi32>
      %150 = vector.broadcast %147 : vector<1x8xi1> to vector<5x8xi1>
      %151 = arith.andi %150, %149 : vector<5x8xi1>
      %152 = arith.addf %145, %94 : vector<5x8xf32>
      %cst_44 = arith.constant 0.000000e+00 : f32
      %153 = vector.broadcast %cst_44 : f32 to vector<5x8xf32>
      %154 = arith.select %151, %152, %153 : vector<5x8xi1>, vector<5x8xf32>
      %cst_45 = arith.constant dense<0.000000e+00> : vector<8xf32>
      %155 = vector.multi_reduction <add>, %154, %cst_45 [0] : vector<5x8xf32> to vector<8xf32>
      %156 = vector.shape_cast %155 : vector<8xf32> to vector<1x8xf32>
      %157 = arith.addf %arg12, %156 : vector<1x8xf32>
      scf.yield %145, %94, %157 : vector<5x8xf32>, vector<5x8xf32>, vector<1x8xf32>
    }
    %c7_i32_35 = arith.constant 7 : i32
    %cst_36 = arith.constant 0.000000e+00 : f32
    %87 = vector.broadcast %cst_36 : f32 to vector<1x8xf32>
    %88 = arith.subf %87, %86#2 : vector<1x8xf32>
    %89 = vector.shape_cast %88 : vector<1x8xf32> to vector<1x1x8xf32>
    %c0_37 = arith.constant 0 : index
    %c0_38 = arith.constant 0 : index
    %c0_39 = arith.constant 0 : index
    %90 = vector.load %arg6[%c0_37, %c0_38, %c0_39] : memref<1x1x8xf32, #tpu.memory_space<vmem>>, vector<1x1x8xf32>
    tpu.vector_store %arg6[%c0_37, %c0_38, %c0_39], %89 {strides = array<i32>} : memref<1x1x8xf32, #tpu.memory_space<vmem>>, vector<1x1x8xf32>,
    return
  }
  func.func @transform_0(%arg0: i32) -> (i32, i32, i32) {
    %c0_i32 = arith.constant 0 : i32
    %c0_i32_0 = arith.constant 0 : i32
    %c0_i32_1 = arith.constant 0 : i32
    return %arg0, %c0_i32, %c0_i32_0 : i32, i32, i32
  }
  func.func @transform_1(%arg0: i32) -> (i32, i32, i32) {
    %c0_i32 = arith.constant 0 : i32
    %c0_i32_0 = arith.constant 0 : i32
    %c0_i32_1 = arith.constant 0 : i32
    return %arg0, %c0_i32, %c0_i32_0 : i32, i32, i32
  }
  func.func @transform_2(%arg0: i32) -> (i32, i32) {
    %c0_i32 = arith.constant 0 : i32
    %c0_i32_0 = arith.constant 0 : i32
    return %arg0, %c0_i32 : i32, i32
  }
  func.func @transform_3(%arg0: i32) -> (i32, i32, i32) {
    %c0_i32 = arith.constant 0 : i32
    %c0_i32_0 = arith.constant 0 : i32
    %c0_i32_1 = arith.constant 0 : i32
    return %arg0, %c0_i32, %c0_i32_0 : i32, i32, i32
  }
  func.func @transform_4(%arg0: i32) -> (i32, i32, i32) {
    %c0_i32 = arith.constant 0 : i32
    %c0_i32_0 = arith.constant 0 : i32
    %c0_i32_1 = arith.constant 0 : i32
    return %arg0, %c0_i32, %c0_i32_0 : i32, i32, i32
  }
  func.func @transform_5(%arg0: i32) -> (i32, i32, i32) {
    %c0_i32 = arith.constant 0 : i32
    %c0_i32_0 = arith.constant 0 : i32
    %c0_i32_1 = arith.constant 0 : i32
    return %arg0, %c0_i32, %c0_i32_0 : i32, i32, i32
  }
}

</mosaic_0001>

<llo_original>
// kernel: tpu_custom_call.1
$region0: #{tpu_custom_call.1}
  #allocation0 [shape = 'u32[]', space=smem, size = 0x4, offset = 0x4, fixed_abs, tag = 'smem constant byte address 0x4 - core index']
  #allocation1 [shape = 'u32[144,128]{1,0:T(1,128)}', space=vmem, size = 0x12000, scoped, tag = 'internal scratch']
  #allocation2 [shape = 'f32[8,8,5]{2,1,0:T(8,128)}', space=vmem, size = 0x8000, scoped, tag = 'scratch operand']
  #allocation3 [shape = 'f32[8,8,4]{2,1,0:T(8,128)}', space=vmem, size = 0x8000, scoped, tag = 'scratch operand']
  %s0 = inlined_call_operand.vmem [shape: f32[8,8,32], index: 0, kind: input, shape index: {}]
  %s1 = inlined_call_operand.vmem [shape: f32[8,5,32], index: 1, kind: input, shape index: {}]
  %s2 = inlined_call_operand.vmem [shape: s32[8,4], index: 2, kind: input, shape index: {}]
  %s3 = inlined_call_operand.vmem [shape: s32[1,1,8], index: 3, kind: input, shape index: {}]
  %s4 = inlined_call_operand.vmem [shape: s32[1,1,8], index: 4, kind: input, shape index: {}]
  %s5 = inlined_call_operand.hbm [shape: f32[1,1,8], index: 5, kind: output, shape index: {}]
  %s6 = sld [smem:[#allocation0]]
  $region37: #{tpu_custom_call.1} parent=0
    _
  %s8 = ssub.s32 1, %s6
  %s9 = scalar_select 0, %s8, %s6
  $region1: #{tpu_custom_call.1} parent=0
    #allocation4 [shape = 'u8[512]{0}', space=vmem, size = 0x400, scoped, tag = 'output window, operand 0, single buffered']
    #allocation5 [shape = 's32[1]{0}', space=sflag, size = 0x4, scoped, tag = 'scoped memory for tpu_custom_call.1']
    %10 = vsyncpa [#allocation5], 0
    // Predicated region
    $region2: #{tpu_custom_call.1} parent=1 // pred_check
      _
    $region3: #{tpu_custom_call.1} parent=1 // pred_check_branch
      %12 = sbr.rel (0) target = $region5
    $region4: #{tpu_custom_call.1} parent=1 // pred_region
      _
    $region5: #{tpu_custom_call.1} parent=1 // pred_fallthru
      _
    // Predicated region
    $region6: #{tpu_custom_call.1} parent=1 // pred_check
      _
    $region7: #{tpu_custom_call.1} parent=1 // pred_check_branch
      %14 = sbr.rel (0) target = $region9
    $region8: #{tpu_custom_call.1} parent=1 // pred_region
      _
    $region9: #{tpu_custom_call.1} parent=1 // pred_fallthru
      _
    // Predicated region
    $region10: #{tpu_custom_call.1} parent=1 // pred_check
      _
    $region11: #{tpu_custom_call.1} parent=1 // pred_check_branch
      %16 = sbr.rel (0) target = $region13
    $region12: #{tpu_custom_call.1} parent=1 // pred_region
      _
    $region13: #{tpu_custom_call.1} parent=1 // pred_fallthru
      _
    // Predicated region
    $region14: #{tpu_custom_call.1} parent=1 // pred_check
      _
    $region15: #{tpu_custom_call.1} parent=1 // pred_check_branch
      %18 = sbr.rel (0) target = $region17
    $region16: #{tpu_custom_call.1} parent=1 // pred_region
      _
    $region17: #{tpu_custom_call.1} parent=1 // pred_fallthru
      _
    // Predicated region
    $region18: #{tpu_custom_call.1} parent=1 // pred_check
      _
    $region19: #{tpu_custom_call.1} parent=1 // pred_check_branch
      %20 = sbr.rel (0) target = $region21
    $region20: #{tpu_custom_call.1} parent=1 // pred_region
      _
    $region21: #{tpu_custom_call.1} parent=1 // pred_fallthru
      _
    %v21 = vld [vmem:[%s0] sm:$0xff]
    %v22 = vld [vmem:[%s0 + $0x8] sm:$0xff]
    %v23 = vld [vmem:[%s0 + $0x10] sm:$0xff]
    %v24 = vld [vmem:[%s0 + $0x18] sm:$0xff]
    %v25 = vld [vmem:[%s0 + $0x20] sm:$0xff]
    %v26 = vld [vmem:[%s0 + $0x28] sm:$0xff]
    %v27 = vld [vmem:[%s0 + $0x30] sm:$0xff]
    %v28 = vld [vmem:[%s0 + $0x38] sm:$0xff]
    %v29 = vld [vmem:[%s1] sm:$0x1f]
    %v30 = vld [vmem:[%s1 + $0x8] sm:$0x1f]
    %v31 = vld [vmem:[%s1 + $0x10] sm:$0x1f]
    %v32 = vld [vmem:[%s1 + $0x18] sm:$0x1f]
    %v33 = vld [vmem:[%s1 + $0x20] sm:$0x1f]
    %v34 = vld [vmem:[%s1 + $0x28] sm:$0x1f]
    %v35 = vld [vmem:[%s1 + $0x30] sm:$0x1f]
    %v36 = vld [vmem:[%s1 + $0x38] sm:$0x1f]
    %v37 = vld [vmem:[%s2] sm:$0xff]
    %vm38 = vcmask 261120
    %v39 = vsel %vm38, %v21, -inf
    %40 = vmax.xlane.f32.xlu0 %v39
    %v41 = vpop.xlane.xlu0 %40
    %v42 = vsel %vm38, %v22, -inf
    %43 = vmax.xlane.f32.xlu0 %v42
    %v44 = vpop.xlane.xlu0 %43
    %v45 = vsel %vm38, %v23, -inf
    %46 = vmax.xlane.f32.xlu0 %v45
    %v47 = vpop.xlane.xlu0 %46
    %v48 = vsel %vm38, %v24, -inf
    %49 = vmax.xlane.f32.xlu0 %v48
    %v50 = vpop.xlane.xlu0 %49
    %v51 = vsel %vm38, %v25, -inf
    %52 = vmax.xlane.f32.xlu0 %v51
    %v53 = vpop.xlane.xlu0 %52
    %v54 = vsel %vm38, %v26, -inf
    %55 = vmax.xlane.f32.xlu0 %v54
    %v56 = vpop.xlane.xlu0 %55
    %v57 = vsel %vm38, %v27, -inf
    %58 = vmax.xlane.f32.xlu0 %v57
    %v59 = vpop.xlane.xlu0 %58
    %v60 = vsel %vm38, %v28, -inf
    %61 = vmax.xlane.f32.xlu0 %v60
    %v62 = vpop.xlane.xlu0 %61
    %vm63 = vcmask 258048
    %v64 = vsel %vm63, %v29, -inf
    %65 = vmax.xlane.f32.xlu0 %v64
    %v66 = vpop.xlane.xlu0 %65
    %v67 = vsel %vm63, %v30, -inf
    %68 = vmax.xlane.f32.xlu0 %v67
    %v69 = vpop.xlane.xlu0 %68
    %v70 = vsel %vm63, %v31, -inf
    %71 = vmax.xlane.f32.xlu0 %v70
    %v72 = vpop.xlane.xlu0 %71
    %v73 = vsel %vm63, %v32, -inf
    %74 = vmax.xlane.f32.xlu0 %v73
    %v75 = vpop.xlane.xlu0 %74
    %v76 = vsel %vm63, %v33, -inf
    %77 = vmax.xlane.f32.xlu0 %v76
    %v78 = vpop.xlane.xlu0 %77
    %v79 = vsel %vm63, %v34, -inf
    %80 = vmax.xlane.f32.xlu0 %v79
    %v81 = vpop.xlane.xlu0 %80
    %v82 = vsel %vm63, %v35, -inf
    %83 = vmax.xlane.f32.xlu0 %v82
    %v84 = vpop.xlane.xlu0 %83
    %v85 = vsel %vm63, %v36, -inf
    %86 = vmax.xlane.f32.xlu0 %v85
    %v87 = vpop.xlane.xlu0 %86
    %v88 = vsub.f32 %v21, %v41
    %v89 = vsub.f32 %v22, %v44
    %v90 = vsub.f32 %v23, %v47
    %v91 = vsub.f32 %v24, %v50
    %v92 = vsub.f32 %v25, %v53
    %v93 = vsub.f32 %v26, %v56
    %v94 = vsub.f32 %v27, %v59
    %v95 = vsub.f32 %v28, %v62
    %v96 = vmul.f32 %v88, 1.442695
    %v97 = vpow.pop %v96
    %v98 = vmul.f32 %v89, 1.442695
    %v99 = vpow.pop %v98
    %v100 = vmul.f32 %v90, 1.442695
    %v101 = vpow.pop %v100
    %v102 = vmul.f32 %v91, 1.442695
    %v103 = vpow.pop %v102
    %v104 = vmul.f32 %v92, 1.442695
    %v105 = vpow.pop %v104
    %v106 = vmul.f32 %v93, 1.442695
    %v107 = vpow.pop %v106
    %v108 = vmul.f32 %v94, 1.442695
    %v109 = vpow.pop %v108
    %v110 = vmul.f32 %v95, 1.442695
    %v111 = vpow.pop %v110
    %v112 = vsub.f32 %v29, %v66
    %v113 = vsub.f32 %v30, %v69
    %v114 = vsub.f32 %v31, %v72
    %v115 = vsub.f32 %v32, %v75
    %v116 = vsub.f32 %v33, %v78
    %v117 = vsub.f32 %v34, %v81
    %v118 = vsub.f32 %v35, %v84
    %v119 = vsub.f32 %v36, %v87
    %v120 = vmul.f32 %v112, 1.442695
    %v121 = vpow.pop %v120
    %v122 = vmul.f32 %v113, 1.442695
    %v123 = vpow.pop %v122
    %v124 = vmul.f32 %v114, 1.442695
    %v125 = vpow.pop %v124
    %v126 = vmul.f32 %v115, 1.442695
    %v127 = vpow.pop %v126
    %v128 = vmul.f32 %v116, 1.442695
    %v129 = vpow.pop %v128
    %v130 = vmul.f32 %v117, 1.442695
    %v131 = vpow.pop %v130
    %v132 = vmul.f32 %v118, 1.442695
    %v133 = vpow.pop %v132
    %v134 = vmul.f32 %v119, 1.442695
    %v135 = vpow.pop %v134
    %v137 = vsel %vm38, %v97, 0
    %v140 = vsel %vm38, %v121, 0
    %142 = vmatprep.subr.mxu0 0.0
    %143 = vmatpush1.xpose.msra.mxu0 0.0
    %144 = vmatprep.subr.mxu0 0.0
    %145 = vmatpush1.xpose.msra.mxu0 0.0
    %146 = vmatprep.subr.mxu0 0.0
    %147 = vmatpush1.xpose.msra.mxu0 0.0
    %148 = vmatprep.subr.mxu0 0.0
    %149 = vmatpush1.xpose.msra.mxu0 0.0
    %150 = vmatprep.subr.mxu0 0.0
    %151 = vmatpush1.xpose.msra.mxu0 0.0
    %152 = vmatprep.subr.mxu0 0.0
    %153 = vmatpush1.xpose.msra.mxu0 0.0
    %154 = vmatprep.subr.mxu0 0.0
    %155 = vmatpush1.xpose.msra.mxu0 0.0
    %156 = vmatprep.subr.mxu0 0.0
    %157 = vmatpush1.xpose.msra.mxu0 0.0
    %158 = vmatprep.subr.mxu0 0.0
    %159 = vmatpush1.xpose.msra.mxu0 0.0
    %160 = vmatprep.subr.mxu0 0.0
    %161 = vmatpush1.xpose.msra.mxu0 0.0
    %162 = vmatprep.subr.mxu0 0.0
    %163 = vmatpush1.xpose.msra.mxu0 0.0
    %164 = vmatprep.subr.mxu0 0.0
    %165 = vmatpush1.xpose.msra.mxu0 0.0
    %166 = vmatprep.subr.mxu0 0.0
    %167 = vmatpush1.xpose.msra.mxu0 0.0
    %168 = vmatprep.subr.mxu0 0.0
    %169 = vmatpush1.xpose.msra.mxu0 0.0
    %170 = vmatprep.subr.mxu0 0.0
    %171 = vmatpush1.xpose.msra.mxu0 0.0
    %172 = vmatprep.subr.mxu0 0.0
    %v173 = vand.u32 %v140, 4294901760
    %174 = vmatpush1.xpose.msra.mxu0 %v173
    %175 = vmatprep.subr.mxu0 0.0
    %176 = vmatpush2.xpose.msra.mxu0 0.0
    %177 = vmatprep.subr.mxu0 0.0
    %178 = vmatpush2.xpose.msra.mxu0 0.0
    %179 = vmatprep.subr.mxu0 0.0
    %180 = vmatpush2.xpose.msra.mxu0 0.0
    %181 = vmatprep.subr.mxu0 0.0
    %182 = vmatpush2.xpose.msra.mxu0 0.0
    %183 = vmatprep.subr.mxu0 0.0
    %184 = vmatpush2.xpose.msra.mxu0 0.0
    %185 = vmatprep.subr.mxu0 0.0
    %186 = vmatpush2.xpose.msra.mxu0 0.0
    %187 = vmatprep.subr.mxu0 0.0
    %188 = vmatpush2.xpose.msra.mxu0 0.0
    %189 = vmatprep.subr.mxu0 0.0
    %190 = vmatpush2.xpose.msra.mxu0 0.0
    %191 = vmatprep.subr.mxu0 0.0
    %192 = vmatpush2.xpose.msra.mxu0 0.0
    %193 = vmatprep.subr.mxu0 0.0
    %194 = vmatpush2.xpose.msra.mxu0 0.0
    %195 = vmatprep.subr.mxu0 0.0
    %196 = vmatpush2.xpose.msra.mxu0 0.0
    %197 = vmatprep.subr.mxu0 0.0
    %198 = vmatpush2.xpose.msra.mxu0 0.0
    %199 = vmatprep.subr.mxu0 0.0
    %200 = vmatpush2.xpose.msra.mxu0 0.0
    %201 = vmatprep.subr.mxu0 0.0
    %202 = vmatpush2.xpose.msra.mxu0 0.0
    %203 = vmatprep.subr.mxu0 0.0
    %204 = vmatpush2.xpose.msra.mxu0 0.0
    %205 = vmatprep.subr.mxu0 0.0
    %206 = vmatpush2.xpose.msra.mxu0 0.0
    %207 = vmatprep.mubr.f32.mxu0 0.0
    %v208 = vand.u32 %v137, 4294901760
    %v209 = vsub.f32 %v137, %v208
    %v210 = vand.u32 %v209, 4294901760
    %v211 = vsub.f32 %v209, %v210
    %v212 = vand.u32 %v211, 4294901760
    %213 = vmatmul.mubr.f32.gmra.mxu0 %v212
    %v214 = vpop.f32.mrf.mxu0
    %v215 = vadd.f32 0.0, %v214
    %v216 = vpop.f32.mrf.mxu0
    %217 = vdwg.mxu0
    %218 = vmatprep.subr.mxu0 0.0
    %219 = vmatpush1.xpose.msra.mxu0 0.0
    %220 = vmatprep.subr.mxu0 0.0
    %221 = vmatpush1.xpose.msra.mxu0 0.0
    %222 = vmatprep.subr.mxu0 0.0
    %223 = vmatpush1.xpose.msra.mxu0 0.0
    %224 = vmatprep.subr.mxu0 0.0
    %225 = vmatpush1.xpose.msra.mxu0 0.0
    %226 = vmatprep.subr.mxu0 0.0
    %227 = vmatpush1.xpose.msra.mxu0 0.0
    %228 = vmatprep.subr.mxu0 0.0
    %229 = vmatpush1.xpose.msra.mxu0 0.0
    %230 = vmatprep.subr.mxu0 0.0
    %231 = vmatpush1.xpose.msra.mxu0 0.0
    %232 = vmatprep.subr.mxu0 0.0
    %233 = vmatpush1.xpose.msra.mxu0 0.0
    %234 = vmatprep.subr.mxu0 0.0
    %235 = vmatpush1.xpose.msra.mxu0 0.0
    %236 = vmatprep.subr.mxu0 0.0
    %237 = vmatpush1.xpose.msra.mxu0 0.0
    %238 = vmatprep.subr.mxu0 0.0
    %239 = vmatpush1.xpose.msra.mxu0 0.0
    %240 = vmatprep.subr.mxu0 0.0
    %241 = vmatpush1.xpose.msra.mxu0 0.0
    %242 = vmatprep.subr.mxu0 0.0
    %243 = vmatpush1.xpose.msra.mxu0 0.0
    %244 = vmatprep.subr.mxu0 0.0
    %245 = vmatpush1.xpose.msra.mxu0 0.0
    %246 = vmatprep.subr.mxu0 0.0
    %247 = vmatpush1.xpose.msra.mxu0 0.0
    %248 = vmatprep.subr.mxu0 0.0
    %v249 = vand.u32 %v140, 4294901760
    %v250 = vsub.f32 %v140, %v249
    %v251 = vand.u32 %v250, 4294901760
    %v252 = vsub.f32 %v250, %v251
    %v253 = vand.u32 %v252, 4294901760
    %254 = vmatpush1.xpose.msra.mxu0 %v253
    %255 = vmatprep.subr.mxu0 0.0
    %256 = vmatpush2.xpose.msra.mxu0 0.0
    %257 = vmatprep.subr.mxu0 0.0
    %258 = vmatpush2.xpose.msra.mxu0 0.0
    %259 = vmatprep.subr.mxu0 0.0
    %260 = vmatpush2.xpose.msra.mxu0 0.0
    %261 = vmatprep.subr.mxu0 0.0
    %262 = vmatpush2.xpose.msra.mxu0 0.0
    %263 = vmatprep.subr.mxu0 0.0
    %264 = vmatpush2.xpose.msra.mxu0 0.0
    %265 = vmatprep.subr.mxu0 0.0
    %266 = vmatpush2.xpose.msra.mxu0 0.0
    %267 = vmatprep.subr.mxu0 0.0
    %268 = vmatpush2.xpose.msra.mxu0 0.0
    %269 = vmatprep.subr.mxu0 0.0
    %270 = vmatpush2.xpose.msra.mxu0 0.0
    %271 = vmatprep.subr.mxu0 0.0
    %272 = vmatpush2.xpose.msra.mxu0 0.0
    %273 = vmatprep.subr.mxu0 0.0
    %274 = vmatpush2.xpose.msra.mxu0 0.0
    %275 = vmatprep.subr.mxu0 0.0
    %276 = vmatpush2.xpose.msra.mxu0 0.0
    %277 = vmatprep.subr.mxu0 0.0
    %278 = vmatpush2.xpose.msra.mxu0 0.0
    %279 = vmatprep.subr.mxu0 0.0
    %280 = vmatpush2.xpose.msra.mxu0 0.0
    %281 = vmatprep.subr.mxu0 0.0
    %282 = vmatpush2.xpose.msra.mxu0 0.0
    %283 = vmatprep.subr.mxu0 0.0
    %284 = vmatpush2.xpose.msra.mxu0 0.0
    %285 = vmatprep.subr.mxu0 0.0
    %286 = vmatpush2.xpose.msra.mxu0 0.0
    %287 = vmatprep.mubr.f32.mxu0 0.0
    %v288 = vand.u32 %v137, 4294901760
    %289 = vmatmul.mubr.f32.gmra.mxu0 %v288
    %v290 = vpop.f32.mrf.mxu0
    %v291 = vadd.f32 %v215, %v290
    %v292 = vpop.f32.mrf.mxu0
    %293 = vdwg.mxu0
    %294 = vmatprep.subr.mxu0 0.0
    %295 = vmatpush1.xpose.msra.mxu0 0.0
    %296 = vmatprep.subr.mxu0 0.0
    %297 = vmatpush1.xpose.msra.mxu0 0.0
    %298 = vmatprep.subr.mxu0 0.0
    %299 = vmatpush1.xpose.msra.mxu0 0.0
    %300 = vmatprep.subr.mxu0 0.0
    %301 = vmatpush1.xpose.msra.mxu0 0.0
    %302 = vmatprep.subr.mxu0 0.0
    %303 = vmatpush1.xpose.msra.mxu0 0.0
    %304 = vmatprep.subr.mxu0 0.0
    %305 = vmatpush1.xpose.msra.mxu0 0.0
    %306 = vmatprep.subr.mxu0 0.0
    %307 = vmatpush1.xpose.msra.mxu0 0.0
    %308 = vmatprep.subr.mxu0 0.0
    %309 = vmatpush1.xpose.msra.mxu0 0.0
    %310 = vmatprep.subr.mxu0 0.0
    %311 = vmatpush1.xpose.msra.mxu0 0.0
    %312 = vmatprep.subr.mxu0 0.0
    %313 = vmatpush1.xpose.msra.mxu0 0.0
    %314 = vmatprep.subr.mxu0 0.0
    %315 = vmatpush1.xpose.msra.mxu0 0.0
    %316 = vmatprep.subr.mxu0 0.0
    %317 = vmatpush1.xpose.msra.mxu0 0.0
    %318 = vmatprep.subr.mxu0 0.0
    %319 = vmatpush1.xpose.msra.mxu0 0.0
    %320 = vmatprep.subr.mxu0 0.0
    %321 = vmatpush1.xpose.msra.mxu0 0.0
    %322 = vmatprep.subr.mxu0 0.0
    %323 = vmatpush1.xpose.msra.mxu0 0.0
    %324 = vmatprep.subr.mxu0 0.0
    %v325 = vand.u32 %v140, 4294901760
    %v326 = vsub.f32 %v140, %v325
    %327 = vmatpush1.xpose.msra.mxu0 %v326
    %328 = vmatprep.subr.mxu0 0.0
    %329 = vmatpush2.xpose.msra.mxu0 0.0
    %330 = vmatprep.subr.mxu0 0.0
    %331 = vmatpush2.xpose.msra.mxu0 0.0
    %332 = vmatprep.subr.mxu0 0.0
    %333 = vmatpush2.xpose.msra.mxu0 0.0
    %334 = vmatprep.subr.mxu0 0.0
    %335 = vmatpush2.xpose.msra.mxu0 0.0
    %336 = vmatprep.subr.mxu0 0.0
    %337 = vmatpush2.xpose.msra.mxu0 0.0
    %338 = vmatprep.subr.mxu0 0.0
    %339 = vmatpush2.xpose.msra.mxu0 0.0
    %340 = vmatprep.subr.mxu0 0.0
    %341 = vmatpush2.xpose.msra.mxu0 0.0
    %342 = vmatprep.subr.mxu0 0.0
    %343 = vmatpush2.xpose.msra.mxu0 0.0
    %344 = vmatprep.subr.mxu0 0.0
    %345 = vmatpush2.xpose.msra.mxu0 0.0
    %346 = vmatprep.subr.mxu0 0.0
    %347 = vmatpush2.xpose.msra.mxu0 0.0
    %348 = vmatprep.subr.mxu0 0.0
    %349 = vmatpush2.xpose.msra.mxu0 0.0
    %350 = vmatprep.subr.mxu0 0.0
    %351 = vmatpush2.xpose.msra.mxu0 0.0
    %352 = vmatprep.subr.mxu0 0.0
    %353 = vmatpush2.xpose.msra.mxu0 0.0
    %354 = vmatprep.subr.mxu0 0.0
    %355 = vmatpush2.xpose.msra.mxu0 0.0
    %356 = vmatprep.subr.mxu0 0.0
    %357 = vmatpush2.xpose.msra.mxu0 0.0
    %358 = vmatprep.subr.mxu0 0.0
    %359 = vmatpush2.xpose.msra.mxu0 0.0
    %360 = vmatprep.mubr.f32.mxu0 0.0
    %v361 = vand.u32 %v137, 4294901760
    %v362 = vsub.f32 %v137, %v361
    %363 = vmatmul.mubr.f32.gmra.mxu0 %v362
    %v364 = vpop.f32.mrf.mxu0
    %v365 = vadd.f32 %v291, %v364
    %v366 = vpop.f32.mrf.mxu0
    %367 = vdwg.mxu0
    %368 = vmatprep.subr.mxu0 0.0
    %369 = vmatpush1.xpose.msra.mxu0 0.0
    %370 = vmatprep.subr.mxu0 0.0
    %371 = vmatpush1.xpose.msra.mxu0 0.0
    %372 = vmatprep.subr.mxu0 0.0
    %373 = vmatpush1.xpose.msra.mxu0 0.0
    %374 = vmatprep.subr.mxu0 0.0
    %375 = vmatpush1.xpose.msra.mxu0 0.0
    %376 = vmatprep.subr.mxu0 0.0
    %377 = vmatpush1.xpose.msra.mxu0 0.0
    %378 = vmatprep.subr.mxu0 0.0
    %379 = vmatpush1.xpose.msra.mxu0 0.0
    %380 = vmatprep.subr.mxu0 0.0
    %381 = vmatpush1.xpose.msra.mxu0 0.0
    %382 = vmatprep.subr.mxu0 0.0
    %383 = vmatpush1.xpose.msra.mxu0 0.0
    %384 = vmatprep.subr.mxu0 0.0
    %385 = vmatpush1.xpose.msra.mxu0 0.0
    %386 = vmatprep.subr.mxu0 0.0
    %387 = vmatpush1.xpose.msra.mxu0 0.0
    %388 = vmatprep.subr.mxu0 0.0
    %389 = vmatpush1.xpose.msra.mxu0 0.0
    %390 = vmatprep.subr.mxu0 0.0
    %391 = vmatpush1.xpose.msra.mxu0 0.0
    %392 = vmatprep.subr.mxu0 0.0
    %393 = vmatpush1.xpose.msra.mxu0 0.0
    %394 = vmatprep.subr.mxu0 0.0
    %395 = vmatpush1.xpose.msra.mxu0 0.0
    %396 = vmatprep.subr.mxu0 0.0
    %397 = vmatpush1.xpose.msra.mxu0 0.0
    %398 = vmatprep.subr.mxu0 0.0
    %v399 = vand.u32 %v140, 4294901760
    %400 = vmatpush1.xpose.msra.mxu0 %v399
    %401 = vmatprep.subr.mxu0 0.0
    %402 = vmatpush2.xpose.msra.mxu0 0.0
    %403 = vmatprep.subr.mxu0 0.0
    %404 = vmatpush2.xpose.msra.mxu0 0.0
    %405 = vmatprep.subr.mxu0 0.0
    %406 = vmatpush2.xpose.msra.mxu0 0.0
    %407 = vmatprep.subr.mxu0 0.0
    %408 = vmatpush2.xpose.msra.mxu0 0.0
    %409 = vmatprep.subr.mxu0 0.0
    %410 = vmatpush2.xpose.msra.mxu0 0.0
    %411 = vmatprep.subr.mxu0 0.0
    %412 = vmatpush2.xpose.msra.mxu0 0.0
    %413 = vmatprep.subr.mxu0 0.0
    %414 = vmatpush2.xpose.msra.mxu0 0.0
    %415 = vmatprep.subr.mxu0 0.0
    %416 = vmatpush2.xpose.msra.mxu0 0.0
    %417 = vmatprep.subr.mxu0 0.0
    %418 = vmatpush2.xpose.msra.mxu0 0.0
    %419 = vmatprep.subr.mxu0 0.0
    %420 = vmatpush2.xpose.msra.mxu0 0.0
    %421 = vmatprep.subr.mxu0 0.0
    %422 = vmatpush2.xpose.msra.mxu0 0.0
    %423 = vmatprep.subr.mxu0 0.0
    %424 = vmatpush2.xpose.msra.mxu0 0.0
    %425 = vmatprep.subr.mxu0 0.0
    %426 = vmatpush2.xpose.msra.mxu0 0.0
    %427 = vmatprep.subr.mxu0 0.0
    %428 = vmatpush2.xpose.msra.mxu0 0.0
    %429 = vmatprep.subr.mxu0 0.0
    %430 = vmatpush2.xpose.msra.mxu0 0.0
    %431 = vmatprep.subr.mxu0 0.0
    %432 = vmatpush2.xpose.msra.mxu0 0.0
    %433 = vmatprep.mubr.f32.mxu0 0.0
    %v434 = vand.u32 %v137, 4294901760
    %v435 = vsub.f32 %v137, %v434
    %v436 = vand.u32 %v435, 4294901760
    %437 = vmatmul.mubr.f32.gmra.mxu0 %v436
    %v438 = vpop.f32.mrf.mxu0
    %v439 = vadd.f32 %v365, %v438
    %v440 = vpop.f32.mrf.mxu0
    %441 = vdwg.mxu0
    %442 = vmatprep.subr.mxu0 0.0
    %443 = vmatpush1.xpose.msra.mxu0 0.0
    %444 = vmatprep.subr.mxu0 0.0
    %445 = vmatpush1.xpose.msra.mxu0 0.0
    %446 = vmatprep.subr.mxu0 0.0
    %447 = vmatpush1.xpose.msra.mxu0 0.0
    %448 = vmatprep.subr.mxu0 0.0
    %449 = vmatpush1.xpose.msra.mxu0 0.0
    %450 = vmatprep.subr.mxu0 0.0
    %451 = vmatpush1.xpose.msra.mxu0 0.0
    %452 = vmatprep.subr.mxu0 0.0
    %453 = vmatpush1.xpose.msra.mxu0 0.0
    %454 = vmatprep.subr.mxu0 0.0
    %455 = vmatpush1.xpose.msra.mxu0 0.0
    %456 = vmatprep.subr.mxu0 0.0
    %457 = vmatpush1.xpose.msra.mxu0 0.0
    %458 = vmatprep.subr.mxu0 0.0
    %459 = vmatpush1.xpose.msra.mxu0 0.0
    %460 = vmatprep.subr.mxu0 0.0
    %461 = vmatpush1.xpose.msra.mxu0 0.0
    %462 = vmatprep.subr.mxu0 0.0
    %463 = vmatpush1.xpose.msra.mxu0 0.0
    %464 = vmatprep.subr.mxu0 0.0
    %465 = vmatpush1.xpose.msra.mxu0 0.0
    %466 = vmatprep.subr.mxu0 0.0
    %467 = vmatpush1.xpose.msra.mxu0 0.0
    %468 = vmatprep.subr.mxu0 0.0
    %469 = vmatpush1.xpose.msra.mxu0 0.0
    %470 = vmatprep.subr.mxu0 0.0
    %471 = vmatpush1.xpose.msra.mxu0 0.0
    %472 = vmatprep.subr.mxu0 0.0
    %v473 = vand.u32 %v140, 4294901760
    %v474 = vsub.f32 %v140, %v473
    %v475 = vand.u32 %v474, 4294901760
    %476 = vmatpush1.xpose.msra.mxu0 %v475
    %477 = vmatprep.subr.mxu0 0.0
    %478 = vmatpush2.xpose.msra.mxu0 0.0
    %479 = vmatprep.subr.mxu0 0.0
    %480 = vmatpush2.xpose.msra.mxu0 0.0
    %481 = vmatprep.subr.mxu0 0.0
    %482 = vmatpush2.xpose.msra.mxu0 0.0
    %483 = vmatprep.subr.mxu0 0.0
    %484 = vmatpush2.xpose.msra.mxu0 0.0
    %485 = vmatprep.subr.mxu0 0.0
    %486 = vmatpush2.xpose.msra.mxu0 0.0
    %487 = vmatprep.subr.mxu0 0.0
    %488 = vmatpush2.xpose.msra.mxu0 0.0
    %489 = vmatprep.subr.mxu0 0.0
    %490 = vmatpush2.xpose.msra.mxu0 0.0
    %491 = vmatprep.subr.mxu0 0.0
    %492 = vmatpush2.xpose.msra.mxu0 0.0
    %493 = vmatprep.subr.mxu0 0.0
    %494 = vmatpush2.xpose.msra.mxu0 0.0
    %495 = vmatprep.subr.mxu0 0.0
    %496 = vmatpush2.xpose.msra.mxu0 0.0
    %497 = vmatprep.subr.mxu0 0.0
    %498 = vmatpush2.xpose.msra.mxu0 0.0
    %499 = vmatprep.subr.mxu0 0.0
    %500 = vmatpush2.xpose.msra.mxu0 0.0
    %501 = vmatprep.subr.mxu0 0.0
    %502 = vmatpush2.xpose.msra.mxu0 0.0
    %503 = vmatprep.subr.mxu0 0.0
    %504 = vmatpush2.xpose.msra.mxu0 0.0
    %505 = vmatprep.subr.mxu0 0.0
    %506 = vmatpush2.xpose.msra.mxu0 0.0
    %507 = vmatprep.subr.mxu0 0.0
    %508 = vmatpush2.xpose.msra.mxu0 0.0
    %509 = vmatprep.mubr.f32.mxu0 0.0
    %v510 = vand.u32 %v137, 4294901760
    %511 = vmatmul.mubr.f32.gmra.mxu0 %v510
    %v512 = vpop.f32.mrf.mxu0
    %v513 = vadd.f32 %v439, %v512
    %v514 = vpop.f32.mrf.mxu0
    %515 = vdwg.mxu0
    %516 = vmatprep.subr.mxu0 0.0
    %517 = vmatpush1.xpose.msra.mxu0 0.0
    %518 = vmatprep.subr.mxu0 0.0
    %519 = vmatpush1.xpose.msra.mxu0 0.0
    %520 = vmatprep.subr.mxu0 0.0
    %521 = vmatpush1.xpose.msra.mxu0 0.0
    %522 = vmatprep.subr.mxu0 0.0
    %523 = vmatpush1.xpose.msra.mxu0 0.0
    %524 = vmatprep.subr.mxu0 0.0
    %525 = vmatpush1.xpose.msra.mxu0 0.0
    %526 = vmatprep.subr.mxu0 0.0
    %527 = vmatpush1.xpose.msra.mxu0 0.0
    %528 = vmatprep.subr.mxu0 0.0
    %529 = vmatpush1.xpose.msra.mxu0 0.0
    %530 = vmatprep.subr.mxu0 0.0
    %531 = vmatpush1.xpose.msra.mxu0 0.0
    %532 = vmatprep.subr.mxu0 0.0
    %533 = vmatpush1.xpose.msra.mxu0 0.0
    %534 = vmatprep.subr.mxu0 0.0
    %535 = vmatpush1.xpose.msra.mxu0 0.0
    %536 = vmatprep.subr.mxu0 0.0
    %537 = vmatpush1.xpose.msra.mxu0 0.0
    %538 = vmatprep.subr.mxu0 0.0
    %539 = vmatpush1.xpose.msra.mxu0 0.0
    %540 = vmatprep.subr.mxu0 0.0
    %541 = vmatpush1.xpose.msra.mxu0 0.0
    %542 = vmatprep.subr.mxu0 0.0
    %543 = vmatpush1.xpose.msra.mxu0 0.0
    %544 = vmatprep.subr.mxu0 0.0
    %545 = vmatpush1.xpose.msra.mxu0 0.0
    %546 = vmatprep.subr.mxu0 0.0
    %v547 = vand.u32 %v140, 4294901760
    %548 = vmatpush1.xpose.msra.mxu0 %v547
    %549 = vmatprep.subr.mxu0 0.0
    %550 = vmatpush2.xpose.msra.mxu0 0.0
    %551 = vmatprep.subr.mxu0 0.0
    %552 = vmatpush2.xpose.msra.mxu0 0.0
    %553 = vmatprep.subr.mxu0 0.0
    %554 = vmatpush2.xpose.msra.mxu0 0.0
    %555 = vmatprep.subr.mxu0 0.0
    %556 = vmatpush2.xpose.msra.mxu0 0.0
    %557 = vmatprep.subr.mxu0 0.0
    %558 = vmatpush2.xpose.msra.mxu0 0.0
    %559 = vmatprep.subr.mxu0 0.0
    %560 = vmatpush2.xpose.msra.mxu0 0.0
    %561 = vmatprep.subr.mxu0 0.0
    %562 = vmatpush2.xpose.msra.mxu0 0.0
    %563 = vmatprep.subr.mxu0 0.0
    %564 = vmatpush2.xpose.msra.mxu0 0.0
    %565 = vmatprep.subr.mxu0 0.0
    %566 = vmatpush2.xpose.msra.mxu0 0.0
    %567 = vmatprep.subr.mxu0 0.0
    %568 = vmatpush2.xpose.msra.mxu0 0.0
    %569 = vmatprep.subr.mxu0 0.0
    %570 = vmatpush2.xpose.msra.mxu0 0.0
    %571 = vmatprep.subr.mxu0 0.0
    %572 = vmatpush2.xpose.msra.mxu0 0.0
    %573 = vmatprep.subr.mxu0 0.0
    %574 = vmatpush2.xpose.msra.mxu0 0.0
    %575 = vmatprep.subr.mxu0 0.0
    %576 = vmatpush2.xpose.msra.mxu0 0.0
    %577 = vmatprep.subr.mxu0 0.0
    %578 = vmatpush2.xpose.msra.mxu0 0.0
    %579 = vmatprep.subr.mxu0 0.0
    %580 = vmatpush2.xpose.msra.mxu0 0.0
    %581 = vmatprep.mubr.f32.mxu0 0.0
    %v582 = vand.u32 %v137, 4294901760
    %583 = vmatmul.mubr.f32.gmra.mxu0 %v582
    %v584 = vpop.f32.mrf.mxu0
    %v585 = vadd.f32 %v513, %v584
    %v586 = vpop.f32.mrf.mxu0
    %587 = vdwg.mxu0
    %v589 = vsel %vm38, %v99, 0
    %v592 = vsel %vm38, %v123, 0
    %594 = vmatprep.subr.mxu0 0.0
    %595 = vmatpush1.xpose.msra.mxu0 0.0
    %596 = vmatprep.subr.mxu0 0.0
    %597 = vmatpush1.xpose.msra.mxu0 0.0
    %598 = vmatprep.subr.mxu0 0.0
    %599 = vmatpush1.xpose.msra.mxu0 0.0
    %600 = vmatprep.subr.mxu0 0.0
    %601 = vmatpush1.xpose.msra.mxu0 0.0
    %602 = vmatprep.subr.mxu0 0.0
    %603 = vmatpush1.xpose.msra.mxu0 0.0
    %604 = vmatprep.subr.mxu0 0.0
    %605 = vmatpush1.xpose.msra.mxu0 0.0
    %606 = vmatprep.subr.mxu0 0.0
    %607 = vmatpush1.xpose.msra.mxu0 0.0
    %608 = vmatprep.subr.mxu0 0.0
    %609 = vmatpush1.xpose.msra.mxu0 0.0
    %610 = vmatprep.subr.mxu0 0.0
    %611 = vmatpush1.xpose.msra.mxu0 0.0
    %612 = vmatprep.subr.mxu0 0.0
    %613 = vmatpush1.xpose.msra.mxu0 0.0
    %614 = vmatprep.subr.mxu0 0.0
    %615 = vmatpush1.xpose.msra.mxu0 0.0
    %616 = vmatprep.subr.mxu0 0.0
    %617 = vmatpush1.xpose.msra.mxu0 0.0
    %618 = vmatprep.subr.mxu0 0.0
    %619 = vmatpush1.xpose.msra.mxu0 0.0
    %620 = vmatprep.subr.mxu0 0.0
    %621 = vmatpush1.xpose.msra.mxu0 0.0
    %622 = vmatprep.subr.mxu0 0.0
    %623 = vmatpush1.xpose.msra.mxu0 0.0
    %624 = vmatprep.subr.mxu0 0.0
    %v625 = vand.u32 %v592, 4294901760
    %626 = vmatpush1.xpose.msra.mxu0 %v625
    %627 = vmatprep.subr.mxu0 0.0
    %628 = vmatpush2.xpose.msra.mxu0 0.0
    %629 = vmatprep.subr.mxu0 0.0
    %630 = vmatpush2.xpose.msra.mxu0 0.0
    %631 = vmatprep.subr.mxu0 0.0
    %632 = vmatpush2.xpose.msra.mxu0 0.0
    %633 = vmatprep.subr.mxu0 0.0
    %634 = vmatpush2.xpose.msra.mxu0 0.0
    %635 = vmatprep.subr.mxu0 0.0
    %636 = vmatpush2.xpose.msra.mxu0 0.0
    %637 = vmatprep.subr.mxu0 0.0
    %638 = vmatpush2.xpose.msra.mxu0 0.0
    %639 = vmatprep.subr.mxu0 0.0
    %640 = vmatpush2.xpose.msra.mxu0 0.0
    %641 = vmatprep.subr.mxu0 0.0
    %642 = vmatpush2.xpose.msra.mxu0 0.0
    %643 = vmatprep.subr.mxu0 0.0
    %644 = vmatpush2.xpose.msra.mxu0 0.0
    %645 = vmatprep.subr.mxu0 0.0
    %646 = vmatpush2.xpose.msra.mxu0 0.0
    %647 = vmatprep.subr.mxu0 0.0
    %648 = vmatpush2.xpose.msra.mxu0 0.0
    %649 = vmatprep.subr.mxu0 0.0
    %650 = vmatpush2.xpose.msra.mxu0 0.0
    %651 = vmatprep.subr.mxu0 0.0
    %652 = vmatpush2.xpose.msra.mxu0 0.0
    %653 = vmatprep.subr.mxu0 0.0
    %654 = vmatpush2.xpose.msra.mxu0 0.0
    %655 = vmatprep.subr.mxu0 0.0
    %656 = vmatpush2.xpose.msra.mxu0 0.0
    %657 = vmatprep.subr.mxu0 0.0
    %658 = vmatpush2.xpose.msra.mxu0 0.0
    %659 = vmatprep.mubr.f32.mxu0 0.0
    %v660 = vand.u32 %v589, 4294901760
    %v661 = vsub.f32 %v589, %v660
    %v662 = vand.u32 %v661, 4294901760
    %v663 = vsub.f32 %v661, %v662
    %v664 = vand.u32 %v663, 4294901760
    %665 = vmatmul.mubr.f32.gmra.mxu0 %v664
    %v666 = vpop.f32.mrf.mxu0
    %v667 = vadd.f32 0.0, %v666
    %v668 = vpop.f32.mrf.mxu0
    %669 = vdwg.mxu0
    %670 = vmatprep.subr.mxu0 0.0
    %671 = vmatpush1.xpose.msra.mxu0 0.0
    %672 = vmatprep.subr.mxu0 0.0
    %673 = vmatpush1.xpose.msra.mxu0 0.0
    %674 = vmatprep.subr.mxu0 0.0
    %675 = vmatpush1.xpose.msra.mxu0 0.0
    %676 = vmatprep.subr.mxu0 0.0
    %677 = vmatpush1.xpose.msra.mxu0 0.0
    %678 = vmatprep.subr.mxu0 0.0
    %679 = vmatpush1.xpose.msra.mxu0 0.0
    %680 = vmatprep.subr.mxu0 0.0
    %681 = vmatpush1.xpose.msra.mxu0 0.0
    %682 = vmatprep.subr.mxu0 0.0
    %683 = vmatpush1.xpose.msra.mxu0 0.0
    %684 = vmatprep.subr.mxu0 0.0
    %685 = vmatpush1.xpose.msra.mxu0 0.0
    %686 = vmatprep.subr.mxu0 0.0
    %687 = vmatpush1.xpose.msra.mxu0 0.0
    %688 = vmatprep.subr.mxu0 0.0
    %689 = vmatpush1.xpose.msra.mxu0 0.0
    %690 = vmatprep.subr.mxu0 0.0
    %691 = vmatpush1.xpose.msra.mxu0 0.0
    %692 = vmatprep.subr.mxu0 0.0
    %693 = vmatpush1.xpose.msra.mxu0 0.0
    %694 = vmatprep.subr.mxu0 0.0
    %695 = vmatpush1.xpose.msra.mxu0 0.0
    %696 = vmatprep.subr.mxu0 0.0
    %697 = vmatpush1.xpose.msra.mxu0 0.0
    %698 = vmatprep.subr.mxu0 0.0
    %699 = vmatpush1.xpose.msra.mxu0 0.0
    %700 = vmatprep.subr.mxu0 0.0
    %v701 = vand.u32 %v592, 4294901760
    %v702 = vsub.f32 %v592, %v701
    %v703 = vand.u32 %v702, 4294901760
    %v704 = vsub.f32 %v702, %v703
    %v705 = vand.u32 %v704, 4294901760
    %706 = vmatpush1.xpose.msra.mxu0 %v705
    %707 = vmatprep.subr.mxu0 0.0
    %708 = vmatpush2.xpose.msra.mxu0 0.0
    %709 = vmatprep.subr.mxu0 0.0
    %710 = vmatpush2.xpose.msra.mxu0 0.0
    %711 = vmatprep.subr.mxu0 0.0
    %712 = vmatpush2.xpose.msra.mxu0 0.0
    %713 = vmatprep.subr.mxu0 0.0
    %714 = vmatpush2.xpose.msra.mxu0 0.0
    %715 = vmatprep.subr.mxu0 0.0
    %716 = vmatpush2.xpose.msra.mxu0 0.0
    %717 = vmatprep.subr.mxu0 0.0
    %718 = vmatpush2.xpose.msra.mxu0 0.0
    %719 = vmatprep.subr.mxu0 0.0
    %720 = vmatpush2.xpose.msra.mxu0 0.0
    %721 = vmatprep.subr.mxu0 0.0
    %722 = vmatpush2.xpose.msra.mxu0 0.0
    %723 = vmatprep.subr.mxu0 0.0
    %724 = vmatpush2.xpose.msra.mxu0 0.0
    %725 = vmatprep.subr.mxu0 0.0
    %726 = vmatpush2.xpose.msra.mxu0 0.0
    %727 = vmatprep.subr.mxu0 0.0
    %728 = vmatpush2.xpose.msra.mxu0 0.0
    %729 = vmatprep.subr.mxu0 0.0
    %730 = vmatpush2.xpose.msra.mxu0 0.0
    %731 = vmatprep.subr.mxu0 0.0
    %732 = vmatpush2.xpose.msra.mxu0 0.0
    %733 = vmatprep.subr.mxu0 0.0
    %734 = vmatpush2.xpose.msra.mxu0 0.0
    %735 = vmatprep.subr.mxu0 0.0
    %736 = vmatpush2.xpose.msra.mxu0 0.0
    %737 = vmatprep.subr.mxu0 0.0
    %738 = vmatpush2.xpose.msra.mxu0 0.0
    %739 = vmatprep.mubr.f32.mxu0 0.0
    %v740 = vand.u32 %v589, 4294901760
    %741 = vmatmul.mubr.f32.gmra.mxu0 %v740
    %v742 = vpop.f32.mrf.mxu0
    %v743 = vadd.f32 %v667, %v742
    %v744 = vpop.f32.mrf.mxu0
    %745 = vdwg.mxu0
    %746 = vmatprep.subr.mxu0 0.0
    %747 = vmatpush1.xpose.msra.mxu0 0.0
    %748 = vmatprep.subr.mxu0 0.0
    %749 = vmatpush1.xpose.msra.mxu0 0.0
    %750 = vmatprep.subr.mxu0 0.0
    %751 = vmatpush1.xpose.msra.mxu0 0.0
    %752 = vmatprep.subr.mxu0 0.0
    %753 = vmatpush1.xpose.msra.mxu0 0.0
    %754 = vmatprep.subr.mxu0 0.0
    %755 = vmatpush1.xpose.msra.mxu0 0.0
    %756 = vmatprep.subr.mxu0 0.0
    %757 = vmatpush1.xpose.msra.mxu0 0.0
    %758 = vmatprep.subr.mxu0 0.0
    %759 = vmatpush1.xpose.msra.mxu0 0.0
    %760 = vmatprep.subr.mxu0 0.0
    %761 = vmatpush1.xpose.msra.mxu0 0.0
    %762 = vmatprep.subr.mxu0 0.0
    %763 = vmatpush1.xpose.msra.mxu0 0.0
    %764 = vmatprep.subr.mxu0 0.0
    %765 = vmatpush1.xpose.msra.mxu0 0.0
    %766 = vmatprep.subr.mxu0 0.0
    %767 = vmatpush1.xpose.msra.mxu0 0.0
    %768 = vmatprep.subr.mxu0 0.0
    %769 = vmatpush1.xpose.msra.mxu0 0.0
    %770 = vmatprep.subr.mxu0 0.0
    %771 = vmatpush1.xpose.msra.mxu0 0.0
    %772 = vmatprep.subr.mxu0 0.0
    %773 = vmatpush1.xpose.msra.mxu0 0.0
    %774 = vmatprep.subr.mxu0 0.0
    %775 = vmatpush1.xpose.msra.mxu0 0.0
    %776 = vmatprep.subr.mxu0 0.0
    %v777 = vand.u32 %v592, 4294901760
    %v778 = vsub.f32 %v592, %v777
    %779 = vmatpush1.xpose.msra.mxu0 %v778
    %780 = vmatprep.subr.mxu0 0.0
    %781 = vmatpush2.xpose.msra.mxu0 0.0
    %782 = vmatprep.subr.mxu0 0.0
    %783 = vmatpush2.xpose.msra.mxu0 0.0
    %784 = vmatprep.subr.mxu0 0.0
    %785 = vmatpush2.xpose.msra.mxu0 0.0
    %786 = vmatprep.subr.mxu0 0.0
    %787 = vmatpush2.xpose.msra.mxu0 0.0
    %788 = vmatprep.subr.mxu0 0.0
    %789 = vmatpush2.xpose.msra.mxu0 0.0
    %790 = vmatprep.subr.mxu0 0.0
    %791 = vmatpush2.xpose.msra.mxu0 0.0
    %792 = vmatprep.subr.mxu0 0.0
    %793 = vmatpush2.xpose.msra.mxu0 0.0
    %794 = vmatprep.subr.mxu0 0.0
    %795 = vmatpush2.xpose.msra.mxu0 0.0
    %796 = vmatprep.subr.mxu0 0.0
    %797 = vmatpush2.xpose.msra.mxu0 0.0
    %798 = vmatprep.subr.mxu0 0.0
    %799 = vmatpush2.xpose.msra.mxu0 0.0
    %800 = vmatprep.subr.mxu0 0.0
    %801 = vmatpush2.xpose.msra.mxu0 0.0
    %802 = vmatprep.subr.mxu0 0.0
    %803 = vmatpush2.xpose.msra.mxu0 0.0
    %804 = vmatprep.subr.mxu0 0.0
    %805 = vmatpush2.xpose.msra.mxu0 0.0
    %806 = vmatprep.subr.mxu0 0.0
    %807 = vmatpush2.xpose.msra.mxu0 0.0
    %808 = vmatprep.subr.mxu0 0.0
    %809 = vmatpush2.xpose.msra.mxu0 0.0
    %810 = vmatprep.subr.mxu0 0.0
    %811 = vmatpush2.xpose.msra.mxu0 0.0
    %812 = vmatprep.mubr.f32.mxu0 0.0
    %v813 = vand.u32 %v589, 4294901760
    %v814 = vsub.f32 %v589, %v813
    %815 = vmatmul.mubr.f32.gmra.mxu0 %v814
    %v816 = vpop.f32.mrf.mxu0
    %v817 = vadd.f32 %v743, %v816
    %v818 = vpop.f32.mrf.mxu0
    %819 = vdwg.mxu0
    %820 = vmatprep.subr.mxu0 0.0
    %821 = vmatpush1.xpose.msra.mxu0 0.0
    %822 = vmatprep.subr.mxu0 0.0
    %823 = vmatpush1.xpose.msra.mxu0 0.0
    %824 = vmatprep.subr.mxu0 0.0
    %825 = vmatpush1.xpose.msra.mxu0 0.0
    %826 = vmatprep.subr.mxu0 0.0
    %827 = vmatpush1.xpose.msra.mxu0 0.0
    %828 = vmatprep.subr.mxu0 0.0
    %829 = vmatpush1.xpose.msra.mxu0 0.0
    %830 = vmatprep.subr.mxu0 0.0
    %831 = vmatpush1.xpose.msra.mxu0 0.0
    %832 = vmatprep.subr.mxu0 0.0
    %833 = vmatpush1.xpose.msra.mxu0 0.0
    %834 = vmatprep.subr.mxu0 0.0
    %835 = vmatpush1.xpose.msra.mxu0 0.0
    %836 = vmatprep.subr.mxu0 0.0
    %837 = vmatpush1.xpose.msra.mxu0 0.0
    %838 = vmatprep.subr.mxu0 0.0
    %839 = vmatpush1.xpose.msra.mxu0 0.0
    %840 = vmatprep.subr.mxu0 0.0
    %841 = vmatpush1.xpose.msra.mxu0 0.0
    %842 = vmatprep.subr.mxu0 0.0
    %843 = vmatpush1.xpose.msra.mxu0 0.0
    %844 = vmatprep.subr.mxu0 0.0
    %845 = vmatpush1.xpose.msra.mxu0 0.0
    %846 = vmatprep.subr.mxu0 0.0
    %847 = vmatpush1.xpose.msra.mxu0 0.0
    %848 = vmatprep.subr.mxu0 0.0
    %849 = vmatpush1.xpose.msra.mxu0 0.0
    %850 = vmatprep.subr.mxu0 0.0
    %v851 = vand.u32 %v592, 4294901760
    %852 = vmatpush1.xpose.msra.mxu0 %v851
    %853 = vmatprep.subr.mxu0 0.0
    %854 = vmatpush2.xpose.msra.mxu0 0.0
    %855 = vmatprep.subr.mxu0 0.0
    %856 = vmatpush2.xpose.msra.mxu0 0.0
    %857 = vmatprep.subr.mxu0 0.0
    %858 = vmatpush2.xpose.msra.mxu0 0.0
    %859 = vmatprep.subr.mxu0 0.0
    %860 = vmatpush2.xpose.msra.mxu0 0.0
    %861 = vmatprep.subr.mxu0 0.0
    %862 = vmatpush2.xpose.msra.mxu0 0.0
    %863 = vmatprep.subr.mxu0 0.0
    %864 = vmatpush2.xpose.msra.mxu0 0.0
    %865 = vmatprep.subr.mxu0 0.0
    %866 = vmatpush2.xpose.msra.mxu0 0.0
    %867 = vmatprep.subr.mxu0 0.0
    %868 = vmatpush2.xpose.msra.mxu0 0.0
    %869 = vmatprep.subr.mxu0 0.0
    %870 = vmatpush2.xpose.msra.mxu0 0.0
    %871 = vmatprep.subr.mxu0 0.0
    %872 = vmatpush2.xpose.msra.mxu0 0.0
    %873 = vmatprep.subr.mxu0 0.0
    %874 = vmatpush2.xpose.msra.mxu0 0.0
    %875 = vmatprep.subr.mxu0 0.0
    %876 = vmatpush2.xpose.msra.mxu0 0.0
    %877 = vmatprep.subr.mxu0 0.0
    %878 = vmatpush2.xpose.msra.mxu0 0.0
    %879 = vmatprep.subr.mxu0 0.0
    %880 = vmatpush2.xpose.msra.mxu0 0.0
    %881 = vmatprep.subr.mxu0 0.0
    %882 = vmatpush2.xpose.msra.mxu0 0.0
    %883 = vmatprep.subr.mxu0 0.0
    %884 = vmatpush2.xpose.msra.mxu0 0.0
    %885 = vmatprep.mubr.f32.mxu0 0.0
    %v886 = vand.u32 %v589, 4294901760
    %v887 = vsub.f32 %v589, %v886
    %v888 = vand.u32 %v887, 4294901760
    %889 = vmatmul.mubr.f32.gmra.mxu0 %v888
    %v890 = vpop.f32.mrf.mxu0
    %v891 = vadd.f32 %v817, %v890
    %v892 = vpop.f32.mrf.mxu0
    %893 = vdwg.mxu0
    %894 = vmatprep.subr.mxu0 0.0
    %895 = vmatpush1.xpose.msra.mxu0 0.0
    %896 = vmatprep.subr.mxu0 0.0
    %897 = vmatpush1.xpose.msra.mxu0 0.0
    %898 = vmatprep.subr.mxu0 0.0
    %899 = vmatpush1.xpose.msra.mxu0 0.0
    %900 = vmatprep.subr.mxu0 0.0
    %901 = vmatpush1.xpose.msra.mxu0 0.0
    %902 = vmatprep.subr.mxu0 0.0
    %903 = vmatpush1.xpose.msra.mxu0 0.0
    %904 = vmatprep.subr.mxu0 0.0
    %905 = vmatpush1.xpose.msra.mxu0 0.0
    %906 = vmatprep.subr.mxu0 0.0
    %907 = vmatpush1.xpose.msra.mxu0 0.0
    %908 = vmatprep.subr.mxu0 0.0
    %909 = vmatpush1.xpose.msra.mxu0 0.0
    %910 = vmatprep.subr.mxu0 0.0
    %911 = vmatpush1.xpose.msra.mxu0 0.0
    %912 = vmatprep.subr.mxu0 0.0
    %913 = vmatpush1.xpose.msra.mxu0 0.0
    %914 = vmatprep.subr.mxu0 0.0
    %915 = vmatpush1.xpose.msra.mxu0 0.0
    %916 = vmatprep.subr.mxu0 0.0
    %917 = vmatpush1.xpose.msra.mxu0 0.0
    %918 = vmatprep.subr.mxu0 0.0
    %919 = vmatpush1.xpose.msra.mxu0 0.0
    %920 = vmatprep.subr.mxu0 0.0
    %921 = vmatpush1.xpose.msra.mxu0 0.0
    %922 = vmatprep.subr.mxu0 0.0
    %923 = vmatpush1.xpose.msra.mxu0 0.0
    %924 = vmatprep.subr.mxu0 0.0
    %v925 = vand.u32 %v592, 4294901760
    %v926 = vsub.f32 %v592, %v925
    %v927 = vand.u32 %v926, 4294901760
    %928 = vmatpush1.xpose.msra.mxu0 %v927
    %929 = vmatprep.subr.mxu0 0.0
    %930 = vmatpush2.xpose.msra.mxu0 0.0
    %931 = vmatprep.subr.mxu0 0.0
    %932 = vmatpush2.xpose.msra.mxu0 0.0
    %933 = vmatprep.subr.mxu0 0.0
    %934 = vmatpush2.xpose.msra.mxu0 0.0
    %935 = vmatprep.subr.mxu0 0.0
    %936 = vmatpush2.xpose.msra.mxu0 0.0
    %937 = vmatprep.subr.mxu0 0.0
    %938 = vmatpush2.xpose.msra.mxu0 0.0
    %939 = vmatprep.subr.mxu0 0.0
    %940 = vmatpush2.xpose.msra.mxu0 0.0
    %941 = vmatprep.subr.mxu0 0.0
    %942 = vmatpush2.xpose.msra.mxu0 0.0
    %943 = vmatprep.subr.mxu0 0.0
    %944 = vmatpush2.xpose.msra.mxu0 0.0
    %945 = vmatprep.subr.mxu0 0.0
    %946 = vmatpush2.xpose.msra.mxu0 0.0
    %947 = vmatprep.subr.mxu0 0.0
    %948 = vmatpush2.xpose.msra.mxu0 0.0
    %949 = vmatprep.subr.mxu0 0.0
    %950 = vmatpush2.xpose.msra.mxu0 0.0
    %951 = vmatprep.subr.mxu0 0.0
    %952 = vmatpush2.xpose.msra.mxu0 0.0
    %953 = vmatprep.subr.mxu0 0.0
    %954 = vmatpush2.xpose.msra.mxu0 0.0
    %955 = vmatprep.subr.mxu0 0.0
    %956 = vmatpush2.xpose.msra.mxu0 0.0
    %957 = vmatprep.subr.mxu0 0.0
    %958 = vmatpush2.xpose.msra.mxu0 0.0
    %959 = vmatprep.subr.mxu0 0.0
    %960 = vmatpush2.xpose.msra.mxu0 0.0
    %961 = vmatprep.mubr.f32.mxu0 0.0
    %v962 = vand.u32 %v589, 4294901760
    %963 = vmatmul.mubr.f32.gmra.mxu0 %v962
    %v964 = vpop.f32.mrf.mxu0
    %v965 = vadd.f32 %v891, %v964
    %v966 = vpop.f32.mrf.mxu0
    %967 = vdwg.mxu0
    %968 = vmatprep.subr.mxu0 0.0
    %969 = vmatpush1.xpose.msra.mxu0 0.0
    %970 = vmatprep.subr.mxu0 0.0
    %971 = vmatpush1.xpose.msra.mxu0 0.0
    %972 = vmatprep.subr.mxu0 0.0
    %973 = vmatpush1.xpose.msra.mxu0 0.0
    %974 = vmatprep.subr.mxu0 0.0
    %975 = vmatpush1.xpose.msra.mxu0 0.0
    %976 = vmatprep.subr.mxu0 0.0
    %977 = vmatpush1.xpose.msra.mxu0 0.0
    %978 = vmatprep.subr.mxu0 0.0
    %979 = vmatpush1.xpose.msra.mxu0 0.0
    %980 = vmatprep.subr.mxu0 0.0
    %981 = vmatpush1.xpose.msra.mxu0 0.0
    %982 = vmatprep.subr.mxu0 0.0
    %983 = vmatpush1.xpose.msra.mxu0 0.0
    %984 = vmatprep.subr.mxu0 0.0
    %985 = vmatpush1.xpose.msra.mxu0 0.0
    %986 = vmatprep.subr.mxu0 0.0
    %987 = vmatpush1.xpose.msra.mxu0 0.0
    %988 = vmatprep.subr.mxu0 0.0
    %989 = vmatpush1.xpose.msra.mxu0 0.0
    %990 = vmatprep.subr.mxu0 0.0
    %991 = vmatpush1.xpose.msra.mxu0 0.0
    %992 = vmatprep.subr.mxu0 0.0
    %993 = vmatpush1.xpose.msra.mxu0 0.0
    %994 = vmatprep.subr.mxu0 0.0
    %995 = vmatpush1.xpose.msra.mxu0 0.0
    %996 = vmatprep.subr.mxu0 0.0
    %997 = vmatpush1.xpose.msra.mxu0 0.0
    %998 = vmatprep.subr.mxu0 0.0
    %v999 = vand.u32 %v592, 4294901760
    %1000 = vmatpush1.xpose.msra.mxu0 %v999
    %1001 = vmatprep.subr.mxu0 0.0
    %1002 = vmatpush2.xpose.msra.mxu0 0.0
    %1003 = vmatprep.subr.mxu0 0.0
    %1004 = vmatpush2.xpose.msra.mxu0 0.0
    %1005 = vmatprep.subr.mxu0 0.0
    %1006 = vmatpush2.xpose.msra.mxu0 0.0
    %1007 = vmatprep.subr.mxu0 0.0
    %1008 = vmatpush2.xpose.msra.mxu0 0.0
    %1009 = vmatprep.subr.mxu0 0.0
    %1010 = vmatpush2.xpose.msra.mxu0 0.0
    %1011 = vmatprep.subr.mxu0 0.0
    %1012 = vmatpush2.xpose.msra.mxu0 0.0
    %1013 = vmatprep.subr.mxu0 0.0
    %1014 = vmatpush2.xpose.msra.mxu0 0.0
    %1015 = vmatprep.subr.mxu0 0.0
    %1016 = vmatpush2.xpose.msra.mxu0 0.0
    %1017 = vmatprep.subr.mxu0 0.0
    %1018 = vmatpush2.xpose.msra.mxu0 0.0
    %1019 = vmatprep.subr.mxu0 0.0
    %1020 = vmatpush2.xpose.msra.mxu0 0.0
    %1021 = vmatprep.subr.mxu0 0.0
    %1022 = vmatpush2.xpose.msra.mxu0 0.0
    %1023 = vmatprep.subr.mxu0 0.0
    %1024 = vmatpush2.xpose.msra.mxu0 0.0
    %1025 = vmatprep.subr.mxu0 0.0
    %1026 = vmatpush2.xpose.msra.mxu0 0.0
    %1027 = vmatprep.subr.mxu0 0.0
    %1028 = vmatpush2.xpose.msra.mxu0 0.0
    %1029 = vmatprep.subr.mxu0 0.0
    %1030 = vmatpush2.xpose.msra.mxu0 0.0
    %1031 = vmatprep.subr.mxu0 0.0
    %1032 = vmatpush2.xpose.msra.mxu0 0.0
    %1033 = vmatprep.mubr.f32.mxu0 0.0
    %v1034 = vand.u32 %v589, 4294901760
    %1035 = vmatmul.mubr.f32.gmra.mxu0 %v1034
    %v1036 = vpop.f32.mrf.mxu0
    %v1037 = vadd.f32 %v965, %v1036
    %v1038 = vpop.f32.mrf.mxu0
    %1039 = vdwg.mxu0
    %v1041 = vsel %vm38, %v101, 0
    %v1044 = vsel %vm38, %v125, 0
    %1046 = vmatprep.subr.mxu0 0.0
    %1047 = vmatpush1.xpose.msra.mxu0 0.0
    %1048 = vmatprep.subr.mxu0 0.0
    %1049 = vmatpush1.xpose.msra.mxu0 0.0
    %1050 = vmatprep.subr.mxu0 0.0
    %1051 = vmatpush1.xpose.msra.mxu0 0.0
    %1052 = vmatprep.subr.mxu0 0.0
    %1053 = vmatpush1.xpose.msra.mxu0 0.0
    %1054 = vmatprep.subr.mxu0 0.0
    %1055 = vmatpush1.xpose.msra.mxu0 0.0
    %1056 = vmatprep.subr.mxu0 0.0
    %1057 = vmatpush1.xpose.msra.mxu0 0.0
    %1058 = vmatprep.subr.mxu0 0.0
    %1059 = vmatpush1.xpose.msra.mxu0 0.0
    %1060 = vmatprep.subr.mxu0 0.0
    %1061 = vmatpush1.xpose.msra.mxu0 0.0
    %1062 = vmatprep.subr.mxu0 0.0
    %1063 = vmatpush1.xpose.msra.mxu0 0.0
    %1064 = vmatprep.subr.mxu0 0.0
    %1065 = vmatpush1.xpose.msra.mxu0 0.0
    %1066 = vmatprep.subr.mxu0 0.0
    %1067 = vmatpush1.xpose.msra.mxu0 0.0
    %1068 = vmatprep.subr.mxu0 0.0
    %1069 = vmatpush1.xpose.msra.mxu0 0.0
    %1070 = vmatprep.subr.mxu0 0.0
    %1071 = vmatpush1.xpose.msra.mxu0 0.0
    %1072 = vmatprep.subr.mxu0 0.0
    %1073 = vmatpush1.xpose.msra.mxu0 0.0
    %1074 = vmatprep.subr.mxu0 0.0
    %1075 = vmatpush1.xpose.msra.mxu0 0.0
    %1076 = vmatprep.subr.mxu0 0.0
    %v1077 = vand.u32 %v1044, 4294901760
    %1078 = vmatpush1.xpose.msra.mxu0 %v1077
    %1079 = vmatprep.subr.mxu0 0.0
    %1080 = vmatpush2.xpose.msra.mxu0 0.0
    %1081 = vmatprep.subr.mxu0 0.0
    %1082 = vmatpush2.xpose.msra.mxu0 0.0
    %1083 = vmatprep.subr.mxu0 0.0
    %1084 = vmatpush2.xpose.msra.mxu0 0.0
    %1085 = vmatprep.subr.mxu0 0.0
    %1086 = vmatpush2.xpose.msra.mxu0 0.0
    %1087 = vmatprep.subr.mxu0 0.0
    %1088 = vmatpush2.xpose.msra.mxu0 0.0
    %1089 = vmatprep.subr.mxu0 0.0
    %1090 = vmatpush2.xpose.msra.mxu0 0.0
    %1091 = vmatprep.subr.mxu0 0.0
    %1092 = vmatpush2.xpose.msra.mxu0 0.0
    %1093 = vmatprep.subr.mxu0 0.0
    %1094 = vmatpush2.xpose.msra.mxu0 0.0
    %1095 = vmatprep.subr.mxu0 0.0
    %1096 = vmatpush2.xpose.msra.mxu0 0.0
    %1097 = vmatprep.subr.mxu0 0.0
    %1098 = vmatpush2.xpose.msra.mxu0 0.0
    %1099 = vmatprep.subr.mxu0 0.0
    %1100 = vmatpush2.xpose.msra.mxu0 0.0
    %1101 = vmatprep.subr.mxu0 0.0
    %1102 = vmatpush2.xpose.msra.mxu0 0.0
    %1103 = vmatprep.subr.mxu0 0.0
    %1104 = vmatpush2.xpose.msra.mxu0 0.0
    %1105 = vmatprep.subr.mxu0 0.0
    %1106 = vmatpush2.xpose.msra.mxu0 0.0
    %1107 = vmatprep.subr.mxu0 0.0
    %1108 = vmatpush2.xpose.msra.mxu0 0.0
    %1109 = vmatprep.subr.mxu0 0.0
    %1110 = vmatpush2.xpose.msra.mxu0 0.0
    %1111 = vmatprep.mubr.f32.mxu0 0.0
    %v1112 = vand.u32 %v1041, 4294901760
    %v1113 = vsub.f32 %v1041, %v1112
    %v1114 = vand.u32 %v1113, 4294901760
    %v1115 = vsub.f32 %v1113, %v1114
    %v1116 = vand.u32 %v1115, 4294901760
    %1117 = vmatmul.mubr.f32.gmra.mxu0 %v1116
    %v1118 = vpop.f32.mrf.mxu0
    %v1119 = vadd.f32 0.0, %v1118
    %v1120 = vpop.f32.mrf.mxu0
    %1121 = vdwg.mxu0
    %1122 = vmatprep.subr.mxu0 0.0
    %1123 = vmatpush1.xpose.msra.mxu0 0.0
    %1124 = vmatprep.subr.mxu0 0.0
    %1125 = vmatpush1.xpose.msra.mxu0 0.0
    %1126 = vmatprep.subr.mxu0 0.0
    %1127 = vmatpush1.xpose.msra.mxu0 0.0
    %1128 = vmatprep.subr.mxu0 0.0
    %1129 = vmatpush1.xpose.msra.mxu0 0.0
    %1130 = vmatprep.subr.mxu0 0.0
    %1131 = vmatpush1.xpose.msra.mxu0 0.0
    %1132 = vmatprep.subr.mxu0 0.0
    %1133 = vmatpush1.xpose.msra.mxu0 0.0
    %1134 = vmatprep.subr.mxu0 0.0
    %1135 = vmatpush1.xpose.msra.mxu0 0.0
    %1136 = vmatprep.subr.mxu0 0.0
    %1137 = vmatpush1.xpose.msra.mxu0 0.0
    %1138 = vmatprep.subr.mxu0 0.0
    %1139 = vmatpush1.xpose.msra.mxu0 0.0
    %1140 = vmatprep.subr.mxu0 0.0
    %1141 = vmatpush1.xpose.msra.mxu0 0.0
    %1142 = vmatprep.subr.mxu0 0.0
    %1143 = vmatpush1.xpose.msra.mxu0 0.0
    %1144 = vmatprep.subr.mxu0 0.0
    %1145 = vmatpush1.xpose.msra.mxu0 0.0
    %1146 = vmatprep.subr.mxu0 0.0
    %1147 = vmatpush1.xpose.msra.mxu0 0.0
    %1148 = vmatprep.subr.mxu0 0.0
    %1149 = vmatpush1.xpose.msra.mxu0 0.0
    %1150 = vmatprep.subr.mxu0 0.0
    %1151 = vmatpush1.xpose.msra.mxu0 0.0
    %1152 = vmatprep.subr.mxu0 0.0
    %v1153 = vand.u32 %v1044, 4294901760
    %v1154 = vsub.f32 %v1044, %v1153
    %v1155 = vand.u32 %v1154, 4294901760
    %v1156 = vsub.f32 %v1154, %v1155
    %v1157 = vand.u32 %v1156, 4294901760
    %1158 = vmatpush1.xpose.msra.mxu0 %v1157
    %1159 = vmatprep.subr.mxu0 0.0
    %1160 = vmatpush2.xpose.msra.mxu0 0.0
    %1161 = vmatprep.subr.mxu0 0.0
    %1162 = vmatpush2.xpose.msra.mxu0 0.0
    %1163 = vmatprep.subr.mxu0 0.0
    %1164 = vmatpush2.xpose.msra.mxu0 0.0
    %1165 = vmatprep.subr.mxu0 0.0
    %1166 = vmatpush2.xpose.msra.mxu0 0.0
    %1167 = vmatprep.subr.mxu0 0.0
    %1168 = vmatpush2.xpose.msra.mxu0 0.0
    %1169 = vmatprep.subr.mxu0 0.0
    %1170 = vmatpush2.xpose.msra.mxu0 0.0
    %1171 = vmatprep.subr.mxu0 0.0
    %1172 = vmatpush2.xpose.msra.mxu0 0.0
    %1173 = vmatprep.subr.mxu0 0.0
    %1174 = vmatpush2.xpose.msra.mxu0 0.0
    %1175 = vmatprep.subr.mxu0 0.0
    %1176 = vmatpush2.xpose.msra.mxu0 0.0
    %1177 = vmatprep.subr.mxu0 0.0
    %1178 = vmatpush2.xpose.msra.mxu0 0.0
    %1179 = vmatprep.subr.mxu0 0.0
    %1180 = vmatpush2.xpose.msra.mxu0 0.0
    %1181 = vmatprep.subr.mxu0 0.0
    %1182 = vmatpush2.xpose.msra.mxu0 0.0
    %1183 = vmatprep.subr.mxu0 0.0
    %1184 = vmatpush2.xpose.msra.mxu0 0.0
    %1185 = vmatprep.subr.mxu0 0.0
    %1186 = vmatpush2.xpose.msra.mxu0 0.0
    %1187 = vmatprep.subr.mxu0 0.0
    %1188 = vmatpush2.xpose.msra.mxu0 0.0
    %1189 = vmatprep.subr.mxu0 0.0
    %1190 = vmatpush2.xpose.msra.mxu0 0.0
    %1191 = vmatprep.mubr.f32.mxu0 0.0
    %v1192 = vand.u32 %v1041, 4294901760
    %1193 = vmatmul.mubr.f32.gmra.mxu0 %v1192
    %v1194 = vpop.f32.mrf.mxu0
    %v1195 = vadd.f32 %v1119, %v1194
    %v1196 = vpop.f32.mrf.mxu0
    %1197 = vdwg.mxu0
    %1198 = vmatprep.subr.mxu0 0.0
    %1199 = vmatpush1.xpose.msra.mxu0 0.0
    %1200 = vmatprep.subr.mxu0 0.0
    %1201 = vmatpush1.xpose.msra.mxu0 0.0
    %1202 = vmatprep.subr.mxu0 0.0
    %1203 = vmatpush1.xpose.msra.mxu0 0.0
    %1204 = vmatprep.subr.mxu0 0.0
    %1205 = vmatpush1.xpose.msra.mxu0 0.0
    %1206 = vmatprep.subr.mxu0 0.0
    %1207 = vmatpush1.xpose.msra.mxu0 0.0
    %1208 = vmatprep.subr.mxu0 0.0
    %1209 = vmatpush1.xpose.msra.mxu0 0.0
    %1210 = vmatprep.subr.mxu0 0.0
    %1211 = vmatpush1.xpose.msra.mxu0 0.0
    %1212 = vmatprep.subr.mxu0 0.0
    %1213 = vmatpush1.xpose.msra.mxu0 0.0
    %1214 = vmatprep.subr.mxu0 0.0
    %1215 = vmatpush1.xpose.msra.mxu0 0.0
    %1216 = vmatprep.subr.mxu0 0.0
    %1217 = vmatpush1.xpose.msra.mxu0 0.0
    %1218 = vmatprep.subr.mxu0 0.0
    %1219 = vmatpush1.xpose.msra.mxu0 0.0
    %1220 = vmatprep.subr.mxu0 0.0
    %1221 = vmatpush1.xpose.msra.mxu0 0.0
    %1222 = vmatprep.subr.mxu0 0.0
    %1223 = vmatpush1.xpose.msra.mxu0 0.0
    %1224 = vmatprep.subr.mxu0 0.0
    %1225 = vmatpush1.xpose.msra.mxu0 0.0
    %1226 = vmatprep.subr.mxu0 0.0
    %1227 = vmatpush1.xpose.msra.mxu0 0.0
    %1228 = vmatprep.subr.mxu0 0.0
    %v1229 = vand.u32 %v1044, 4294901760
    %v1230 = vsub.f32 %v1044, %v1229
    %1231 = vmatpush1.xpose.msra.mxu0 %v1230
    %1232 = vmatprep.subr.mxu0 0.0
    %1233 = vmatpush2.xpose.msra.mxu0 0.0
    %1234 = vmatprep.subr.mxu0 0.0
    %1235 = vmatpush2.xpose.msra.mxu0 0.0
    %1236 = vmatprep.subr.mxu0 0.0
    %1237 = vmatpush2.xpose.msra.mxu0 0.0
    %1238 = vmatprep.subr.mxu0 0.0
    %1239 = vmatpush2.xpose.msra.mxu0 0.0
    %1240 = vmatprep.subr.mxu0 0.0
    %1241 = vmatpush2.xpose.msra.mxu0 0.0
    %1242 = vmatprep.subr.mxu0 0.0
    %1243 = vmatpush2.xpose.msra.mxu0 0.0
    %1244 = vmatprep.subr.mxu0 0.0
    %1245 = vmatpush2.xpose.msra.mxu0 0.0
    %1246 = vmatprep.subr.mxu0 0.0
    %1247 = vmatpush2.xpose.msra.mxu0 0.0
    %1248 = vmatprep.subr.mxu0 0.0
    %1249 = vmatpush2.xpose.msra.mxu0 0.0
    %1250 = vmatprep.subr.mxu0 0.0
    %1251 = vmatpush2.xpose.msra.mxu0 0.0
    %1252 = vmatprep.subr.mxu0 0.0
    %1253 = vmatpush2.xpose.msra.mxu0 0.0
    %1254 = vmatprep.subr.mxu0 0.0
    %1255 = vmatpush2.xpose.msra.mxu0 0.0
    %1256 = vmatprep.subr.mxu0 0.0
    %1257 = vmatpush2.xpose.msra.mxu0 0.0
    %1258 = vmatprep.subr.mxu0 0.0
    %1259 = vmatpush2.xpose.msra.mxu0 0.0
    %1260 = vmatprep.subr.mxu0 0.0
    %1261 = vmatpush2.xpose.msra.mxu0 0.0
    %1262 = vmatprep.subr.mxu0 0.0
    %1263 = vmatpush2.xpose.msra.mxu0 0.0
    %1264 = vmatprep.mubr.f32.mxu0 0.0
    %v1265 = vand.u32 %v1041, 4294901760
    %v1266 = vsub.f32 %v1041, %v1265
    %1267 = vmatmul.mubr.f32.gmra.mxu0 %v1266
    %v1268 = vpop.f32.mrf.mxu0
    %v1269 = vadd.f32 %v1195, %v1268
    %v1270 = vpop.f32.mrf.mxu0
    %1271 = vdwg.mxu0
    %1272 = vmatprep.subr.mxu0 0.0
    %1273 = vmatpush1.xpose.msra.mxu0 0.0
    %1274 = vmatprep.subr.mxu0 0.0
    %1275 = vmatpush1.xpose.msra.mxu0 0.0
    %1276 = vmatprep.subr.mxu0 0.0
    %1277 = vmatpush1.xpose.msra.mxu0 0.0
    %1278 = vmatprep.subr.mxu0 0.0
    %1279 = vmatpush1.xpose.msra.mxu0 0.0
    %1280 = vmatprep.subr.mxu0 0.0
    %1281 = vmatpush1.xpose.msra.mxu0 0.0
    %1282 = vmatprep.subr.mxu0 0.0
    %1283 = vmatpush1.xpose.msra.mxu0 0.0
    %1284 = vmatprep.subr.mxu0 0.0
    %1285 = vmatpush1.xpose.msra.mxu0 0.0
    %1286 = vmatprep.subr.mxu0 0.0
    %1287 = vmatpush1.xpose.msra.mxu0 0.0
    %1288 = vmatprep.subr.mxu0 0.0
    %1289 = vmatpush1.xpose.msra.mxu0 0.0
    %1290 = vmatprep.subr.mxu0 0.0
    %1291 = vmatpush1.xpose.msra.mxu0 0.0
    %1292 = vmatprep.subr.mxu0 0.0
    %1293 = vmatpush1.xpose.msra.mxu0 0.0
    %1294 = vmatprep.subr.mxu0 0.0
    %1295 = vmatpush1.xpose.msra.mxu0 0.0
    %1296 = vmatprep.subr.mxu0 0.0
    %1297 = vmatpush1.xpose.msra.mxu0 0.0
    %1298 = vmatprep.subr.mxu0 0.0
    %1299 = vmatpush1.xpose.msra.mxu0 0.0
    %1300 = vmatprep.subr.mxu0 0.0
    %1301 = vmatpush1.xpose.msra.mxu0 0.0
    %1302 = vmatprep.subr.mxu0 0.0
    %v1303 = vand.u32 %v1044, 4294901760
    %1304 = vmatpush1.xpose.msra.mxu0 %v1303
    %1305 = vmatprep.subr.mxu0 0.0
    %1306 = vmatpush2.xpose.msra.mxu0 0.0
    %1307 = vmatprep.subr.mxu0 0.0
    %1308 = vmatpush2.xpose.msra.mxu0 0.0
    %1309 = vmatprep.subr.mxu0 0.0
    %1310 = vmatpush2.xpose.msra.mxu0 0.0
    %1311 = vmatprep.subr.mxu0 0.0
    %1312 = vmatpush2.xpose.msra.mxu0 0.0
    %1313 = vmatprep.subr.mxu0 0.0
    %1314 = vmatpush2.xpose.msra.mxu0 0.0
    %1315 = vmatprep.subr.mxu0 0.0
    %1316 = vmatpush2.xpose.msra.mxu0 0.0
    %1317 = vmatprep.subr.mxu0 0.0
    %1318 = vmatpush2.xpose.msra.mxu0 0.0
    %1319 = vmatprep.subr.mxu0 0.0
    %1320 = vmatpush2.xpose.msra.mxu0 0.0
    %1321 = vmatprep.subr.mxu0 0.0
    %1322 = vmatpush2.xpose.msra.mxu0 0.0
    %1323 = vmatprep.subr.mxu0 0.0
    %1324 = vmatpush2.xpose.msra.mxu0 0.0
    %1325 = vmatprep.subr.mxu0 0.0
    %1326 = vmatpush2.xpose.msra.mxu0 0.0
    %1327 = vmatprep.subr.mxu0 0.0
    %1328 = vmatpush2.xpose.msra.mxu0 0.0
    %1329 = vmatprep.subr.mxu0 0.0
    %1330 = vmatpush2.xpose.msra.mxu0 0.0
    %1331 = vmatprep.subr.mxu0 0.0
    %1332 = vmatpush2.xpose.msra.mxu0 0.0
    %1333 = vmatprep.subr.mxu0 0.0
    %1334 = vmatpush2.xpose.msra.mxu0 0.0
    %1335 = vmatprep.subr.mxu0 0.0
    %1336 = vmatpush2.xpose.msra.mxu0 0.0
    %1337 = vmatprep.mubr.f32.mxu0 0.0
    %v1338 = vand.u32 %v1041, 4294901760
    %v1339 = vsub.f32 %v1041, %v1338
    %v1340 = vand.u32 %v1339, 4294901760
    %1341 = vmatmul.mubr.f32.gmra.mxu0 %v1340
    %v1342 = vpop.f32.mrf.mxu0
    %v1343 = vadd.f32 %v1269, %v1342
    %v1344 = vpop.f32.mrf.mxu0
    %1345 = vdwg.mxu0
    %1346 = vmatprep.subr.mxu0 0.0
    %1347 = vmatpush1.xpose.msra.mxu0 0.0
    %1348 = vmatprep.subr.mxu0 0.0
    %1349 = vmatpush1.xpose.msra.mxu0 0.0
    %1350 = vmatprep.subr.mxu0 0.0
    %1351 = vmatpush1.xpose.msra.mxu0 0.0
    %1352 = vmatprep.subr.mxu0 0.0
    %1353 = vmatpush1.xpose.msra.mxu0 0.0
    %1354 = vmatprep.subr.mxu0 0.0
    %1355 = vmatpush1.xpose.msra.mxu0 0.0
    %1356 = vmatprep.subr.mxu0 0.0
    %1357 = vmatpush1.xpose.msra.mxu0 0.0
    %1358 = vmatprep.subr.mxu0 0.0
    %1359 = vmatpush1.xpose.msra.mxu0 0.0
    %1360 = vmatprep.subr.mxu0 0.0
    %1361 = vmatpush1.xpose.msra.mxu0 0.0
    %1362 = vmatprep.subr.mxu0 0.0
    %1363 = vmatpush1.xpose.msra.mxu0 0.0
    %1364 = vmatprep.subr.mxu0 0.0
    %1365 = vmatpush1.xpose.msra.mxu0 0.0
    %1366 = vmatprep.subr.mxu0 0.0
    %1367 = vmatpush1.xpose.msra.mxu0 0.0
    %1368 = vmatprep.subr.mxu0 0.0
    %1369 = vmatpush1.xpose.msra.mxu0 0.0
    %1370 = vmatprep.subr.mxu0 0.0
    %1371 = vmatpush1.xpose.msra.mxu0 0.0
    %1372 = vmatprep.subr.mxu0 0.0
    %1373 = vmatpush1.xpose.msra.mxu0 0.0
    %1374 = vmatprep.subr.mxu0 0.0
    %1375 = vmatpush1.xpose.msra.mxu0 0.0
    %1376 = vmatprep.subr.mxu0 0.0
    %v1377 = vand.u32 %v1044, 4294901760
    %v1378 = vsub.f32 %v1044, %v1377
    %v1379 = vand.u32 %v1378, 4294901760
    %1380 = vmatpush1.xpose.msra.mxu0 %v1379
    %1381 = vmatprep.subr.mxu0 0.0
    %1382 = vmatpush2.xpose.msra.mxu0 0.0
    %1383 = vmatprep.subr.mxu0 0.0
    %1384 = vmatpush2.xpose.msra.mxu0 0.0
    %1385 = vmatprep.subr.mxu0 0.0
    %1386 = vmatpush2.xpose.msra.mxu0 0.0
    %1387 = vmatprep.subr.mxu0 0.0
    %1388 = vmatpush2.xpose.msra.mxu0 0.0
    %1389 = vmatprep.subr.mxu0 0.0
    %1390 = vmatpush2.xpose.msra.mxu0 0.0
    %1391 = vmatprep.subr.mxu0 0.0
    %1392 = vmatpush2.xpose.msra.mxu0 0.0
    %1393 = vmatprep.subr.mxu0 0.0
    %1394 = vmatpush2.xpose.msra.mxu0 0.0
    %1395 = vmatprep.subr.mxu0 0.0
    %1396 = vmatpush2.xpose.msra.mxu0 0.0
    %1397 = vmatprep.subr.mxu0 0.0
    %1398 = vmatpush2.xpose.msra.mxu0 0.0
    %1399 = vmatprep.subr.mxu0 0.0
    %1400 = vmatpush2.xpose.msra.mxu0 0.0
    %1401 = vmatprep.subr.mxu0 0.0
    %1402 = vmatpush2.xpose.msra.mxu0 0.0
    %1403 = vmatprep.subr.mxu0 0.0
    %1404 = vmatpush2.xpose.msra.mxu0 0.0
    %1405 = vmatprep.subr.mxu0 0.0
    %1406 = vmatpush2.xpose.msra.mxu0 0.0
    %1407 = vmatprep.subr.mxu0 0.0
    %1408 = vmatpush2.xpose.msra.mxu0 0.0
    %1409 = vmatprep.subr.mxu0 0.0
    %1410 = vmatpush2.xpose.msra.mxu0 0.0
    %1411 = vmatprep.subr.mxu0 0.0
    %1412 = vmatpush2.xpose.msra.mxu0 0.0
    %1413 = vmatprep.mubr.f32.mxu0 0.0
    %v1414 = vand.u32 %v1041, 4294901760
    %1415 = vmatmul.mubr.f32.gmra.mxu0 %v1414
    %v1416 = vpop.f32.mrf.mxu0
    %v1417 = vadd.f32 %v1343, %v1416
    %v1418 = vpop.f32.mrf.mxu0
    %1419 = vdwg.mxu0
    %1420 = vmatprep.subr.mxu0 0.0
    %1421 = vmatpush1.xpose.msra.mxu0 0.0
    %1422 = vmatprep.subr.mxu0 0.0
    %1423 = vmatpush1.xpose.msra.mxu0 0.0
    %1424 = vmatprep.subr.mxu0 0.0
    %1425 = vmatpush1.xpose.msra.mxu0 0.0
    %1426 = vmatprep.subr.mxu0 0.0
    %1427 = vmatpush1.xpose.msra.mxu0 0.0
    %1428 = vmatprep.subr.mxu0 0.0
    %1429 = vmatpush1.xpose.msra.mxu0 0.0
    %1430 = vmatprep.subr.mxu0 0.0
    %1431 = vmatpush1.xpose.msra.mxu0 0.0
    %1432 = vmatprep.subr.mxu0 0.0
    %1433 = vmatpush1.xpose.msra.mxu0 0.0
    %1434 = vmatprep.subr.mxu0 0.0
    %1435 = vmatpush1.xpose.msra.mxu0 0.0
    %1436 = vmatprep.subr.mxu0 0.0
    %1437 = vmatpush1.xpose.msra.mxu0 0.0
    %1438 = vmatprep.subr.mxu0 0.0
    %1439 = vmatpush1.xpose.msra.mxu0 0.0
    %1440 = vmatprep.subr.mxu0 0.0
    %1441 = vmatpush1.xpose.msra.mxu0 0.0
    %1442 = vmatprep.subr.mxu0 0.0
    %1443 = vmatpush1.xpose.msra.mxu0 0.0
    %1444 = vmatprep.subr.mxu0 0.0
    %1445 = vmatpush1.xpose.msra.mxu0 0.0
    %1446 = vmatprep.subr.mxu0 0.0
    %1447 = vmatpush1.xpose.msra.mxu0 0.0
    %1448 = vmatprep.subr.mxu0 0.0
    %1449 = vmatpush1.xpose.msra.mxu0 0.0
    %1450 = vmatprep.subr.mxu0 0.0
    %v1451 = vand.u32 %v1044, 4294901760
    %1452 = vmatpush1.xpose.msra.mxu0 %v1451
    %1453 = vmatprep.subr.mxu0 0.0
    %1454 = vmatpush2.xpose.msra.mxu0 0.0
    %1455 = vmatprep.subr.mxu0 0.0
    %1456 = vmatpush2.xpose.msra.mxu0 0.0
    %1457 = vmatprep.subr.mxu0 0.0
    %1458 = vmatpush2.xpose.msra.mxu0 0.0
    %1459 = vmatprep.subr.mxu0 0.0
    %1460 = vmatpush2.xpose.msra.mxu0 0.0
    %1461 = vmatprep.subr.mxu0 0.0
    %1462 = vmatpush2.xpose.msra.mxu0 0.0
    %1463 = vmatprep.subr.mxu0 0.0
    %1464 = vmatpush2.xpose.msra.mxu0 0.0
    %1465 = vmatprep.subr.mxu0 0.0
    %1466 = vmatpush2.xpose.msra.mxu0 0.0
    %1467 = vmatprep.subr.mxu0 0.0
    %1468 = vmatpush2.xpose.msra.mxu0 0.0
    %1469 = vmatprep.subr.mxu0 0.0
    %1470 = vmatpush2.xpose.msra.mxu0 0.0
    %1471 = vmatprep.subr.mxu0 0.0
    %1472 = vmatpush2.xpose.msra.mxu0 0.0
    %1473 = vmatprep.subr.mxu0 0.0
    %1474 = vmatpush2.xpose.msra.mxu0 0.0
    %1475 = vmatprep.subr.mxu0 0.0
    %1476 = vmatpush2.xpose.msra.mxu0 0.0
    %1477 = vmatprep.subr.mxu0 0.0
    %1478 = vmatpush2.xpose.msra.mxu0 0.0
    %1479 = vmatprep.subr.mxu0 0.0
    %1480 = vmatpush2.xpose.msra.mxu0 0.0
    %1481 = vmatprep.subr.mxu0 0.0
    %1482 = vmatpush2.xpose.msra.mxu0 0.0
    %1483 = vmatprep.subr.mxu0 0.0
    %1484 = vmatpush2.xpose.msra.mxu0 0.0
    %1485 = vmatprep.mubr.f32.mxu0 0.0
    %v1486 = vand.u32 %v1041, 4294901760
    %1487 = vmatmul.mubr.f32.gmra.mxu0 %v1486
    %v1488 = vpop.f32.mrf.mxu0
    %v1489 = vadd.f32 %v1417, %v1488
    %v1490 = vpop.f32.mrf.mxu0
    %1491 = vdwg.mxu0
    %v1493 = vsel %vm38, %v103, 0
    %v1496 = vsel %vm38, %v127, 0
    %1498 = vmatprep.subr.mxu0 0.0
    %1499 = vmatpush1.xpose.msra.mxu0 0.0
    %1500 = vmatprep.subr.mxu0 0.0
    %1501 = vmatpush1.xpose.msra.mxu0 0.0
    %1502 = vmatprep.subr.mxu0 0.0
    %1503 = vmatpush1.xpose.msra.mxu0 0.0
    %1504 = vmatprep.subr.mxu0 0.0
    %1505 = vmatpush1.xpose.msra.mxu0 0.0
    %1506 = vmatprep.subr.mxu0 0.0
    %1507 = vmatpush1.xpose.msra.mxu0 0.0
    %1508 = vmatprep.subr.mxu0 0.0
    %1509 = vmatpush1.xpose.msra.mxu0 0.0
    %1510 = vmatprep.subr.mxu0 0.0
    %1511 = vmatpush1.xpose.msra.mxu0 0.0
    %1512 = vmatprep.subr.mxu0 0.0
    %1513 = vmatpush1.xpose.msra.mxu0 0.0
    %1514 = vmatprep.subr.mxu0 0.0
    %1515 = vmatpush1.xpose.msra.mxu0 0.0
    %1516 = vmatprep.subr.mxu0 0.0
    %1517 = vmatpush1.xpose.msra.mxu0 0.0
    %1518 = vmatprep.subr.mxu0 0.0
    %1519 = vmatpush1.xpose.msra.mxu0 0.0
    %1520 = vmatprep.subr.mxu0 0.0
    %1521 = vmatpush1.xpose.msra.mxu0 0.0
    %1522 = vmatprep.subr.mxu0 0.0
    %1523 = vmatpush1.xpose.msra.mxu0 0.0
    %1524 = vmatprep.subr.mxu0 0.0
    %1525 = vmatpush1.xpose.msra.mxu0 0.0
    %1526 = vmatprep.subr.mxu0 0.0
    %1527 = vmatpush1.xpose.msra.mxu0 0.0
    %1528 = vmatprep.subr.mxu0 0.0
    %v1529 = vand.u32 %v1496, 4294901760
    %1530 = vmatpush1.xpose.msra.mxu0 %v1529
    %1531 = vmatprep.subr.mxu0 0.0
    %1532 = vmatpush2.xpose.msra.mxu0 0.0
    %1533 = vmatprep.subr.mxu0 0.0
    %1534 = vmatpush2.xpose.msra.mxu0 0.0
    %1535 = vmatprep.subr.mxu0 0.0
    %1536 = vmatpush2.xpose.msra.mxu0 0.0
    %1537 = vmatprep.subr.mxu0 0.0
    %1538 = vmatpush2.xpose.msra.mxu0 0.0
    %1539 = vmatprep.subr.mxu0 0.0
    %1540 = vmatpush2.xpose.msra.mxu0 0.0
    %1541 = vmatprep.subr.mxu0 0.0
    %1542 = vmatpush2.xpose.msra.mxu0 0.0
    %1543 = vmatprep.subr.mxu0 0.0
    %1544 = vmatpush2.xpose.msra.mxu0 0.0
    %1545 = vmatprep.subr.mxu0 0.0
    %1546 = vmatpush2.xpose.msra.mxu0 0.0
    %1547 = vmatprep.subr.mxu0 0.0
    %1548 = vmatpush2.xpose.msra.mxu0 0.0
    %1549 = vmatprep.subr.mxu0 0.0
    %1550 = vmatpush2.xpose.msra.mxu0 0.0
    %1551 = vmatprep.subr.mxu0 0.0
    %1552 = vmatpush2.xpose.msra.mxu0 0.0
    %1553 = vmatprep.subr.mxu0 0.0
    %1554 = vmatpush2.xpose.msra.mxu0 0.0
    %1555 = vmatprep.subr.mxu0 0.0
    %1556 = vmatpush2.xpose.msra.mxu0 0.0
    %1557 = vmatprep.subr.mxu0 0.0
    %1558 = vmatpush2.xpose.msra.mxu0 0.0
    %1559 = vmatprep.subr.mxu0 0.0
    %1560 = vmatpush2.xpose.msra.mxu0 0.0
    %1561 = vmatprep.subr.mxu0 0.0
    %1562 = vmatpush2.xpose.msra.mxu0 0.0
    %1563 = vmatprep.mubr.f32.mxu0 0.0
    %v1564 = vand.u32 %v1493, 4294901760
    %v1565 = vsub.f32 %v1493, %v1564
    %v1566 = vand.u32 %v1565, 4294901760
    %v1567 = vsub.f32 %v1565, %v1566
    %v1568 = vand.u32 %v1567, 4294901760
    %1569 = vmatmul.mubr.f32.gmra.mxu0 %v1568
    %v1570 = vpop.f32.mrf.mxu0
    %v1571 = vadd.f32 0.0, %v1570
    %v1572 = vpop.f32.mrf.mxu0
    %1573 = vdwg.mxu0
    %1574 = vmatprep.subr.mxu0 0.0
    %1575 = vmatpush1.xpose.msra.mxu0 0.0
    %1576 = vmatprep.subr.mxu0 0.0
    %1577 = vmatpush1.xpose.msra.mxu0 0.0
    %1578 = vmatprep.subr.mxu0 0.0
    %1579 = vmatpush1.xpose.msra.mxu0 0.0
    %1580 = vmatprep.subr.mxu0 0.0
    %1581 = vmatpush1.xpose.msra.mxu0 0.0
    %1582 = vmatprep.subr.mxu0 0.0
    %1583 = vmatpush1.xpose.msra.mxu0 0.0
    %1584 = vmatprep.subr.mxu0 0.0
    %1585 = vmatpush1.xpose.msra.mxu0 0.0
    %1586 = vmatprep.subr.mxu0 0.0
    %1587 = vmatpush1.xpose.msra.mxu0 0.0
    %1588 = vmatprep.subr.mxu0 0.0
    %1589 = vmatpush1.xpose.msra.mxu0 0.0
    %1590 = vmatprep.subr.mxu0 0.0
    %1591 = vmatpush1.xpose.msra.mxu0 0.0
    %1592 = vmatprep.subr.mxu0 0.0
    %1593 = vmatpush1.xpose.msra.mxu0 0.0
    %1594 = vmatprep.subr.mxu0 0.0
    %1595 = vmatpush1.xpose.msra.mxu0 0.0
    %1596 = vmatprep.subr.mxu0 0.0
    %1597 = vmatpush1.xpose.msra.mxu0 0.0
    %1598 = vmatprep.subr.mxu0 0.0
    %1599 = vmatpush1.xpose.msra.mxu0 0.0
    %1600 = vmatprep.subr.mxu0 0.0
    %1601 = vmatpush1.xpose.msra.mxu0 0.0
    %1602 = vmatprep.subr.mxu0 0.0
    %1603 = vmatpush1.xpose.msra.mxu0 0.0
    %1604 = vmatprep.subr.mxu0 0.0
    %v1605 = vand.u32 %v1496, 4294901760
    %v1606 = vsub.f32 %v1496, %v1605
    %v1607 = vand.u32 %v1606, 4294901760
    %v1608 = vsub.f32 %v1606, %v1607
    %v1609 = vand.u32 %v1608, 4294901760
    %1610 = vmatpush1.xpose.msra.mxu0 %v1609
    %1611 = vmatprep.subr.mxu0 0.0
    %1612 = vmatpush2.xpose.msra.mxu0 0.0
    %1613 = vmatprep.subr.mxu0 0.0
    %1614 = vmatpush2.xpose.msra.mxu0 0.0
    %1615 = vmatprep.subr.mxu0 0.0
    %1616 = vmatpush2.xpose.msra.mxu0 0.0
    %1617 = vmatprep.subr.mxu0 0.0
    %1618 = vmatpush2.xpose.msra.mxu0 0.0
    %1619 = vmatprep.subr.mxu0 0.0
    %1620 = vmatpush2.xpose.msra.mxu0 0.0
    %1621 = vmatprep.subr.mxu0 0.0
    %1622 = vmatpush2.xpose.msra.mxu0 0.0
    %1623 = vmatprep.subr.mxu0 0.0
    %1624 = vmatpush2.xpose.msra.mxu0 0.0
    %1625 = vmatprep.subr.mxu0 0.0
    %1626 = vmatpush2.xpose.msra.mxu0 0.0
    %1627 = vmatprep.subr.mxu0 0.0
    %1628 = vmatpush2.xpose.msra.mxu0 0.0
    %1629 = vmatprep.subr.mxu0 0.0
    %1630 = vmatpush2.xpose.msra.mxu0 0.0
    %1631 = vmatprep.subr.mxu0 0.0
    %1632 = vmatpush2.xpose.msra.mxu0 0.0
    %1633 = vmatprep.subr.mxu0 0.0
    %1634 = vmatpush2.xpose.msra.mxu0 0.0
    %1635 = vmatprep.subr.mxu0 0.0
    %1636 = vmatpush2.xpose.msra.mxu0 0.0
    %1637 = vmatprep.subr.mxu0 0.0
    %1638 = vmatpush2.xpose.msra.mxu0 0.0
    %1639 = vmatprep.subr.mxu0 0.0
    %1640 = vmatpush2.xpose.msra.mxu0 0.0
    %1641 = vmatprep.subr.mxu0 0.0
    %1642 = vmatpush2.xpose.msra.mxu0 0.0
    %1643 = vmatprep.mubr.f32.mxu0 0.0
    %v1644 = vand.u32 %v1493, 4294901760
    %1645 = vmatmul.mubr.f32.gmra.mxu0 %v1644
    %v1646 = vpop.f32.mrf.mxu0
    %v1647 = vadd.f32 %v1571, %v1646
    %v1648 = vpop.f32.mrf.mxu0
    %1649 = vdwg.mxu0
    %1650 = vmatprep.subr.mxu0 0.0
    %1651 = vmatpush1.xpose.msra.mxu0 0.0
    %1652 = vmatprep.subr.mxu0 0.0
    %1653 = vmatpush1.xpose.msra.mxu0 0.0
    %1654 = vmatprep.subr.mxu0 0.0
    %1655 = vmatpush1.xpose.msra.mxu0 0.0
    %1656 = vmatprep.subr.mxu0 0.0
    %1657 = vmatpush1.xpose.msra.mxu0 0.0
    %1658 = vmatprep.subr.mxu0 0.0
    %1659 = vmatpush1.xpose.msra.mxu0 0.0
    %1660 = vmatprep.subr.mxu0 0.0
    %1661 = vmatpush1.xpose.msra.mxu0 0.0
    %1662 = vmatprep.subr.mxu0 0.0
    %1663 = vmatpush1.xpose.msra.mxu0 0.0
    %1664 = vmatprep.subr.mxu0 0.0
    %1665 = vmatpush1.xpose.msra.mxu0 0.0
    %1666 = vmatprep.subr.mxu0 0.0
    %1667 = vmatpush1.xpose.msra.mxu0 0.0
    %1668 = vmatprep.subr.mxu0 0.0
    %1669 = vmatpush1.xpose.msra.mxu0 0.0
    %1670 = vmatprep.subr.mxu0 0.0
    %1671 = vmatpush1.xpose.msra.mxu0 0.0
    %1672 = vmatprep.subr.mxu0 0.0
    %1673 = vmatpush1.xpose.msra.mxu0 0.0
    %1674 = vmatprep.subr.mxu0 0.0
    %1675 = vmatpush1.xpose.msra.mxu0 0.0
    %1676 = vmatprep.subr.mxu0 0.0
    %1677 = vmatpush1.xpose.msra.mxu0 0.0
    %1678 = vmatprep.subr.mxu0 0.0
    %1679 = vmatpush1.xpose.msra.mxu0 0.0
    %1680 = vmatprep.subr.mxu0 0.0
    %v1681 = vand.u32 %v1496, 4294901760
    %v1682 = vsub.f32 %v1496, %v1681
    %1683 = vmatpush1.xpose.msra.mxu0 %v1682
    %1684 = vmatprep.subr.mxu0 0.0
    %1685 = vmatpush2.xpose.msra.mxu0 0.0
    %1686 = vmatprep.subr.mxu0 0.0
    %1687 = vmatpush2.xpose.msra.mxu0 0.0
    %1688 = vmatprep.subr.mxu0 0.0
    %1689 = vmatpush2.xpose.msra.mxu0 0.0
    %1690 = vmatprep.subr.mxu0 0.0
    %1691 = vmatpush2.xpose.msra.mxu0 0.0
    %1692 = vmatprep.subr.mxu0 0.0
    %1693 = vmatpush2.xpose.msra.mxu0 0.0
    %1694 = vmatprep.subr.mxu0 0.0
    %1695 = vmatpush2.xpose.msra.mxu0 0.0
    %1696 = vmatprep.subr.mxu0 0.0
    %1697 = vmatpush2.xpose.msra.mxu0 0.0
    %1698 = vmatprep.subr.mxu0 0.0
    %1699 = vmatpush2.xpose.msra.mxu0 0.0
    %1700 = vmatprep.subr.mxu0 0.0
    %1701 = vmatpush2.xpose.msra.mxu0 0.0
    %1702 = vmatprep.subr.mxu0 0.0
    %1703 = vmatpush2.xpose.msra.mxu0 0.0
    %1704 = vmatprep.subr.mxu0 0.0
    %1705 = vmatpush2.xpose.msra.mxu0 0.0
    %1706 = vmatprep.subr.mxu0 0.0
    %1707 = vmatpush2.xpose.msra.mxu0 0.0
    %1708 = vmatprep.subr.mxu0 0.0
    %1709 = vmatpush2.xpose.msra.mxu0 0.0
    %1710 = vmatprep.subr.mxu0 0.0
    %1711 = vmatpush2.xpose.msra.mxu0 0.0
    %1712 = vmatprep.subr.mxu0 0.0
    %1713 = vmatpush2.xpose.msra.mxu0 0.0
    %1714 = vmatprep.subr.mxu0 0.0
    %1715 = vmatpush2.xpose.msra.mxu0 0.0
    %1716 = vmatprep.mubr.f32.mxu0 0.0
    %v1717 = vand.u32 %v1493, 4294901760
    %v1718 = vsub.f32 %v1493, %v1717
    %1719 = vmatmul.mubr.f32.gmra.mxu0 %v1718
    %v1720 = vpop.f32.mrf.mxu0
    %v1721 = vadd.f32 %v1647, %v1720
    %v1722 = vpop.f32.mrf.mxu0
    %1723 = vdwg.mxu0
    %1724 = vmatprep.subr.mxu0 0.0
    %1725 = vmatpush1.xpose.msra.mxu0 0.0
    %1726 = vmatprep.subr.mxu0 0.0
    %1727 = vmatpush1.xpose.msra.mxu0 0.0
    %1728 = vmatprep.subr.mxu0 0.0
    %1729 = vmatpush1.xpose.msra.mxu0 0.0
    %1730 = vmatprep.subr.mxu0 0.0
    %1731 = vmatpush1.xpose.msra.mxu0 0.0
    %1732 = vmatprep.subr.mxu0 0.0
    %1733 = vmatpush1.xpose.msra.mxu0 0.0
    %1734 = vmatprep.subr.mxu0 0.0
    %1735 = vmatpush1.xpose.msra.mxu0 0.0
    %1736 = vmatprep.subr.mxu0 0.0
    %1737 = vmatpush1.xpose.msra.mxu0 0.0
    %1738 = vmatprep.subr.mxu0 0.0
    %1739 = vmatpush1.xpose.msra.mxu0 0.0
    %1740 = vmatprep.subr.mxu0 0.0
    %1741 = vmatpush1.xpose.msra.mxu0 0.0
    %1742 = vmatprep.subr.mxu0 0.0
    %1743 = vmatpush1.xpose.msra.mxu0 0.0
    %1744 = vmatprep.subr.mxu0 0.0
    %1745 = vmatpush1.xpose.msra.mxu0 0.0
    %1746 = vmatprep.subr.mxu0 0.0
    %1747 = vmatpush1.xpose.msra.mxu0 0.0
    %1748 = vmatprep.subr.mxu0 0.0
    %1749 = vmatpush1.xpose.msra.mxu0 0.0
    %1750 = vmatprep.subr.mxu0 0.0
    %1751 = vmatpush1.xpose.msra.mxu0 0.0
    %1752 = vmatprep.subr.mxu0 0.0
    %1753 = vmatpush1.xpose.msra.mxu0 0.0
    %1754 = vmatprep.subr.mxu0 0.0
    %v1755 = vand.u32 %v1496, 4294901760
    %1756 = vmatpush1.xpose.msra.mxu0 %v1755
    %1757 = vmatprep.subr.mxu0 0.0
    %1758 = vmatpush2.xpose.msra.mxu0 0.0
    %1759 = vmatprep.subr.mxu0 0.0
    %1760 = vmatpush2.xpose.msra.mxu0 0.0
    %1761 = vmatprep.subr.mxu0 0.0
    %1762 = vmatpush2.xpose.msra.mxu0 0.0
    %1763 = vmatprep.subr.mxu0 0.0
    %1764 = vmatpush2.xpose.msra.mxu0 0.0
    %1765 = vmatprep.subr.mxu0 0.0
    %1766 = vmatpush2.xpose.msra.mxu0 0.0
    %1767 = vmatprep.subr.mxu0 0.0
    %1768 = vmatpush2.xpose.msra.mxu0 0.0
    %1769 = vmatprep.subr.mxu0 0.0
    %1770 = vmatpush2.xpose.msra.mxu0 0.0
    %1771 = vmatprep.subr.mxu0 0.0
    %1772 = vmatpush2.xpose.msra.mxu0 0.0
    %1773 = vmatprep.subr.mxu0 0.0
    %1774 = vmatpush2.xpose.msra.mxu0 0.0
    %1775 = vmatprep.subr.mxu0 0.0
    %1776 = vmatpush2.xpose.msra.mxu0 0.0
    %1777 = vmatprep.subr.mxu0 0.0
    %1778 = vmatpush2.xpose.msra.mxu0 0.0
    %1779 = vmatprep.subr.mxu0 0.0
    %1780 = vmatpush2.xpose.msra.mxu0 0.0
    %1781 = vmatprep.subr.mxu0 0.0
    %1782 = vmatpush2.xpose.msra.mxu0 0.0
    %1783 = vmatprep.subr.mxu0 0.0
    %1784 = vmatpush2.xpose.msra.mxu0 0.0
    %1785 = vmatprep.subr.mxu0 0.0
    %1786 = vmatpush2.xpose.msra.mxu0 0.0
    %1787 = vmatprep.subr.mxu0 0.0
    %1788 = vmatpush2.xpose.msra.mxu0 0.0
    %1789 = vmatprep.mubr.f32.mxu0 0.0
    %v1790 = vand.u32 %v1493, 4294901760
    %v1791 = vsub.f32 %v1493, %v1790
    %v1792 = vand.u32 %v1791, 4294901760
    %1793 = vmatmul.mubr.f32.gmra.mxu0 %v1792
    %v1794 = vpop.f32.mrf.mxu0
    %v1795 = vadd.f32 %v1721, %v1794
    %v1796 = vpop.f32.mrf.mxu0
    %1797 = vdwg.mxu0
    %1798 = vmatprep.subr.mxu0 0.0
    %1799 = vmatpush1.xpose.msra.mxu0 0.0
    %1800 = vmatprep.subr.mxu0 0.0
    %1801 = vmatpush1.xpose.msra.mxu0 0.0
    %1802 = vmatprep.subr.mxu0 0.0
    %1803 = vmatpush1.xpose.msra.mxu0 0.0
    %1804 = vmatprep.subr.mxu0 0.0
    %1805 = vmatpush1.xpose.msra.mxu0 0.0
    %1806 = vmatprep.subr.mxu0 0.0
    %1807 = vmatpush1.xpose.msra.mxu0 0.0
    %1808 = vmatprep.subr.mxu0 0.0
    %1809 = vmatpush1.xpose.msra.mxu0 0.0
    %1810 = vmatprep.subr.mxu0 0.0
    %1811 = vmatpush1.xpose.msra.mxu0 0.0
    %1812 = vmatprep.subr.mxu0 0.0
    %1813 = vmatpush1.xpose.msra.mxu0 0.0
    %1814 = vmatprep.subr.mxu0 0.0
    %1815 = vmatpush1.xpose.msra.mxu0 0.0
    %1816 = vmatprep.subr.mxu0 0.0
    %1817 = vmatpush1.xpose.msra.mxu0 0.0
    %1818 = vmatprep.subr.mxu0 0.0
    %1819 = vmatpush1.xpose.msra.mxu0 0.0
    %1820 = vmatprep.subr.mxu0 0.0
    %1821 = vmatpush1.xpose.msra.mxu0 0.0
    %1822 = vmatprep.subr.mxu0 0.0
    %1823 = vmatpush1.xpose.msra.mxu0 0.0
    %1824 = vmatprep.subr.mxu0 0.0
    %1825 = vmatpush1.xpose.msra.mxu0 0.0
    %1826 = vmatprep.subr.mxu0 0.0
    %1827 = vmatpush1.xpose.msra.mxu0 0.0
    %1828 = vmatprep.subr.mxu0 0.0
    %v1829 = vand.u32 %v1496, 4294901760
    %v1830 = vsub.f32 %v1496, %v1829
    %v1831 = vand.u32 %v1830, 4294901760
    %1832 = vmatpush1.xpose.msra.mxu0 %v1831
    %1833 = vmatprep.subr.mxu0 0.0
    %1834 = vmatpush2.xpose.msra.mxu0 0.0
    %1835 = vmatprep.subr.mxu0 0.0
    %1836 = vmatpush2.xpose.msra.mxu0 0.0
    %1837 = vmatprep.subr.mxu0 0.0
    %1838 = vmatpush2.xpose.msra.mxu0 0.0
    %1839 = vmatprep.subr.mxu0 0.0
    %1840 = vmatpush2.xpose.msra.mxu0 0.0
    %1841 = vmatprep.subr.mxu0 0.0
    %1842 = vmatpush2.xpose.msra.mxu0 0.0
    %1843 = vmatprep.subr.mxu0 0.0
    %1844 = vmatpush2.xpose.msra.mxu0 0.0
    %1845 = vmatprep.subr.mxu0 0.0
    %1846 = vmatpush2.xpose.msra.mxu0 0.0
    %1847 = vmatprep.subr.mxu0 0.0
    %1848 = vmatpush2.xpose.msra.mxu0 0.0
    %1849 = vmatprep.subr.mxu0 0.0
    %1850 = vmatpush2.xpose.msra.mxu0 0.0
    %1851 = vmatprep.subr.mxu0 0.0
    %1852 = vmatpush2.xpose.msra.mxu0 0.0
    %1853 = vmatprep.subr.mxu0 0.0
    %1854 = vmatpush2.xpose.msra.mxu0 0.0
    %1855 = vmatprep.subr.mxu0 0.0
    %1856 = vmatpush2.xpose.msra.mxu0 0.0
    %1857 = vmatprep.subr.mxu0 0.0
    %1858 = vmatpush2.xpose.msra.mxu0 0.0
    %1859 = vmatprep.subr.mxu0 0.0
    %1860 = vmatpush2.xpose.msra.mxu0 0.0
    %1861 = vmatprep.subr.mxu0 0.0
    %1862 = vmatpush2.xpose.msra.mxu0 0.0
    %1863 = vmatprep.subr.mxu0 0.0
    %1864 = vmatpush2.xpose.msra.mxu0 0.0
    %1865 = vmatprep.mubr.f32.mxu0 0.0
    %v1866 = vand.u32 %v1493, 4294901760
    %1867 = vmatmul.mubr.f32.gmra.mxu0 %v1866
    %v1868 = vpop.f32.mrf.mxu0
    %v1869 = vadd.f32 %v1795, %v1868
    %v1870 = vpop.f32.mrf.mxu0
    %1871 = vdwg.mxu0
    %1872 = vmatprep.subr.mxu0 0.0
    %1873 = vmatpush1.xpose.msra.mxu0 0.0
    %1874 = vmatprep.subr.mxu0 0.0
    %1875 = vmatpush1.xpose.msra.mxu0 0.0
    %1876 = vmatprep.subr.mxu0 0.0
    %1877 = vmatpush1.xpose.msra.mxu0 0.0
    %1878 = vmatprep.subr.mxu0 0.0
    %1879 = vmatpush1.xpose.msra.mxu0 0.0
    %1880 = vmatprep.subr.mxu0 0.0
    %1881 = vmatpush1.xpose.msra.mxu0 0.0
    %1882 = vmatprep.subr.mxu0 0.0
    %1883 = vmatpush1.xpose.msra.mxu0 0.0
    %1884 = vmatprep.subr.mxu0 0.0
    %1885 = vmatpush1.xpose.msra.mxu0 0.0
    %1886 = vmatprep.subr.mxu0 0.0
    %1887 = vmatpush1.xpose.msra.mxu0 0.0
    %1888 = vmatprep.subr.mxu0 0.0
    %1889 = vmatpush1.xpose.msra.mxu0 0.0
    %1890 = vmatprep.subr.mxu0 0.0
    %1891 = vmatpush1.xpose.msra.mxu0 0.0
    %1892 = vmatprep.subr.mxu0 0.0
    %1893 = vmatpush1.xpose.msra.mxu0 0.0
    %1894 = vmatprep.subr.mxu0 0.0
    %1895 = vmatpush1.xpose.msra.mxu0 0.0
    %1896 = vmatprep.subr.mxu0 0.0
    %1897 = vmatpush1.xpose.msra.mxu0 0.0
    %1898 = vmatprep.subr.mxu0 0.0
    %1899 = vmatpush1.xpose.msra.mxu0 0.0
    %1900 = vmatprep.subr.mxu0 0.0
    %1901 = vmatpush1.xpose.msra.mxu0 0.0
    %1902 = vmatprep.subr.mxu0 0.0
    %v1903 = vand.u32 %v1496, 4294901760
    %1904 = vmatpush1.xpose.msra.mxu0 %v1903
    %1905 = vmatprep.subr.mxu0 0.0
    %1906 = vmatpush2.xpose.msra.mxu0 0.0
    %1907 = vmatprep.subr.mxu0 0.0
    %1908 = vmatpush2.xpose.msra.mxu0 0.0
    %1909 = vmatprep.subr.mxu0 0.0
    %1910 = vmatpush2.xpose.msra.mxu0 0.0
    %1911 = vmatprep.subr.mxu0 0.0
    %1912 = vmatpush2.xpose.msra.mxu0 0.0
    %1913 = vmatprep.subr.mxu0 0.0
    %1914 = vmatpush2.xpose.msra.mxu0 0.0
    %1915 = vmatprep.subr.mxu0 0.0
    %1916 = vmatpush2.xpose.msra.mxu0 0.0
    %1917 = vmatprep.subr.mxu0 0.0
    %1918 = vmatpush2.xpose.msra.mxu0 0.0
    %1919 = vmatprep.subr.mxu0 0.0
    %1920 = vmatpush2.xpose.msra.mxu0 0.0
    %1921 = vmatprep.subr.mxu0 0.0
    %1922 = vmatpush2.xpose.msra.mxu0 0.0
    %1923 = vmatprep.subr.mxu0 0.0
    %1924 = vmatpush2.xpose.msra.mxu0 0.0
    %1925 = vmatprep.subr.mxu0 0.0
    %1926 = vmatpush2.xpose.msra.mxu0 0.0
    %1927 = vmatprep.subr.mxu0 0.0
    %1928 = vmatpush2.xpose.msra.mxu0 0.0
    %1929 = vmatprep.subr.mxu0 0.0
    %1930 = vmatpush2.xpose.msra.mxu0 0.0
    %1931 = vmatprep.subr.mxu0 0.0
    %1932 = vmatpush2.xpose.msra.mxu0 0.0
    %1933 = vmatprep.subr.mxu0 0.0
    %1934 = vmatpush2.xpose.msra.mxu0 0.0
    %1935 = vmatprep.subr.mxu0 0.0
    %1936 = vmatpush2.xpose.msra.mxu0 0.0
    %1937 = vmatprep.mubr.f32.mxu0 0.0
    %v1938 = vand.u32 %v1493, 4294901760
    %1939 = vmatmul.mubr.f32.gmra.mxu0 %v1938
    %v1940 = vpop.f32.mrf.mxu0
    %v1941 = vadd.f32 %v1869, %v1940
    %v1942 = vpop.f32.mrf.mxu0
    %1943 = vdwg.mxu0
    %v1945 = vsel %vm38, %v105, 0
    %v1948 = vsel %vm38, %v129, 0
    %1950 = vmatprep.subr.mxu0 0.0
    %1951 = vmatpush1.xpose.msra.mxu0 0.0
    %1952 = vmatprep.subr.mxu0 0.0
    %1953 = vmatpush1.xpose.msra.mxu0 0.0
    %1954 = vmatprep.subr.mxu0 0.0
    %1955 = vmatpush1.xpose.msra.mxu0 0.0
    %1956 = vmatprep.subr.mxu0 0.0
    %1957 = vmatpush1.xpose.msra.mxu0 0.0
    %1958 = vmatprep.subr.mxu0 0.0
    %1959 = vmatpush1.xpose.msra.mxu0 0.0
    %1960 = vmatprep.subr.mxu0 0.0
    %1961 = vmatpush1.xpose.msra.mxu0 0.0
    %1962 = vmatprep.subr.mxu0 0.0
    %1963 = vmatpush1.xpose.msra.mxu0 0.0
    %1964 = vmatprep.subr.mxu0 0.0
    %1965 = vmatpush1.xpose.msra.mxu0 0.0
    %1966 = vmatprep.subr.mxu0 0.0
    %1967 = vmatpush1.xpose.msra.mxu0 0.0
    %1968 = vmatprep.subr.mxu0 0.0
    %1969 = vmatpush1.xpose.msra.mxu0 0.0
    %1970 = vmatprep.subr.mxu0 0.0
    %1971 = vmatpush1.xpose.msra.mxu0 0.0
    %1972 = vmatprep.subr.mxu0 0.0
    %1973 = vmatpush1.xpose.msra.mxu0 0.0
    %1974 = vmatprep.subr.mxu0 0.0
    %1975 = vmatpush1.xpose.msra.mxu0 0.0
    %1976 = vmatprep.subr.mxu0 0.0
    %1977 = vmatpush1.xpose.msra.mxu0 0.0
    %1978 = vmatprep.subr.mxu0 0.0
    %1979 = vmatpush1.xpose.msra.mxu0 0.0
    %1980 = vmatprep.subr.mxu0 0.0
    %v1981 = vand.u32 %v1948, 4294901760
    %1982 = vmatpush1.xpose.msra.mxu0 %v1981
    %1983 = vmatprep.subr.mxu0 0.0
    %1984 = vmatpush2.xpose.msra.mxu0 0.0
    %1985 = vmatprep.subr.mxu0 0.0
    %1986 = vmatpush2.xpose.msra.mxu0 0.0
    %1987 = vmatprep.subr.mxu0 0.0
    %1988 = vmatpush2.xpose.msra.mxu0 0.0
    %1989 = vmatprep.subr.mxu0 0.0
    %1990 = vmatpush2.xpose.msra.mxu0 0.0
    %1991 = vmatprep.subr.mxu0 0.0
    %1992 = vmatpush2.xpose.msra.mxu0 0.0
    %1993 = vmatprep.subr.mxu0 0.0
    %1994 = vmatpush2.xpose.msra.mxu0 0.0
    %1995 = vmatprep.subr.mxu0 0.0
    %1996 = vmatpush2.xpose.msra.mxu0 0.0
    %1997 = vmatprep.subr.mxu0 0.0
    %1998 = vmatpush2.xpose.msra.mxu0 0.0
    %1999 = vmatprep.subr.mxu0 0.0
    %2000 = vmatpush2.xpose.msra.mxu0 0.0
    %2001 = vmatprep.subr.mxu0 0.0
    %2002 = vmatpush2.xpose.msra.mxu0 0.0
    %2003 = vmatprep.subr.mxu0 0.0
    %2004 = vmatpush2.xpose.msra.mxu0 0.0
    %2005 = vmatprep.subr.mxu0 0.0
    %2006 = vmatpush2.xpose.msra.mxu0 0.0
    %2007 = vmatprep.subr.mxu0 0.0
    %2008 = vmatpush2.xpose.msra.mxu0 0.0
    %2009 = vmatprep.subr.mxu0 0.0
    %2010 = vmatpush2.xpose.msra.mxu0 0.0
    %2011 = vmatprep.subr.mxu0 0.0
    %2012 = vmatpush2.xpose.msra.mxu0 0.0
    %2013 = vmatprep.subr.mxu0 0.0
    %2014 = vmatpush2.xpose.msra.mxu0 0.0
    %2015 = vmatprep.mubr.f32.mxu0 0.0
    %v2016 = vand.u32 %v1945, 4294901760
    %v2017 = vsub.f32 %v1945, %v2016
    %v2018 = vand.u32 %v2017, 4294901760
    %v2019 = vsub.f32 %v2017, %v2018
    %v2020 = vand.u32 %v2019, 4294901760
    %2021 = vmatmul.mubr.f32.gmra.mxu0 %v2020
    %v2022 = vpop.f32.mrf.mxu0
    %v2023 = vadd.f32 0.0, %v2022
    %v2024 = vpop.f32.mrf.mxu0
    %2025 = vdwg.mxu0
    %2026 = vmatprep.subr.mxu0 0.0
    %2027 = vmatpush1.xpose.msra.mxu0 0.0
    %2028 = vmatprep.subr.mxu0 0.0
    %2029 = vmatpush1.xpose.msra.mxu0 0.0
    %2030 = vmatprep.subr.mxu0 0.0
    %2031 = vmatpush1.xpose.msra.mxu0 0.0
    %2032 = vmatprep.subr.mxu0 0.0
    %2033 = vmatpush1.xpose.msra.mxu0 0.0
    %2034 = vmatprep.subr.mxu0 0.0
    %2035 = vmatpush1.xpose.msra.mxu0 0.0
    %2036 = vmatprep.subr.mxu0 0.0
    %2037 = vmatpush1.xpose.msra.mxu0 0.0
    %2038 = vmatprep.subr.mxu0 0.0
    %2039 = vmatpush1.xpose.msra.mxu0 0.0
    %2040 = vmatprep.subr.mxu0 0.0
    %2041 = vmatpush1.xpose.msra.mxu0 0.0
    %2042 = vmatprep.subr.mxu0 0.0
    %2043 = vmatpush1.xpose.msra.mxu0 0.0
    %2044 = vmatprep.subr.mxu0 0.0
    %2045 = vmatpush1.xpose.msra.mxu0 0.0
    %2046 = vmatprep.subr.mxu0 0.0
    %2047 = vmatpush1.xpose.msra.mxu0 0.0
    %2048 = vmatprep.subr.mxu0 0.0
    %2049 = vmatpush1.xpose.msra.mxu0 0.0
    %2050 = vmatprep.subr.mxu0 0.0
    %2051 = vmatpush1.xpose.msra.mxu0 0.0
    %2052 = vmatprep.subr.mxu0 0.0
    %2053 = vmatpush1.xpose.msra.mxu0 0.0
    %2054 = vmatprep.subr.mxu0 0.0
    %2055 = vmatpush1.xpose.msra.mxu0 0.0
    %2056 = vmatprep.subr.mxu0 0.0
    %v2057 = vand.u32 %v1948, 4294901760
    %v2058 = vsub.f32 %v1948, %v2057
    %v2059 = vand.u32 %v2058, 4294901760
    %v2060 = vsub.f32 %v2058, %v2059
    %v2061 = vand.u32 %v2060, 4294901760
    %2062 = vmatpush1.xpose.msra.mxu0 %v2061
    %2063 = vmatprep.subr.mxu0 0.0
    %2064 = vmatpush2.xpose.msra.mxu0 0.0
    %2065 = vmatprep.subr.mxu0 0.0
    %2066 = vmatpush2.xpose.msra.mxu0 0.0
    %2067 = vmatprep.subr.mxu0 0.0
    %2068 = vmatpush2.xpose.msra.mxu0 0.0
    %2069 = vmatprep.subr.mxu0 0.0
    %2070 = vmatpush2.xpose.msra.mxu0 0.0
    %2071 = vmatprep.subr.mxu0 0.0
    %2072 = vmatpush2.xpose.msra.mxu0 0.0
    %2073 = vmatprep.subr.mxu0 0.0
    %2074 = vmatpush2.xpose.msra.mxu0 0.0
    %2075 = vmatprep.subr.mxu0 0.0
    %2076 = vmatpush2.xpose.msra.mxu0 0.0
    %2077 = vmatprep.subr.mxu0 0.0
    %2078 = vmatpush2.xpose.msra.mxu0 0.0
    %2079 = vmatprep.subr.mxu0 0.0
    %2080 = vmatpush2.xpose.msra.mxu0 0.0
    %2081 = vmatprep.subr.mxu0 0.0
    %2082 = vmatpush2.xpose.msra.mxu0 0.0
    %2083 = vmatprep.subr.mxu0 0.0
    %2084 = vmatpush2.xpose.msra.mxu0 0.0
    %2085 = vmatprep.subr.mxu0 0.0
    %2086 = vmatpush2.xpose.msra.mxu0 0.0
    %2087 = vmatprep.subr.mxu0 0.0
    %2088 = vmatpush2.xpose.msra.mxu0 0.0
    %2089 = vmatprep.subr.mxu0 0.0
    %2090 = vmatpush2.xpose.msra.mxu0 0.0
    %2091 = vmatprep.subr.mxu0 0.0
    %2092 = vmatpush2.xpose.msra.mxu0 0.0
    %2093 = vmatprep.subr.mxu0 0.0
    %2094 = vmatpush2.xpose.msra.mxu0 0.0
    %2095 = vmatprep.mubr.f32.mxu0 0.0
    %v2096 = vand.u32 %v1945, 4294901760
    %2097 = vmatmul.mubr.f32.gmra.mxu0 %v2096
    %v2098 = vpop.f32.mrf.mxu0
    %v2099 = vadd.f32 %v2023, %v2098
    %v2100 = vpop.f32.mrf.mxu0
    %2101 = vdwg.mxu0
    %2102 = vmatprep.subr.mxu0 0.0
    %2103 = vmatpush1.xpose.msra.mxu0 0.0
    %2104 = vmatprep.subr.mxu0 0.0
    %2105 = vmatpush1.xpose.msra.mxu0 0.0
    %2106 = vmatprep.subr.mxu0 0.0
    %2107 = vmatpush1.xpose.msra.mxu0 0.0
    %2108 = vmatprep.subr.mxu0 0.0
    %2109 = vmatpush1.xpose.msra.mxu0 0.0
    %2110 = vmatprep.subr.mxu0 0.0
    %2111 = vmatpush1.xpose.msra.mxu0 0.0
    %2112 = vmatprep.subr.mxu0 0.0
    %2113 = vmatpush1.xpose.msra.mxu0 0.0
    %2114 = vmatprep.subr.mxu0 0.0
    %2115 = vmatpush1.xpose.msra.mxu0 0.0
    %2116 = vmatprep.subr.mxu0 0.0
    %2117 = vmatpush1.xpose.msra.mxu0 0.0
    %2118 = vmatprep.subr.mxu0 0.0
    %2119 = vmatpush1.xpose.msra.mxu0 0.0
    %2120 = vmatprep.subr.mxu0 0.0
    %2121 = vmatpush1.xpose.msra.mxu0 0.0
    %2122 = vmatprep.subr.mxu0 0.0
    %2123 = vmatpush1.xpose.msra.mxu0 0.0
    %2124 = vmatprep.subr.mxu0 0.0
    %2125 = vmatpush1.xpose.msra.mxu0 0.0
    %2126 = vmatprep.subr.mxu0 0.0
    %2127 = vmatpush1.xpose.msra.mxu0 0.0
    %2128 = vmatprep.subr.mxu0 0.0
    %2129 = vmatpush1.xpose.msra.mxu0 0.0
    %2130 = vmatprep.subr.mxu0 0.0
    %2131 = vmatpush1.xpose.msra.mxu0 0.0
    %2132 = vmatprep.subr.mxu0 0.0
    %v2133 = vand.u32 %v1948, 4294901760
    %v2134 = vsub.f32 %v1948, %v2133
    %2135 = vmatpush1.xpose.msra.mxu0 %v2134
    %2136 = vmatprep.subr.mxu0 0.0
    %2137 = vmatpush2.xpose.msra.mxu0 0.0
    %2138 = vmatprep.subr.mxu0 0.0
    %2139 = vmatpush2.xpose.msra.mxu0 0.0
    %2140 = vmatprep.subr.mxu0 0.0
    %2141 = vmatpush2.xpose.msra.mxu0 0.0
    %2142 = vmatprep.subr.mxu0 0.0
    %2143 = vmatpush2.xpose.msra.mxu0 0.0
    %2144 = vmatprep.subr.mxu0 0.0
    %2145 = vmatpush2.xpose.msra.mxu0 0.0
    %2146 = vmatprep.subr.mxu0 0.0
    %2147 = vmatpush2.xpose.msra.mxu0 0.0
    %2148 = vmatprep.subr.mxu0 0.0
    %2149 = vmatpush2.xpose.msra.mxu0 0.0
    %2150 = vmatprep.subr.mxu0 0.0
    %2151 = vmatpush2.xpose.msra.mxu0 0.0
    %2152 = vmatprep.subr.mxu0 0.0
    %2153 = vmatpush2.xpose.msra.mxu0 0.0
    %2154 = vmatprep.subr.mxu0 0.0
    %2155 = vmatpush2.xpose.msra.mxu0 0.0
    %2156 = vmatprep.subr.mxu0 0.0
    %2157 = vmatpush2.xpose.msra.mxu0 0.0
    %2158 = vmatprep.subr.mxu0 0.0
    %2159 = vmatpush2.xpose.msra.mxu0 0.0
    %2160 = vmatprep.subr.mxu0 0.0
    %2161 = vmatpush2.xpose.msra.mxu0 0.0
    %2162 = vmatprep.subr.mxu0 0.0
    %2163 = vmatpush2.xpose.msra.mxu0 0.0
    %2164 = vmatprep.subr.mxu0 0.0
    %2165 = vmatpush2.xpose.msra.mxu0 0.0
    %2166 = vmatprep.subr.mxu0 0.0
    %2167 = vmatpush2.xpose.msra.mxu0 0.0
    %2168 = vmatprep.mubr.f32.mxu0 0.0
    %v2169 = vand.u32 %v1945, 4294901760
    %v2170 = vsub.f32 %v1945, %v2169
    %2171 = vmatmul.mubr.f32.gmra.mxu0 %v2170
    %v2172 = vpop.f32.mrf.mxu0
    %v2173 = vadd.f32 %v2099, %v2172
    %v2174 = vpop.f32.mrf.mxu0
    %2175 = vdwg.mxu0
    %2176 = vmatprep.subr.mxu0 0.0
    %2177 = vmatpush1.xpose.msra.mxu0 0.0
    %2178 = vmatprep.subr.mxu0 0.0
    %2179 = vmatpush1.xpose.msra.mxu0 0.0
    %2180 = vmatprep.subr.mxu0 0.0
    %2181 = vmatpush1.xpose.msra.mxu0 0.0
    %2182 = vmatprep.subr.mxu0 0.0
    %2183 = vmatpush1.xpose.msra.mxu0 0.0
    %2184 = vmatprep.subr.mxu0 0.0
    %2185 = vmatpush1.xpose.msra.mxu0 0.0
    %2186 = vmatprep.subr.mxu0 0.0
    %2187 = vmatpush1.xpose.msra.mxu0 0.0
    %2188 = vmatprep.subr.mxu0 0.0
    %2189 = vmatpush1.xpose.msra.mxu0 0.0
    %2190 = vmatprep.subr.mxu0 0.0
    %2191 = vmatpush1.xpose.msra.mxu0 0.0
    %2192 = vmatprep.subr.mxu0 0.0
    %2193 = vmatpush1.xpose.msra.mxu0 0.0
    %2194 = vmatprep.subr.mxu0 0.0
    %2195 = vmatpush1.xpose.msra.mxu0 0.0
    %2196 = vmatprep.subr.mxu0 0.0
    %2197 = vmatpush1.xpose.msra.mxu0 0.0
    %2198 = vmatprep.subr.mxu0 0.0
    %2199 = vmatpush1.xpose.msra.mxu0 0.0
    %2200 = vmatprep.subr.mxu0 0.0
    %2201 = vmatpush1.xpose.msra.mxu0 0.0
    %2202 = vmatprep.subr.mxu0 0.0
    %2203 = vmatpush1.xpose.msra.mxu0 0.0
    %2204 = vmatprep.subr.mxu0 0.0
    %2205 = vmatpush1.xpose.msra.mxu0 0.0
    %2206 = vmatprep.subr.mxu0 0.0
    %v2207 = vand.u32 %v1948, 4294901760
    %2208 = vmatpush1.xpose.msra.mxu0 %v2207
    %2209 = vmatprep.subr.mxu0 0.0
    %2210 = vmatpush2.xpose.msra.mxu0 0.0
    %2211 = vmatprep.subr.mxu0 0.0
    %2212 = vmatpush2.xpose.msra.mxu0 0.0
    %2213 = vmatprep.subr.mxu0 0.0
    %2214 = vmatpush2.xpose.msra.mxu0 0.0
    %2215 = vmatprep.subr.mxu0 0.0
    %2216 = vmatpush2.xpose.msra.mxu0 0.0
    %2217 = vmatprep.subr.mxu0 0.0
    %2218 = vmatpush2.xpose.msra.mxu0 0.0
    %2219 = vmatprep.subr.mxu0 0.0
    %2220 = vmatpush2.xpose.msra.mxu0 0.0
    %2221 = vmatprep.subr.mxu0 0.0
    %2222 = vmatpush2.xpose.msra.mxu0 0.0
    %2223 = vmatprep.subr.mxu0 0.0
    %2224 = vmatpush2.xpose.msra.mxu0 0.0
    %2225 = vmatprep.subr.mxu0 0.0
    %2226 = vmatpush2.xpose.msra.mxu0 0.0
    %2227 = vmatprep.subr.mxu0 0.0
    %2228 = vmatpush2.xpose.msra.mxu0 0.0
    %2229 = vmatprep.subr.mxu0 0.0
    %2230 = vmatpush2.xpose.msra.mxu0 0.0
    %2231 = vmatprep.subr.mxu0 0.0
    %2232 = vmatpush2.xpose.msra.mxu0 0.0
    %2233 = vmatprep.subr.mxu0 0.0
    %2234 = vmatpush2.xpose.msra.mxu0 0.0
    %2235 = vmatprep.subr.mxu0 0.0
    %2236 = vmatpush2.xpose.msra.mxu0 0.0
    %2237 = vmatprep.subr.mxu0 0.0
    %2238 = vmatpush2.xpose.msra.mxu0 0.0
    %2239 = vmatprep.subr.mxu0 0.0
    %2240 = vmatpush2.xpose.msra.mxu0 0.0
    %2241 = vmatprep.mubr.f32.mxu0 0.0
    %v2242 = vand.u32 %v1945, 4294901760
    %v2243 = vsub.f32 %v1945, %v2242
    %v2244 = vand.u32 %v2243, 4294901760
    %2245 = vmatmul.mubr.f32.gmra.mxu0 %v2244
    %v2246 = vpop.f32.mrf.mxu0
    %v2247 = vadd.f32 %v2173, %v2246
    %v2248 = vpop.f32.mrf.mxu0
    %2249 = vdwg.mxu0
    %2250 = vmatprep.subr.mxu0 0.0
    %2251 = vmatpush1.xpose.msra.mxu0 0.0
    %2252 = vmatprep.subr.mxu0 0.0
    %2253 = vmatpush1.xpose.msra.mxu0 0.0
    %2254 = vmatprep.subr.mxu0 0.0
    %2255 = vmatpush1.xpose.msra.mxu0 0.0
    %2256 = vmatprep.subr.mxu0 0.0
    %2257 = vmatpush1.xpose.msra.mxu0 0.0
    %2258 = vmatprep.subr.mxu0 0.0
    %2259 = vmatpush1.xpose.msra.mxu0 0.0
    %2260 = vmatprep.subr.mxu0 0.0
    %2261 = vmatpush1.xpose.msra.mxu0 0.0
    %2262 = vmatprep.subr.mxu0 0.0
    %2263 = vmatpush1.xpose.msra.mxu0 0.0
    %2264 = vmatprep.subr.mxu0 0.0
    %2265 = vmatpush1.xpose.msra.mxu0 0.0
    %2266 = vmatprep.subr.mxu0 0.0
    %2267 = vmatpush1.xpose.msra.mxu0 0.0
    %2268 = vmatprep.subr.mxu0 0.0
    %2269 = vmatpush1.xpose.msra.mxu0 0.0
    %2270 = vmatprep.subr.mxu0 0.0
    %2271 = vmatpush1.xpose.msra.mxu0 0.0
    %2272 = vmatprep.subr.mxu0 0.0
    %2273 = vmatpush1.xpose.msra.mxu0 0.0
    %2274 = vmatprep.subr.mxu0 0.0
    %2275 = vmatpush1.xpose.msra.mxu0 0.0
    %2276 = vmatprep.subr.mxu0 0.0
    %2277 = vmatpush1.xpose.msra.mxu0 0.0
    %2278 = vmatprep.subr.mxu0 0.0
    %2279 = vmatpush1.xpose.msra.mxu0 0.0
    %2280 = vmatprep.subr.mxu0 0.0
    %v2281 = vand.u32 %v1948, 4294901760
    %v2282 = vsub.f32 %v1948, %v2281
    %v2283 = vand.u32 %v2282, 4294901760
    %2284 = vmatpush1.xpose.msra.mxu0 %v2283
    %2285 = vmatprep.subr.mxu0 0.0
    %2286 = vmatpush2.xpose.msra.mxu0 0.0
    %2287 = vmatprep.subr.mxu0 0.0
    %2288 = vmatpush2.xpose.msra.mxu0 0.0
    %2289 = vmatprep.subr.mxu0 0.0
    %2290 = vmatpush2.xpose.msra.mxu0 0.0
    %2291 = vmatprep.subr.mxu0 0.0
    %2292 = vmatpush2.xpose.msra.mxu0 0.0
    %2293 = vmatprep.subr.mxu0 0.0
    %2294 = vmatpush2.xpose.msra.mxu0 0.0
    %2295 = vmatprep.subr.mxu0 0.0
    %2296 = vmatpush2.xpose.msra.mxu0 0.0
    %2297 = vmatprep.subr.mxu0 0.0
    %2298 = vmatpush2.xpose.msra.mxu0 0.0
    %2299 = vmatprep.subr.mxu0 0.0
    %2300 = vmatpush2.xpose.msra.mxu0 0.0
    %2301 = vmatprep.subr.mxu0 0.0
    %2302 = vmatpush2.xpose.msra.mxu0 0.0
    %2303 = vmatprep.subr.mxu0 0.0
    %2304 = vmatpush2.xpose.msra.mxu0 0.0
    %2305 = vmatprep.subr.mxu0 0.0
    %2306 = vmatpush2.xpose.msra.mxu0 0.0
    %2307 = vmatprep.subr.mxu0 0.0
    %2308 = vmatpush2.xpose.msra.mxu0 0.0
    %2309 = vmatprep.subr.mxu0 0.0
    %2310 = vmatpush2.xpose.msra.mxu0 0.0
    %2311 = vmatprep.subr.mxu0 0.0
    %2312 = vmatpush2.xpose.msra.mxu0 0.0
    %2313 = vmatprep.subr.mxu0 0.0
    %2314 = vmatpush2.xpose.msra.mxu0 0.0
    %2315 = vmatprep.subr.mxu0 0.0
    %2316 = vmatpush2.xpose.msra.mxu0 0.0
    %2317 = vmatprep.mubr.f32.mxu0 0.0
    %v2318 = vand.u32 %v1945, 4294901760
    %2319 = vmatmul.mubr.f32.gmra.mxu0 %v2318
    %v2320 = vpop.f32.mrf.mxu0
    %v2321 = vadd.f32 %v2247, %v2320
    %v2322 = vpop.f32.mrf.mxu0
    %2323 = vdwg.mxu0
    %2324 = vmatprep.subr.mxu0 0.0
    %2325 = vmatpush1.xpose.msra.mxu0 0.0
    %2326 = vmatprep.subr.mxu0 0.0
    %2327 = vmatpush1.xpose.msra.mxu0 0.0
    %2328 = vmatprep.subr.mxu0 0.0
    %2329 = vmatpush1.xpose.msra.mxu0 0.0
    %2330 = vmatprep.subr.mxu0 0.0
    %2331 = vmatpush1.xpose.msra.mxu0 0.0
    %2332 = vmatprep.subr.mxu0 0.0
    %2333 = vmatpush1.xpose.msra.mxu0 0.0
    %2334 = vmatprep.subr.mxu0 0.0
    %2335 = vmatpush1.xpose.msra.mxu0 0.0
    %2336 = vmatprep.subr.mxu0 0.0
    %2337 = vmatpush1.xpose.msra.mxu0 0.0
    %2338 = vmatprep.subr.mxu0 0.0
    %2339 = vmatpush1.xpose.msra.mxu0 0.0
    %2340 = vmatprep.subr.mxu0 0.0
    %2341 = vmatpush1.xpose.msra.mxu0 0.0
    %2342 = vmatprep.subr.mxu0 0.0
    %2343 = vmatpush1.xpose.msra.mxu0 0.0
    %2344 = vmatprep.subr.mxu0 0.0
    %2345 = vmatpush1.xpose.msra.mxu0 0.0
    %2346 = vmatprep.subr.mxu0 0.0
    %2347 = vmatpush1.xpose.msra.mxu0 0.0
    %2348 = vmatprep.subr.mxu0 0.0
    %2349 = vmatpush1.xpose.msra.mxu0 0.0
    %2350 = vmatprep.subr.mxu0 0.0
    %2351 = vmatpush1.xpose.msra.mxu0 0.0
    %2352 = vmatprep.subr.mxu0 0.0
    %2353 = vmatpush1.xpose.msra.mxu0 0.0
    %2354 = vmatprep.subr.mxu0 0.0
    %v2355 = vand.u32 %v1948, 4294901760
    %2356 = vmatpush1.xpose.msra.mxu0 %v2355
    %2357 = vmatprep.subr.mxu0 0.0
    %2358 = vmatpush2.xpose.msra.mxu0 0.0
    %2359 = vmatprep.subr.mxu0 0.0
    %2360 = vmatpush2.xpose.msra.mxu0 0.0
    %2361 = vmatprep.subr.mxu0 0.0
    %2362 = vmatpush2.xpose.msra.mxu0 0.0
    %2363 = vmatprep.subr.mxu0 0.0
    %2364 = vmatpush2.xpose.msra.mxu0 0.0
    %2365 = vmatprep.subr.mxu0 0.0
    %2366 = vmatpush2.xpose.msra.mxu0 0.0
    %2367 = vmatprep.subr.mxu0 0.0
    %2368 = vmatpush2.xpose.msra.mxu0 0.0
    %2369 = vmatprep.subr.mxu0 0.0
    %2370 = vmatpush2.xpose.msra.mxu0 0.0
    %2371 = vmatprep.subr.mxu0 0.0
    %2372 = vmatpush2.xpose.msra.mxu0 0.0
    %2373 = vmatprep.subr.mxu0 0.0
    %2374 = vmatpush2.xpose.msra.mxu0 0.0
    %2375 = vmatprep.subr.mxu0 0.0
    %2376 = vmatpush2.xpose.msra.mxu0 0.0
    %2377 = vmatprep.subr.mxu0 0.0
    %2378 = vmatpush2.xpose.msra.mxu0 0.0
    %2379 = vmatprep.subr.mxu0 0.0
    %2380 = vmatpush2.xpose.msra.mxu0 0.0
    %2381 = vmatprep.subr.mxu0 0.0
    %2382 = vmatpush2.xpose.msra.mxu0 0.0
    %2383 = vmatprep.subr.mxu0 0.0
    %2384 = vmatpush2.xpose.msra.mxu0 0.0
    %2385 = vmatprep.subr.mxu0 0.0
    %2386 = vmatpush2.xpose.msra.mxu0 0.0
    %2387 = vmatprep.subr.mxu0 0.0
    %2388 = vmatpush2.xpose.msra.mxu0 0.0
    %2389 = vmatprep.mubr.f32.mxu0 0.0
    %v2390 = vand.u32 %v1945, 4294901760
    %2391 = vmatmul.mubr.f32.gmra.mxu0 %v2390
    %v2392 = vpop.f32.mrf.mxu0
    %v2393 = vadd.f32 %v2321, %v2392
    %v2394 = vpop.f32.mrf.mxu0
    %2395 = vdwg.mxu0
    %v2397 = vsel %vm38, %v107, 0
    %v2400 = vsel %vm38, %v131, 0
    %2402 = vmatprep.subr.mxu0 0.0
    %2403 = vmatpush1.xpose.msra.mxu0 0.0
    %2404 = vmatprep.subr.mxu0 0.0
    %2405 = vmatpush1.xpose.msra.mxu0 0.0
    %2406 = vmatprep.subr.mxu0 0.0
    %2407 = vmatpush1.xpose.msra.mxu0 0.0
    %2408 = vmatprep.subr.mxu0 0.0
    %2409 = vmatpush1.xpose.msra.mxu0 0.0
    %2410 = vmatprep.subr.mxu0 0.0
    %2411 = vmatpush1.xpose.msra.mxu0 0.0
    %2412 = vmatprep.subr.mxu0 0.0
    %2413 = vmatpush1.xpose.msra.mxu0 0.0
    %2414 = vmatprep.subr.mxu0 0.0
    %2415 = vmatpush1.xpose.msra.mxu0 0.0
    %2416 = vmatprep.subr.mxu0 0.0
    %2417 = vmatpush1.xpose.msra.mxu0 0.0
    %2418 = vmatprep.subr.mxu0 0.0
    %2419 = vmatpush1.xpose.msra.mxu0 0.0
    %2420 = vmatprep.subr.mxu0 0.0
    %2421 = vmatpush1.xpose.msra.mxu0 0.0
    %2422 = vmatprep.subr.mxu0 0.0
    %2423 = vmatpush1.xpose.msra.mxu0 0.0
    %2424 = vmatprep.subr.mxu0 0.0
    %2425 = vmatpush1.xpose.msra.mxu0 0.0
    %2426 = vmatprep.subr.mxu0 0.0
    %2427 = vmatpush1.xpose.msra.mxu0 0.0
    %2428 = vmatprep.subr.mxu0 0.0
    %2429 = vmatpush1.xpose.msra.mxu0 0.0
    %2430 = vmatprep.subr.mxu0 0.0
    %2431 = vmatpush1.xpose.msra.mxu0 0.0
    %2432 = vmatprep.subr.mxu0 0.0
    %v2433 = vand.u32 %v2400, 4294901760
    %2434 = vmatpush1.xpose.msra.mxu0 %v2433
    %2435 = vmatprep.subr.mxu0 0.0
    %2436 = vmatpush2.xpose.msra.mxu0 0.0
    %2437 = vmatprep.subr.mxu0 0.0
    %2438 = vmatpush2.xpose.msra.mxu0 0.0
    %2439 = vmatprep.subr.mxu0 0.0
    %2440 = vmatpush2.xpose.msra.mxu0 0.0
    %2441 = vmatprep.subr.mxu0 0.0
    %2442 = vmatpush2.xpose.msra.mxu0 0.0
    %2443 = vmatprep.subr.mxu0 0.0
    %2444 = vmatpush2.xpose.msra.mxu0 0.0
    %2445 = vmatprep.subr.mxu0 0.0
    %2446 = vmatpush2.xpose.msra.mxu0 0.0
    %2447 = vmatprep.subr.mxu0 0.0
    %2448 = vmatpush2.xpose.msra.mxu0 0.0
    %2449 = vmatprep.subr.mxu0 0.0
    %2450 = vmatpush2.xpose.msra.mxu0 0.0
    %2451 = vmatprep.subr.mxu0 0.0
    %2452 = vmatpush2.xpose.msra.mxu0 0.0
    %2453 = vmatprep.subr.mxu0 0.0
    %2454 = vmatpush2.xpose.msra.mxu0 0.0
    %2455 = vmatprep.subr.mxu0 0.0
    %2456 = vmatpush2.xpose.msra.mxu0 0.0
    %2457 = vmatprep.subr.mxu0 0.0
    %2458 = vmatpush2.xpose.msra.mxu0 0.0
    %2459 = vmatprep.subr.mxu0 0.0
    %2460 = vmatpush2.xpose.msra.mxu0 0.0
    %2461 = vmatprep.subr.mxu0 0.0
    %2462 = vmatpush2.xpose.msra.mxu0 0.0
    %2463 = vmatprep.subr.mxu0 0.0
    %2464 = vmatpush2.xpose.msra.mxu0 0.0
    %2465 = vmatprep.subr.mxu0 0.0
    %2466 = vmatpush2.xpose.msra.mxu0 0.0
    %2467 = vmatprep.mubr.f32.mxu0 0.0
    %v2468 = vand.u32 %v2397, 4294901760
    %v2469 = vsub.f32 %v2397, %v2468
    %v2470 = vand.u32 %v2469, 4294901760
    %v2471 = vsub.f32 %v2469, %v2470
    %v2472 = vand.u32 %v2471, 4294901760
    %2473 = vmatmul.mubr.f32.gmra.mxu0 %v2472
    %v2474 = vpop.f32.mrf.mxu0
    %v2475 = vadd.f32 0.0, %v2474
    %v2476 = vpop.f32.mrf.mxu0
    %2477 = vdwg.mxu0
    %2478 = vmatprep.subr.mxu0 0.0
    %2479 = vmatpush1.xpose.msra.mxu0 0.0
    %2480 = vmatprep.subr.mxu0 0.0
    %2481 = vmatpush1.xpose.msra.mxu0 0.0
    %2482 = vmatprep.subr.mxu0 0.0
    %2483 = vmatpush1.xpose.msra.mxu0 0.0
    %2484 = vmatprep.subr.mxu0 0.0
    %2485 = vmatpush1.xpose.msra.mxu0 0.0
    %2486 = vmatprep.subr.mxu0 0.0
    %2487 = vmatpush1.xpose.msra.mxu0 0.0
    %2488 = vmatprep.subr.mxu0 0.0
    %2489 = vmatpush1.xpose.msra.mxu0 0.0
    %2490 = vmatprep.subr.mxu0 0.0
    %2491 = vmatpush1.xpose.msra.mxu0 0.0
    %2492 = vmatprep.subr.mxu0 0.0
    %2493 = vmatpush1.xpose.msra.mxu0 0.0
    %2494 = vmatprep.subr.mxu0 0.0
    %2495 = vmatpush1.xpose.msra.mxu0 0.0
    %2496 = vmatprep.subr.mxu0 0.0
    %2497 = vmatpush1.xpose.msra.mxu0 0.0
    %2498 = vmatprep.subr.mxu0 0.0
    %2499 = vmatpush1.xpose.msra.mxu0 0.0
    %2500 = vmatprep.subr.mxu0 0.0
    %2501 = vmatpush1.xpose.msra.mxu0 0.0
    %2502 = vmatprep.subr.mxu0 0.0
    %2503 = vmatpush1.xpose.msra.mxu0 0.0
    %2504 = vmatprep.subr.mxu0 0.0
    %2505 = vmatpush1.xpose.msra.mxu0 0.0
    %2506 = vmatprep.subr.mxu0 0.0
    %2507 = vmatpush1.xpose.msra.mxu0 0.0
    %2508 = vmatprep.subr.mxu0 0.0
    %v2509 = vand.u32 %v2400, 4294901760
    %v2510 = vsub.f32 %v2400, %v2509
    %v2511 = vand.u32 %v2510, 4294901760
    %v2512 = vsub.f32 %v2510, %v2511
    %v2513 = vand.u32 %v2512, 4294901760
    %2514 = vmatpush1.xpose.msra.mxu0 %v2513
    %2515 = vmatprep.subr.mxu0 0.0
    %2516 = vmatpush2.xpose.msra.mxu0 0.0
    %2517 = vmatprep.subr.mxu0 0.0
    %2518 = vmatpush2.xpose.msra.mxu0 0.0
    %2519 = vmatprep.subr.mxu0 0.0
    %2520 = vmatpush2.xpose.msra.mxu0 0.0
    %2521 = vmatprep.subr.mxu0 0.0
    %2522 = vmatpush2.xpose.msra.mxu0 0.0
    %2523 = vmatprep.subr.mxu0 0.0
    %2524 = vmatpush2.xpose.msra.mxu0 0.0
    %2525 = vmatprep.subr.mxu0 0.0
    %2526 = vmatpush2.xpose.msra.mxu0 0.0
    %2527 = vmatprep.subr.mxu0 0.0
    %2528 = vmatpush2.xpose.msra.mxu0 0.0
    %2529 = vmatprep.subr.mxu0 0.0
    %2530 = vmatpush2.xpose.msra.mxu0 0.0
    %2531 = vmatprep.subr.mxu0 0.0
    %2532 = vmatpush2.xpose.msra.mxu0 0.0
    %2533 = vmatprep.subr.mxu0 0.0
    %2534 = vmatpush2.xpose.msra.mxu0 0.0
    %2535 = vmatprep.subr.mxu0 0.0
    %2536 = vmatpush2.xpose.msra.mxu0 0.0
    %2537 = vmatprep.subr.mxu0 0.0
    %2538 = vmatpush2.xpose.msra.mxu0 0.0
    %2539 = vmatprep.subr.mxu0 0.0
    %2540 = vmatpush2.xpose.msra.mxu0 0.0
    %2541 = vmatprep.subr.mxu0 0.0
    %2542 = vmatpush2.xpose.msra.mxu0 0.0
    %2543 = vmatprep.subr.mxu0 0.0
    %2544 = vmatpush2.xpose.msra.mxu0 0.0
    %2545 = vmatprep.subr.mxu0 0.0
    %2546 = vmatpush2.xpose.msra.mxu0 0.0
    %2547 = vmatprep.mubr.f32.mxu0 0.0
    %v2548 = vand.u32 %v2397, 4294901760
    %2549 = vmatmul.mubr.f32.gmra.mxu0 %v2548
    %v2550 = vpop.f32.mrf.mxu0
    %v2551 = vadd.f32 %v2475, %v2550
    %v2552 = vpop.f32.mrf.mxu0
    %2553 = vdwg.mxu0
    %2554 = vmatprep.subr.mxu0 0.0
    %2555 = vmatpush1.xpose.msra.mxu0 0.0
    %2556 = vmatprep.subr.mxu0 0.0
    %2557 = vmatpush1.xpose.msra.mxu0 0.0
    %2558 = vmatprep.subr.mxu0 0.0
    %2559 = vmatpush1.xpose.msra.mxu0 0.0
    %2560 = vmatprep.subr.mxu0 0.0
    %2561 = vmatpush1.xpose.msra.mxu0 0.0
    %2562 = vmatprep.subr.mxu0 0.0
    %2563 = vmatpush1.xpose.msra.mxu0 0.0
    %2564 = vmatprep.subr.mxu0 0.0
    %2565 = vmatpush1.xpose.msra.mxu0 0.0
    %2566 = vmatprep.subr.mxu0 0.0
    %2567 = vmatpush1.xpose.msra.mxu0 0.0
    %2568 = vmatprep.subr.mxu0 0.0
    %2569 = vmatpush1.xpose.msra.mxu0 0.0
    %2570 = vmatprep.subr.mxu0 0.0
    %2571 = vmatpush1.xpose.msra.mxu0 0.0
    %2572 = vmatprep.subr.mxu0 0.0
    %2573 = vmatpush1.xpose.msra.mxu0 0.0
    %2574 = vmatprep.subr.mxu0 0.0
    %2575 = vmatpush1.xpose.msra.mxu0 0.0
    %2576 = vmatprep.subr.mxu0 0.0
    %2577 = vmatpush1.xpose.msra.mxu0 0.0
    %2578 = vmatprep.subr.mxu0 0.0
    %2579 = vmatpush1.xpose.msra.mxu0 0.0
    %2580 = vmatprep.subr.mxu0 0.0
    %2581 = vmatpush1.xpose.msra.mxu0 0.0
    %2582 = vmatprep.subr.mxu0 0.0
    %2583 = vmatpush1.xpose.msra.mxu0 0.0
    %2584 = vmatprep.subr.mxu0 0.0
    %v2585 = vand.u32 %v2400, 4294901760
    %v2586 = vsub.f32 %v2400, %v2585
    %2587 = vmatpush1.xpose.msra.mxu0 %v2586
    %2588 = vmatprep.subr.mxu0 0.0
    %2589 = vmatpush2.xpose.msra.mxu0 0.0
    %2590 = vmatprep.subr.mxu0 0.0
    %2591 = vmatpush2.xpose.msra.mxu0 0.0
    %2592 = vmatprep.subr.mxu0 0.0
    %2593 = vmatpush2.xpose.msra.mxu0 0.0
    %2594 = vmatprep.subr.mxu0 0.0
    %2595 = vmatpush2.xpose.msra.mxu0 0.0
    %2596 = vmatprep.subr.mxu0 0.0
    %2597 = vmatpush2.xpose.msra.mxu0 0.0
    %2598 = vmatprep.subr.mxu0 0.0
    %2599 = vmatpush2.xpose.msra.mxu0 0.0
    %2600 = vmatprep.subr.mxu0 0.0
    %2601 = vmatpush2.xpose.msra.mxu0 0.0
    %2602 = vmatprep.subr.mxu0 0.0
    %2603 = vmatpush2.xpose.msra.mxu0 0.0
    %2604 = vmatprep.subr.mxu0 0.0
    %2605 = vmatpush2.xpose.msra.mxu0 0.0
    %2606 = vmatprep.subr.mxu0 0.0
    %2607 = vmatpush2.xpose.msra.mxu0 0.0
    %2608 = vmatprep.subr.mxu0 0.0
    %2609 = vmatpush2.xpose.msra.mxu0 0.0
    %2610 = vmatprep.subr.mxu0 0.0
    %2611 = vmatpush2.xpose.msra.mxu0 0.0
    %2612 = vmatprep.subr.mxu0 0.0
    %2613 = vmatpush2.xpose.msra.mxu0 0.0
    %2614 = vmatprep.subr.mxu0 0.0
    %2615 = vmatpush2.xpose.msra.mxu0 0.0
    %2616 = vmatprep.subr.mxu0 0.0
    %2617 = vmatpush2.xpose.msra.mxu0 0.0
    %2618 = vmatprep.subr.mxu0 0.0
    %2619 = vmatpush2.xpose.msra.mxu0 0.0
    %2620 = vmatprep.mubr.f32.mxu0 0.0
    %v2621 = vand.u32 %v2397, 4294901760
    %v2622 = vsub.f32 %v2397, %v2621
    %2623 = vmatmul.mubr.f32.gmra.mxu0 %v2622
    %v2624 = vpop.f32.mrf.mxu0
    %v2625 = vadd.f32 %v2551, %v2624
    %v2626 = vpop.f32.mrf.mxu0
    %2627 = vdwg.mxu0
    %2628 = vmatprep.subr.mxu0 0.0
    %2629 = vmatpush1.xpose.msra.mxu0 0.0
    %2630 = vmatprep.subr.mxu0 0.0
    %2631 = vmatpush1.xpose.msra.mxu0 0.0
    %2632 = vmatprep.subr.mxu0 0.0
    %2633 = vmatpush1.xpose.msra.mxu0 0.0
    %2634 = vmatprep.subr.mxu0 0.0
    %2635 = vmatpush1.xpose.msra.mxu0 0.0
    %2636 = vmatprep.subr.mxu0 0.0
    %2637 = vmatpush1.xpose.msra.mxu0 0.0
    %2638 = vmatprep.subr.mxu0 0.0
    %2639 = vmatpush1.xpose.msra.mxu0 0.0
    %2640 = vmatprep.subr.mxu0 0.0
    %2641 = vmatpush1.xpose.msra.mxu0 0.0
    %2642 = vmatprep.subr.mxu0 0.0
    %2643 = vmatpush1.xpose.msra.mxu0 0.0
    %2644 = vmatprep.subr.mxu0 0.0
    %2645 = vmatpush1.xpose.msra.mxu0 0.0
    %2646 = vmatprep.subr.mxu0 0.0
    %2647 = vmatpush1.xpose.msra.mxu0 0.0
    %2648 = vmatprep.subr.mxu0 0.0
    %2649 = vmatpush1.xpose.msra.mxu0 0.0
    %2650 = vmatprep.subr.mxu0 0.0
    %2651 = vmatpush1.xpose.msra.mxu0 0.0
    %2652 = vmatprep.subr.mxu0 0.0
    %2653 = vmatpush1.xpose.msra.mxu0 0.0
    %2654 = vmatprep.subr.mxu0 0.0
    %2655 = vmatpush1.xpose.msra.mxu0 0.0
    %2656 = vmatprep.subr.mxu0 0.0
    %2657 = vmatpush1.xpose.msra.mxu0 0.0
    %2658 = vmatprep.subr.mxu0 0.0
    %v2659 = vand.u32 %v2400, 4294901760
    %2660 = vmatpush1.xpose.msra.mxu0 %v2659
    %2661 = vmatprep.subr.mxu0 0.0
    %2662 = vmatpush2.xpose.msra.mxu0 0.0
    %2663 = vmatprep.subr.mxu0 0.0
    %2664 = vmatpush2.xpose.msra.mxu0 0.0
    %2665 = vmatprep.subr.mxu0 0.0
    %2666 = vmatpush2.xpose.msra.mxu0 0.0
    %2667 = vmatprep.subr.mxu0 0.0
    %2668 = vmatpush2.xpose.msra.mxu0 0.0
    %2669 = vmatprep.subr.mxu0 0.0
    %2670 = vmatpush2.xpose.msra.mxu0 0.0
    %2671 = vmatprep.subr.mxu0 0.0
    %2672 = vmatpush2.xpose.msra.mxu0 0.0
    %2673 = vmatprep.subr.mxu0 0.0
    %2674 = vmatpush2.xpose.msra.mxu0 0.0
    %2675 = vmatprep.subr.mxu0 0.0
    %2676 = vmatpush2.xpose.msra.mxu0 0.0
    %2677 = vmatprep.subr.mxu0 0.0
    %2678 = vmatpush2.xpose.msra.mxu0 0.0
    %2679 = vmatprep.subr.mxu0 0.0
    %2680 = vmatpush2.xpose.msra.mxu0 0.0
    %2681 = vmatprep.subr.mxu0 0.0
    %2682 = vmatpush2.xpose.msra.mxu0 0.0
    %2683 = vmatprep.subr.mxu0 0.0
    %2684 = vmatpush2.xpose.msra.mxu0 0.0
    %2685 = vmatprep.subr.mxu0 0.0
    %2686 = vmatpush2.xpose.msra.mxu0 0.0
    %2687 = vmatprep.subr.mxu0 0.0
    %2688 = vmatpush2.xpose.msra.mxu0 0.0
    %2689 = vmatprep.subr.mxu0 0.0
    %2690 = vmatpush2.xpose.msra.mxu0 0.0
    %2691 = vmatprep.subr.mxu0 0.0
    %2692 = vmatpush2.xpose.msra.mxu0 0.0
    %2693 = vmatprep.mubr.f32.mxu0 0.0
    %v2694 = vand.u32 %v2397, 4294901760
    %v2695 = vsub.f32 %v2397, %v2694
    %v2696 = vand.u32 %v2695, 4294901760
    %2697 = vmatmul.mubr.f32.gmra.mxu0 %v2696
    %v2698 = vpop.f32.mrf.mxu0
    %v2699 = vadd.f32 %v2625, %v2698
    %v2700 = vpop.f32.mrf.mxu0
    %2701 = vdwg.mxu0
    %2702 = vmatprep.subr.mxu0 0.0
    %2703 = vmatpush1.xpose.msra.mxu0 0.0
    %2704 = vmatprep.subr.mxu0 0.0
    %2705 = vmatpush1.xpose.msra.mxu0 0.0
    %2706 = vmatprep.subr.mxu0 0.0
    %2707 = vmatpush1.xpose.msra.mxu0 0.0
    %2708 = vmatprep.subr.mxu0 0.0
    %2709 = vmatpush1.xpose.msra.mxu0 0.0
    %2710 = vmatprep.subr.mxu0 0.0
    %2711 = vmatpush1.xpose.msra.mxu0 0.0
    %2712 = vmatprep.subr.mxu0 0.0
    %2713 = vmatpush1.xpose.msra.mxu0 0.0
    %2714 = vmatprep.subr.mxu0 0.0
    %2715 = vmatpush1.xpose.msra.mxu0 0.0
    %2716 = vmatprep.subr.mxu0 0.0
    %2717 = vmatpush1.xpose.msra.mxu0 0.0
    %2718 = vmatprep.subr.mxu0 0.0
    %2719 = vmatpush1.xpose.msra.mxu0 0.0
    %2720 = vmatprep.subr.mxu0 0.0
    %2721 = vmatpush1.xpose.msra.mxu0 0.0
    %2722 = vmatprep.subr.mxu0 0.0
    %2723 = vmatpush1.xpose.msra.mxu0 0.0
    %2724 = vmatprep.subr.mxu0 0.0
    %2725 = vmatpush1.xpose.msra.mxu0 0.0
    %2726 = vmatprep.subr.mxu0 0.0
    %2727 = vmatpush1.xpose.msra.mxu0 0.0
    %2728 = vmatprep.subr.mxu0 0.0
    %2729 = vmatpush1.xpose.msra.mxu0 0.0
    %2730 = vmatprep.subr.mxu0 0.0
    %2731 = vmatpush1.xpose.msra.mxu0 0.0
    %2732 = vmatprep.subr.mxu0 0.0
    %v2733 = vand.u32 %v2400, 4294901760
    %v2734 = vsub.f32 %v2400, %v2733
    %v2735 = vand.u32 %v2734, 4294901760
    %2736 = vmatpush1.xpose.msra.mxu0 %v2735
    %2737 = vmatprep.subr.mxu0 0.0
    %2738 = vmatpush2.xpose.msra.mxu0 0.0
    %2739 = vmatprep.subr.mxu0 0.0
    %2740 = vmatpush2.xpose.msra.mxu0 0.0
    %2741 = vmatprep.subr.mxu0 0.0
    %2742 = vmatpush2.xpose.msra.mxu0 0.0
    %2743 = vmatprep.subr.mxu0 0.0
    %2744 = vmatpush2.xpose.msra.mxu0 0.0
    %2745 = vmatprep.subr.mxu0 0.0
    %2746 = vmatpush2.xpose.msra.mxu0 0.0
    %2747 = vmatprep.subr.mxu0 0.0
    %2748 = vmatpush2.xpose.msra.mxu0 0.0
    %2749 = vmatprep.subr.mxu0 0.0
    %2750 = vmatpush2.xpose.msra.mxu0 0.0
    %2751 = vmatprep.subr.mxu0 0.0
    %2752 = vmatpush2.xpose.msra.mxu0 0.0
    %2753 = vmatprep.subr.mxu0 0.0
    %2754 = vmatpush2.xpose.msra.mxu0 0.0
    %2755 = vmatprep.subr.mxu0 0.0
    %2756 = vmatpush2.xpose.msra.mxu0 0.0
    %2757 = vmatprep.subr.mxu0 0.0
    %2758 = vmatpush2.xpose.msra.mxu0 0.0
    %2759 = vmatprep.subr.mxu0 0.0
    %2760 = vmatpush2.xpose.msra.mxu0 0.0
    %2761 = vmatprep.subr.mxu0 0.0
    %2762 = vmatpush2.xpose.msra.mxu0 0.0
    %2763 = vmatprep.subr.mxu0 0.0
    %2764 = vmatpush2.xpose.msra.mxu0 0.0
    %2765 = vmatprep.subr.mxu0 0.0
    %2766 = vmatpush2.xpose.msra.mxu0 0.0
    %2767 = vmatprep.subr.mxu0 0.0
    %2768 = vmatpush2.xpose.msra.mxu0 0.0
    %2769 = vmatprep.mubr.f32.mxu0 0.0
    %v2770 = vand.u32 %v2397, 4294901760
    %2771 = vmatmul.mubr.f32.gmra.mxu0 %v2770
    %v2772 = vpop.f32.mrf.mxu0
    %v2773 = vadd.f32 %v2699, %v2772
    %v2774 = vpop.f32.mrf.mxu0
    %2775 = vdwg.mxu0
    %2776 = vmatprep.subr.mxu0 0.0
    %2777 = vmatpush1.xpose.msra.mxu0 0.0
    %2778 = vmatprep.subr.mxu0 0.0
    %2779 = vmatpush1.xpose.msra.mxu0 0.0
    %2780 = vmatprep.subr.mxu0 0.0
    %2781 = vmatpush1.xpose.msra.mxu0 0.0
    %2782 = vmatprep.subr.mxu0 0.0
    %2783 = vmatpush1.xpose.msra.mxu0 0.0
    %2784 = vmatprep.subr.mxu0 0.0
    %2785 = vmatpush1.xpose.msra.mxu0 0.0
    %2786 = vmatprep.subr.mxu0 0.0
    %2787 = vmatpush1.xpose.msra.mxu0 0.0
    %2788 = vmatprep.subr.mxu0 0.0
    %2789 = vmatpush1.xpose.msra.mxu0 0.0
    %2790 = vmatprep.subr.mxu0 0.0
    %2791 = vmatpush1.xpose.msra.mxu0 0.0
    %2792 = vmatprep.subr.mxu0 0.0
    %2793 = vmatpush1.xpose.msra.mxu0 0.0
    %2794 = vmatprep.subr.mxu0 0.0
    %2795 = vmatpush1.xpose.msra.mxu0 0.0
    %2796 = vmatprep.subr.mxu0 0.0
    %2797 = vmatpush1.xpose.msra.mxu0 0.0
    %2798 = vmatprep.subr.mxu0 0.0
    %2799 = vmatpush1.xpose.msra.mxu0 0.0
    %2800 = vmatprep.subr.mxu0 0.0
    %2801 = vmatpush1.xpose.msra.mxu0 0.0
    %2802 = vmatprep.subr.mxu0 0.0
    %2803 = vmatpush1.xpose.msra.mxu0 0.0
    %2804 = vmatprep.subr.mxu0 0.0
    %2805 = vmatpush1.xpose.msra.mxu0 0.0
    %2806 = vmatprep.subr.mxu0 0.0
    %v2807 = vand.u32 %v2400, 4294901760
    %2808 = vmatpush1.xpose.msra.mxu0 %v2807
    %2809 = vmatprep.subr.mxu0 0.0
    %2810 = vmatpush2.xpose.msra.mxu0 0.0
    %2811 = vmatprep.subr.mxu0 0.0
    %2812 = vmatpush2.xpose.msra.mxu0 0.0
    %2813 = vmatprep.subr.mxu0 0.0
    %2814 = vmatpush2.xpose.msra.mxu0 0.0
    %2815 = vmatprep.subr.mxu0 0.0
    %2816 = vmatpush2.xpose.msra.mxu0 0.0
    %2817 = vmatprep.subr.mxu0 0.0
    %2818 = vmatpush2.xpose.msra.mxu0 0.0
    %2819 = vmatprep.subr.mxu0 0.0
    %2820 = vmatpush2.xpose.msra.mxu0 0.0
    %2821 = vmatprep.subr.mxu0 0.0
    %2822 = vmatpush2.xpose.msra.mxu0 0.0
    %2823 = vmatprep.subr.mxu0 0.0
    %2824 = vmatpush2.xpose.msra.mxu0 0.0
    %2825 = vmatprep.subr.mxu0 0.0
    %2826 = vmatpush2.xpose.msra.mxu0 0.0
    %2827 = vmatprep.subr.mxu0 0.0
    %2828 = vmatpush2.xpose.msra.mxu0 0.0
    %2829 = vmatprep.subr.mxu0 0.0
    %2830 = vmatpush2.xpose.msra.mxu0 0.0
    %2831 = vmatprep.subr.mxu0 0.0
    %2832 = vmatpush2.xpose.msra.mxu0 0.0
    %2833 = vmatprep.subr.mxu0 0.0
    %2834 = vmatpush2.xpose.msra.mxu0 0.0
    %2835 = vmatprep.subr.mxu0 0.0
    %2836 = vmatpush2.xpose.msra.mxu0 0.0
    %2837 = vmatprep.subr.mxu0 0.0
    %2838 = vmatpush2.xpose.msra.mxu0 0.0
    %2839 = vmatprep.subr.mxu0 0.0
    %2840 = vmatpush2.xpose.msra.mxu0 0.0
    %2841 = vmatprep.mubr.f32.mxu0 0.0
    %v2842 = vand.u32 %v2397, 4294901760
    %2843 = vmatmul.mubr.f32.gmra.mxu0 %v2842
    %v2844 = vpop.f32.mrf.mxu0
    %v2845 = vadd.f32 %v2773, %v2844
    %v2846 = vpop.f32.mrf.mxu0
    %2847 = vdwg.mxu0
    %v2849 = vsel %vm38, %v109, 0
    %v2852 = vsel %vm38, %v133, 0
    %2854 = vmatprep.subr.mxu0 0.0
    %2855 = vmatpush1.xpose.msra.mxu0 0.0
    %2856 = vmatprep.subr.mxu0 0.0
    %2857 = vmatpush1.xpose.msra.mxu0 0.0
    %2858 = vmatprep.subr.mxu0 0.0
    %2859 = vmatpush1.xpose.msra.mxu0 0.0
    %2860 = vmatprep.subr.mxu0 0.0
    %2861 = vmatpush1.xpose.msra.mxu0 0.0
    %2862 = vmatprep.subr.mxu0 0.0
    %2863 = vmatpush1.xpose.msra.mxu0 0.0
    %2864 = vmatprep.subr.mxu0 0.0
    %2865 = vmatpush1.xpose.msra.mxu0 0.0
    %2866 = vmatprep.subr.mxu0 0.0
    %2867 = vmatpush1.xpose.msra.mxu0 0.0
    %2868 = vmatprep.subr.mxu0 0.0
    %2869 = vmatpush1.xpose.msra.mxu0 0.0
    %2870 = vmatprep.subr.mxu0 0.0
    %2871 = vmatpush1.xpose.msra.mxu0 0.0
    %2872 = vmatprep.subr.mxu0 0.0
    %2873 = vmatpush1.xpose.msra.mxu0 0.0
    %2874 = vmatprep.subr.mxu0 0.0
    %2875 = vmatpush1.xpose.msra.mxu0 0.0
    %2876 = vmatprep.subr.mxu0 0.0
    %2877 = vmatpush1.xpose.msra.mxu0 0.0
    %2878 = vmatprep.subr.mxu0 0.0
    %2879 = vmatpush1.xpose.msra.mxu0 0.0
    %2880 = vmatprep.subr.mxu0 0.0
    %2881 = vmatpush1.xpose.msra.mxu0 0.0
    %2882 = vmatprep.subr.mxu0 0.0
    %2883 = vmatpush1.xpose.msra.mxu0 0.0
    %2884 = vmatprep.subr.mxu0 0.0
    %v2885 = vand.u32 %v2852, 4294901760
    %2886 = vmatpush1.xpose.msra.mxu0 %v2885
    %2887 = vmatprep.subr.mxu0 0.0
    %2888 = vmatpush2.xpose.msra.mxu0 0.0
    %2889 = vmatprep.subr.mxu0 0.0
    %2890 = vmatpush2.xpose.msra.mxu0 0.0
    %2891 = vmatprep.subr.mxu0 0.0
    %2892 = vmatpush2.xpose.msra.mxu0 0.0
    %2893 = vmatprep.subr.mxu0 0.0
    %2894 = vmatpush2.xpose.msra.mxu0 0.0
    %2895 = vmatprep.subr.mxu0 0.0
    %2896 = vmatpush2.xpose.msra.mxu0 0.0
    %2897 = vmatprep.subr.mxu0 0.0
    %2898 = vmatpush2.xpose.msra.mxu0 0.0
    %2899 = vmatprep.subr.mxu0 0.0
    %2900 = vmatpush2.xpose.msra.mxu0 0.0
    %2901 = vmatprep.subr.mxu0 0.0
    %2902 = vmatpush2.xpose.msra.mxu0 0.0
    %2903 = vmatprep.subr.mxu0 0.0
    %2904 = vmatpush2.xpose.msra.mxu0 0.0
    %2905 = vmatprep.subr.mxu0 0.0
    %2906 = vmatpush2.xpose.msra.mxu0 0.0
    %2907 = vmatprep.subr.mxu0 0.0
    %2908 = vmatpush2.xpose.msra.mxu0 0.0
    %2909 = vmatprep.subr.mxu0 0.0
    %2910 = vmatpush2.xpose.msra.mxu0 0.0
    %2911 = vmatprep.subr.mxu0 0.0
    %2912 = vmatpush2.xpose.msra.mxu0 0.0
    %2913 = vmatprep.subr.mxu0 0.0
    %2914 = vmatpush2.xpose.msra.mxu0 0.0
    %2915 = vmatprep.subr.mxu0 0.0
    %2916 = vmatpush2.xpose.msra.mxu0 0.0
    %2917 = vmatprep.subr.mxu0 0.0
    %2918 = vmatpush2.xpose.msra.mxu0 0.0
    %2919 = vmatprep.mubr.f32.mxu0 0.0
    %v2920 = vand.u32 %v2849, 4294901760
    %v2921 = vsub.f32 %v2849, %v2920
    %v2922 = vand.u32 %v2921, 4294901760
    %v2923 = vsub.f32 %v2921, %v2922
    %v2924 = vand.u32 %v2923, 4294901760
    %2925 = vmatmul.mubr.f32.gmra.mxu0 %v2924
    %v2926 = vpop.f32.mrf.mxu0
    %v2927 = vadd.f32 0.0, %v2926
    %v2928 = vpop.f32.mrf.mxu0
    %2929 = vdwg.mxu0
    %2930 = vmatprep.subr.mxu0 0.0
    %2931 = vmatpush1.xpose.msra.mxu0 0.0
    %2932 = vmatprep.subr.mxu0 0.0
    %2933 = vmatpush1.xpose.msra.mxu0 0.0
    %2934 = vmatprep.subr.mxu0 0.0
    %2935 = vmatpush1.xpose.msra.mxu0 0.0
    %2936 = vmatprep.subr.mxu0 0.0
    %2937 = vmatpush1.xpose.msra.mxu0 0.0
    %2938 = vmatprep.subr.mxu0 0.0
    %2939 = vmatpush1.xpose.msra.mxu0 0.0
    %2940 = vmatprep.subr.mxu0 0.0
    %2941 = vmatpush1.xpose.msra.mxu0 0.0
    %2942 = vmatprep.subr.mxu0 0.0
    %2943 = vmatpush1.xpose.msra.mxu0 0.0
    %2944 = vmatprep.subr.mxu0 0.0
    %2945 = vmatpush1.xpose.msra.mxu0 0.0
    %2946 = vmatprep.subr.mxu0 0.0
    %2947 = vmatpush1.xpose.msra.mxu0 0.0
    %2948 = vmatprep.subr.mxu0 0.0
    %2949 = vmatpush1.xpose.msra.mxu0 0.0
    %2950 = vmatprep.subr.mxu0 0.0
    %2951 = vmatpush1.xpose.msra.mxu0 0.0
    %2952 = vmatprep.subr.mxu0 0.0
    %2953 = vmatpush1.xpose.msra.mxu0 0.0
    %2954 = vmatprep.subr.mxu0 0.0
    %2955 = vmatpush1.xpose.msra.mxu0 0.0
    %2956 = vmatprep.subr.mxu0 0.0
    %2957 = vmatpush1.xpose.msra.mxu0 0.0
    %2958 = vmatprep.subr.mxu0 0.0
    %2959 = vmatpush1.xpose.msra.mxu0 0.0
    %2960 = vmatprep.subr.mxu0 0.0
    %v2961 = vand.u32 %v2852, 4294901760
    %v2962 = vsub.f32 %v2852, %v2961
    %v2963 = vand.u32 %v2962, 4294901760
    %v2964 = vsub.f32 %v2962, %v2963
    %v2965 = vand.u32 %v2964, 4294901760
    %2966 = vmatpush1.xpose.msra.mxu0 %v2965
    %2967 = vmatprep.subr.mxu0 0.0
    %2968 = vmatpush2.xpose.msra.mxu0 0.0
    %2969 = vmatprep.subr.mxu0 0.0
    %2970 = vmatpush2.xpose.msra.mxu0 0.0
    %2971 = vmatprep.subr.mxu0 0.0
    %2972 = vmatpush2.xpose.msra.mxu0 0.0
    %2973 = vmatprep.subr.mxu0 0.0
    %2974 = vmatpush2.xpose.msra.mxu0 0.0
    %2975 = vmatprep.subr.mxu0 0.0
    %2976 = vmatpush2.xpose.msra.mxu0 0.0
    %2977 = vmatprep.subr.mxu0 0.0
    %2978 = vmatpush2.xpose.msra.mxu0 0.0
    %2979 = vmatprep.subr.mxu0 0.0
    %2980 = vmatpush2.xpose.msra.mxu0 0.0
    %2981 = vmatprep.subr.mxu0 0.0
    %2982 = vmatpush2.xpose.msra.mxu0 0.0
    %2983 = vmatprep.subr.mxu0 0.0
    %2984 = vmatpush2.xpose.msra.mxu0 0.0
    %2985 = vmatprep.subr.mxu0 0.0
    %2986 = vmatpush2.xpose.msra.mxu0 0.0
    %2987 = vmatprep.subr.mxu0 0.0
    %2988 = vmatpush2.xpose.msra.mxu0 0.0
    %2989 = vmatprep.subr.mxu0 0.0
    %2990 = vmatpush2.xpose.msra.mxu0 0.0
    %2991 = vmatprep.subr.mxu0 0.0
    %2992 = vmatpush2.xpose.msra.mxu0 0.0
    %2993 = vmatprep.subr.mxu0 0.0
    %2994 = vmatpush2.xpose.msra.mxu0 0.0
    %2995 = vmatprep.subr.mxu0 0.0
    %2996 = vmatpush2.xpose.msra.mxu0 0.0
    %2997 = vmatprep.subr.mxu0 0.0
    %2998 = vmatpush2.xpose.msra.mxu0 0.0
    %2999 = vmatprep.mubr.f32.mxu0 0.0
    %v3000 = vand.u32 %v2849, 4294901760
    %3001 = vmatmul.mubr.f32.gmra.mxu0 %v3000
    %v3002 = vpop.f32.mrf.mxu0
    %v3003 = vadd.f32 %v2927, %v3002
    %v3004 = vpop.f32.mrf.mxu0
    %3005 = vdwg.mxu0
    %3006 = vmatprep.subr.mxu0 0.0
    %3007 = vmatpush1.xpose.msra.mxu0 0.0
    %3008 = vmatprep.subr.mxu0 0.0
    %3009 = vmatpush1.xpose.msra.mxu0 0.0
    %3010 = vmatprep.subr.mxu0 0.0
    %3011 = vmatpush1.xpose.msra.mxu0 0.0
    %3012 = vmatprep.subr.mxu0 0.0
    %3013 = vmatpush1.xpose.msra.mxu0 0.0
    %3014 = vmatprep.subr.mxu0 0.0
    %3015 = vmatpush1.xpose.msra.mxu0 0.0
    %3016 = vmatprep.subr.mxu0 0.0
    %3017 = vmatpush1.xpose.msra.mxu0 0.0
    %3018 = vmatprep.subr.mxu0 0.0
    %3019 = vmatpush1.xpose.msra.mxu0 0.0
    %3020 = vmatprep.subr.mxu0 0.0
    %3021 = vmatpush1.xpose.msra.mxu0 0.0
    %3022 = vmatprep.subr.mxu0 0.0
    %3023 = vmatpush1.xpose.msra.mxu0 0.0
    %3024 = vmatprep.subr.mxu0 0.0
    %3025 = vmatpush1.xpose.msra.mxu0 0.0
    %3026 = vmatprep.subr.mxu0 0.0
    %3027 = vmatpush1.xpose.msra.mxu0 0.0
    %3028 = vmatprep.subr.mxu0 0.0
    %3029 = vmatpush1.xpose.msra.mxu0 0.0
    %3030 = vmatprep.subr.mxu0 0.0
    %3031 = vmatpush1.xpose.msra.mxu0 0.0
    %3032 = vmatprep.subr.mxu0 0.0
    %3033 = vmatpush1.xpose.msra.mxu0 0.0
    %3034 = vmatprep.subr.mxu0 0.0
    %3035 = vmatpush1.xpose.msra.mxu0 0.0
    %3036 = vmatprep.subr.mxu0 0.0
    %v3037 = vand.u32 %v2852, 4294901760
    %v3038 = vsub.f32 %v2852, %v3037
    %3039 = vmatpush1.xpose.msra.mxu0 %v3038
    %3040 = vmatprep.subr.mxu0 0.0
    %3041 = vmatpush2.xpose.msra.mxu0 0.0
    %3042 = vmatprep.subr.mxu0 0.0
    %3043 = vmatpush2.xpose.msra.mxu0 0.0
    %3044 = vmatprep.subr.mxu0 0.0
    %3045 = vmatpush2.xpose.msra.mxu0 0.0
    %3046 = vmatprep.subr.mxu0 0.0
    %3047 = vmatpush2.xpose.msra.mxu0 0.0
    %3048 = vmatprep.subr.mxu0 0.0
    %3049 = vmatpush2.xpose.msra.mxu0 0.0
    %3050 = vmatprep.subr.mxu0 0.0
    %3051 = vmatpush2.xpose.msra.mxu0 0.0
    %3052 = vmatprep.subr.mxu0 0.0
    %3053 = vmatpush2.xpose.msra.mxu0 0.0
    %3054 = vmatprep.subr.mxu0 0.0
    %3055 = vmatpush2.xpose.msra.mxu0 0.0
    %3056 = vmatprep.subr.mxu0 0.0
    %3057 = vmatpush2.xpose.msra.mxu0 0.0
    %3058 = vmatprep.subr.mxu0 0.0
    %3059 = vmatpush2.xpose.msra.mxu0 0.0
    %3060 = vmatprep.subr.mxu0 0.0
    %3061 = vmatpush2.xpose.msra.mxu0 0.0
    %3062 = vmatprep.subr.mxu0 0.0
    %3063 = vmatpush2.xpose.msra.mxu0 0.0
    %3064 = vmatprep.subr.mxu0 0.0
    %3065 = vmatpush2.xpose.msra.mxu0 0.0
    %3066 = vmatprep.subr.mxu0 0.0
    %3067 = vmatpush2.xpose.msra.mxu0 0.0
    %3068 = vmatprep.subr.mxu0 0.0
    %3069 = vmatpush2.xpose.msra.mxu0 0.0
    %3070 = vmatprep.subr.mxu0 0.0
    %3071 = vmatpush2.xpose.msra.mxu0 0.0
    %3072 = vmatprep.mubr.f32.mxu0 0.0
    %v3073 = vand.u32 %v2849, 4294901760
    %v3074 = vsub.f32 %v2849, %v3073
    %3075 = vmatmul.mubr.f32.gmra.mxu0 %v3074
    %v3076 = vpop.f32.mrf.mxu0
    %v3077 = vadd.f32 %v3003, %v3076
    %v3078 = vpop.f32.mrf.mxu0
    %3079 = vdwg.mxu0
    %3080 = vmatprep.subr.mxu0 0.0
    %3081 = vmatpush1.xpose.msra.mxu0 0.0
    %3082 = vmatprep.subr.mxu0 0.0
    %3083 = vmatpush1.xpose.msra.mxu0 0.0
    %3084 = vmatprep.subr.mxu0 0.0
    %3085 = vmatpush1.xpose.msra.mxu0 0.0
    %3086 = vmatprep.subr.mxu0 0.0
    %3087 = vmatpush1.xpose.msra.mxu0 0.0
    %3088 = vmatprep.subr.mxu0 0.0
    %3089 = vmatpush1.xpose.msra.mxu0 0.0
    %3090 = vmatprep.subr.mxu0 0.0
    %3091 = vmatpush1.xpose.msra.mxu0 0.0
    %3092 = vmatprep.subr.mxu0 0.0
    %3093 = vmatpush1.xpose.msra.mxu0 0.0
    %3094 = vmatprep.subr.mxu0 0.0
    %3095 = vmatpush1.xpose.msra.mxu0 0.0
    %3096 = vmatprep.subr.mxu0 0.0
    %3097 = vmatpush1.xpose.msra.mxu0 0.0
    %3098 = vmatprep.subr.mxu0 0.0
    %3099 = vmatpush1.xpose.msra.mxu0 0.0
    %3100 = vmatprep.subr.mxu0 0.0
    %3101 = vmatpush1.xpose.msra.mxu0 0.0
    %3102 = vmatprep.subr.mxu0 0.0
    %3103 = vmatpush1.xpose.msra.mxu0 0.0
    %3104 = vmatprep.subr.mxu0 0.0
    %3105 = vmatpush1.xpose.msra.mxu0 0.0
    %3106 = vmatprep.subr.mxu0 0.0
    %3107 = vmatpush1.xpose.msra.mxu0 0.0
    %3108 = vmatprep.subr.mxu0 0.0
    %3109 = vmatpush1.xpose.msra.mxu0 0.0
    %3110 = vmatprep.subr.mxu0 0.0
    %v3111 = vand.u32 %v2852, 4294901760
    %3112 = vmatpush1.xpose.msra.mxu0 %v3111
    %3113 = vmatprep.subr.mxu0 0.0
    %3114 = vmatpush2.xpose.msra.mxu0 0.0
    %3115 = vmatprep.subr.mxu0 0.0
    %3116 = vmatpush2.xpose.msra.mxu0 0.0
    %3117 = vmatprep.subr.mxu0 0.0
    %3118 = vmatpush2.xpose.msra.mxu0 0.0
    %3119 = vmatprep.subr.mxu0 0.0
    %3120 = vmatpush2.xpose.msra.mxu0 0.0
    %3121 = vmatprep.subr.mxu0 0.0
    %3122 = vmatpush2.xpose.msra.mxu0 0.0
    %3123 = vmatprep.subr.mxu0 0.0
    %3124 = vmatpush2.xpose.msra.mxu0 0.0
    %3125 = vmatprep.subr.mxu0 0.0
    %3126 = vmatpush2.xpose.msra.mxu0 0.0
    %3127 = vmatprep.subr.mxu0 0.0
    %3128 = vmatpush2.xpose.msra.mxu0 0.0
    %3129 = vmatprep.subr.mxu0 0.0
    %3130 = vmatpush2.xpose.msra.mxu0 0.0
    %3131 = vmatprep.subr.mxu0 0.0
    %3132 = vmatpush2.xpose.msra.mxu0 0.0
    %3133 = vmatprep.subr.mxu0 0.0
    %3134 = vmatpush2.xpose.msra.mxu0 0.0
    %3135 = vmatprep.subr.mxu0 0.0
    %3136 = vmatpush2.xpose.msra.mxu0 0.0
    %3137 = vmatprep.subr.mxu0 0.0
    %3138 = vmatpush2.xpose.msra.mxu0 0.0
    %3139 = vmatprep.subr.mxu0 0.0
    %3140 = vmatpush2.xpose.msra.mxu0 0.0
    %3141 = vmatprep.subr.mxu0 0.0
    %3142 = vmatpush2.xpose.msra.mxu0 0.0
    %3143 = vmatprep.subr.mxu0 0.0
    %3144 = vmatpush2.xpose.msra.mxu0 0.0
    %3145 = vmatprep.mubr.f32.mxu0 0.0
    %v3146 = vand.u32 %v2849, 4294901760
    %v3147 = vsub.f32 %v2849, %v3146
    %v3148 = vand.u32 %v3147, 4294901760
    %3149 = vmatmul.mubr.f32.gmra.mxu0 %v3148
    %v3150 = vpop.f32.mrf.mxu0
    %v3151 = vadd.f32 %v3077, %v3150
    %v3152 = vpop.f32.mrf.mxu0
    %3153 = vdwg.mxu0
    %3154 = vmatprep.subr.mxu0 0.0
    %3155 = vmatpush1.xpose.msra.mxu0 0.0
    %3156 = vmatprep.subr.mxu0 0.0
    %3157 = vmatpush1.xpose.msra.mxu0 0.0
    %3158 = vmatprep.subr.mxu0 0.0
    %3159 = vmatpush1.xpose.msra.mxu0 0.0
    %3160 = vmatprep.subr.mxu0 0.0
    %3161 = vmatpush1.xpose.msra.mxu0 0.0
    %3162 = vmatprep.subr.mxu0 0.0
    %3163 = vmatpush1.xpose.msra.mxu0 0.0
    %3164 = vmatprep.subr.mxu0 0.0
    %3165 = vmatpush1.xpose.msra.mxu0 0.0
    %3166 = vmatprep.subr.mxu0 0.0
    %3167 = vmatpush1.xpose.msra.mxu0 0.0
    %3168 = vmatprep.subr.mxu0 0.0
    %3169 = vmatpush1.xpose.msra.mxu0 0.0
    %3170 = vmatprep.subr.mxu0 0.0
    %3171 = vmatpush1.xpose.msra.mxu0 0.0
    %3172 = vmatprep.subr.mxu0 0.0
    %3173 = vmatpush1.xpose.msra.mxu0 0.0
    %3174 = vmatprep.subr.mxu0 0.0
    %3175 = vmatpush1.xpose.msra.mxu0 0.0
    %3176 = vmatprep.subr.mxu0 0.0
    %3177 = vmatpush1.xpose.msra.mxu0 0.0
    %3178 = vmatprep.subr.mxu0 0.0
    %3179 = vmatpush1.xpose.msra.mxu0 0.0
    %3180 = vmatprep.subr.mxu0 0.0
    %3181 = vmatpush1.xpose.msra.mxu0 0.0
    %3182 = vmatprep.subr.mxu0 0.0
    %3183 = vmatpush1.xpose.msra.mxu0 0.0
    %3184 = vmatprep.subr.mxu0 0.0
    %v3185 = vand.u32 %v2852, 4294901760
    %v3186 = vsub.f32 %v2852, %v3185
    %v3187 = vand.u32 %v3186, 4294901760
    %3188 = vmatpush1.xpose.msra.mxu0 %v3187
    %3189 = vmatprep.subr.mxu0 0.0
    %3190 = vmatpush2.xpose.msra.mxu0 0.0
    %3191 = vmatprep.subr.mxu0 0.0
    %3192 = vmatpush2.xpose.msra.mxu0 0.0
    %3193 = vmatprep.subr.mxu0 0.0
    %3194 = vmatpush2.xpose.msra.mxu0 0.0
    %3195 = vmatprep.subr.mxu0 0.0
    %3196 = vmatpush2.xpose.msra.mxu0 0.0
    %3197 = vmatprep.subr.mxu0 0.0
    %3198 = vmatpush2.xpose.msra.mxu0 0.0
    %3199 = vmatprep.subr.mxu0 0.0
    %3200 = vmatpush2.xpose.msra.mxu0 0.0
    %3201 = vmatprep.subr.mxu0 0.0
    %3202 = vmatpush2.xpose.msra.mxu0 0.0
    %3203 = vmatprep.subr.mxu0 0.0
    %3204 = vmatpush2.xpose.msra.mxu0 0.0
    %3205 = vmatprep.subr.mxu0 0.0
    %3206 = vmatpush2.xpose.msra.mxu0 0.0
    %3207 = vmatprep.subr.mxu0 0.0
    %3208 = vmatpush2.xpose.msra.mxu0 0.0
    %3209 = vmatprep.subr.mxu0 0.0
    %3210 = vmatpush2.xpose.msra.mxu0 0.0
    %3211 = vmatprep.subr.mxu0 0.0
    %3212 = vmatpush2.xpose.msra.mxu0 0.0
    %3213 = vmatprep.subr.mxu0 0.0
    %3214 = vmatpush2.xpose.msra.mxu0 0.0
    %3215 = vmatprep.subr.mxu0 0.0
    %3216 = vmatpush2.xpose.msra.mxu0 0.0
    %3217 = vmatprep.subr.mxu0 0.0
    %3218 = vmatpush2.xpose.msra.mxu0 0.0
    %3219 = vmatprep.subr.mxu0 0.0
    %3220 = vmatpush2.xpose.msra.mxu0 0.0
    %3221 = vmatprep.mubr.f32.mxu0 0.0
    %v3222 = vand.u32 %v2849, 4294901760
    %3223 = vmatmul.mubr.f32.gmra.mxu0 %v3222
    %v3224 = vpop.f32.mrf.mxu0
    %v3225 = vadd.f32 %v3151, %v3224
    %v3226 = vpop.f32.mrf.mxu0
    %3227 = vdwg.mxu0
    %3228 = vmatprep.subr.mxu0 0.0
    %3229 = vmatpush1.xpose.msra.mxu0 0.0
    %3230 = vmatprep.subr.mxu0 0.0
    %3231 = vmatpush1.xpose.msra.mxu0 0.0
    %3232 = vmatprep.subr.mxu0 0.0
    %3233 = vmatpush1.xpose.msra.mxu0 0.0
    %3234 = vmatprep.subr.mxu0 0.0
    %3235 = vmatpush1.xpose.msra.mxu0 0.0
    %3236 = vmatprep.subr.mxu0 0.0
    %3237 = vmatpush1.xpose.msra.mxu0 0.0
    %3238 = vmatprep.subr.mxu0 0.0
    %3239 = vmatpush1.xpose.msra.mxu0 0.0
    %3240 = vmatprep.subr.mxu0 0.0
    %3241 = vmatpush1.xpose.msra.mxu0 0.0
    %3242 = vmatprep.subr.mxu0 0.0
    %3243 = vmatpush1.xpose.msra.mxu0 0.0
    %3244 = vmatprep.subr.mxu0 0.0
    %3245 = vmatpush1.xpose.msra.mxu0 0.0
    %3246 = vmatprep.subr.mxu0 0.0
    %3247 = vmatpush1.xpose.msra.mxu0 0.0
    %3248 = vmatprep.subr.mxu0 0.0
    %3249 = vmatpush1.xpose.msra.mxu0 0.0
    %3250 = vmatprep.subr.mxu0 0.0
    %3251 = vmatpush1.xpose.msra.mxu0 0.0
    %3252 = vmatprep.subr.mxu0 0.0
    %3253 = vmatpush1.xpose.msra.mxu0 0.0
    %3254 = vmatprep.subr.mxu0 0.0
    %3255 = vmatpush1.xpose.msra.mxu0 0.0
    %3256 = vmatprep.subr.mxu0 0.0
    %3257 = vmatpush1.xpose.msra.mxu0 0.0
    %3258 = vmatprep.subr.mxu0 0.0
    %v3259 = vand.u32 %v2852, 4294901760
    %3260 = vmatpush1.xpose.msra.mxu0 %v3259
    %3261 = vmatprep.subr.mxu0 0.0
    %3262 = vmatpush2.xpose.msra.mxu0 0.0
    %3263 = vmatprep.subr.mxu0 0.0
    %3264 = vmatpush2.xpose.msra.mxu0 0.0
    %3265 = vmatprep.subr.mxu0 0.0
    %3266 = vmatpush2.xpose.msra.mxu0 0.0
    %3267 = vmatprep.subr.mxu0 0.0
    %3268 = vmatpush2.xpose.msra.mxu0 0.0
    %3269 = vmatprep.subr.mxu0 0.0
    %3270 = vmatpush2.xpose.msra.mxu0 0.0
    %3271 = vmatprep.subr.mxu0 0.0
    %3272 = vmatpush2.xpose.msra.mxu0 0.0
    %3273 = vmatprep.subr.mxu0 0.0
    %3274 = vmatpush2.xpose.msra.mxu0 0.0
    %3275 = vmatprep.subr.mxu0 0.0
    %3276 = vmatpush2.xpose.msra.mxu0 0.0
    %3277 = vmatprep.subr.mxu0 0.0
    %3278 = vmatpush2.xpose.msra.mxu0 0.0
    %3279 = vmatprep.subr.mxu0 0.0
    %3280 = vmatpush2.xpose.msra.mxu0 0.0
    %3281 = vmatprep.subr.mxu0 0.0
    %3282 = vmatpush2.xpose.msra.mxu0 0.0
    %3283 = vmatprep.subr.mxu0 0.0
    %3284 = vmatpush2.xpose.msra.mxu0 0.0
    %3285 = vmatprep.subr.mxu0 0.0
    %3286 = vmatpush2.xpose.msra.mxu0 0.0
    %3287 = vmatprep.subr.mxu0 0.0
    %3288 = vmatpush2.xpose.msra.mxu0 0.0
    %3289 = vmatprep.subr.mxu0 0.0
    %3290 = vmatpush2.xpose.msra.mxu0 0.0
    %3291 = vmatprep.subr.mxu0 0.0
    %3292 = vmatpush2.xpose.msra.mxu0 0.0
    %3293 = vmatprep.mubr.f32.mxu0 0.0
    %v3294 = vand.u32 %v2849, 4294901760
    %3295 = vmatmul.mubr.f32.gmra.mxu0 %v3294
    %v3296 = vpop.f32.mrf.mxu0
    %v3297 = vadd.f32 %v3225, %v3296
    %v3298 = vpop.f32.mrf.mxu0
    %3299 = vdwg.mxu0
    %v3301 = vsel %vm38, %v111, 0
    %v3304 = vsel %vm38, %v135, 0
    %3306 = vmatprep.subr.mxu0 0.0
    %3307 = vmatpush1.xpose.msra.mxu0 0.0
    %3308 = vmatprep.subr.mxu0 0.0
    %3309 = vmatpush1.xpose.msra.mxu0 0.0
    %3310 = vmatprep.subr.mxu0 0.0
    %3311 = vmatpush1.xpose.msra.mxu0 0.0
    %3312 = vmatprep.subr.mxu0 0.0
    %3313 = vmatpush1.xpose.msra.mxu0 0.0
    %3314 = vmatprep.subr.mxu0 0.0
    %3315 = vmatpush1.xpose.msra.mxu0 0.0
    %3316 = vmatprep.subr.mxu0 0.0
    %3317 = vmatpush1.xpose.msra.mxu0 0.0
    %3318 = vmatprep.subr.mxu0 0.0
    %3319 = vmatpush1.xpose.msra.mxu0 0.0
    %3320 = vmatprep.subr.mxu0 0.0
    %3321 = vmatpush1.xpose.msra.mxu0 0.0
    %3322 = vmatprep.subr.mxu0 0.0
    %3323 = vmatpush1.xpose.msra.mxu0 0.0
    %3324 = vmatprep.subr.mxu0 0.0
    %3325 = vmatpush1.xpose.msra.mxu0 0.0
    %3326 = vmatprep.subr.mxu0 0.0
    %3327 = vmatpush1.xpose.msra.mxu0 0.0
    %3328 = vmatprep.subr.mxu0 0.0
    %3329 = vmatpush1.xpose.msra.mxu0 0.0
    %3330 = vmatprep.subr.mxu0 0.0
    %3331 = vmatpush1.xpose.msra.mxu0 0.0
    %3332 = vmatprep.subr.mxu0 0.0
    %3333 = vmatpush1.xpose.msra.mxu0 0.0
    %3334 = vmatprep.subr.mxu0 0.0
    %3335 = vmatpush1.xpose.msra.mxu0 0.0
    %3336 = vmatprep.subr.mxu0 0.0
    %v3337 = vand.u32 %v3304, 4294901760
    %3338 = vmatpush1.xpose.msra.mxu0 %v3337
    %3339 = vmatprep.subr.mxu0 0.0
    %3340 = vmatpush2.xpose.msra.mxu0 0.0
    %3341 = vmatprep.subr.mxu0 0.0
    %3342 = vmatpush2.xpose.msra.mxu0 0.0
    %3343 = vmatprep.subr.mxu0 0.0
    %3344 = vmatpush2.xpose.msra.mxu0 0.0
    %3345 = vmatprep.subr.mxu0 0.0
    %3346 = vmatpush2.xpose.msra.mxu0 0.0
    %3347 = vmatprep.subr.mxu0 0.0
    %3348 = vmatpush2.xpose.msra.mxu0 0.0
    %3349 = vmatprep.subr.mxu0 0.0
    %3350 = vmatpush2.xpose.msra.mxu0 0.0
    %3351 = vmatprep.subr.mxu0 0.0
    %3352 = vmatpush2.xpose.msra.mxu0 0.0
    %3353 = vmatprep.subr.mxu0 0.0
    %3354 = vmatpush2.xpose.msra.mxu0 0.0
    %3355 = vmatprep.subr.mxu0 0.0
    %3356 = vmatpush2.xpose.msra.mxu0 0.0
    %3357 = vmatprep.subr.mxu0 0.0
    %3358 = vmatpush2.xpose.msra.mxu0 0.0
    %3359 = vmatprep.subr.mxu0 0.0
    %3360 = vmatpush2.xpose.msra.mxu0 0.0
    %3361 = vmatprep.subr.mxu0 0.0
    %3362 = vmatpush2.xpose.msra.mxu0 0.0
    %3363 = vmatprep.subr.mxu0 0.0
    %3364 = vmatpush2.xpose.msra.mxu0 0.0
    %3365 = vmatprep.subr.mxu0 0.0
    %3366 = vmatpush2.xpose.msra.mxu0 0.0
    %3367 = vmatprep.subr.mxu0 0.0
    %3368 = vmatpush2.xpose.msra.mxu0 0.0
    %3369 = vmatprep.subr.mxu0 0.0
    %3370 = vmatpush2.xpose.msra.mxu0 0.0
    %3371 = vmatprep.mubr.f32.mxu0 0.0
    %v3372 = vand.u32 %v3301, 4294901760
    %v3373 = vsub.f32 %v3301, %v3372
    %v3374 = vand.u32 %v3373, 4294901760
    %v3375 = vsub.f32 %v3373, %v3374
    %v3376 = vand.u32 %v3375, 4294901760
    %3377 = vmatmul.mubr.f32.gmra.mxu0 %v3376
    %v3378 = vpop.f32.mrf.mxu0
    %v3379 = vadd.f32 0.0, %v3378
    %v3380 = vpop.f32.mrf.mxu0
    %3381 = vdwg.mxu0
    %3382 = vmatprep.subr.mxu0 0.0
    %3383 = vmatpush1.xpose.msra.mxu0 0.0
    %3384 = vmatprep.subr.mxu0 0.0
    %3385 = vmatpush1.xpose.msra.mxu0 0.0
    %3386 = vmatprep.subr.mxu0 0.0
    %3387 = vmatpush1.xpose.msra.mxu0 0.0
    %3388 = vmatprep.subr.mxu0 0.0
    %3389 = vmatpush1.xpose.msra.mxu0 0.0
    %3390 = vmatprep.subr.mxu0 0.0
    %3391 = vmatpush1.xpose.msra.mxu0 0.0
    %3392 = vmatprep.subr.mxu0 0.0
    %3393 = vmatpush1.xpose.msra.mxu0 0.0
    %3394 = vmatprep.subr.mxu0 0.0
    %3395 = vmatpush1.xpose.msra.mxu0 0.0
    %3396 = vmatprep.subr.mxu0 0.0
    %3397 = vmatpush1.xpose.msra.mxu0 0.0
    %3398 = vmatprep.subr.mxu0 0.0
    %3399 = vmatpush1.xpose.msra.mxu0 0.0
    %3400 = vmatprep.subr.mxu0 0.0
    %3401 = vmatpush1.xpose.msra.mxu0 0.0
    %3402 = vmatprep.subr.mxu0 0.0
    %3403 = vmatpush1.xpose.msra.mxu0 0.0
    %3404 = vmatprep.subr.mxu0 0.0
    %3405 = vmatpush1.xpose.msra.mxu0 0.0
    %3406 = vmatprep.subr.mxu0 0.0
    %3407 = vmatpush1.xpose.msra.mxu0 0.0
    %3408 = vmatprep.subr.mxu0 0.0
    %3409 = vmatpush1.xpose.msra.mxu0 0.0
    %3410 = vmatprep.subr.mxu0 0.0
    %3411 = vmatpush1.xpose.msra.mxu0 0.0
    %3412 = vmatprep.subr.mxu0 0.0
    %v3413 = vand.u32 %v3304, 4294901760
    %v3414 = vsub.f32 %v3304, %v3413
    %v3415 = vand.u32 %v3414, 4294901760
    %v3416 = vsub.f32 %v3414, %v3415
    %v3417 = vand.u32 %v3416, 4294901760
    %3418 = vmatpush1.xpose.msra.mxu0 %v3417
    %3419 = vmatprep.subr.mxu0 0.0
    %3420 = vmatpush2.xpose.msra.mxu0 0.0
    %3421 = vmatprep.subr.mxu0 0.0
    %3422 = vmatpush2.xpose.msra.mxu0 0.0
    %3423 = vmatprep.subr.mxu0 0.0
    %3424 = vmatpush2.xpose.msra.mxu0 0.0
    %3425 = vmatprep.subr.mxu0 0.0
    %3426 = vmatpush2.xpose.msra.mxu0 0.0
    %3427 = vmatprep.subr.mxu0 0.0
    %3428 = vmatpush2.xpose.msra.mxu0 0.0
    %3429 = vmatprep.subr.mxu0 0.0
    %3430 = vmatpush2.xpose.msra.mxu0 0.0
    %3431 = vmatprep.subr.mxu0 0.0
    %3432 = vmatpush2.xpose.msra.mxu0 0.0
    %3433 = vmatprep.subr.mxu0 0.0
    %3434 = vmatpush2.xpose.msra.mxu0 0.0
    %3435 = vmatprep.subr.mxu0 0.0
    %3436 = vmatpush2.xpose.msra.mxu0 0.0
    %3437 = vmatprep.subr.mxu0 0.0
    %3438 = vmatpush2.xpose.msra.mxu0 0.0
    %3439 = vmatprep.subr.mxu0 0.0
    %3440 = vmatpush2.xpose.msra.mxu0 0.0
    %3441 = vmatprep.subr.mxu0 0.0
    %3442 = vmatpush2.xpose.msra.mxu0 0.0
    %3443 = vmatprep.subr.mxu0 0.0
    %3444 = vmatpush2.xpose.msra.mxu0 0.0
    %3445 = vmatprep.subr.mxu0 0.0
    %3446 = vmatpush2.xpose.msra.mxu0 0.0
    %3447 = vmatprep.subr.mxu0 0.0
    %3448 = vmatpush2.xpose.msra.mxu0 0.0
    %3449 = vmatprep.subr.mxu0 0.0
    %3450 = vmatpush2.xpose.msra.mxu0 0.0
    %3451 = vmatprep.mubr.f32.mxu0 0.0
    %v3452 = vand.u32 %v3301, 4294901760
    %3453 = vmatmul.mubr.f32.gmra.mxu0 %v3452
    %v3454 = vpop.f32.mrf.mxu0
    %v3455 = vadd.f32 %v3379, %v3454
    %v3456 = vpop.f32.mrf.mxu0
    %3457 = vdwg.mxu0
    %3458 = vmatprep.subr.mxu0 0.0
    %3459 = vmatpush1.xpose.msra.mxu0 0.0
    %3460 = vmatprep.subr.mxu0 0.0
    %3461 = vmatpush1.xpose.msra.mxu0 0.0
    %3462 = vmatprep.subr.mxu0 0.0
    %3463 = vmatpush1.xpose.msra.mxu0 0.0
    %3464 = vmatprep.subr.mxu0 0.0
    %3465 = vmatpush1.xpose.msra.mxu0 0.0
    %3466 = vmatprep.subr.mxu0 0.0
    %3467 = vmatpush1.xpose.msra.mxu0 0.0
    %3468 = vmatprep.subr.mxu0 0.0
    %3469 = vmatpush1.xpose.msra.mxu0 0.0
    %3470 = vmatprep.subr.mxu0 0.0
    %3471 = vmatpush1.xpose.msra.mxu0 0.0
    %3472 = vmatprep.subr.mxu0 0.0
    %3473 = vmatpush1.xpose.msra.mxu0 0.0
    %3474 = vmatprep.subr.mxu0 0.0
    %3475 = vmatpush1.xpose.msra.mxu0 0.0
    %3476 = vmatprep.subr.mxu0 0.0
    %3477 = vmatpush1.xpose.msra.mxu0 0.0
    %3478 = vmatprep.subr.mxu0 0.0
    %3479 = vmatpush1.xpose.msra.mxu0 0.0
    %3480 = vmatprep.subr.mxu0 0.0
    %3481 = vmatpush1.xpose.msra.mxu0 0.0
    %3482 = vmatprep.subr.mxu0 0.0
    %3483 = vmatpush1.xpose.msra.mxu0 0.0
    %3484 = vmatprep.subr.mxu0 0.0
    %3485 = vmatpush1.xpose.msra.mxu0 0.0
    %3486 = vmatprep.subr.mxu0 0.0
    %3487 = vmatpush1.xpose.msra.mxu0 0.0
    %3488 = vmatprep.subr.mxu0 0.0
    %v3489 = vand.u32 %v3304, 4294901760
    %v3490 = vsub.f32 %v3304, %v3489
    %3491 = vmatpush1.xpose.msra.mxu0 %v3490
    %3492 = vmatprep.subr.mxu0 0.0
    %3493 = vmatpush2.xpose.msra.mxu0 0.0
    %3494 = vmatprep.subr.mxu0 0.0
    %3495 = vmatpush2.xpose.msra.mxu0 0.0
    %3496 = vmatprep.subr.mxu0 0.0
    %3497 = vmatpush2.xpose.msra.mxu0 0.0
    %3498 = vmatprep.subr.mxu0 0.0
    %3499 = vmatpush2.xpose.msra.mxu0 0.0
    %3500 = vmatprep.subr.mxu0 0.0
    %3501 = vmatpush2.xpose.msra.mxu0 0.0
    %3502 = vmatprep.subr.mxu0 0.0
    %3503 = vmatpush2.xpose.msra.mxu0 0.0
    %3504 = vmatprep.subr.mxu0 0.0
    %3505 = vmatpush2.xpose.msra.mxu0 0.0
    %3506 = vmatprep.subr.mxu0 0.0
    %3507 = vmatpush2.xpose.msra.mxu0 0.0
    %3508 = vmatprep.subr.mxu0 0.0
    %3509 = vmatpush2.xpose.msra.mxu0 0.0
    %3510 = vmatprep.subr.mxu0 0.0
    %3511 = vmatpush2.xpose.msra.mxu0 0.0
    %3512 = vmatprep.subr.mxu0 0.0
    %3513 = vmatpush2.xpose.msra.mxu0 0.0
    %3514 = vmatprep.subr.mxu0 0.0
    %3515 = vmatpush2.xpose.msra.mxu0 0.0
    %3516 = vmatprep.subr.mxu0 0.0
    %3517 = vmatpush2.xpose.msra.mxu0 0.0
    %3518 = vmatprep.subr.mxu0 0.0
    %3519 = vmatpush2.xpose.msra.mxu0 0.0
    %3520 = vmatprep.subr.mxu0 0.0
    %3521 = vmatpush2.xpose.msra.mxu0 0.0
    %3522 = vmatprep.subr.mxu0 0.0
    %3523 = vmatpush2.xpose.msra.mxu0 0.0
    %3524 = vmatprep.mubr.f32.mxu0 0.0
    %v3525 = vand.u32 %v3301, 4294901760
    %v3526 = vsub.f32 %v3301, %v3525
    %3527 = vmatmul.mubr.f32.gmra.mxu0 %v3526
    %v3528 = vpop.f32.mrf.mxu0
    %v3529 = vadd.f32 %v3455, %v3528
    %v3530 = vpop.f32.mrf.mxu0
    %3531 = vdwg.mxu0
    %3532 = vmatprep.subr.mxu0 0.0
    %3533 = vmatpush1.xpose.msra.mxu0 0.0
    %3534 = vmatprep.subr.mxu0 0.0
    %3535 = vmatpush1.xpose.msra.mxu0 0.0
    %3536 = vmatprep.subr.mxu0 0.0
    %3537 = vmatpush1.xpose.msra.mxu0 0.0
    %3538 = vmatprep.subr.mxu0 0.0
    %3539 = vmatpush1.xpose.msra.mxu0 0.0
    %3540 = vmatprep.subr.mxu0 0.0
    %3541 = vmatpush1.xpose.msra.mxu0 0.0
    %3542 = vmatprep.subr.mxu0 0.0
    %3543 = vmatpush1.xpose.msra.mxu0 0.0
    %3544 = vmatprep.subr.mxu0 0.0
    %3545 = vmatpush1.xpose.msra.mxu0 0.0
    %3546 = vmatprep.subr.mxu0 0.0
    %3547 = vmatpush1.xpose.msra.mxu0 0.0
    %3548 = vmatprep.subr.mxu0 0.0
    %3549 = vmatpush1.xpose.msra.mxu0 0.0
    %3550 = vmatprep.subr.mxu0 0.0
    %3551 = vmatpush1.xpose.msra.mxu0 0.0
    %3552 = vmatprep.subr.mxu0 0.0
    %3553 = vmatpush1.xpose.msra.mxu0 0.0
    %3554 = vmatprep.subr.mxu0 0.0
    %3555 = vmatpush1.xpose.msra.mxu0 0.0
    %3556 = vmatprep.subr.mxu0 0.0
    %3557 = vmatpush1.xpose.msra.mxu0 0.0
    %3558 = vmatprep.subr.mxu0 0.0
    %3559 = vmatpush1.xpose.msra.mxu0 0.0
    %3560 = vmatprep.subr.mxu0 0.0
    %3561 = vmatpush1.xpose.msra.mxu0 0.0
    %3562 = vmatprep.subr.mxu0 0.0
    %v3563 = vand.u32 %v3304, 4294901760
    %3564 = vmatpush1.xpose.msra.mxu0 %v3563
    %3565 = vmatprep.subr.mxu0 0.0
    %3566 = vmatpush2.xpose.msra.mxu0 0.0
    %3567 = vmatprep.subr.mxu0 0.0
    %3568 = vmatpush2.xpose.msra.mxu0 0.0
    %3569 = vmatprep.subr.mxu0 0.0
    %3570 = vmatpush2.xpose.msra.mxu0 0.0
    %3571 = vmatprep.subr.mxu0 0.0
    %3572 = vmatpush2.xpose.msra.mxu0 0.0
    %3573 = vmatprep.subr.mxu0 0.0
    %3574 = vmatpush2.xpose.msra.mxu0 0.0
    %3575 = vmatprep.subr.mxu0 0.0
    %3576 = vmatpush2.xpose.msra.mxu0 0.0
    %3577 = vmatprep.subr.mxu0 0.0
    %3578 = vmatpush2.xpose.msra.mxu0 0.0
    %3579 = vmatprep.subr.mxu0 0.0
    %3580 = vmatpush2.xpose.msra.mxu0 0.0
    %3581 = vmatprep.subr.mxu0 0.0
    %3582 = vmatpush2.xpose.msra.mxu0 0.0
    %3583 = vmatprep.subr.mxu0 0.0
    %3584 = vmatpush2.xpose.msra.mxu0 0.0
    %3585 = vmatprep.subr.mxu0 0.0
    %3586 = vmatpush2.xpose.msra.mxu0 0.0
    %3587 = vmatprep.subr.mxu0 0.0
    %3588 = vmatpush2.xpose.msra.mxu0 0.0
    %3589 = vmatprep.subr.mxu0 0.0
    %3590 = vmatpush2.xpose.msra.mxu0 0.0
    %3591 = vmatprep.subr.mxu0 0.0
    %3592 = vmatpush2.xpose.msra.mxu0 0.0
    %3593 = vmatprep.subr.mxu0 0.0
    %3594 = vmatpush2.xpose.msra.mxu0 0.0
    %3595 = vmatprep.subr.mxu0 0.0
    %3596 = vmatpush2.xpose.msra.mxu0 0.0
    %3597 = vmatprep.mubr.f32.mxu0 0.0
    %v3598 = vand.u32 %v3301, 4294901760
    %v3599 = vsub.f32 %v3301, %v3598
    %v3600 = vand.u32 %v3599, 4294901760
    %3601 = vmatmul.mubr.f32.gmra.mxu0 %v3600
    %v3602 = vpop.f32.mrf.mxu0
    %v3603 = vadd.f32 %v3529, %v3602
    %v3604 = vpop.f32.mrf.mxu0
    %3605 = vdwg.mxu0
    %3606 = vmatprep.subr.mxu0 0.0
    %3607 = vmatpush1.xpose.msra.mxu0 0.0
    %3608 = vmatprep.subr.mxu0 0.0
    %3609 = vmatpush1.xpose.msra.mxu0 0.0
    %3610 = vmatprep.subr.mxu0 0.0
    %3611 = vmatpush1.xpose.msra.mxu0 0.0
    %3612 = vmatprep.subr.mxu0 0.0
    %3613 = vmatpush1.xpose.msra.mxu0 0.0
    %3614 = vmatprep.subr.mxu0 0.0
    %3615 = vmatpush1.xpose.msra.mxu0 0.0
    %3616 = vmatprep.subr.mxu0 0.0
    %3617 = vmatpush1.xpose.msra.mxu0 0.0
    %3618 = vmatprep.subr.mxu0 0.0
    %3619 = vmatpush1.xpose.msra.mxu0 0.0
    %3620 = vmatprep.subr.mxu0 0.0
    %3621 = vmatpush1.xpose.msra.mxu0 0.0
    %3622 = vmatprep.subr.mxu0 0.0
    %3623 = vmatpush1.xpose.msra.mxu0 0.0
    %3624 = vmatprep.subr.mxu0 0.0
    %3625 = vmatpush1.xpose.msra.mxu0 0.0
    %3626 = vmatprep.subr.mxu0 0.0
    %3627 = vmatpush1.xpose.msra.mxu0 0.0
    %3628 = vmatprep.subr.mxu0 0.0
    %3629 = vmatpush1.xpose.msra.mxu0 0.0
    %3630 = vmatprep.subr.mxu0 0.0
    %3631 = vmatpush1.xpose.msra.mxu0 0.0
    %3632 = vmatprep.subr.mxu0 0.0
    %3633 = vmatpush1.xpose.msra.mxu0 0.0
    %3634 = vmatprep.subr.mxu0 0.0
    %3635 = vmatpush1.xpose.msra.mxu0 0.0
    %3636 = vmatprep.subr.mxu0 0.0
    %v3637 = vand.u32 %v3304, 4294901760
    %v3638 = vsub.f32 %v3304, %v3637
    %v3639 = vand.u32 %v3638, 4294901760
    %3640 = vmatpush1.xpose.msra.mxu0 %v3639
    %3641 = vmatprep.subr.mxu0 0.0
    %3642 = vmatpush2.xpose.msra.mxu0 0.0
    %3643 = vmatprep.subr.mxu0 0.0
    %3644 = vmatpush2.xpose.msra.mxu0 0.0
    %3645 = vmatprep.subr.mxu0 0.0
    %3646 = vmatpush2.xpose.msra.mxu0 0.0
    %3647 = vmatprep.subr.mxu0 0.0
    %3648 = vmatpush2.xpose.msra.mxu0 0.0
    %3649 = vmatprep.subr.mxu0 0.0
    %3650 = vmatpush2.xpose.msra.mxu0 0.0
    %3651 = vmatprep.subr.mxu0 0.0
    %3652 = vmatpush2.xpose.msra.mxu0 0.0
    %3653 = vmatprep.subr.mxu0 0.0
    %3654 = vmatpush2.xpose.msra.mxu0 0.0
    %3655 = vmatprep.subr.mxu0 0.0
    %3656 = vmatpush2.xpose.msra.mxu0 0.0
    %3657 = vmatprep.subr.mxu0 0.0
    %3658 = vmatpush2.xpose.msra.mxu0 0.0
    %3659 = vmatprep.subr.mxu0 0.0
    %3660 = vmatpush2.xpose.msra.mxu0 0.0
    %3661 = vmatprep.subr.mxu0 0.0
    %3662 = vmatpush2.xpose.msra.mxu0 0.0
    %3663 = vmatprep.subr.mxu0 0.0
    %3664 = vmatpush2.xpose.msra.mxu0 0.0
    %3665 = vmatprep.subr.mxu0 0.0
    %3666 = vmatpush2.xpose.msra.mxu0 0.0
    %3667 = vmatprep.subr.mxu0 0.0
    %3668 = vmatpush2.xpose.msra.mxu0 0.0
    %3669 = vmatprep.subr.mxu0 0.0
    %3670 = vmatpush2.xpose.msra.mxu0 0.0
    %3671 = vmatprep.subr.mxu0 0.0
    %3672 = vmatpush2.xpose.msra.mxu0 0.0
    %3673 = vmatprep.mubr.f32.mxu0 0.0
    %v3674 = vand.u32 %v3301, 4294901760
    %3675 = vmatmul.mubr.f32.gmra.mxu0 %v3674
    %v3676 = vpop.f32.mrf.mxu0
    %v3677 = vadd.f32 %v3603, %v3676
    %v3678 = vpop.f32.mrf.mxu0
    %3679 = vdwg.mxu0
    %3680 = vmatprep.subr.mxu0 0.0
    %3681 = vmatpush1.xpose.msra.mxu0 0.0
    %3682 = vmatprep.subr.mxu0 0.0
    %3683 = vmatpush1.xpose.msra.mxu0 0.0
    %3684 = vmatprep.subr.mxu0 0.0
    %3685 = vmatpush1.xpose.msra.mxu0 0.0
    %3686 = vmatprep.subr.mxu0 0.0
    %3687 = vmatpush1.xpose.msra.mxu0 0.0
    %3688 = vmatprep.subr.mxu0 0.0
    %3689 = vmatpush1.xpose.msra.mxu0 0.0
    %3690 = vmatprep.subr.mxu0 0.0
    %3691 = vmatpush1.xpose.msra.mxu0 0.0
    %3692 = vmatprep.subr.mxu0 0.0
    %3693 = vmatpush1.xpose.msra.mxu0 0.0
    %3694 = vmatprep.subr.mxu0 0.0
    %3695 = vmatpush1.xpose.msra.mxu0 0.0
    %3696 = vmatprep.subr.mxu0 0.0
    %3697 = vmatpush1.xpose.msra.mxu0 0.0
    %3698 = vmatprep.subr.mxu0 0.0
    %3699 = vmatpush1.xpose.msra.mxu0 0.0
    %3700 = vmatprep.subr.mxu0 0.0
    %3701 = vmatpush1.xpose.msra.mxu0 0.0
    %3702 = vmatprep.subr.mxu0 0.0
    %3703 = vmatpush1.xpose.msra.mxu0 0.0
    %3704 = vmatprep.subr.mxu0 0.0
    %3705 = vmatpush1.xpose.msra.mxu0 0.0
    %3706 = vmatprep.subr.mxu0 0.0
    %3707 = vmatpush1.xpose.msra.mxu0 0.0
    %3708 = vmatprep.subr.mxu0 0.0
    %3709 = vmatpush1.xpose.msra.mxu0 0.0
    %3710 = vmatprep.subr.mxu0 0.0
    %v3711 = vand.u32 %v3304, 4294901760
    %3712 = vmatpush1.xpose.msra.mxu0 %v3711
    %3713 = vmatprep.subr.mxu0 0.0
    %3714 = vmatpush2.xpose.msra.mxu0 0.0
    %3715 = vmatprep.subr.mxu0 0.0
    %3716 = vmatpush2.xpose.msra.mxu0 0.0
    %3717 = vmatprep.subr.mxu0 0.0
    %3718 = vmatpush2.xpose.msra.mxu0 0.0
    %3719 = vmatprep.subr.mxu0 0.0
    %3720 = vmatpush2.xpose.msra.mxu0 0.0
    %3721 = vmatprep.subr.mxu0 0.0
    %3722 = vmatpush2.xpose.msra.mxu0 0.0
    %3723 = vmatprep.subr.mxu0 0.0
    %3724 = vmatpush2.xpose.msra.mxu0 0.0
    %3725 = vmatprep.subr.mxu0 0.0
    %3726 = vmatpush2.xpose.msra.mxu0 0.0
    %3727 = vmatprep.subr.mxu0 0.0
    %3728 = vmatpush2.xpose.msra.mxu0 0.0
    %3729 = vmatprep.subr.mxu0 0.0
    %3730 = vmatpush2.xpose.msra.mxu0 0.0
    %3731 = vmatprep.subr.mxu0 0.0
    %3732 = vmatpush2.xpose.msra.mxu0 0.0
    %3733 = vmatprep.subr.mxu0 0.0
    %3734 = vmatpush2.xpose.msra.mxu0 0.0
    %3735 = vmatprep.subr.mxu0 0.0
    %3736 = vmatpush2.xpose.msra.mxu0 0.0
    %3737 = vmatprep.subr.mxu0 0.0
    %3738 = vmatpush2.xpose.msra.mxu0 0.0
    %3739 = vmatprep.subr.mxu0 0.0
    %3740 = vmatpush2.xpose.msra.mxu0 0.0
    %3741 = vmatprep.subr.mxu0 0.0
    %3742 = vmatpush2.xpose.msra.mxu0 0.0
    %3743 = vmatprep.subr.mxu0 0.0
    %3744 = vmatpush2.xpose.msra.mxu0 0.0
    %3745 = vmatprep.mubr.f32.mxu0 0.0
    %v3746 = vand.u32 %v3301, 4294901760
    %3747 = vmatmul.mubr.f32.gmra.mxu0 %v3746
    %v3748 = vpop.f32.mrf.mxu0
    %v3749 = vadd.f32 %v3677, %v3748
    %v3750 = vpop.f32.mrf.mxu0
    %3751 = vdwg.mxu0
    %v3752 = vlog2.pop %v585
    %v3753 = vmul.f32 %v3752, 0.6931472
    %v3754 = vlog2.pop %v1037
    %v3755 = vmul.f32 %v3754, 0.6931472
    %v3756 = vlog2.pop %v1489
    %v3757 = vmul.f32 %v3756, 0.6931472
    %v3758 = vlog2.pop %v1941
    %v3759 = vmul.f32 %v3758, 0.6931472
    %v3760 = vlog2.pop %v2393
    %v3761 = vmul.f32 %v3760, 0.6931472
    %v3762 = vlog2.pop %v2845
    %v3763 = vmul.f32 %v3762, 0.6931472
    %v3764 = vlog2.pop %v3297
    %v3765 = vmul.f32 %v3764, 0.6931472
    %v3766 = vlog2.pop %v3749
    %v3767 = vmul.f32 %v3766, 0.6931472
    %3769 = vset.pattern.permute.xlu0 0
    %3770 = vperm.xlu0 %3769, %v88
    %v3771 = vpop.permute.xlu0 %3770
    %3774 = vset.pattern.permute.xlu0 0
    %3775 = vperm.xlu0 %3774, %v89
    %v3776 = vpop.permute.xlu0 %3775
    %3779 = vset.pattern.permute.xlu0 0
    %3780 = vperm.xlu0 %3779, %v90
    %v3781 = vpop.permute.xlu0 %3780
    %3784 = vset.pattern.permute.xlu0 0
    %3785 = vperm.xlu0 %3784, %v91
    %v3786 = vpop.permute.xlu0 %3785
    %3789 = vset.pattern.permute.xlu0 0
    %3790 = vperm.xlu0 %3789, %v92
    %v3791 = vpop.permute.xlu0 %3790
    %3794 = vset.pattern.permute.xlu0 0
    %3795 = vperm.xlu0 %3794, %v93
    %v3796 = vpop.permute.xlu0 %3795
    %3799 = vset.pattern.permute.xlu0 0
    %3800 = vperm.xlu0 %3799, %v94
    %v3801 = vpop.permute.xlu0 %3800
    %3804 = vset.pattern.permute.xlu0 0
    %3805 = vperm.xlu0 %3804, %v95
    %v3806 = vpop.permute.xlu0 %3805
    %3816 = vset.pattern.permute.xlu0 0
    %3817 = vperm.xlu0 %3816, %v112
    %v3818 = vpop.permute.xlu0 %3817
    %3819 = vset.pattern.permute.xlu0 0
    %3820 = vperm.xlu0 %3819, %v113
    %v3821 = vpop.permute.xlu0 %3820
    %3822 = vset.pattern.permute.xlu0 0
    %3823 = vperm.xlu0 %3822, %v114
    %v3824 = vpop.permute.xlu0 %3823
    %3825 = vset.pattern.permute.xlu0 0
    %3826 = vperm.xlu0 %3825, %v115
    %v3827 = vpop.permute.xlu0 %3826
    %3828 = vset.pattern.permute.xlu0 0
    %3829 = vperm.xlu0 %3828, %v116
    %v3830 = vpop.permute.xlu0 %3829
    %3831 = vset.pattern.permute.xlu0 0
    %3832 = vperm.xlu0 %3831, %v117
    %v3833 = vpop.permute.xlu0 %3832
    %3834 = vset.pattern.permute.xlu0 0
    %3835 = vperm.xlu0 %3834, %v118
    %v3836 = vpop.permute.xlu0 %3835
    %3837 = vset.pattern.permute.xlu0 0
    %3838 = vperm.xlu0 %3837, %v119
    %v3839 = vpop.permute.xlu0 %3838
    %v3840 = vlaneseq
    %v3841 = vand.u32 %v3840, 127
    %v3842 = vlaneseq
    %v3843 = vshrl.u32 %v3842, 7
    %v3844 = vsub.s32 %v3841, %v3843
    %v3845 = vrot.slane %v3818, %v3844
    %v3846 = vlaneseq
    %v3847 = vshrl.u32 %v3846, 7
    %v3848 = vsub.s32 %v3841, %v3847
    %v3849 = vrot.slane %v3821, %v3848
    %v3850 = vlaneseq
    %v3851 = vshrl.u32 %v3850, 7
    %v3852 = vsub.s32 %v3841, %v3851
    %v3853 = vrot.slane %v3824, %v3852
    %v3854 = vlaneseq
    %v3855 = vshrl.u32 %v3854, 7
    %v3856 = vsub.s32 %v3841, %v3855
    %v3857 = vrot.slane %v3827, %v3856
    %v3858 = vlaneseq
    %v3859 = vshrl.u32 %v3858, 7
    %v3860 = vsub.s32 %v3841, %v3859
    %v3861 = vrot.slane %v3830, %v3860
    %v3862 = vlaneseq
    %v3863 = vshrl.u32 %v3862, 7
    %v3864 = vsub.s32 %v3841, %v3863
    %v3865 = vrot.slane %v3833, %v3864
    %v3866 = vlaneseq
    %v3867 = vshrl.u32 %v3866, 7
    %v3868 = vsub.s32 %v3841, %v3867
    %v3869 = vrot.slane %v3836, %v3868
    %v3870 = vlaneseq
    %v3871 = vshrl.u32 %v3870, 7
    %v3872 = vsub.s32 %v3841, %v3871
    %v3873 = vrot.slane %v3839, %v3872
    %vm3874 = vcmask 1041409
    %vm3875 = vcmask 1042434
    %v3876 = vsel %vm3875, %v3845, %v3845
    %vm3877 = vcmask 1043459
    %v3878 = vsel %vm3877, %v3845, %v3876
    %vm3879 = vcmask 1044484
    %v3880 = vsel %vm3879, %v3845, %v3878
    %vm3881 = vcmask 1045509
    %v3882 = vsel %vm3881, %v3845, %v3880
    %vm3883 = vcmask 1046534
    %v3884 = vsel %vm3883, %v3845, %v3882
    %vm3885 = vcmask 1047559
    %v3886 = vsel %vm3885, %v3845, %v3884
    %v3887 = vsel %vm3875, %v3849, %v3849
    %v3888 = vsel %vm3877, %v3849, %v3887
    %v3889 = vsel %vm3879, %v3849, %v3888
    %v3890 = vsel %vm3881, %v3849, %v3889
    %v3891 = vsel %vm3883, %v3849, %v3890
    %v3892 = vsel %vm3885, %v3849, %v3891
    %v3893 = vsel %vm3875, %v3853, %v3853
    %v3894 = vsel %vm3877, %v3853, %v3893
    %v3895 = vsel %vm3879, %v3853, %v3894
    %v3896 = vsel %vm3881, %v3853, %v3895
    %v3897 = vsel %vm3883, %v3853, %v3896
    %v3898 = vsel %vm3885, %v3853, %v3897
    %v3899 = vsel %vm3875, %v3857, %v3857
    %v3900 = vsel %vm3877, %v3857, %v3899
    %v3901 = vsel %vm3879, %v3857, %v3900
    %v3902 = vsel %vm3881, %v3857, %v3901
    %v3903 = vsel %vm3883, %v3857, %v3902
    %v3904 = vsel %vm3885, %v3857, %v3903
    %v3905 = vsel %vm3875, %v3861, %v3861
    %v3906 = vsel %vm3877, %v3861, %v3905
    %v3907 = vsel %vm3879, %v3861, %v3906
    %v3908 = vsel %vm3881, %v3861, %v3907
    %v3909 = vsel %vm3883, %v3861, %v3908
    %v3910 = vsel %vm3885, %v3861, %v3909
    %v3911 = vsel %vm3875, %v3865, %v3865
    %v3912 = vsel %vm3877, %v3865, %v3911
    %v3913 = vsel %vm3879, %v3865, %v3912
    %v3914 = vsel %vm3881, %v3865, %v3913
    %v3915 = vsel %vm3883, %v3865, %v3914
    %v3916 = vsel %vm3885, %v3865, %v3915
    %v3917 = vsel %vm3875, %v3869, %v3869
    %v3918 = vsel %vm3877, %v3869, %v3917
    %v3919 = vsel %vm3879, %v3869, %v3918
    %v3920 = vsel %vm3881, %v3869, %v3919
    %v3921 = vsel %vm3883, %v3869, %v3920
    %v3922 = vsel %vm3885, %v3869, %v3921
    %v3923 = vsel %vm3875, %v3873, %v3873
    %v3924 = vsel %vm3877, %v3873, %v3923
    %v3925 = vsel %vm3879, %v3873, %v3924
    %v3926 = vsel %vm3881, %v3873, %v3925
    %v3927 = vsel %vm3883, %v3873, %v3926
    %v3928 = vsel %vm3885, %v3873, %v3927
    %v3937 = vadd.f32 %v3771, %v3886
    %v3938 = vadd.f32 %v3776, %v3892
    %v3939 = vadd.f32 %v3781, %v3898
    %v3940 = vadd.f32 %v3786, %v3904
    %v3941 = vadd.f32 %v3791, %v3910
    %v3942 = vadd.f32 %v3796, %v3916
    %v3943 = vadd.f32 %v3801, %v3922
    %v3944 = vadd.f32 %v3806, %v3928
    %v3945 = vsub.f32 %v3937, %v3753
    %v3946 = vsub.f32 %v3938, %v3755
    %v3947 = vsub.f32 %v3939, %v3757
    %v3948 = vsub.f32 %v3940, %v3759
    %v3949 = vsub.f32 %v3941, %v3761
    %v3950 = vsub.f32 %v3942, %v3763
    %v3951 = vsub.f32 %v3943, %v3765
    %v3952 = vsub.f32 %v3944, %v3767
    %vm3953 = vcmask 39936
    %3954 = vst.msk [vmem:[#allocation2] sm:$0xff] %vm3953, %v3945
    %3955 = vst.msk [vmem:[#allocation2 + $0x8] sm:$0xff] %vm3953, %v3946
    %3956 = vst.msk [vmem:[#allocation2 + $0x10] sm:$0xff] %vm3953, %v3947
    %3957 = vst.msk [vmem:[#allocation2 + $0x18] sm:$0xff] %vm3953, %v3948
    %3958 = vst.msk [vmem:[#allocation2 + $0x20] sm:$0xff] %vm3953, %v3949
    %3959 = vst.msk [vmem:[#allocation2 + $0x28] sm:$0xff] %vm3953, %v3950
    %3960 = vst.msk [vmem:[#allocation2 + $0x30] sm:$0xff] %vm3953, %v3951
    %3961 = vst.msk [vmem:[#allocation2 + $0x38] sm:$0xff] %vm3953, %v3952
    %v3962 = vlaneseq
    %v3963 = vshrl.u32 %v3962, 7
    %v3964 = vsub.s32 0, %v3963
    %v3965 = vrot.slane %v37, %v3964
    %3967 = vbcast.lane.b32.xlu0 %v3965, 256
    %v3968 = vpop.permute.xlu0 %3967
    %v3969 = vlaneseq
    %v3970 = vshrl.u32 %v3969, 7
    %v3971 = vsub.s32 1, %v3970
    %v3972 = vrot.slane %v37, %v3971
    %3974 = vbcast.lane.b32.xlu0 %v3972, 256
    %v3975 = vpop.permute.xlu0 %3974
    %v3976 = vlaneseq
    %v3977 = vshrl.u32 %v3976, 7
    %v3978 = vsub.s32 2, %v3977
    %v3979 = vrot.slane %v37, %v3978
    %3981 = vbcast.lane.b32.xlu0 %v3979, 256
    %v3982 = vpop.permute.xlu0 %3981
    %v3983 = vlaneseq
    %v3984 = vshrl.u32 %v3983, 7
    %v3985 = vsub.s32 3, %v3984
    %v3986 = vrot.slane %v37, %v3985
    %3988 = vbcast.lane.b32.xlu0 %v3986, 256
    %v3989 = vpop.permute.xlu0 %3988
    %v3990 = vlaneseq
    %v3991 = vshrl.u32 %v3990, 7
    %v3992 = vsub.s32 4, %v3991
    %v3993 = vrot.slane %v37, %v3992
    %3995 = vbcast.lane.b32.xlu0 %v3993, 256
    %v3996 = vpop.permute.xlu0 %3995
    %v3997 = vlaneseq
    %v3998 = vshrl.u32 %v3997, 7
    %v3999 = vsub.s32 5, %v3998
    %v4000 = vrot.slane %v37, %v3999
    %4002 = vbcast.lane.b32.xlu0 %v4000, 256
    %v4003 = vpop.permute.xlu0 %4002
    %v4004 = vlaneseq
    %v4005 = vshrl.u32 %v4004, 7
    %v4006 = vsub.s32 6, %v4005
    %v4007 = vrot.slane %v37, %v4006
    %4009 = vbcast.lane.b32.xlu0 %v4007, 256
    %v4010 = vpop.permute.xlu0 %4009
    %v4011 = vlaneseq
    %v4012 = vshrl.u32 %v4011, 7
    %v4013 = vsub.s32 7, %v4012
    %v4014 = vrot.slane %v37, %v4013
    %4016 = vbcast.lane.b32.xlu0 %v4014, 256
    %v4017 = vpop.permute.xlu0 %4016
    %vm4018 = vcmp.eq.s32.totalorder %v3968, %v3841
    %vm4019 = vcmp.eq.s32.totalorder %v3975, %v3841
    %vm4020 = vcmp.eq.s32.totalorder %v3982, %v3841
    %vm4021 = vcmp.eq.s32.totalorder %v3989, %v3841
    %vm4022 = vcmp.eq.s32.totalorder %v3996, %v3841
    %vm4023 = vcmp.eq.s32.totalorder %v4003, %v3841
    %vm4024 = vcmp.eq.s32.totalorder %v4010, %v3841
    %vm4025 = vcmp.eq.s32.totalorder %v4017, %v3841
    %v4026 = vsel %vm4018, 1, 0
    %v4027 = vsel %vm4019, 1, 0
    %v4028 = vsel %vm4020, 1, 0
    %v4029 = vsel %vm4021, 1, 0
    %v4030 = vsel %vm4022, 1, 0
    %v4031 = vsel %vm4023, 1, 0
    %v4032 = vsel %vm4024, 1, 0
    %v4033 = vsel %vm4025, 1, 0
    %v4034 = vcvt.s32.f32 %v4026
    %v4035 = vcvt.s32.f32 %v4027
    %v4036 = vcvt.s32.f32 %v4028
    %v4037 = vcvt.s32.f32 %v4029
    %v4038 = vcvt.s32.f32 %v4030
    %v4039 = vcvt.s32.f32 %v4031
    %v4040 = vcvt.s32.f32 %v4032
    %v4041 = vcvt.s32.f32 %v4033
    %v4043 = vsel %vm38, %v21, 0
    %v4046 = vsel %vm38, %v4034, 0
    %4048 = vmatprep.subr.mxu0 0.0
    %4049 = vmatpush1.xpose.msra.mxu0 0.0
    %4050 = vmatprep.subr.mxu0 0.0
    %4051 = vmatpush1.xpose.msra.mxu0 0.0
    %4052 = vmatprep.subr.mxu0 0.0
    %4053 = vmatpush1.xpose.msra.mxu0 0.0
    %4054 = vmatprep.subr.mxu0 0.0
    %4055 = vmatpush1.xpose.msra.mxu0 0.0
    %4056 = vmatprep.subr.mxu0 0.0
    %4057 = vmatpush1.xpose.msra.mxu0 0.0
    %4058 = vmatprep.subr.mxu0 0.0
    %4059 = vmatpush1.xpose.msra.mxu0 0.0
    %4060 = vmatprep.subr.mxu0 0.0
    %4061 = vmatpush1.xpose.msra.mxu0 0.0
    %4062 = vmatprep.subr.mxu0 0.0
    %4063 = vmatpush1.xpose.msra.mxu0 0.0
    %4064 = vmatprep.subr.mxu0 0.0
    %4065 = vmatpush1.xpose.msra.mxu0 0.0
    %4066 = vmatprep.subr.mxu0 0.0
    %4067 = vmatpush1.xpose.msra.mxu0 0.0
    %4068 = vmatprep.subr.mxu0 0.0
    %4069 = vmatpush1.xpose.msra.mxu0 0.0
    %4070 = vmatprep.subr.mxu0 0.0
    %4071 = vmatpush1.xpose.msra.mxu0 0.0
    %4072 = vmatprep.subr.mxu0 0.0
    %4073 = vmatpush1.xpose.msra.mxu0 0.0
    %4074 = vmatprep.subr.mxu0 0.0
    %4075 = vmatpush1.xpose.msra.mxu0 0.0
    %4076 = vmatprep.subr.mxu0 0.0
    %4077 = vmatpush1.xpose.msra.mxu0 0.0
    %4078 = vmatprep.subr.mxu0 0.0
    %v4079 = vand.u32 %v4046, 4294901760
    %4080 = vmatpush1.xpose.msra.mxu0 %v4079
    %4081 = vmatprep.subr.mxu0 0.0
    %4082 = vmatpush2.xpose.msra.mxu0 0.0
    %4083 = vmatprep.subr.mxu0 0.0
    %4084 = vmatpush2.xpose.msra.mxu0 0.0
    %4085 = vmatprep.subr.mxu0 0.0
    %4086 = vmatpush2.xpose.msra.mxu0 0.0
    %4087 = vmatprep.subr.mxu0 0.0
    %4088 = vmatpush2.xpose.msra.mxu0 0.0
    %4089 = vmatprep.subr.mxu0 0.0
    %4090 = vmatpush2.xpose.msra.mxu0 0.0
    %4091 = vmatprep.subr.mxu0 0.0
    %4092 = vmatpush2.xpose.msra.mxu0 0.0
    %4093 = vmatprep.subr.mxu0 0.0
    %4094 = vmatpush2.xpose.msra.mxu0 0.0
    %4095 = vmatprep.subr.mxu0 0.0
    %4096 = vmatpush2.xpose.msra.mxu0 0.0
    %4097 = vmatprep.subr.mxu0 0.0
    %4098 = vmatpush2.xpose.msra.mxu0 0.0
    %4099 = vmatprep.subr.mxu0 0.0
    %4100 = vmatpush2.xpose.msra.mxu0 0.0
    %4101 = vmatprep.subr.mxu0 0.0
    %4102 = vmatpush2.xpose.msra.mxu0 0.0
    %4103 = vmatprep.subr.mxu0 0.0
    %4104 = vmatpush2.xpose.msra.mxu0 0.0
    %4105 = vmatprep.subr.mxu0 0.0
    %4106 = vmatpush2.xpose.msra.mxu0 0.0
    %4107 = vmatprep.subr.mxu0 0.0
    %4108 = vmatpush2.xpose.msra.mxu0 0.0
    %4109 = vmatprep.subr.mxu0 0.0
    %4110 = vmatpush2.xpose.msra.mxu0 0.0
    %4111 = vmatprep.subr.mxu0 0.0
    %4112 = vmatpush2.xpose.msra.mxu0 0.0
    %4113 = vmatprep.mubr.f32.mxu0 0.0
    %v4114 = vand.u32 %v4043, 4294901760
    %v4115 = vsub.f32 %v4043, %v4114
    %v4116 = vand.u32 %v4115, 4294901760
    %v4117 = vsub.f32 %v4115, %v4116
    %v4118 = vand.u32 %v4117, 4294901760
    %4119 = vmatmul.mubr.f32.gmra.mxu0 %v4118
    %v4120 = vpop.f32.mrf.mxu0
    %v4121 = vadd.f32 0.0, %v4120
    %v4122 = vpop.f32.mrf.mxu0
    %4123 = vdwg.mxu0
    %4124 = vmatprep.subr.mxu0 0.0
    %4125 = vmatpush1.xpose.msra.mxu0 0.0
    %4126 = vmatprep.subr.mxu0 0.0
    %4127 = vmatpush1.xpose.msra.mxu0 0.0
    %4128 = vmatprep.subr.mxu0 0.0
    %4129 = vmatpush1.xpose.msra.mxu0 0.0
    %4130 = vmatprep.subr.mxu0 0.0
    %4131 = vmatpush1.xpose.msra.mxu0 0.0
    %4132 = vmatprep.subr.mxu0 0.0
    %4133 = vmatpush1.xpose.msra.mxu0 0.0
    %4134 = vmatprep.subr.mxu0 0.0
    %4135 = vmatpush1.xpose.msra.mxu0 0.0
    %4136 = vmatprep.subr.mxu0 0.0
    %4137 = vmatpush1.xpose.msra.mxu0 0.0
    %4138 = vmatprep.subr.mxu0 0.0
    %4139 = vmatpush1.xpose.msra.mxu0 0.0
    %4140 = vmatprep.subr.mxu0 0.0
    %4141 = vmatpush1.xpose.msra.mxu0 0.0
    %4142 = vmatprep.subr.mxu0 0.0
    %4143 = vmatpush1.xpose.msra.mxu0 0.0
    %4144 = vmatprep.subr.mxu0 0.0
    %4145 = vmatpush1.xpose.msra.mxu0 0.0
    %4146 = vmatprep.subr.mxu0 0.0
    %4147 = vmatpush1.xpose.msra.mxu0 0.0
    %4148 = vmatprep.subr.mxu0 0.0
    %4149 = vmatpush1.xpose.msra.mxu0 0.0
    %4150 = vmatprep.subr.mxu0 0.0
    %4151 = vmatpush1.xpose.msra.mxu0 0.0
    %4152 = vmatprep.subr.mxu0 0.0
    %4153 = vmatpush1.xpose.msra.mxu0 0.0
    %4154 = vmatprep.subr.mxu0 0.0
    %v4155 = vand.u32 %v4046, 4294901760
    %v4156 = vsub.f32 %v4046, %v4155
    %v4157 = vand.u32 %v4156, 4294901760
    %v4158 = vsub.f32 %v4156, %v4157
    %v4159 = vand.u32 %v4158, 4294901760
    %4160 = vmatpush1.xpose.msra.mxu0 %v4159
    %4161 = vmatprep.subr.mxu0 0.0
    %4162 = vmatpush2.xpose.msra.mxu0 0.0
    %4163 = vmatprep.subr.mxu0 0.0
    %4164 = vmatpush2.xpose.msra.mxu0 0.0
    %4165 = vmatprep.subr.mxu0 0.0
    %4166 = vmatpush2.xpose.msra.mxu0 0.0
    %4167 = vmatprep.subr.mxu0 0.0
    %4168 = vmatpush2.xpose.msra.mxu0 0.0
    %4169 = vmatprep.subr.mxu0 0.0
    %4170 = vmatpush2.xpose.msra.mxu0 0.0
    %4171 = vmatprep.subr.mxu0 0.0
    %4172 = vmatpush2.xpose.msra.mxu0 0.0
    %4173 = vmatprep.subr.mxu0 0.0
    %4174 = vmatpush2.xpose.msra.mxu0 0.0
    %4175 = vmatprep.subr.mxu0 0.0
    %4176 = vmatpush2.xpose.msra.mxu0 0.0
    %4177 = vmatprep.subr.mxu0 0.0
    %4178 = vmatpush2.xpose.msra.mxu0 0.0
    %4179 = vmatprep.subr.mxu0 0.0
    %4180 = vmatpush2.xpose.msra.mxu0 0.0
    %4181 = vmatprep.subr.mxu0 0.0
    %4182 = vmatpush2.xpose.msra.mxu0 0.0
    %4183 = vmatprep.subr.mxu0 0.0
    %4184 = vmatpush2.xpose.msra.mxu0 0.0
    %4185 = vmatprep.subr.mxu0 0.0
    %4186 = vmatpush2.xpose.msra.mxu0 0.0
    %4187 = vmatprep.subr.mxu0 0.0
    %4188 = vmatpush2.xpose.msra.mxu0 0.0
    %4189 = vmatprep.subr.mxu0 0.0
    %4190 = vmatpush2.xpose.msra.mxu0 0.0
    %4191 = vmatprep.subr.mxu0 0.0
    %4192 = vmatpush2.xpose.msra.mxu0 0.0
    %4193 = vmatprep.mubr.f32.mxu0 0.0
    %v4194 = vand.u32 %v4043, 4294901760
    %4195 = vmatmul.mubr.f32.gmra.mxu0 %v4194
    %v4196 = vpop.f32.mrf.mxu0
    %v4197 = vadd.f32 %v4121, %v4196
    %v4198 = vpop.f32.mrf.mxu0
    %4199 = vdwg.mxu0
    %4200 = vmatprep.subr.mxu0 0.0
    %4201 = vmatpush1.xpose.msra.mxu0 0.0
    %4202 = vmatprep.subr.mxu0 0.0
    %4203 = vmatpush1.xpose.msra.mxu0 0.0
    %4204 = vmatprep.subr.mxu0 0.0
    %4205 = vmatpush1.xpose.msra.mxu0 0.0
    %4206 = vmatprep.subr.mxu0 0.0
    %4207 = vmatpush1.xpose.msra.mxu0 0.0
    %4208 = vmatprep.subr.mxu0 0.0
    %4209 = vmatpush1.xpose.msra.mxu0 0.0
    %4210 = vmatprep.subr.mxu0 0.0
    %4211 = vmatpush1.xpose.msra.mxu0 0.0
    %4212 = vmatprep.subr.mxu0 0.0
    %4213 = vmatpush1.xpose.msra.mxu0 0.0
    %4214 = vmatprep.subr.mxu0 0.0
    %4215 = vmatpush1.xpose.msra.mxu0 0.0
    %4216 = vmatprep.subr.mxu0 0.0
    %4217 = vmatpush1.xpose.msra.mxu0 0.0
    %4218 = vmatprep.subr.mxu0 0.0
    %4219 = vmatpush1.xpose.msra.mxu0 0.0
    %4220 = vmatprep.subr.mxu0 0.0
    %4221 = vmatpush1.xpose.msra.mxu0 0.0
    %4222 = vmatprep.subr.mxu0 0.0
    %4223 = vmatpush1.xpose.msra.mxu0 0.0
    %4224 = vmatprep.subr.mxu0 0.0
    %4225 = vmatpush1.xpose.msra.mxu0 0.0
    %4226 = vmatprep.subr.mxu0 0.0
    %4227 = vmatpush1.xpose.msra.mxu0 0.0
    %4228 = vmatprep.subr.mxu0 0.0
    %4229 = vmatpush1.xpose.msra.mxu0 0.0
    %4230 = vmatprep.subr.mxu0 0.0
    %v4231 = vand.u32 %v4046, 4294901760
    %v4232 = vsub.f32 %v4046, %v4231
    %4233 = vmatpush1.xpose.msra.mxu0 %v4232
    %4234 = vmatprep.subr.mxu0 0.0
    %4235 = vmatpush2.xpose.msra.mxu0 0.0
    %4236 = vmatprep.subr.mxu0 0.0
    %4237 = vmatpush2.xpose.msra.mxu0 0.0
    %4238 = vmatprep.subr.mxu0 0.0
    %4239 = vmatpush2.xpose.msra.mxu0 0.0
    %4240 = vmatprep.subr.mxu0 0.0
    %4241 = vmatpush2.xpose.msra.mxu0 0.0
    %4242 = vmatprep.subr.mxu0 0.0
    %4243 = vmatpush2.xpose.msra.mxu0 0.0
    %4244 = vmatprep.subr.mxu0 0.0
    %4245 = vmatpush2.xpose.msra.mxu0 0.0
    %4246 = vmatprep.subr.mxu0 0.0
    %4247 = vmatpush2.xpose.msra.mxu0 0.0
    %4248 = vmatprep.subr.mxu0 0.0
    %4249 = vmatpush2.xpose.msra.mxu0 0.0
    %4250 = vmatprep.subr.mxu0 0.0
    %4251 = vmatpush2.xpose.msra.mxu0 0.0
    %4252 = vmatprep.subr.mxu0 0.0
    %4253 = vmatpush2.xpose.msra.mxu0 0.0
    %4254 = vmatprep.subr.mxu0 0.0
    %4255 = vmatpush2.xpose.msra.mxu0 0.0
    %4256 = vmatprep.subr.mxu0 0.0
    %4257 = vmatpush2.xpose.msra.mxu0 0.0
    %4258 = vmatprep.subr.mxu0 0.0
    %4259 = vmatpush2.xpose.msra.mxu0 0.0
    %4260 = vmatprep.subr.mxu0 0.0
    %4261 = vmatpush2.xpose.msra.mxu0 0.0
    %4262 = vmatprep.subr.mxu0 0.0
    %4263 = vmatpush2.xpose.msra.mxu0 0.0
    %4264 = vmatprep.subr.mxu0 0.0
    %4265 = vmatpush2.xpose.msra.mxu0 0.0
    %4266 = vmatprep.mubr.f32.mxu0 0.0
    %v4267 = vand.u32 %v4043, 4294901760
    %v4268 = vsub.f32 %v4043, %v4267
    %4269 = vmatmul.mubr.f32.gmra.mxu0 %v4268
    %v4270 = vpop.f32.mrf.mxu0
    %v4271 = vadd.f32 %v4197, %v4270
    %v4272 = vpop.f32.mrf.mxu0
    %4273 = vdwg.mxu0
    %4274 = vmatprep.subr.mxu0 0.0
    %4275 = vmatpush1.xpose.msra.mxu0 0.0
    %4276 = vmatprep.subr.mxu0 0.0
    %4277 = vmatpush1.xpose.msra.mxu0 0.0
    %4278 = vmatprep.subr.mxu0 0.0
    %4279 = vmatpush1.xpose.msra.mxu0 0.0
    %4280 = vmatprep.subr.mxu0 0.0
    %4281 = vmatpush1.xpose.msra.mxu0 0.0
    %4282 = vmatprep.subr.mxu0 0.0
    %4283 = vmatpush1.xpose.msra.mxu0 0.0
    %4284 = vmatprep.subr.mxu0 0.0
    %4285 = vmatpush1.xpose.msra.mxu0 0.0
    %4286 = vmatprep.subr.mxu0 0.0
    %4287 = vmatpush1.xpose.msra.mxu0 0.0
    %4288 = vmatprep.subr.mxu0 0.0
    %4289 = vmatpush1.xpose.msra.mxu0 0.0
    %4290 = vmatprep.subr.mxu0 0.0
    %4291 = vmatpush1.xpose.msra.mxu0 0.0
    %4292 = vmatprep.subr.mxu0 0.0
    %4293 = vmatpush1.xpose.msra.mxu0 0.0
    %4294 = vmatprep.subr.mxu0 0.0
    %4295 = vmatpush1.xpose.msra.mxu0 0.0
    %4296 = vmatprep.subr.mxu0 0.0
    %4297 = vmatpush1.xpose.msra.mxu0 0.0
    %4298 = vmatprep.subr.mxu0 0.0
    %4299 = vmatpush1.xpose.msra.mxu0 0.0
    %4300 = vmatprep.subr.mxu0 0.0
    %4301 = vmatpush1.xpose.msra.mxu0 0.0
    %4302 = vmatprep.subr.mxu0 0.0
    %4303 = vmatpush1.xpose.msra.mxu0 0.0
    %4304 = vmatprep.subr.mxu0 0.0
    %v4305 = vand.u32 %v4046, 4294901760
    %4306 = vmatpush1.xpose.msra.mxu0 %v4305
    %4307 = vmatprep.subr.mxu0 0.0
    %4308 = vmatpush2.xpose.msra.mxu0 0.0
    %4309 = vmatprep.subr.mxu0 0.0
    %4310 = vmatpush2.xpose.msra.mxu0 0.0
    %4311 = vmatprep.subr.mxu0 0.0
    %4312 = vmatpush2.xpose.msra.mxu0 0.0
    %4313 = vmatprep.subr.mxu0 0.0
    %4314 = vmatpush2.xpose.msra.mxu0 0.0
    %4315 = vmatprep.subr.mxu0 0.0
    %4316 = vmatpush2.xpose.msra.mxu0 0.0
    %4317 = vmatprep.subr.mxu0 0.0
    %4318 = vmatpush2.xpose.msra.mxu0 0.0
    %4319 = vmatprep.subr.mxu0 0.0
    %4320 = vmatpush2.xpose.msra.mxu0 0.0
    %4321 = vmatprep.subr.mxu0 0.0
    %4322 = vmatpush2.xpose.msra.mxu0 0.0
    %4323 = vmatprep.subr.mxu0 0.0
    %4324 = vmatpush2.xpose.msra.mxu0 0.0
    %4325 = vmatprep.subr.mxu0 0.0
    %4326 = vmatpush2.xpose.msra.mxu0 0.0
    %4327 = vmatprep.subr.mxu0 0.0
    %4328 = vmatpush2.xpose.msra.mxu0 0.0
    %4329 = vmatprep.subr.mxu0 0.0
    %4330 = vmatpush2.xpose.msra.mxu0 0.0
    %4331 = vmatprep.subr.mxu0 0.0
    %4332 = vmatpush2.xpose.msra.mxu0 0.0
    %4333 = vmatprep.subr.mxu0 0.0
    %4334 = vmatpush2.xpose.msra.mxu0 0.0
    %4335 = vmatprep.subr.mxu0 0.0
    %4336 = vmatpush2.xpose.msra.mxu0 0.0
    %4337 = vmatprep.subr.mxu0 0.0
    %4338 = vmatpush2.xpose.msra.mxu0 0.0
    %4339 = vmatprep.mubr.f32.mxu0 0.0
    %v4340 = vand.u32 %v4043, 4294901760
    %v4341 = vsub.f32 %v4043, %v4340
    %v4342 = vand.u32 %v4341, 4294901760
    %4343 = vmatmul.mubr.f32.gmra.mxu0 %v4342
    %v4344 = vpop.f32.mrf.mxu0
    %v4345 = vadd.f32 %v4271, %v4344
    %v4346 = vpop.f32.mrf.mxu0
    %4347 = vdwg.mxu0
    %4348 = vmatprep.subr.mxu0 0.0
    %4349 = vmatpush1.xpose.msra.mxu0 0.0
    %4350 = vmatprep.subr.mxu0 0.0
    %4351 = vmatpush1.xpose.msra.mxu0 0.0
    %4352 = vmatprep.subr.mxu0 0.0
    %4353 = vmatpush1.xpose.msra.mxu0 0.0
    %4354 = vmatprep.subr.mxu0 0.0
    %4355 = vmatpush1.xpose.msra.mxu0 0.0
    %4356 = vmatprep.subr.mxu0 0.0
    %4357 = vmatpush1.xpose.msra.mxu0 0.0
    %4358 = vmatprep.subr.mxu0 0.0
    %4359 = vmatpush1.xpose.msra.mxu0 0.0
    %4360 = vmatprep.subr.mxu0 0.0
    %4361 = vmatpush1.xpose.msra.mxu0 0.0
    %4362 = vmatprep.subr.mxu0 0.0
    %4363 = vmatpush1.xpose.msra.mxu0 0.0
    %4364 = vmatprep.subr.mxu0 0.0
    %4365 = vmatpush1.xpose.msra.mxu0 0.0
    %4366 = vmatprep.subr.mxu0 0.0
    %4367 = vmatpush1.xpose.msra.mxu0 0.0
    %4368 = vmatprep.subr.mxu0 0.0
    %4369 = vmatpush1.xpose.msra.mxu0 0.0
    %4370 = vmatprep.subr.mxu0 0.0
    %4371 = vmatpush1.xpose.msra.mxu0 0.0
    %4372 = vmatprep.subr.mxu0 0.0
    %4373 = vmatpush1.xpose.msra.mxu0 0.0
    %4374 = vmatprep.subr.mxu0 0.0
    %4375 = vmatpush1.xpose.msra.mxu0 0.0
    %4376 = vmatprep.subr.mxu0 0.0
    %4377 = vmatpush1.xpose.msra.mxu0 0.0
    %4378 = vmatprep.subr.mxu0 0.0
    %v4379 = vand.u32 %v4046, 4294901760
    %v4380 = vsub.f32 %v4046, %v4379
    %v4381 = vand.u32 %v4380, 4294901760
    %4382 = vmatpush1.xpose.msra.mxu0 %v4381
    %4383 = vmatprep.subr.mxu0 0.0
    %4384 = vmatpush2.xpose.msra.mxu0 0.0
    %4385 = vmatprep.subr.mxu0 0.0
    %4386 = vmatpush2.xpose.msra.mxu0 0.0
    %4387 = vmatprep.subr.mxu0 0.0
    %4388 = vmatpush2.xpose.msra.mxu0 0.0
    %4389 = vmatprep.subr.mxu0 0.0
    %4390 = vmatpush2.xpose.msra.mxu0 0.0
    %4391 = vmatprep.subr.mxu0 0.0
    %4392 = vmatpush2.xpose.msra.mxu0 0.0
    %4393 = vmatprep.subr.mxu0 0.0
    %4394 = vmatpush2.xpose.msra.mxu0 0.0
    %4395 = vmatprep.subr.mxu0 0.0
    %4396 = vmatpush2.xpose.msra.mxu0 0.0
    %4397 = vmatprep.subr.mxu0 0.0
    %4398 = vmatpush2.xpose.msra.mxu0 0.0
    %4399 = vmatprep.subr.mxu0 0.0
    %4400 = vmatpush2.xpose.msra.mxu0 0.0
    %4401 = vmatprep.subr.mxu0 0.0
    %4402 = vmatpush2.xpose.msra.mxu0 0.0
    %4403 = vmatprep.subr.mxu0 0.0
    %4404 = vmatpush2.xpose.msra.mxu0 0.0
    %4405 = vmatprep.subr.mxu0 0.0
    %4406 = vmatpush2.xpose.msra.mxu0 0.0
    %4407 = vmatprep.subr.mxu0 0.0
    %4408 = vmatpush2.xpose.msra.mxu0 0.0
    %4409 = vmatprep.subr.mxu0 0.0
    %4410 = vmatpush2.xpose.msra.mxu0 0.0
    %4411 = vmatprep.subr.mxu0 0.0
    %4412 = vmatpush2.xpose.msra.mxu0 0.0
    %4413 = vmatprep.subr.mxu0 0.0
    %4414 = vmatpush2.xpose.msra.mxu0 0.0
    %4415 = vmatprep.mubr.f32.mxu0 0.0
    %v4416 = vand.u32 %v4043, 4294901760
    %4417 = vmatmul.mubr.f32.gmra.mxu0 %v4416
    %v4418 = vpop.f32.mrf.mxu0
    %v4419 = vadd.f32 %v4345, %v4418
    %v4420 = vpop.f32.mrf.mxu0
    %4421 = vdwg.mxu0
    %4422 = vmatprep.subr.mxu0 0.0
    %4423 = vmatpush1.xpose.msra.mxu0 0.0
    %4424 = vmatprep.subr.mxu0 0.0
    %4425 = vmatpush1.xpose.msra.mxu0 0.0
    %4426 = vmatprep.subr.mxu0 0.0
    %4427 = vmatpush1.xpose.msra.mxu0 0.0
    %4428 = vmatprep.subr.mxu0 0.0
    %4429 = vmatpush1.xpose.msra.mxu0 0.0
    %4430 = vmatprep.subr.mxu0 0.0
    %4431 = vmatpush1.xpose.msra.mxu0 0.0
    %4432 = vmatprep.subr.mxu0 0.0
    %4433 = vmatpush1.xpose.msra.mxu0 0.0
    %4434 = vmatprep.subr.mxu0 0.0
    %4435 = vmatpush1.xpose.msra.mxu0 0.0
    %4436 = vmatprep.subr.mxu0 0.0
    %4437 = vmatpush1.xpose.msra.mxu0 0.0
    %4438 = vmatprep.subr.mxu0 0.0
    %4439 = vmatpush1.xpose.msra.mxu0 0.0
    %4440 = vmatprep.subr.mxu0 0.0
    %4441 = vmatpush1.xpose.msra.mxu0 0.0
    %4442 = vmatprep.subr.mxu0 0.0
    %4443 = vmatpush1.xpose.msra.mxu0 0.0
    %4444 = vmatprep.subr.mxu0 0.0
    %4445 = vmatpush1.xpose.msra.mxu0 0.0
    %4446 = vmatprep.subr.mxu0 0.0
    %4447 = vmatpush1.xpose.msra.mxu0 0.0
    %4448 = vmatprep.subr.mxu0 0.0
    %4449 = vmatpush1.xpose.msra.mxu0 0.0
    %4450 = vmatprep.subr.mxu0 0.0
    %4451 = vmatpush1.xpose.msra.mxu0 0.0
    %4452 = vmatprep.subr.mxu0 0.0
    %v4453 = vand.u32 %v4046, 4294901760
    %4454 = vmatpush1.xpose.msra.mxu0 %v4453
    %4455 = vmatprep.subr.mxu0 0.0
    %4456 = vmatpush2.xpose.msra.mxu0 0.0
    %4457 = vmatprep.subr.mxu0 0.0
    %4458 = vmatpush2.xpose.msra.mxu0 0.0
    %4459 = vmatprep.subr.mxu0 0.0
    %4460 = vmatpush2.xpose.msra.mxu0 0.0
    %4461 = vmatprep.subr.mxu0 0.0
    %4462 = vmatpush2.xpose.msra.mxu0 0.0
    %4463 = vmatprep.subr.mxu0 0.0
    %4464 = vmatpush2.xpose.msra.mxu0 0.0
    %4465 = vmatprep.subr.mxu0 0.0
    %4466 = vmatpush2.xpose.msra.mxu0 0.0
    %4467 = vmatprep.subr.mxu0 0.0
    %4468 = vmatpush2.xpose.msra.mxu0 0.0
    %4469 = vmatprep.subr.mxu0 0.0
    %4470 = vmatpush2.xpose.msra.mxu0 0.0
    %4471 = vmatprep.subr.mxu0 0.0
    %4472 = vmatpush2.xpose.msra.mxu0 0.0
    %4473 = vmatprep.subr.mxu0 0.0
    %4474 = vmatpush2.xpose.msra.mxu0 0.0
    %4475 = vmatprep.subr.mxu0 0.0
    %4476 = vmatpush2.xpose.msra.mxu0 0.0
    %4477 = vmatprep.subr.mxu0 0.0
    %4478 = vmatpush2.xpose.msra.mxu0 0.0
    %4479 = vmatprep.subr.mxu0 0.0
    %4480 = vmatpush2.xpose.msra.mxu0 0.0
    %4481 = vmatprep.subr.mxu0 0.0
    %4482 = vmatpush2.xpose.msra.mxu0 0.0
    %4483 = vmatprep.subr.mxu0 0.0
    %4484 = vmatpush2.xpose.msra.mxu0 0.0
    %4485 = vmatprep.subr.mxu0 0.0
    %4486 = vmatpush2.xpose.msra.mxu0 0.0
    %4487 = vmatprep.mubr.f32.mxu0 0.0
    %v4488 = vand.u32 %v4043, 4294901760
    %4489 = vmatmul.mubr.f32.gmra.mxu0 %v4488
    %v4490 = vpop.f32.mrf.mxu0
    %v4491 = vadd.f32 %v4419, %v4490
    %v4492 = vpop.f32.mrf.mxu0
    %4493 = vdwg.mxu0
    %v4495 = vsel %vm38, %v22, 0
    %v4498 = vsel %vm38, %v4035, 0
    %4500 = vmatprep.subr.mxu0 0.0
    %4501 = vmatpush1.xpose.msra.mxu0 0.0
    %4502 = vmatprep.subr.mxu0 0.0
    %4503 = vmatpush1.xpose.msra.mxu0 0.0
    %4504 = vmatprep.subr.mxu0 0.0
    %4505 = vmatpush1.xpose.msra.mxu0 0.0
    %4506 = vmatprep.subr.mxu0 0.0
    %4507 = vmatpush1.xpose.msra.mxu0 0.0
    %4508 = vmatprep.subr.mxu0 0.0
    %4509 = vmatpush1.xpose.msra.mxu0 0.0
    %4510 = vmatprep.subr.mxu0 0.0
    %4511 = vmatpush1.xpose.msra.mxu0 0.0
    %4512 = vmatprep.subr.mxu0 0.0
    %4513 = vmatpush1.xpose.msra.mxu0 0.0
    %4514 = vmatprep.subr.mxu0 0.0
    %4515 = vmatpush1.xpose.msra.mxu0 0.0
    %4516 = vmatprep.subr.mxu0 0.0
    %4517 = vmatpush1.xpose.msra.mxu0 0.0
    %4518 = vmatprep.subr.mxu0 0.0
    %4519 = vmatpush1.xpose.msra.mxu0 0.0
    %4520 = vmatprep.subr.mxu0 0.0
    %4521 = vmatpush1.xpose.msra.mxu0 0.0
    %4522 = vmatprep.subr.mxu0 0.0
    %4523 = vmatpush1.xpose.msra.mxu0 0.0
    %4524 = vmatprep.subr.mxu0 0.0
    %4525 = vmatpush1.xpose.msra.mxu0 0.0
    %4526 = vmatprep.subr.mxu0 0.0
    %4527 = vmatpush1.xpose.msra.mxu0 0.0
    %4528 = vmatprep.subr.mxu0 0.0
    %4529 = vmatpush1.xpose.msra.mxu0 0.0
    %4530 = vmatprep.subr.mxu0 0.0
    %v4531 = vand.u32 %v4498, 4294901760
    %4532 = vmatpush1.xpose.msra.mxu0 %v4531
    %4533 = vmatprep.subr.mxu0 0.0
    %4534 = vmatpush2.xpose.msra.mxu0 0.0
    %4535 = vmatprep.subr.mxu0 0.0
    %4536 = vmatpush2.xpose.msra.mxu0 0.0
    %4537 = vmatprep.subr.mxu0 0.0
    %4538 = vmatpush2.xpose.msra.mxu0 0.0
    %4539 = vmatprep.subr.mxu0 0.0
    %4540 = vmatpush2.xpose.msra.mxu0 0.0
    %4541 = vmatprep.subr.mxu0 0.0
    %4542 = vmatpush2.xpose.msra.mxu0 0.0
    %4543 = vmatprep.subr.mxu0 0.0
    %4544 = vmatpush2.xpose.msra.mxu0 0.0
    %4545 = vmatprep.subr.mxu0 0.0
    %4546 = vmatpush2.xpose.msra.mxu0 0.0
    %4547 = vmatprep.subr.mxu0 0.0
    %4548 = vmatpush2.xpose.msra.mxu0 0.0
    %4549 = vmatprep.subr.mxu0 0.0
    %4550 = vmatpush2.xpose.msra.mxu0 0.0
    %4551 = vmatprep.subr.mxu0 0.0
    %4552 = vmatpush2.xpose.msra.mxu0 0.0
    %4553 = vmatprep.subr.mxu0 0.0
    %4554 = vmatpush2.xpose.msra.mxu0 0.0
    %4555 = vmatprep.subr.mxu0 0.0
    %4556 = vmatpush2.xpose.msra.mxu0 0.0
    %4557 = vmatprep.subr.mxu0 0.0
    %4558 = vmatpush2.xpose.msra.mxu0 0.0
    %4559 = vmatprep.subr.mxu0 0.0
    %4560 = vmatpush2.xpose.msra.mxu0 0.0
    %4561 = vmatprep.subr.mxu0 0.0
    %4562 = vmatpush2.xpose.msra.mxu0 0.0
    %4563 = vmatprep.subr.mxu0 0.0
    %4564 = vmatpush2.xpose.msra.mxu0 0.0
    %4565 = vmatprep.mubr.f32.mxu0 0.0
    %v4566 = vand.u32 %v4495, 4294901760
    %v4567 = vsub.f32 %v4495, %v4566
    %v4568 = vand.u32 %v4567, 4294901760
    %v4569 = vsub.f32 %v4567, %v4568
    %v4570 = vand.u32 %v4569, 4294901760
    %4571 = vmatmul.mubr.f32.gmra.mxu0 %v4570
    %v4572 = vpop.f32.mrf.mxu0
    %v4573 = vadd.f32 0.0, %v4572
    %v4574 = vpop.f32.mrf.mxu0
    %4575 = vdwg.mxu0
    %4576 = vmatprep.subr.mxu0 0.0
    %4577 = vmatpush1.xpose.msra.mxu0 0.0
    %4578 = vmatprep.subr.mxu0 0.0
    %4579 = vmatpush1.xpose.msra.mxu0 0.0
    %4580 = vmatprep.subr.mxu0 0.0
    %4581 = vmatpush1.xpose.msra.mxu0 0.0
    %4582 = vmatprep.subr.mxu0 0.0
    %4583 = vmatpush1.xpose.msra.mxu0 0.0
    %4584 = vmatprep.subr.mxu0 0.0
    %4585 = vmatpush1.xpose.msra.mxu0 0.0
    %4586 = vmatprep.subr.mxu0 0.0
    %4587 = vmatpush1.xpose.msra.mxu0 0.0
    %4588 = vmatprep.subr.mxu0 0.0
    %4589 = vmatpush1.xpose.msra.mxu0 0.0
    %4590 = vmatprep.subr.mxu0 0.0
    %4591 = vmatpush1.xpose.msra.mxu0 0.0
    %4592 = vmatprep.subr.mxu0 0.0
    %4593 = vmatpush1.xpose.msra.mxu0 0.0
    %4594 = vmatprep.subr.mxu0 0.0
    %4595 = vmatpush1.xpose.msra.mxu0 0.0
    %4596 = vmatprep.subr.mxu0 0.0
    %4597 = vmatpush1.xpose.msra.mxu0 0.0
    %4598 = vmatprep.subr.mxu0 0.0
    %4599 = vmatpush1.xpose.msra.mxu0 0.0
    %4600 = vmatprep.subr.mxu0 0.0
    %4601 = vmatpush1.xpose.msra.mxu0 0.0
    %4602 = vmatprep.subr.mxu0 0.0
    %4603 = vmatpush1.xpose.msra.mxu0 0.0
    %4604 = vmatprep.subr.mxu0 0.0
    %4605 = vmatpush1.xpose.msra.mxu0 0.0
    %4606 = vmatprep.subr.mxu0 0.0
    %v4607 = vand.u32 %v4498, 4294901760
    %v4608 = vsub.f32 %v4498, %v4607
    %v4609 = vand.u32 %v4608, 4294901760
    %v4610 = vsub.f32 %v4608, %v4609
    %v4611 = vand.u32 %v4610, 4294901760
    %4612 = vmatpush1.xpose.msra.mxu0 %v4611
    %4613 = vmatprep.subr.mxu0 0.0
    %4614 = vmatpush2.xpose.msra.mxu0 0.0
    %4615 = vmatprep.subr.mxu0 0.0
    %4616 = vmatpush2.xpose.msra.mxu0 0.0
    %4617 = vmatprep.subr.mxu0 0.0
    %4618 = vmatpush2.xpose.msra.mxu0 0.0
    %4619 = vmatprep.subr.mxu0 0.0
    %4620 = vmatpush2.xpose.msra.mxu0 0.0
    %4621 = vmatprep.subr.mxu0 0.0
    %4622 = vmatpush2.xpose.msra.mxu0 0.0
    %4623 = vmatprep.subr.mxu0 0.0
    %4624 = vmatpush2.xpose.msra.mxu0 0.0
    %4625 = vmatprep.subr.mxu0 0.0
    %4626 = vmatpush2.xpose.msra.mxu0 0.0
    %4627 = vmatprep.subr.mxu0 0.0
    %4628 = vmatpush2.xpose.msra.mxu0 0.0
    %4629 = vmatprep.subr.mxu0 0.0
    %4630 = vmatpush2.xpose.msra.mxu0 0.0
    %4631 = vmatprep.subr.mxu0 0.0
    %4632 = vmatpush2.xpose.msra.mxu0 0.0
    %4633 = vmatprep.subr.mxu0 0.0
    %4634 = vmatpush2.xpose.msra.mxu0 0.0
    %4635 = vmatprep.subr.mxu0 0.0
    %4636 = vmatpush2.xpose.msra.mxu0 0.0
    %4637 = vmatprep.subr.mxu0 0.0
    %4638 = vmatpush2.xpose.msra.mxu0 0.0
    %4639 = vmatprep.subr.mxu0 0.0
    %4640 = vmatpush2.xpose.msra.mxu0 0.0
    %4641 = vmatprep.subr.mxu0 0.0
    %4642 = vmatpush2.xpose.msra.mxu0 0.0
    %4643 = vmatprep.subr.mxu0 0.0
    %4644 = vmatpush2.xpose.msra.mxu0 0.0
    %4645 = vmatprep.mubr.f32.mxu0 0.0
    %v4646 = vand.u32 %v4495, 4294901760
    %4647 = vmatmul.mubr.f32.gmra.mxu0 %v4646
    %v4648 = vpop.f32.mrf.mxu0
    %v4649 = vadd.f32 %v4573, %v4648
    %v4650 = vpop.f32.mrf.mxu0
    %4651 = vdwg.mxu0
    %4652 = vmatprep.subr.mxu0 0.0
    %4653 = vmatpush1.xpose.msra.mxu0 0.0
    %4654 = vmatprep.subr.mxu0 0.0
    %4655 = vmatpush1.xpose.msra.mxu0 0.0
    %4656 = vmatprep.subr.mxu0 0.0
    %4657 = vmatpush1.xpose.msra.mxu0 0.0
    %4658 = vmatprep.subr.mxu0 0.0
    %4659 = vmatpush1.xpose.msra.mxu0 0.0
    %4660 = vmatprep.subr.mxu0 0.0
    %4661 = vmatpush1.xpose.msra.mxu0 0.0
    %4662 = vmatprep.subr.mxu0 0.0
    %4663 = vmatpush1.xpose.msra.mxu0 0.0
    %4664 = vmatprep.subr.mxu0 0.0
    %4665 = vmatpush1.xpose.msra.mxu0 0.0
    %4666 = vmatprep.subr.mxu0 0.0
    %4667 = vmatpush1.xpose.msra.mxu0 0.0
    %4668 = vmatprep.subr.mxu0 0.0
    %4669 = vmatpush1.xpose.msra.mxu0 0.0
    %4670 = vmatprep.subr.mxu0 0.0
    %4671 = vmatpush1.xpose.msra.mxu0 0.0
    %4672 = vmatprep.subr.mxu0 0.0
    %4673 = vmatpush1.xpose.msra.mxu0 0.0
    %4674 = vmatprep.subr.mxu0 0.0
    %4675 = vmatpush1.xpose.msra.mxu0 0.0
    %4676 = vmatprep.subr.mxu0 0.0
    %4677 = vmatpush1.xpose.msra.mxu0 0.0
    %4678 = vmatprep.subr.mxu0 0.0
    %4679 = vmatpush1.xpose.msra.mxu0 0.0
    %4680 = vmatprep.subr.mxu0 0.0
    %4681 = vmatpush1.xpose.msra.mxu0 0.0
    %4682 = vmatprep.subr.mxu0 0.0
    %v4683 = vand.u32 %v4498, 4294901760
    %v4684 = vsub.f32 %v4498, %v4683
    %4685 = vmatpush1.xpose.msra.mxu0 %v4684
    %4686 = vmatprep.subr.mxu0 0.0
    %4687 = vmatpush2.xpose.msra.mxu0 0.0
    %4688 = vmatprep.subr.mxu0 0.0
    %4689 = vmatpush2.xpose.msra.mxu0 0.0
    %4690 = vmatprep.subr.mxu0 0.0
    %4691 = vmatpush2.xpose.msra.mxu0 0.0
    %4692 = vmatprep.subr.mxu0 0.0
    %4693 = vmatpush2.xpose.msra.mxu0 0.0
    %4694 = vmatprep.subr.mxu0 0.0
    %4695 = vmatpush2.xpose.msra.mxu0 0.0
    %4696 = vmatprep.subr.mxu0 0.0
    %4697 = vmatpush2.xpose.msra.mxu0 0.0
    %4698 = vmatprep.subr.mxu0 0.0
    %4699 = vmatpush2.xpose.msra.mxu0 0.0
    %4700 = vmatprep.subr.mxu0 0.0
    %4701 = vmatpush2.xpose.msra.mxu0 0.0
    %4702 = vmatprep.subr.mxu0 0.0
    %4703 = vmatpush2.xpose.msra.mxu0 0.0
    %4704 = vmatprep.subr.mxu0 0.0
    %4705 = vmatpush2.xpose.msra.mxu0 0.0
    %4706 = vmatprep.subr.mxu0 0.0
    %4707 = vmatpush2.xpose.msra.mxu0 0.0
    %4708 = vmatprep.subr.mxu0 0.0
    %4709 = vmatpush2.xpose.msra.mxu0 0.0
    %4710 = vmatprep.subr.mxu0 0.0
    %4711 = vmatpush2.xpose.msra.mxu0 0.0
    %4712 = vmatprep.subr.mxu0 0.0
    %4713 = vmatpush2.xpose.msra.mxu0 0.0
    %4714 = vmatprep.subr.mxu0 0.0
    %4715 = vmatpush2.xpose.msra.mxu0 0.0
    %4716 = vmatprep.subr.mxu0 0.0
    %4717 = vmatpush2.xpose.msra.mxu0 0.0
    %4718 = vmatprep.mubr.f32.mxu0 0.0
    %v4719 = vand.u32 %v4495, 4294901760
    %v4720 = vsub.f32 %v4495, %v4719
    %4721 = vmatmul.mubr.f32.gmra.mxu0 %v4720
    %v4722 = vpop.f32.mrf.mxu0
    %v4723 = vadd.f32 %v4649, %v4722
    %v4724 = vpop.f32.mrf.mxu0
    %4725 = vdwg.mxu0
    %4726 = vmatprep.subr.mxu0 0.0
    %4727 = vmatpush1.xpose.msra.mxu0 0.0
    %4728 = vmatprep.subr.mxu0 0.0
    %4729 = vmatpush1.xpose.msra.mxu0 0.0
    %4730 = vmatprep.subr.mxu0 0.0
    %4731 = vmatpush1.xpose.msra.mxu0 0.0
    %4732 = vmatprep.subr.mxu0 0.0
    %4733 = vmatpush1.xpose.msra.mxu0 0.0
    %4734 = vmatprep.subr.mxu0 0.0
    %4735 = vmatpush1.xpose.msra.mxu0 0.0
    %4736 = vmatprep.subr.mxu0 0.0
    %4737 = vmatpush1.xpose.msra.mxu0 0.0
    %4738 = vmatprep.subr.mxu0 0.0
    %4739 = vmatpush1.xpose.msra.mxu0 0.0
    %4740 = vmatprep.subr.mxu0 0.0
    %4741 = vmatpush1.xpose.msra.mxu0 0.0
    %4742 = vmatprep.subr.mxu0 0.0
    %4743 = vmatpush1.xpose.msra.mxu0 0.0
    %4744 = vmatprep.subr.mxu0 0.0
    %4745 = vmatpush1.xpose.msra.mxu0 0.0
    %4746 = vmatprep.subr.mxu0 0.0
    %4747 = vmatpush1.xpose.msra.mxu0 0.0
    %4748 = vmatprep.subr.mxu0 0.0
    %4749 = vmatpush1.xpose.msra.mxu0 0.0
    %4750 = vmatprep.subr.mxu0 0.0
    %4751 = vmatpush1.xpose.msra.mxu0 0.0
    %4752 = vmatprep.subr.mxu0 0.0
    %4753 = vmatpush1.xpose.msra.mxu0 0.0
    %4754 = vmatprep.subr.mxu0 0.0
    %4755 = vmatpush1.xpose.msra.mxu0 0.0
    %4756 = vmatprep.subr.mxu0 0.0
    %v4757 = vand.u32 %v4498, 4294901760
    %4758 = vmatpush1.xpose.msra.mxu0 %v4757
    %4759 = vmatprep.subr.mxu0 0.0
    %4760 = vmatpush2.xpose.msra.mxu0 0.0
    %4761 = vmatprep.subr.mxu0 0.0
    %4762 = vmatpush2.xpose.msra.mxu0 0.0
    %4763 = vmatprep.subr.mxu0 0.0
    %4764 = vmatpush2.xpose.msra.mxu0 0.0
    %4765 = vmatprep.subr.mxu0 0.0
    %4766 = vmatpush2.xpose.msra.mxu0 0.0
    %4767 = vmatprep.subr.mxu0 0.0
    %4768 = vmatpush2.xpose.msra.mxu0 0.0
    %4769 = vmatprep.subr.mxu0 0.0
    %4770 = vmatpush2.xpose.msra.mxu0 0.0
    %4771 = vmatprep.subr.mxu0 0.0
    %4772 = vmatpush2.xpose.msra.mxu0 0.0
    %4773 = vmatprep.subr.mxu0 0.0
    %4774 = vmatpush2.xpose.msra.mxu0 0.0
    %4775 = vmatprep.subr.mxu0 0.0
    %4776 = vmatpush2.xpose.msra.mxu0 0.0
    %4777 = vmatprep.subr.mxu0 0.0
    %4778 = vmatpush2.xpose.msra.mxu0 0.0
    %4779 = vmatprep.subr.mxu0 0.0
    %4780 = vmatpush2.xpose.msra.mxu0 0.0
    %4781 = vmatprep.subr.mxu0 0.0
    %4782 = vmatpush2.xpose.msra.mxu0 0.0
    %4783 = vmatprep.subr.mxu0 0.0
    %4784 = vmatpush2.xpose.msra.mxu0 0.0
    %4785 = vmatprep.subr.mxu0 0.0
    %4786 = vmatpush2.xpose.msra.mxu0 0.0
    %4787 = vmatprep.subr.mxu0 0.0
    %4788 = vmatpush2.xpose.msra.mxu0 0.0
    %4789 = vmatprep.subr.mxu0 0.0
    %4790 = vmatpush2.xpose.msra.mxu0 0.0
    %4791 = vmatprep.mubr.f32.mxu0 0.0
    %v4792 = vand.u32 %v4495, 4294901760
    %v4793 = vsub.f32 %v4495, %v4792
    %v4794 = vand.u32 %v4793, 4294901760
    %4795 = vmatmul.mubr.f32.gmra.mxu0 %v4794
    %v4796 = vpop.f32.mrf.mxu0
    %v4797 = vadd.f32 %v4723, %v4796
    %v4798 = vpop.f32.mrf.mxu0
    %4799 = vdwg.mxu0
    %4800 = vmatprep.subr.mxu0 0.0
    %4801 = vmatpush1.xpose.msra.mxu0 0.0
    %4802 = vmatprep.subr.mxu0 0.0
    %4803 = vmatpush1.xpose.msra.mxu0 0.0
    %4804 = vmatprep.subr.mxu0 0.0
    %4805 = vmatpush1.xpose.msra.mxu0 0.0
    %4806 = vmatprep.subr.mxu0 0.0
    %4807 = vmatpush1.xpose.msra.mxu0 0.0
    %4808 = vmatprep.subr.mxu0 0.0
    %4809 = vmatpush1.xpose.msra.mxu0 0.0
    %4810 = vmatprep.subr.mxu0 0.0
    %4811 = vmatpush1.xpose.msra.mxu0 0.0
    %4812 = vmatprep.subr.mxu0 0.0
    %4813 = vmatpush1.xpose.msra.mxu0 0.0
    %4814 = vmatprep.subr.mxu0 0.0
    %4815 = vmatpush1.xpose.msra.mxu0 0.0
    %4816 = vmatprep.subr.mxu0 0.0
    %4817 = vmatpush1.xpose.msra.mxu0 0.0
    %4818 = vmatprep.subr.mxu0 0.0
    %4819 = vmatpush1.xpose.msra.mxu0 0.0
    %4820 = vmatprep.subr.mxu0 0.0
    %4821 = vmatpush1.xpose.msra.mxu0 0.0
    %4822 = vmatprep.subr.mxu0 0.0
    %4823 = vmatpush1.xpose.msra.mxu0 0.0
    %4824 = vmatprep.subr.mxu0 0.0
    %4825 = vmatpush1.xpose.msra.mxu0 0.0
    %4826 = vmatprep.subr.mxu0 0.0
    %4827 = vmatpush1.xpose.msra.mxu0 0.0
    %4828 = vmatprep.subr.mxu0 0.0
    %4829 = vmatpush1.xpose.msra.mxu0 0.0
    %4830 = vmatprep.subr.mxu0 0.0
    %v4831 = vand.u32 %v4498, 4294901760
    %v4832 = vsub.f32 %v4498, %v4831
    %v4833 = vand.u32 %v4832, 4294901760
    %4834 = vmatpush1.xpose.msra.mxu0 %v4833
    %4835 = vmatprep.subr.mxu0 0.0
    %4836 = vmatpush2.xpose.msra.mxu0 0.0
    %4837 = vmatprep.subr.mxu0 0.0
    %4838 = vmatpush2.xpose.msra.mxu0 0.0
    %4839 = vmatprep.subr.mxu0 0.0
    %4840 = vmatpush2.xpose.msra.mxu0 0.0
    %4841 = vmatprep.subr.mxu0 0.0
    %4842 = vmatpush2.xpose.msra.mxu0 0.0
    %4843 = vmatprep.subr.mxu0 0.0
    %4844 = vmatpush2.xpose.msra.mxu0 0.0
    %4845 = vmatprep.subr.mxu0 0.0
    %4846 = vmatpush2.xpose.msra.mxu0 0.0
    %4847 = vmatprep.subr.mxu0 0.0
    %4848 = vmatpush2.xpose.msra.mxu0 0.0
    %4849 = vmatprep.subr.mxu0 0.0
    %4850 = vmatpush2.xpose.msra.mxu0 0.0
    %4851 = vmatprep.subr.mxu0 0.0
    %4852 = vmatpush2.xpose.msra.mxu0 0.0
    %4853 = vmatprep.subr.mxu0 0.0
    %4854 = vmatpush2.xpose.msra.mxu0 0.0
    %4855 = vmatprep.subr.mxu0 0.0
    %4856 = vmatpush2.xpose.msra.mxu0 0.0
    %4857 = vmatprep.subr.mxu0 0.0
    %4858 = vmatpush2.xpose.msra.mxu0 0.0
    %4859 = vmatprep.subr.mxu0 0.0
    %4860 = vmatpush2.xpose.msra.mxu0 0.0
    %4861 = vmatprep.subr.mxu0 0.0
    %4862 = vmatpush2.xpose.msra.mxu0 0.0
    %4863 = vmatprep.subr.mxu0 0.0
    %4864 = vmatpush2.xpose.msra.mxu0 0.0
    %4865 = vmatprep.subr.mxu0 0.0
    %4866 = vmatpush2.xpose.msra.mxu0 0.0
    %4867 = vmatprep.mubr.f32.mxu0 0.0
    %v4868 = vand.u32 %v4495, 4294901760
    %4869 = vmatmul.mubr.f32.gmra.mxu0 %v4868
    %v4870 = vpop.f32.mrf.mxu0
    %v4871 = vadd.f32 %v4797, %v4870
    %v4872 = vpop.f32.mrf.mxu0
    %4873 = vdwg.mxu0
    %4874 = vmatprep.subr.mxu0 0.0
    %4875 = vmatpush1.xpose.msra.mxu0 0.0
    %4876 = vmatprep.subr.mxu0 0.0
    %4877 = vmatpush1.xpose.msra.mxu0 0.0
    %4878 = vmatprep.subr.mxu0 0.0
    %4879 = vmatpush1.xpose.msra.mxu0 0.0
    %4880 = vmatprep.subr.mxu0 0.0
    %4881 = vmatpush1.xpose.msra.mxu0 0.0
    %4882 = vmatprep.subr.mxu0 0.0
    %4883 = vmatpush1.xpose.msra.mxu0 0.0
    %4884 = vmatprep.subr.mxu0 0.0
    %4885 = vmatpush1.xpose.msra.mxu0 0.0
    %4886 = vmatprep.subr.mxu0 0.0
    %4887 = vmatpush1.xpose.msra.mxu0 0.0
    %4888 = vmatprep.subr.mxu0 0.0
    %4889 = vmatpush1.xpose.msra.mxu0 0.0
    %4890 = vmatprep.subr.mxu0 0.0
    %4891 = vmatpush1.xpose.msra.mxu0 0.0
    %4892 = vmatprep.subr.mxu0 0.0
    %4893 = vmatpush1.xpose.msra.mxu0 0.0
    %4894 = vmatprep.subr.mxu0 0.0
    %4895 = vmatpush1.xpose.msra.mxu0 0.0
    %4896 = vmatprep.subr.mxu0 0.0
    %4897 = vmatpush1.xpose.msra.mxu0 0.0
    %4898 = vmatprep.subr.mxu0 0.0
    %4899 = vmatpush1.xpose.msra.mxu0 0.0
    %4900 = vmatprep.subr.mxu0 0.0
    %4901 = vmatpush1.xpose.msra.mxu0 0.0
    %4902 = vmatprep.subr.mxu0 0.0
    %4903 = vmatpush1.xpose.msra.mxu0 0.0
    %4904 = vmatprep.subr.mxu0 0.0
    %v4905 = vand.u32 %v4498, 4294901760
    %4906 = vmatpush1.xpose.msra.mxu0 %v4905
    %4907 = vmatprep.subr.mxu0 0.0
    %4908 = vmatpush2.xpose.msra.mxu0 0.0
    %4909 = vmatprep.subr.mxu0 0.0
    %4910 = vmatpush2.xpose.msra.mxu0 0.0
    %4911 = vmatprep.subr.mxu0 0.0
    %4912 = vmatpush2.xpose.msra.mxu0 0.0
    %4913 = vmatprep.subr.mxu0 0.0
    %4914 = vmatpush2.xpose.msra.mxu0 0.0
    %4915 = vmatprep.subr.mxu0 0.0
    %4916 = vmatpush2.xpose.msra.mxu0 0.0
    %4917 = vmatprep.subr.mxu0 0.0
    %4918 = vmatpush2.xpose.msra.mxu0 0.0
    %4919 = vmatprep.subr.mxu0 0.0
    %4920 = vmatpush2.xpose.msra.mxu0 0.0
    %4921 = vmatprep.subr.mxu0 0.0
    %4922 = vmatpush2.xpose.msra.mxu0 0.0
    %4923 = vmatprep.subr.mxu0 0.0
    %4924 = vmatpush2.xpose.msra.mxu0 0.0
    %4925 = vmatprep.subr.mxu0 0.0
    %4926 = vmatpush2.xpose.msra.mxu0 0.0
    %4927 = vmatprep.subr.mxu0 0.0
    %4928 = vmatpush2.xpose.msra.mxu0 0.0
    %4929 = vmatprep.subr.mxu0 0.0
    %4930 = vmatpush2.xpose.msra.mxu0 0.0
    %4931 = vmatprep.subr.mxu0 0.0
    %4932 = vmatpush2.xpose.msra.mxu0 0.0
    %4933 = vmatprep.subr.mxu0 0.0
    %4934 = vmatpush2.xpose.msra.mxu0 0.0
    %4935 = vmatprep.subr.mxu0 0.0
    %4936 = vmatpush2.xpose.msra.mxu0 0.0
    %4937 = vmatprep.subr.mxu0 0.0
    %4938 = vmatpush2.xpose.msra.mxu0 0.0
    %4939 = vmatprep.mubr.f32.mxu0 0.0
    %v4940 = vand.u32 %v4495, 4294901760
    %4941 = vmatmul.mubr.f32.gmra.mxu0 %v4940
    %v4942 = vpop.f32.mrf.mxu0
    %v4943 = vadd.f32 %v4871, %v4942
    %v4944 = vpop.f32.mrf.mxu0
    %4945 = vdwg.mxu0
    %v4947 = vsel %vm38, %v23, 0
    %v4950 = vsel %vm38, %v4036, 0
    %4952 = vmatprep.subr.mxu0 0.0
    %4953 = vmatpush1.xpose.msra.mxu0 0.0
    %4954 = vmatprep.subr.mxu0 0.0
    %4955 = vmatpush1.xpose.msra.mxu0 0.0
    %4956 = vmatprep.subr.mxu0 0.0
    %4957 = vmatpush1.xpose.msra.mxu0 0.0
    %4958 = vmatprep.subr.mxu0 0.0
    %4959 = vmatpush1.xpose.msra.mxu0 0.0
    %4960 = vmatprep.subr.mxu0 0.0
    %4961 = vmatpush1.xpose.msra.mxu0 0.0
    %4962 = vmatprep.subr.mxu0 0.0
    %4963 = vmatpush1.xpose.msra.mxu0 0.0
    %4964 = vmatprep.subr.mxu0 0.0
    %4965 = vmatpush1.xpose.msra.mxu0 0.0
    %4966 = vmatprep.subr.mxu0 0.0
    %4967 = vmatpush1.xpose.msra.mxu0 0.0
    %4968 = vmatprep.subr.mxu0 0.0
    %4969 = vmatpush1.xpose.msra.mxu0 0.0
    %4970 = vmatprep.subr.mxu0 0.0
    %4971 = vmatpush1.xpose.msra.mxu0 0.0
    %4972 = vmatprep.subr.mxu0 0.0
    %4973 = vmatpush1.xpose.msra.mxu0 0.0
    %4974 = vmatprep.subr.mxu0 0.0
    %4975 = vmatpush1.xpose.msra.mxu0 0.0
    %4976 = vmatprep.subr.mxu0 0.0
    %4977 = vmatpush1.xpose.msra.mxu0 0.0
    %4978 = vmatprep.subr.mxu0 0.0
    %4979 = vmatpush1.xpose.msra.mxu0 0.0
    %4980 = vmatprep.subr.mxu0 0.0
    %4981 = vmatpush1.xpose.msra.mxu0 0.0
    %4982 = vmatprep.subr.mxu0 0.0
    %v4983 = vand.u32 %v4950, 4294901760
    %4984 = vmatpush1.xpose.msra.mxu0 %v4983
    %4985 = vmatprep.subr.mxu0 0.0
    %4986 = vmatpush2.xpose.msra.mxu0 0.0
    %4987 = vmatprep.subr.mxu0 0.0
    %4988 = vmatpush2.xpose.msra.mxu0 0.0
    %4989 = vmatprep.subr.mxu0 0.0
    %4990 = vmatpush2.xpose.msra.mxu0 0.0
    %4991 = vmatprep.subr.mxu0 0.0
    %4992 = vmatpush2.xpose.msra.mxu0 0.0
    %4993 = vmatprep.subr.mxu0 0.0
    %4994 = vmatpush2.xpose.msra.mxu0 0.0
    %4995 = vmatprep.subr.mxu0 0.0
    %4996 = vmatpush2.xpose.msra.mxu0 0.0
    %4997 = vmatprep.subr.mxu0 0.0
    %4998 = vmatpush2.xpose.msra.mxu0 0.0
    %4999 = vmatprep.subr.mxu0 0.0
    %5000 = vmatpush2.xpose.msra.mxu0 0.0
    %5001 = vmatprep.subr.mxu0 0.0
    %5002 = vmatpush2.xpose.msra.mxu0 0.0
    %5003 = vmatprep.subr.mxu0 0.0
    %5004 = vmatpush2.xpose.msra.mxu0 0.0
    %5005 = vmatprep.subr.mxu0 0.0
    %5006 = vmatpush2.xpose.msra.mxu0 0.0
    %5007 = vmatprep.subr.mxu0 0.0
    %5008 = vmatpush2.xpose.msra.mxu0 0.0
    %5009 = vmatprep.subr.mxu0 0.0
    %5010 = vmatpush2.xpose.msra.mxu0 0.0
    %5011 = vmatprep.subr.mxu0 0.0
    %5012 = vmatpush2.xpose.msra.mxu0 0.0
    %5013 = vmatprep.subr.mxu0 0.0
    %5014 = vmatpush2.xpose.msra.mxu0 0.0
    %5015 = vmatprep.subr.mxu0 0.0
    %5016 = vmatpush2.xpose.msra.mxu0 0.0
    %5017 = vmatprep.mubr.f32.mxu0 0.0
    %v5018 = vand.u32 %v4947, 4294901760
    %v5019 = vsub.f32 %v4947, %v5018
    %v5020 = vand.u32 %v5019, 4294901760
    %v5021 = vsub.f32 %v5019, %v5020
    %v5022 = vand.u32 %v5021, 4294901760
    %5023 = vmatmul.mubr.f32.gmra.mxu0 %v5022
    %v5024 = vpop.f32.mrf.mxu0
    %v5025 = vadd.f32 0.0, %v5024
    %v5026 = vpop.f32.mrf.mxu0
    %5027 = vdwg.mxu0
    %5028 = vmatprep.subr.mxu0 0.0
    %5029 = vmatpush1.xpose.msra.mxu0 0.0
    %5030 = vmatprep.subr.mxu0 0.0
    %5031 = vmatpush1.xpose.msra.mxu0 0.0
    %5032 = vmatprep.subr.mxu0 0.0
    %5033 = vmatpush1.xpose.msra.mxu0 0.0
    %5034 = vmatprep.subr.mxu0 0.0
    %5035 = vmatpush1.xpose.msra.mxu0 0.0
    %5036 = vmatprep.subr.mxu0 0.0
    %5037 = vmatpush1.xpose.msra.mxu0 0.0
    %5038 = vmatprep.subr.mxu0 0.0
    %5039 = vmatpush1.xpose.msra.mxu0 0.0
    %5040 = vmatprep.subr.mxu0 0.0
    %5041 = vmatpush1.xpose.msra.mxu0 0.0
    %5042 = vmatprep.subr.mxu0 0.0
    %5043 = vmatpush1.xpose.msra.mxu0 0.0
    %5044 = vmatprep.subr.mxu0 0.0
    %5045 = vmatpush1.xpose.msra.mxu0 0.0
    %5046 = vmatprep.subr.mxu0 0.0
    %5047 = vmatpush1.xpose.msra.mxu0 0.0
    %5048 = vmatprep.subr.mxu0 0.0
    %5049 = vmatpush1.xpose.msra.mxu0 0.0
    %5050 = vmatprep.subr.mxu0 0.0
    %5051 = vmatpush1.xpose.msra.mxu0 0.0
    %5052 = vmatprep.subr.mxu0 0.0
    %5053 = vmatpush1.xpose.msra.mxu0 0.0
    %5054 = vmatprep.subr.mxu0 0.0
    %5055 = vmatpush1.xpose.msra.mxu0 0.0
    %5056 = vmatprep.subr.mxu0 0.0
    %5057 = vmatpush1.xpose.msra.mxu0 0.0
    %5058 = vmatprep.subr.mxu0 0.0
    %v5059 = vand.u32 %v4950, 4294901760
    %v5060 = vsub.f32 %v4950, %v5059
    %v5061 = vand.u32 %v5060, 4294901760
    %v5062 = vsub.f32 %v5060, %v5061
    %v5063 = vand.u32 %v5062, 4294901760
    %5064 = vmatpush1.xpose.msra.mxu0 %v5063
    %5065 = vmatprep.subr.mxu0 0.0
    %5066 = vmatpush2.xpose.msra.mxu0 0.0
    %5067 = vmatprep.subr.mxu0 0.0
    %5068 = vmatpush2.xpose.msra.mxu0 0.0
    %5069 = vmatprep.subr.mxu0 0.0
    %5070 = vmatpush2.xpose.msra.mxu0 0.0
    %5071 = vmatprep.subr.mxu0 0.0
    %5072 = vmatpush2.xpose.msra.mxu0 0.0
    %5073 = vmatprep.subr.mxu0 0.0
    %5074 = vmatpush2.xpose.msra.mxu0 0.0
    %5075 = vmatprep.subr.mxu0 0.0
    %5076 = vmatpush2.xpose.msra.mxu0 0.0
    %5077 = vmatprep.subr.mxu0 0.0
    %5078 = vmatpush2.xpose.msra.mxu0 0.0
    %5079 = vmatprep.subr.mxu0 0.0
    %5080 = vmatpush2.xpose.msra.mxu0 0.0
    %5081 = vmatprep.subr.mxu0 0.0
    %5082 = vmatpush2.xpose.msra.mxu0 0.0
    %5083 = vmatprep.subr.mxu0 0.0
    %5084 = vmatpush2.xpose.msra.mxu0 0.0
    %5085 = vmatprep.subr.mxu0 0.0
    %5086 = vmatpush2.xpose.msra.mxu0 0.0
    %5087 = vmatprep.subr.mxu0 0.0
    %5088 = vmatpush2.xpose.msra.mxu0 0.0
    %5089 = vmatprep.subr.mxu0 0.0
    %5090 = vmatpush2.xpose.msra.mxu0 0.0
    %5091 = vmatprep.subr.mxu0 0.0
    %5092 = vmatpush2.xpose.msra.mxu0 0.0
    %5093 = vmatprep.subr.mxu0 0.0
    %5094 = vmatpush2.xpose.msra.mxu0 0.0
    %5095 = vmatprep.subr.mxu0 0.0
    %5096 = vmatpush2.xpose.msra.mxu0 0.0
    %5097 = vmatprep.mubr.f32.mxu0 0.0
    %v5098 = vand.u32 %v4947, 4294901760
    %5099 = vmatmul.mubr.f32.gmra.mxu0 %v5098
    %v5100 = vpop.f32.mrf.mxu0
    %v5101 = vadd.f32 %v5025, %v5100
    %v5102 = vpop.f32.mrf.mxu0
    %5103 = vdwg.mxu0
    %5104 = vmatprep.subr.mxu0 0.0
    %5105 = vmatpush1.xpose.msra.mxu0 0.0
    %5106 = vmatprep.subr.mxu0 0.0
    %5107 = vmatpush1.xpose.msra.mxu0 0.0
    %5108 = vmatprep.subr.mxu0 0.0
    %5109 = vmatpush1.xpose.msra.mxu0 0.0
    %5110 = vmatprep.subr.mxu0 0.0
    %5111 = vmatpush1.xpose.msra.mxu0 0.0
    %5112 = vmatprep.subr.mxu0 0.0
    %5113 = vmatpush1.xpose.msra.mxu0 0.0
    %5114 = vmatprep.subr.mxu0 0.0
    %5115 = vmatpush1.xpose.msra.mxu0 0.0
    %5116 = vmatprep.subr.mxu0 0.0
    %5117 = vmatpush1.xpose.msra.mxu0 0.0
    %5118 = vmatprep.subr.mxu0 0.0
    %5119 = vmatpush1.xpose.msra.mxu0 0.0
    %5120 = vmatprep.subr.mxu0 0.0
    %5121 = vmatpush1.xpose.msra.mxu0 0.0
    %5122 = vmatprep.subr.mxu0 0.0
    %5123 = vmatpush1.xpose.msra.mxu0 0.0
    %5124 = vmatprep.subr.mxu0 0.0
    %5125 = vmatpush1.xpose.msra.mxu0 0.0
    %5126 = vmatprep.subr.mxu0 0.0
    %5127 = vmatpush1.xpose.msra.mxu0 0.0
    %5128 = vmatprep.subr.mxu0 0.0
    %5129 = vmatpush1.xpose.msra.mxu0 0.0
    %5130 = vmatprep.subr.mxu0 0.0
    %5131 = vmatpush1.xpose.msra.mxu0 0.0
    %5132 = vmatprep.subr.mxu0 0.0
    %5133 = vmatpush1.xpose.msra.mxu0 0.0
    %5134 = vmatprep.subr.mxu0 0.0
    %v5135 = vand.u32 %v4950, 4294901760
    %v5136 = vsub.f32 %v4950, %v5135
    %5137 = vmatpush1.xpose.msra.mxu0 %v5136
    %5138 = vmatprep.subr.mxu0 0.0
    %5139 = vmatpush2.xpose.msra.mxu0 0.0
    %5140 = vmatprep.subr.mxu0 0.0
    %5141 = vmatpush2.xpose.msra.mxu0 0.0
    %5142 = vmatprep.subr.mxu0 0.0
    %5143 = vmatpush2.xpose.msra.mxu0 0.0
    %5144 = vmatprep.subr.mxu0 0.0
    %5145 = vmatpush2.xpose.msra.mxu0 0.0
    %5146 = vmatprep.subr.mxu0 0.0
    %5147 = vmatpush2.xpose.msra.mxu0 0.0
    %5148 = vmatprep.subr.mxu0 0.0
    %5149 = vmatpush2.xpose.msra.mxu0 0.0
    %5150 = vmatprep.subr.mxu0 0.0
    %5151 = vmatpush2.xpose.msra.mxu0 0.0
    %5152 = vmatprep.subr.mxu0 0.0
    %5153 = vmatpush2.xpose.msra.mxu0 0.0
    %5154 = vmatprep.subr.mxu0 0.0
    %5155 = vmatpush2.xpose.msra.mxu0 0.0
    %5156 = vmatprep.subr.mxu0 0.0
    %5157 = vmatpush2.xpose.msra.mxu0 0.0
    %5158 = vmatprep.subr.mxu0 0.0
    %5159 = vmatpush2.xpose.msra.mxu0 0.0
    %5160 = vmatprep.subr.mxu0 0.0
    %5161 = vmatpush2.xpose.msra.mxu0 0.0
    %5162 = vmatprep.subr.mxu0 0.0
    %5163 = vmatpush2.xpose.msra.mxu0 0.0
    %5164 = vmatprep.subr.mxu0 0.0
    %5165 = vmatpush2.xpose.msra.mxu0 0.0
    %5166 = vmatprep.subr.mxu0 0.0
    %5167 = vmatpush2.xpose.msra.mxu0 0.0
    %5168 = vmatprep.subr.mxu0 0.0
    %5169 = vmatpush2.xpose.msra.mxu0 0.0
    %5170 = vmatprep.mubr.f32.mxu0 0.0
    %v5171 = vand.u32 %v4947, 4294901760
    %v5172 = vsub.f32 %v4947, %v5171
    %5173 = vmatmul.mubr.f32.gmra.mxu0 %v5172
    %v5174 = vpop.f32.mrf.mxu0
    %v5175 = vadd.f32 %v5101, %v5174
    %v5176 = vpop.f32.mrf.mxu0
    %5177 = vdwg.mxu0
    %5178 = vmatprep.subr.mxu0 0.0
    %5179 = vmatpush1.xpose.msra.mxu0 0.0
    %5180 = vmatprep.subr.mxu0 0.0
    %5181 = vmatpush1.xpose.msra.mxu0 0.0
    %5182 = vmatprep.subr.mxu0 0.0
    %5183 = vmatpush1.xpose.msra.mxu0 0.0
    %5184 = vmatprep.subr.mxu0 0.0
    %5185 = vmatpush1.xpose.msra.mxu0 0.0
    %5186 = vmatprep.subr.mxu0 0.0
    %5187 = vmatpush1.xpose.msra.mxu0 0.0
    %5188 = vmatprep.subr.mxu0 0.0
    %5189 = vmatpush1.xpose.msra.mxu0 0.0
    %5190 = vmatprep.subr.mxu0 0.0
    %5191 = vmatpush1.xpose.msra.mxu0 0.0
    %5192 = vmatprep.subr.mxu0 0.0
    %5193 = vmatpush1.xpose.msra.mxu0 0.0
    %5194 = vmatprep.subr.mxu0 0.0
    %5195 = vmatpush1.xpose.msra.mxu0 0.0
    %5196 = vmatprep.subr.mxu0 0.0
    %5197 = vmatpush1.xpose.msra.mxu0 0.0
    %5198 = vmatprep.subr.mxu0 0.0
    %5199 = vmatpush1.xpose.msra.mxu0 0.0
    %5200 = vmatprep.subr.mxu0 0.0
    %5201 = vmatpush1.xpose.msra.mxu0 0.0
    %5202 = vmatprep.subr.mxu0 0.0
    %5203 = vmatpush1.xpose.msra.mxu0 0.0
    %5204 = vmatprep.subr.mxu0 0.0
    %5205 = vmatpush1.xpose.msra.mxu0 0.0
    %5206 = vmatprep.subr.mxu0 0.0
    %5207 = vmatpush1.xpose.msra.mxu0 0.0
    %5208 = vmatprep.subr.mxu0 0.0
    %v5209 = vand.u32 %v4950, 4294901760
    %5210 = vmatpush1.xpose.msra.mxu0 %v5209
    %5211 = vmatprep.subr.mxu0 0.0
    %5212 = vmatpush2.xpose.msra.mxu0 0.0
    %5213 = vmatprep.subr.mxu0 0.0
    %5214 = vmatpush2.xpose.msra.mxu0 0.0
    %5215 = vmatprep.subr.mxu0 0.0
    %5216 = vmatpush2.xpose.msra.mxu0 0.0
    %5217 = vmatprep.subr.mxu0 0.0
    %5218 = vmatpush2.xpose.msra.mxu0 0.0
    %5219 = vmatprep.subr.mxu0 0.0
    %5220 = vmatpush2.xpose.msra.mxu0 0.0
    %5221 = vmatprep.subr.mxu0 0.0
    %5222 = vmatpush2.xpose.msra.mxu0 0.0
    %5223 = vmatprep.subr.mxu0 0.0
    %5224 = vmatpush2.xpose.msra.mxu0 0.0
    %5225 = vmatprep.subr.mxu0 0.0
    %5226 = vmatpush2.xpose.msra.mxu0 0.0
    %5227 = vmatprep.subr.mxu0 0.0
    %5228 = vmatpush2.xpose.msra.mxu0 0.0
    %5229 = vmatprep.subr.mxu0 0.0
    %5230 = vmatpush2.xpose.msra.mxu0 0.0
    %5231 = vmatprep.subr.mxu0 0.0
    %5232 = vmatpush2.xpose.msra.mxu0 0.0
    %5233 = vmatprep.subr.mxu0 0.0
    %5234 = vmatpush2.xpose.msra.mxu0 0.0
    %5235 = vmatprep.subr.mxu0 0.0
    %5236 = vmatpush2.xpose.msra.mxu0 0.0
    %5237 = vmatprep.subr.mxu0 0.0
    %5238 = vmatpush2.xpose.msra.mxu0 0.0
    %5239 = vmatprep.subr.mxu0 0.0
    %5240 = vmatpush2.xpose.msra.mxu0 0.0
    %5241 = vmatprep.subr.mxu0 0.0
    %5242 = vmatpush2.xpose.msra.mxu0 0.0
    %5243 = vmatprep.mubr.f32.mxu0 0.0
    %v5244 = vand.u32 %v4947, 4294901760
    %v5245 = vsub.f32 %v4947, %v5244
    %v5246 = vand.u32 %v5245, 4294901760
    %5247 = vmatmul.mubr.f32.gmra.mxu0 %v5246
    %v5248 = vpop.f32.mrf.mxu0
    %v5249 = vadd.f32 %v5175, %v5248
    %v5250 = vpop.f32.mrf.mxu0
    %5251 = vdwg.mxu0
    %5252 = vmatprep.subr.mxu0 0.0
    %5253 = vmatpush1.xpose.msra.mxu0 0.0
    %5254 = vmatprep.subr.mxu0 0.0
    %5255 = vmatpush1.xpose.msra.mxu0 0.0
    %5256 = vmatprep.subr.mxu0 0.0
    %5257 = vmatpush1.xpose.msra.mxu0 0.0
    %5258 = vmatprep.subr.mxu0 0.0
    %5259 = vmatpush1.xpose.msra.mxu0 0.0
    %5260 = vmatprep.subr.mxu0 0.0
    %5261 = vmatpush1.xpose.msra.mxu0 0.0
    %5262 = vmatprep.subr.mxu0 0.0
    %5263 = vmatpush1.xpose.msra.mxu0 0.0
    %5264 = vmatprep.subr.mxu0 0.0
    %5265 = vmatpush1.xpose.msra.mxu0 0.0
    %5266 = vmatprep.subr.mxu0 0.0
    %5267 = vmatpush1.xpose.msra.mxu0 0.0
    %5268 = vmatprep.subr.mxu0 0.0
    %5269 = vmatpush1.xpose.msra.mxu0 0.0
    %5270 = vmatprep.subr.mxu0 0.0
    %5271 = vmatpush1.xpose.msra.mxu0 0.0
    %5272 = vmatprep.subr.mxu0 0.0
    %5273 = vmatpush1.xpose.msra.mxu0 0.0
    %5274 = vmatprep.subr.mxu0 0.0
    %5275 = vmatpush1.xpose.msra.mxu0 0.0
    %5276 = vmatprep.subr.mxu0 0.0
    %5277 = vmatpush1.xpose.msra.mxu0 0.0
    %5278 = vmatprep.subr.mxu0 0.0
    %5279 = vmatpush1.xpose.msra.mxu0 0.0
    %5280 = vmatprep.subr.mxu0 0.0
    %5281 = vmatpush1.xpose.msra.mxu0 0.0
    %5282 = vmatprep.subr.mxu0 0.0
    %v5283 = vand.u32 %v4950, 4294901760
    %v5284 = vsub.f32 %v4950, %v5283
    %v5285 = vand.u32 %v5284, 4294901760
    %5286 = vmatpush1.xpose.msra.mxu0 %v5285
    %5287 = vmatprep.subr.mxu0 0.0
    %5288 = vmatpush2.xpose.msra.mxu0 0.0
    %5289 = vmatprep.subr.mxu0 0.0
    %5290 = vmatpush2.xpose.msra.mxu0 0.0
    %5291 = vmatprep.subr.mxu0 0.0
    %5292 = vmatpush2.xpose.msra.mxu0 0.0
    %5293 = vmatprep.subr.mxu0 0.0
    %5294 = vmatpush2.xpose.msra.mxu0 0.0
    %5295 = vmatprep.subr.mxu0 0.0
    %5296 = vmatpush2.xpose.msra.mxu0 0.0
    %5297 = vmatprep.subr.mxu0 0.0
    %5298 = vmatpush2.xpose.msra.mxu0 0.0
    %5299 = vmatprep.subr.mxu0 0.0
    %5300 = vmatpush2.xpose.msra.mxu0 0.0
    %5301 = vmatprep.subr.mxu0 0.0
    %5302 = vmatpush2.xpose.msra.mxu0 0.0
    %5303 = vmatprep.subr.mxu0 0.0
    %5304 = vmatpush2.xpose.msra.mxu0 0.0
    %5305 = vmatprep.subr.mxu0 0.0
    %5306 = vmatpush2.xpose.msra.mxu0 0.0
    %5307 = vmatprep.subr.mxu0 0.0
    %5308 = vmatpush2.xpose.msra.mxu0 0.0
    %5309 = vmatprep.subr.mxu0 0.0
    %5310 = vmatpush2.xpose.msra.mxu0 0.0
    %5311 = vmatprep.subr.mxu0 0.0
    %5312 = vmatpush2.xpose.msra.mxu0 0.0
    %5313 = vmatprep.subr.mxu0 0.0
    %5314 = vmatpush2.xpose.msra.mxu0 0.0
    %5315 = vmatprep.subr.mxu0 0.0
    %5316 = vmatpush2.xpose.msra.mxu0 0.0
    %5317 = vmatprep.subr.mxu0 0.0
    %5318 = vmatpush2.xpose.msra.mxu0 0.0
    %5319 = vmatprep.mubr.f32.mxu0 0.0
    %v5320 = vand.u32 %v4947, 4294901760
    %5321 = vmatmul.mubr.f32.gmra.mxu0 %v5320
    %v5322 = vpop.f32.mrf.mxu0
    %v5323 = vadd.f32 %v5249, %v5322
    %v5324 = vpop.f32.mrf.mxu0
    %5325 = vdwg.mxu0
    %5326 = vmatprep.subr.mxu0 0.0
    %5327 = vmatpush1.xpose.msra.mxu0 0.0
    %5328 = vmatprep.subr.mxu0 0.0
    %5329 = vmatpush1.xpose.msra.mxu0 0.0
    %5330 = vmatprep.subr.mxu0 0.0
    %5331 = vmatpush1.xpose.msra.mxu0 0.0
    %5332 = vmatprep.subr.mxu0 0.0
    %5333 = vmatpush1.xpose.msra.mxu0 0.0
    %5334 = vmatprep.subr.mxu0 0.0
    %5335 = vmatpush1.xpose.msra.mxu0 0.0
    %5336 = vmatprep.subr.mxu0 0.0
    %5337 = vmatpush1.xpose.msra.mxu0 0.0
    %5338 = vmatprep.subr.mxu0 0.0
    %5339 = vmatpush1.xpose.msra.mxu0 0.0
    %5340 = vmatprep.subr.mxu0 0.0
    %5341 = vmatpush1.xpose.msra.mxu0 0.0
    %5342 = vmatprep.subr.mxu0 0.0
    %5343 = vmatpush1.xpose.msra.mxu0 0.0
    %5344 = vmatprep.subr.mxu0 0.0
    %5345 = vmatpush1.xpose.msra.mxu0 0.0
    %5346 = vmatprep.subr.mxu0 0.0
    %5347 = vmatpush1.xpose.msra.mxu0 0.0
    %5348 = vmatprep.subr.mxu0 0.0
    %5349 = vmatpush1.xpose.msra.mxu0 0.0
    %5350 = vmatprep.subr.mxu0 0.0
    %5351 = vmatpush1.xpose.msra.mxu0 0.0
    %5352 = vmatprep.subr.mxu0 0.0
    %5353 = vmatpush1.xpose.msra.mxu0 0.0
    %5354 = vmatprep.subr.mxu0 0.0
    %5355 = vmatpush1.xpose.msra.mxu0 0.0
    %5356 = vmatprep.subr.mxu0 0.0
    %v5357 = vand.u32 %v4950, 4294901760
    %5358 = vmatpush1.xpose.msra.mxu0 %v5357
    %5359 = vmatprep.subr.mxu0 0.0
    %5360 = vmatpush2.xpose.msra.mxu0 0.0
    %5361 = vmatprep.subr.mxu0 0.0
    %5362 = vmatpush2.xpose.msra.mxu0 0.0
    %5363 = vmatprep.subr.mxu0 0.0
    %5364 = vmatpush2.xpose.msra.mxu0 0.0
    %5365 = vmatprep.subr.mxu0 0.0
    %5366 = vmatpush2.xpose.msra.mxu0 0.0
    %5367 = vmatprep.subr.mxu0 0.0
    %5368 = vmatpush2.xpose.msra.mxu0 0.0
    %5369 = vmatprep.subr.mxu0 0.0
    %5370 = vmatpush2.xpose.msra.mxu0 0.0
    %5371 = vmatprep.subr.mxu0 0.0
    %5372 = vmatpush2.xpose.msra.mxu0 0.0
    %5373 = vmatprep.subr.mxu0 0.0
    %5374 = vmatpush2.xpose.msra.mxu0 0.0
    %5375 = vmatprep.subr.mxu0 0.0
    %5376 = vmatpush2.xpose.msra.mxu0 0.0
    %5377 = vmatprep.subr.mxu0 0.0
    %5378 = vmatpush2.xpose.msra.mxu0 0.0
    %5379 = vmatprep.subr.mxu0 0.0
    %5380 = vmatpush2.xpose.msra.mxu0 0.0
    %5381 = vmatprep.subr.mxu0 0.0
    %5382 = vmatpush2.xpose.msra.mxu0 0.0
    %5383 = vmatprep.subr.mxu0 0.0
    %5384 = vmatpush2.xpose.msra.mxu0 0.0
    %5385 = vmatprep.subr.mxu0 0.0
    %5386 = vmatpush2.xpose.msra.mxu0 0.0
    %5387 = vmatprep.subr.mxu0 0.0
    %5388 = vmatpush2.xpose.msra.mxu0 0.0
    %5389 = vmatprep.subr.mxu0 0.0
    %5390 = vmatpush2.xpose.msra.mxu0 0.0
    %5391 = vmatprep.mubr.f32.mxu0 0.0
    %v5392 = vand.u32 %v4947, 4294901760
    %5393 = vmatmul.mubr.f32.gmra.mxu0 %v5392
    %v5394 = vpop.f32.mrf.mxu0
    %v5395 = vadd.f32 %v5323, %v5394
    %v5396 = vpop.f32.mrf.mxu0
    %5397 = vdwg.mxu0
    %v5399 = vsel %vm38, %v24, 0
    %v5402 = vsel %vm38, %v4037, 0
    %5404 = vmatprep.subr.mxu0 0.0
    %5405 = vmatpush1.xpose.msra.mxu0 0.0
    %5406 = vmatprep.subr.mxu0 0.0
    %5407 = vmatpush1.xpose.msra.mxu0 0.0
    %5408 = vmatprep.subr.mxu0 0.0
    %5409 = vmatpush1.xpose.msra.mxu0 0.0
    %5410 = vmatprep.subr.mxu0 0.0
    %5411 = vmatpush1.xpose.msra.mxu0 0.0
    %5412 = vmatprep.subr.mxu0 0.0
    %5413 = vmatpush1.xpose.msra.mxu0 0.0
    %5414 = vmatprep.subr.mxu0 0.0
    %5415 = vmatpush1.xpose.msra.mxu0 0.0
    %5416 = vmatprep.subr.mxu0 0.0
    %5417 = vmatpush1.xpose.msra.mxu0 0.0
    %5418 = vmatprep.subr.mxu0 0.0
    %5419 = vmatpush1.xpose.msra.mxu0 0.0
    %5420 = vmatprep.subr.mxu0 0.0
    %5421 = vmatpush1.xpose.msra.mxu0 0.0
    %5422 = vmatprep.subr.mxu0 0.0
    %5423 = vmatpush1.xpose.msra.mxu0 0.0
    %5424 = vmatprep.subr.mxu0 0.0
    %5425 = vmatpush1.xpose.msra.mxu0 0.0
    %5426 = vmatprep.subr.mxu0 0.0
    %5427 = vmatpush1.xpose.msra.mxu0 0.0
    %5428 = vmatprep.subr.mxu0 0.0
    %5429 = vmatpush1.xpose.msra.mxu0 0.0
    %5430 = vmatprep.subr.mxu0 0.0
    %5431 = vmatpush1.xpose.msra.mxu0 0.0
    %5432 = vmatprep.subr.mxu0 0.0
    %5433 = vmatpush1.xpose.msra.mxu0 0.0
    %5434 = vmatprep.subr.mxu0 0.0
    %v5435 = vand.u32 %v5402, 4294901760
    %5436 = vmatpush1.xpose.msra.mxu0 %v5435
    %5437 = vmatprep.subr.mxu0 0.0
    %5438 = vmatpush2.xpose.msra.mxu0 0.0
    %5439 = vmatprep.subr.mxu0 0.0
    %5440 = vmatpush2.xpose.msra.mxu0 0.0
    %5441 = vmatprep.subr.mxu0 0.0
    %5442 = vmatpush2.xpose.msra.mxu0 0.0
    %5443 = vmatprep.subr.mxu0 0.0
    %5444 = vmatpush2.xpose.msra.mxu0 0.0
    %5445 = vmatprep.subr.mxu0 0.0
    %5446 = vmatpush2.xpose.msra.mxu0 0.0
    %5447 = vmatprep.subr.mxu0 0.0
    %5448 = vmatpush2.xpose.msra.mxu0 0.0
    %5449 = vmatprep.subr.mxu0 0.0
    %5450 = vmatpush2.xpose.msra.mxu0 0.0
    %5451 = vmatprep.subr.mxu0 0.0
    %5452 = vmatpush2.xpose.msra.mxu0 0.0
    %5453 = vmatprep.subr.mxu0 0.0
    %5454 = vmatpush2.xpose.msra.mxu0 0.0
    %5455 = vmatprep.subr.mxu0 0.0
    %5456 = vmatpush2.xpose.msra.mxu0 0.0
    %5457 = vmatprep.subr.mxu0 0.0
    %5458 = vmatpush2.xpose.msra.mxu0 0.0
    %5459 = vmatprep.subr.mxu0 0.0
    %5460 = vmatpush2.xpose.msra.mxu0 0.0
    %5461 = vmatprep.subr.mxu0 0.0
    %5462 = vmatpush2.xpose.msra.mxu0 0.0
    %5463 = vmatprep.subr.mxu0 0.0
    %5464 = vmatpush2.xpose.msra.mxu0 0.0
    %5465 = vmatprep.subr.mxu0 0.0
    %5466 = vmatpush2.xpose.msra.mxu0 0.0
    %5467 = vmatprep.subr.mxu0 0.0
    %5468 = vmatpush2.xpose.msra.mxu0 0.0
    %5469 = vmatprep.mubr.f32.mxu0 0.0
    %v5470 = vand.u32 %v5399, 4294901760
    %v5471 = vsub.f32 %v5399, %v5470
    %v5472 = vand.u32 %v5471, 4294901760
    %v5473 = vsub.f32 %v5471, %v5472
    %v5474 = vand.u32 %v5473, 4294901760
    %5475 = vmatmul.mubr.f32.gmra.mxu0 %v5474
    %v5476 = vpop.f32.mrf.mxu0
    %v5477 = vadd.f32 0.0, %v5476
    %v5478 = vpop.f32.mrf.mxu0
    %5479 = vdwg.mxu0
    %5480 = vmatprep.subr.mxu0 0.0
    %5481 = vmatpush1.xpose.msra.mxu0 0.0
    %5482 = vmatprep.subr.mxu0 0.0
    %5483 = vmatpush1.xpose.msra.mxu0 0.0
    %5484 = vmatprep.subr.mxu0 0.0
    %5485 = vmatpush1.xpose.msra.mxu0 0.0
    %5486 = vmatprep.subr.mxu0 0.0
    %5487 = vmatpush1.xpose.msra.mxu0 0.0
    %5488 = vmatprep.subr.mxu0 0.0
    %5489 = vmatpush1.xpose.msra.mxu0 0.0
    %5490 = vmatprep.subr.mxu0 0.0
    %5491 = vmatpush1.xpose.msra.mxu0 0.0
    %5492 = vmatprep.subr.mxu0 0.0
    %5493 = vmatpush1.xpose.msra.mxu0 0.0
    %5494 = vmatprep.subr.mxu0 0.0
    %5495 = vmatpush1.xpose.msra.mxu0 0.0
    %5496 = vmatprep.subr.mxu0 0.0
    %5497 = vmatpush1.xpose.msra.mxu0 0.0
    %5498 = vmatprep.subr.mxu0 0.0
    %5499 = vmatpush1.xpose.msra.mxu0 0.0
    %5500 = vmatprep.subr.mxu0 0.0
    %5501 = vmatpush1.xpose.msra.mxu0 0.0
    %5502 = vmatprep.subr.mxu0 0.0
    %5503 = vmatpush1.xpose.msra.mxu0 0.0
    %5504 = vmatprep.subr.mxu0 0.0
    %5505 = vmatpush1.xpose.msra.mxu0 0.0
    %5506 = vmatprep.subr.mxu0 0.0
    %5507 = vmatpush1.xpose.msra.mxu0 0.0
    %5508 = vmatprep.subr.mxu0 0.0
    %5509 = vmatpush1.xpose.msra.mxu0 0.0
    %5510 = vmatprep.subr.mxu0 0.0
    %v5511 = vand.u32 %v5402, 4294901760
    %v5512 = vsub.f32 %v5402, %v5511
    %v5513 = vand.u32 %v5512, 4294901760
    %v5514 = vsub.f32 %v5512, %v5513
    %v5515 = vand.u32 %v5514, 4294901760
    %5516 = vmatpush1.xpose.msra.mxu0 %v5515
    %5517 = vmatprep.subr.mxu0 0.0
    %5518 = vmatpush2.xpose.msra.mxu0 0.0
    %5519 = vmatprep.subr.mxu0 0.0
    %5520 = vmatpush2.xpose.msra.mxu0 0.0
    %5521 = vmatprep.subr.mxu0 0.0
    %5522 = vmatpush2.xpose.msra.mxu0 0.0
    %5523 = vmatprep.subr.mxu0 0.0
    %5524 = vmatpush2.xpose.msra.mxu0 0.0
    %5525 = vmatprep.subr.mxu0 0.0
    %5526 = vmatpush2.xpose.msra.mxu0 0.0
    %5527 = vmatprep.subr.mxu0 0.0
    %5528 = vmatpush2.xpose.msra.mxu0 0.0
    %5529 = vmatprep.subr.mxu0 0.0
    %5530 = vmatpush2.xpose.msra.mxu0 0.0
    %5531 = vmatprep.subr.mxu0 0.0
    %5532 = vmatpush2.xpose.msra.mxu0 0.0
    %5533 = vmatprep.subr.mxu0 0.0
    %5534 = vmatpush2.xpose.msra.mxu0 0.0
    %5535 = vmatprep.subr.mxu0 0.0
    %5536 = vmatpush2.xpose.msra.mxu0 0.0
    %5537 = vmatprep.subr.mxu0 0.0
    %5538 = vmatpush2.xpose.msra.mxu0 0.0
    %5539 = vmatprep.subr.mxu0 0.0
    %5540 = vmatpush2.xpose.msra.mxu0 0.0
    %5541 = vmatprep.subr.mxu0 0.0
    %5542 = vmatpush2.xpose.msra.mxu0 0.0
    %5543 = vmatprep.subr.mxu0 0.0
    %5544 = vmatpush2.xpose.msra.mxu0 0.0
    %5545 = vmatprep.subr.mxu0 0.0
    %5546 = vmatpush2.xpose.msra.mxu0 0.0
    %5547 = vmatprep.subr.mxu0 0.0
    %5548 = vmatpush2.xpose.msra.mxu0 0.0
    %5549 = vmatprep.mubr.f32.mxu0 0.0
    %v5550 = vand.u32 %v5399, 4294901760
    %5551 = vmatmul.mubr.f32.gmra.mxu0 %v5550
    %v5552 = vpop.f32.mrf.mxu0
    %v5553 = vadd.f32 %v5477, %v5552
    %v5554 = vpop.f32.mrf.mxu0
    %5555 = vdwg.mxu0
    %5556 = vmatprep.subr.mxu0 0.0
    %5557 = vmatpush1.xpose.msra.mxu0 0.0
    %5558 = vmatprep.subr.mxu0 0.0
    %5559 = vmatpush1.xpose.msra.mxu0 0.0
    %5560 = vmatprep.subr.mxu0 0.0
    %5561 = vmatpush1.xpose.msra.mxu0 0.0
    %5562 = vmatprep.subr.mxu0 0.0
    %5563 = vmatpush1.xpose.msra.mxu0 0.0
    %5564 = vmatprep.subr.mxu0 0.0
    %5565 = vmatpush1.xpose.msra.mxu0 0.0
    %5566 = vmatprep.subr.mxu0 0.0
    %5567 = vmatpush1.xpose.msra.mxu0 0.0
    %5568 = vmatprep.subr.mxu0 0.0
    %5569 = vmatpush1.xpose.msra.mxu0 0.0
    %5570 = vmatprep.subr.mxu0 0.0
    %5571 = vmatpush1.xpose.msra.mxu0 0.0
    %5572 = vmatprep.subr.mxu0 0.0
    %5573 = vmatpush1.xpose.msra.mxu0 0.0
    %5574 = vmatprep.subr.mxu0 0.0
    %5575 = vmatpush1.xpose.msra.mxu0 0.0
    %5576 = vmatprep.subr.mxu0 0.0
    %5577 = vmatpush1.xpose.msra.mxu0 0.0
    %5578 = vmatprep.subr.mxu0 0.0
    %5579 = vmatpush1.xpose.msra.mxu0 0.0
    %5580 = vmatprep.subr.mxu0 0.0
    %5581 = vmatpush1.xpose.msra.mxu0 0.0
    %5582 = vmatprep.subr.mxu0 0.0
    %5583 = vmatpush1.xpose.msra.mxu0 0.0
    %5584 = vmatprep.subr.mxu0 0.0
    %5585 = vmatpush1.xpose.msra.mxu0 0.0
    %5586 = vmatprep.subr.mxu0 0.0
    %v5587 = vand.u32 %v5402, 4294901760
    %v5588 = vsub.f32 %v5402, %v5587
    %5589 = vmatpush1.xpose.msra.mxu0 %v5588
    %5590 = vmatprep.subr.mxu0 0.0
    %5591 = vmatpush2.xpose.msra.mxu0 0.0
    %5592 = vmatprep.subr.mxu0 0.0
    %5593 = vmatpush2.xpose.msra.mxu0 0.0
    %5594 = vmatprep.subr.mxu0 0.0
    %5595 = vmatpush2.xpose.msra.mxu0 0.0
    %5596 = vmatprep.subr.mxu0 0.0
    %5597 = vmatpush2.xpose.msra.mxu0 0.0
    %5598 = vmatprep.subr.mxu0 0.0
    %5599 = vmatpush2.xpose.msra.mxu0 0.0
    %5600 = vmatprep.subr.mxu0 0.0
    %5601 = vmatpush2.xpose.msra.mxu0 0.0
    %5602 = vmatprep.subr.mxu0 0.0
    %5603 = vmatpush2.xpose.msra.mxu0 0.0
    %5604 = vmatprep.subr.mxu0 0.0
    %5605 = vmatpush2.xpose.msra.mxu0 0.0
    %5606 = vmatprep.subr.mxu0 0.0
    %5607 = vmatpush2.xpose.msra.mxu0 0.0
    %5608 = vmatprep.subr.mxu0 0.0
    %5609 = vmatpush2.xpose.msra.mxu0 0.0
    %5610 = vmatprep.subr.mxu0 0.0
    %5611 = vmatpush2.xpose.msra.mxu0 0.0
    %5612 = vmatprep.subr.mxu0 0.0
    %5613 = vmatpush2.xpose.msra.mxu0 0.0
    %5614 = vmatprep.subr.mxu0 0.0
    %5615 = vmatpush2.xpose.msra.mxu0 0.0
    %5616 = vmatprep.subr.mxu0 0.0
    %5617 = vmatpush2.xpose.msra.mxu0 0.0
    %5618 = vmatprep.subr.mxu0 0.0
    %5619 = vmatpush2.xpose.msra.mxu0 0.0
    %5620 = vmatprep.subr.mxu0 0.0
    %5621 = vmatpush2.xpose.msra.mxu0 0.0
    %5622 = vmatprep.mubr.f32.mxu0 0.0
    %v5623 = vand.u32 %v5399, 4294901760
    %v5624 = vsub.f32 %v5399, %v5623
    %5625 = vmatmul.mubr.f32.gmra.mxu0 %v5624
    %v5626 = vpop.f32.mrf.mxu0
    %v5627 = vadd.f32 %v5553, %v5626
    %v5628 = vpop.f32.mrf.mxu0
    %5629 = vdwg.mxu0
    %5630 = vmatprep.subr.mxu0 0.0
    %5631 = vmatpush1.xpose.msra.mxu0 0.0
    %5632 = vmatprep.subr.mxu0 0.0
    %5633 = vmatpush1.xpose.msra.mxu0 0.0
    %5634 = vmatprep.subr.mxu0 0.0
    %5635 = vmatpush1.xpose.msra.mxu0 0.0
    %5636 = vmatprep.subr.mxu0 0.0
    %5637 = vmatpush1.xpose.msra.mxu0 0.0
    %5638 = vmatprep.subr.mxu0 0.0
    %5639 = vmatpush1.xpose.msra.mxu0 0.0
    %5640 = vmatprep.subr.mxu0 0.0
    %5641 = vmatpush1.xpose.msra.mxu0 0.0
    %5642 = vmatprep.subr.mxu0 0.0
    %5643 = vmatpush1.xpose.msra.mxu0 0.0
    %5644 = vmatprep.subr.mxu0 0.0
    %5645 = vmatpush1.xpose.msra.mxu0 0.0
    %5646 = vmatprep.subr.mxu0 0.0
    %5647 = vmatpush1.xpose.msra.mxu0 0.0
    %5648 = vmatprep.subr.mxu0 0.0
    %5649 = vmatpush1.xpose.msra.mxu0 0.0
    %5650 = vmatprep.subr.mxu0 0.0
    %5651 = vmatpush1.xpose.msra.mxu0 0.0
    %5652 = vmatprep.subr.mxu0 0.0
    %5653 = vmatpush1.xpose.msra.mxu0 0.0
    %5654 = vmatprep.subr.mxu0 0.0
    %5655 = vmatpush1.xpose.msra.mxu0 0.0
    %5656 = vmatprep.subr.mxu0 0.0
    %5657 = vmatpush1.xpose.msra.mxu0 0.0
    %5658 = vmatprep.subr.mxu0 0.0
    %5659 = vmatpush1.xpose.msra.mxu0 0.0
    %5660 = vmatprep.subr.mxu0 0.0
    %v5661 = vand.u32 %v5402, 4294901760
    %5662 = vmatpush1.xpose.msra.mxu0 %v5661
    %5663 = vmatprep.subr.mxu0 0.0
    %5664 = vmatpush2.xpose.msra.mxu0 0.0
    %5665 = vmatprep.subr.mxu0 0.0
    %5666 = vmatpush2.xpose.msra.mxu0 0.0
    %5667 = vmatprep.subr.mxu0 0.0
    %5668 = vmatpush2.xpose.msra.mxu0 0.0
    %5669 = vmatprep.subr.mxu0 0.0
    %5670 = vmatpush2.xpose.msra.mxu0 0.0
    %5671 = vmatprep.subr.mxu0 0.0
    %5672 = vmatpush2.xpose.msra.mxu0 0.0
    %5673 = vmatprep.subr.mxu0 0.0
    %5674 = vmatpush2.xpose.msra.mxu0 0.0
    %5675 = vmatprep.subr.mxu0 0.0
    %5676 = vmatpush2.xpose.msra.mxu0 0.0
    %5677 = vmatprep.subr.mxu0 0.0
    %5678 = vmatpush2.xpose.msra.mxu0 0.0
    %5679 = vmatprep.subr.mxu0 0.0
    %5680 = vmatpush2.xpose.msra.mxu0 0.0
    %5681 = vmatprep.subr.mxu0 0.0
    %5682 = vmatpush2.xpose.msra.mxu0 0.0
    %5683 = vmatprep.subr.mxu0 0.0
    %5684 = vmatpush2.xpose.msra.mxu0 0.0
    %5685 = vmatprep.subr.mxu0 0.0
    %5686 = vmatpush2.xpose.msra.mxu0 0.0
    %5687 = vmatprep.subr.mxu0 0.0
    %5688 = vmatpush2.xpose.msra.mxu0 0.0
    %5689 = vmatprep.subr.mxu0 0.0
    %5690 = vmatpush2.xpose.msra.mxu0 0.0
    %5691 = vmatprep.subr.mxu0 0.0
    %5692 = vmatpush2.xpose.msra.mxu0 0.0
    %5693 = vmatprep.subr.mxu0 0.0
    %5694 = vmatpush2.xpose.msra.mxu0 0.0
    %5695 = vmatprep.mubr.f32.mxu0 0.0
    %v5696 = vand.u32 %v5399, 4294901760
    %v5697 = vsub.f32 %v5399, %v5696
    %v5698 = vand.u32 %v5697, 4294901760
    %5699 = vmatmul.mubr.f32.gmra.mxu0 %v5698
    %v5700 = vpop.f32.mrf.mxu0
    %v5701 = vadd.f32 %v5627, %v5700
    %v5702 = vpop.f32.mrf.mxu0
    %5703 = vdwg.mxu0
    %5704 = vmatprep.subr.mxu0 0.0
    %5705 = vmatpush1.xpose.msra.mxu0 0.0
    %5706 = vmatprep.subr.mxu0 0.0
    %5707 = vmatpush1.xpose.msra.mxu0 0.0
    %5708 = vmatprep.subr.mxu0 0.0
    %5709 = vmatpush1.xpose.msra.mxu0 0.0
    %5710 = vmatprep.subr.mxu0 0.0
    %5711 = vmatpush1.xpose.msra.mxu0 0.0
    %5712 = vmatprep.subr.mxu0 0.0
    %5713 = vmatpush1.xpose.msra.mxu0 0.0
    %5714 = vmatprep.subr.mxu0 0.0
    %5715 = vmatpush1.xpose.msra.mxu0 0.0
    %5716 = vmatprep.subr.mxu0 0.0
    %5717 = vmatpush1.xpose.msra.mxu0 0.0
    %5718 = vmatprep.subr.mxu0 0.0
    %5719 = vmatpush1.xpose.msra.mxu0 0.0
    %5720 = vmatprep.subr.mxu0 0.0
    %5721 = vmatpush1.xpose.msra.mxu0 0.0
    %5722 = vmatprep.subr.mxu0 0.0
    %5723 = vmatpush1.xpose.msra.mxu0 0.0
    %5724 = vmatprep.subr.mxu0 0.0
    %5725 = vmatpush1.xpose.msra.mxu0 0.0
    %5726 = vmatprep.subr.mxu0 0.0
    %5727 = vmatpush1.xpose.msra.mxu0 0.0
    %5728 = vmatprep.subr.mxu0 0.0
    %5729 = vmatpush1.xpose.msra.mxu0 0.0
    %5730 = vmatprep.subr.mxu0 0.0
    %5731 = vmatpush1.xpose.msra.mxu0 0.0
    %5732 = vmatprep.subr.mxu0 0.0
    %5733 = vmatpush1.xpose.msra.mxu0 0.0
    %5734 = vmatprep.subr.mxu0 0.0
    %v5735 = vand.u32 %v5402, 4294901760
    %v5736 = vsub.f32 %v5402, %v5735
    %v5737 = vand.u32 %v5736, 4294901760
    %5738 = vmatpush1.xpose.msra.mxu0 %v5737
    %5739 = vmatprep.subr.mxu0 0.0
    %5740 = vmatpush2.xpose.msra.mxu0 0.0
    %5741 = vmatprep.subr.mxu0 0.0
    %5742 = vmatpush2.xpose.msra.mxu0 0.0
    %5743 = vmatprep.subr.mxu0 0.0
    %5744 = vmatpush2.xpose.msra.mxu0 0.0
    %5745 = vmatprep.subr.mxu0 0.0
    %5746 = vmatpush2.xpose.msra.mxu0 0.0
    %5747 = vmatprep.subr.mxu0 0.0
    %5748 = vmatpush2.xpose.msra.mxu0 0.0
    %5749 = vmatprep.subr.mxu0 0.0
    %5750 = vmatpush2.xpose.msra.mxu0 0.0
    %5751 = vmatprep.subr.mxu0 0.0
    %5752 = vmatpush2.xpose.msra.mxu0 0.0
    %5753 = vmatprep.subr.mxu0 0.0
    %5754 = vmatpush2.xpose.msra.mxu0 0.0
    %5755 = vmatprep.subr.mxu0 0.0
    %5756 = vmatpush2.xpose.msra.mxu0 0.0
    %5757 = vmatprep.subr.mxu0 0.0
    %5758 = vmatpush2.xpose.msra.mxu0 0.0
    %5759 = vmatprep.subr.mxu0 0.0
    %5760 = vmatpush2.xpose.msra.mxu0 0.0
    %5761 = vmatprep.subr.mxu0 0.0
    %5762 = vmatpush2.xpose.msra.mxu0 0.0
    %5763 = vmatprep.subr.mxu0 0.0
    %5764 = vmatpush2.xpose.msra.mxu0 0.0
    %5765 = vmatprep.subr.mxu0 0.0
    %5766 = vmatpush2.xpose.msra.mxu0 0.0
    %5767 = vmatprep.subr.mxu0 0.0
    %5768 = vmatpush2.xpose.msra.mxu0 0.0
    %5769 = vmatprep.subr.mxu0 0.0
    %5770 = vmatpush2.xpose.msra.mxu0 0.0
    %5771 = vmatprep.mubr.f32.mxu0 0.0
    %v5772 = vand.u32 %v5399, 4294901760
    %5773 = vmatmul.mubr.f32.gmra.mxu0 %v5772
    %v5774 = vpop.f32.mrf.mxu0
    %v5775 = vadd.f32 %v5701, %v5774
    %v5776 = vpop.f32.mrf.mxu0
    %5777 = vdwg.mxu0
    %5778 = vmatprep.subr.mxu0 0.0
    %5779 = vmatpush1.xpose.msra.mxu0 0.0
    %5780 = vmatprep.subr.mxu0 0.0
    %5781 = vmatpush1.xpose.msra.mxu0 0.0
    %5782 = vmatprep.subr.mxu0 0.0
    %5783 = vmatpush1.xpose.msra.mxu0 0.0
    %5784 = vmatprep.subr.mxu0 0.0
    %5785 = vmatpush1.xpose.msra.mxu0 0.0
    %5786 = vmatprep.subr.mxu0 0.0
    %5787 = vmatpush1.xpose.msra.mxu0 0.0
    %5788 = vmatprep.subr.mxu0 0.0
    %5789 = vmatpush1.xpose.msra.mxu0 0.0
    %5790 = vmatprep.subr.mxu0 0.0
    %5791 = vmatpush1.xpose.msra.mxu0 0.0
    %5792 = vmatprep.subr.mxu0 0.0
    %5793 = vmatpush1.xpose.msra.mxu0 0.0
    %5794 = vmatprep.subr.mxu0 0.0
    %5795 = vmatpush1.xpose.msra.mxu0 0.0
    %5796 = vmatprep.subr.mxu0 0.0
    %5797 = vmatpush1.xpose.msra.mxu0 0.0
    %5798 = vmatprep.subr.mxu0 0.0
    %5799 = vmatpush1.xpose.msra.mxu0 0.0
    %5800 = vmatprep.subr.mxu0 0.0
    %5801 = vmatpush1.xpose.msra.mxu0 0.0
    %5802 = vmatprep.subr.mxu0 0.0
    %5803 = vmatpush1.xpose.msra.mxu0 0.0
    %5804 = vmatprep.subr.mxu0 0.0
    %5805 = vmatpush1.xpose.msra.mxu0 0.0
    %5806 = vmatprep.subr.mxu0 0.0
    %5807 = vmatpush1.xpose.msra.mxu0 0.0
    %5808 = vmatprep.subr.mxu0 0.0
    %v5809 = vand.u32 %v5402, 4294901760
    %5810 = vmatpush1.xpose.msra.mxu0 %v5809
    %5811 = vmatprep.subr.mxu0 0.0
    %5812 = vmatpush2.xpose.msra.mxu0 0.0
    %5813 = vmatprep.subr.mxu0 0.0
    %5814 = vmatpush2.xpose.msra.mxu0 0.0
    %5815 = vmatprep.subr.mxu0 0.0
    %5816 = vmatpush2.xpose.msra.mxu0 0.0
    %5817 = vmatprep.subr.mxu0 0.0
    %5818 = vmatpush2.xpose.msra.mxu0 0.0
    %5819 = vmatprep.subr.mxu0 0.0
    %5820 = vmatpush2.xpose.msra.mxu0 0.0
    %5821 = vmatprep.subr.mxu0 0.0
    %5822 = vmatpush2.xpose.msra.mxu0 0.0
    %5823 = vmatprep.subr.mxu0 0.0
    %5824 = vmatpush2.xpose.msra.mxu0 0.0
    %5825 = vmatprep.subr.mxu0 0.0
    %5826 = vmatpush2.xpose.msra.mxu0 0.0
    %5827 = vmatprep.subr.mxu0 0.0
    %5828 = vmatpush2.xpose.msra.mxu0 0.0
    %5829 = vmatprep.subr.mxu0 0.0
    %5830 = vmatpush2.xpose.msra.mxu0 0.0
    %5831 = vmatprep.subr.mxu0 0.0
    %5832 = vmatpush2.xpose.msra.mxu0 0.0
    %5833 = vmatprep.subr.mxu0 0.0
    %5834 = vmatpush2.xpose.msra.mxu0 0.0
    %5835 = vmatprep.subr.mxu0 0.0
    %5836 = vmatpush2.xpose.msra.mxu0 0.0
    %5837 = vmatprep.subr.mxu0 0.0
    %5838 = vmatpush2.xpose.msra.mxu0 0.0
    %5839 = vmatprep.subr.mxu0 0.0
    %5840 = vmatpush2.xpose.msra.mxu0 0.0
    %5841 = vmatprep.subr.mxu0 0.0
    %5842 = vmatpush2.xpose.msra.mxu0 0.0
    %5843 = vmatprep.mubr.f32.mxu0 0.0
    %v5844 = vand.u32 %v5399, 4294901760
    %5845 = vmatmul.mubr.f32.gmra.mxu0 %v5844
    %v5846 = vpop.f32.mrf.mxu0
    %v5847 = vadd.f32 %v5775, %v5846
    %v5848 = vpop.f32.mrf.mxu0
    %5849 = vdwg.mxu0
    %v5851 = vsel %vm38, %v25, 0
    %v5854 = vsel %vm38, %v4038, 0
    %5856 = vmatprep.subr.mxu0 0.0
    %5857 = vmatpush1.xpose.msra.mxu0 0.0
    %5858 = vmatprep.subr.mxu0 0.0
    %5859 = vmatpush1.xpose.msra.mxu0 0.0
    %5860 = vmatprep.subr.mxu0 0.0
    %5861 = vmatpush1.xpose.msra.mxu0 0.0
    %5862 = vmatprep.subr.mxu0 0.0
    %5863 = vmatpush1.xpose.msra.mxu0 0.0
    %5864 = vmatprep.subr.mxu0 0.0
    %5865 = vmatpush1.xpose.msra.mxu0 0.0
    %5866 = vmatprep.subr.mxu0 0.0
    %5867 = vmatpush1.xpose.msra.mxu0 0.0
    %5868 = vmatprep.subr.mxu0 0.0
    %5869 = vmatpush1.xpose.msra.mxu0 0.0
    %5870 = vmatprep.subr.mxu0 0.0
    %5871 = vmatpush1.xpose.msra.mxu0 0.0
    %5872 = vmatprep.subr.mxu0 0.0
    %5873 = vmatpush1.xpose.msra.mxu0 0.0
    %5874 = vmatprep.subr.mxu0 0.0
    %5875 = vmatpush1.xpose.msra.mxu0 0.0
    %5876 = vmatprep.subr.mxu0 0.0
    %5877 = vmatpush1.xpose.msra.mxu0 0.0
    %5878 = vmatprep.subr.mxu0 0.0
    %5879 = vmatpush1.xpose.msra.mxu0 0.0
    %5880 = vmatprep.subr.mxu0 0.0
    %5881 = vmatpush1.xpose.msra.mxu0 0.0
    %5882 = vmatprep.subr.mxu0 0.0
    %5883 = vmatpush1.xpose.msra.mxu0 0.0
    %5884 = vmatprep.subr.mxu0 0.0
    %5885 = vmatpush1.xpose.msra.mxu0 0.0
    %5886 = vmatprep.subr.mxu0 0.0
    %v5887 = vand.u32 %v5854, 4294901760
    %5888 = vmatpush1.xpose.msra.mxu0 %v5887
    %5889 = vmatprep.subr.mxu0 0.0
    %5890 = vmatpush2.xpose.msra.mxu0 0.0
    %5891 = vmatprep.subr.mxu0 0.0
    %5892 = vmatpush2.xpose.msra.mxu0 0.0
    %5893 = vmatprep.subr.mxu0 0.0
    %5894 = vmatpush2.xpose.msra.mxu0 0.0
    %5895 = vmatprep.subr.mxu0 0.0
    %5896 = vmatpush2.xpose.msra.mxu0 0.0
    %5897 = vmatprep.subr.mxu0 0.0
    %5898 = vmatpush2.xpose.msra.mxu0 0.0
    %5899 = vmatprep.subr.mxu0 0.0
    %5900 = vmatpush2.xpose.msra.mxu0 0.0
    %5901 = vmatprep.subr.mxu0 0.0
    %5902 = vmatpush2.xpose.msra.mxu0 0.0
    %5903 = vmatprep.subr.mxu0 0.0
    %5904 = vmatpush2.xpose.msra.mxu0 0.0
    %5905 = vmatprep.subr.mxu0 0.0
    %5906 = vmatpush2.xpose.msra.mxu0 0.0
    %5907 = vmatprep.subr.mxu0 0.0
    %5908 = vmatpush2.xpose.msra.mxu0 0.0
    %5909 = vmatprep.subr.mxu0 0.0
    %5910 = vmatpush2.xpose.msra.mxu0 0.0
    %5911 = vmatprep.subr.mxu0 0.0
    %5912 = vmatpush2.xpose.msra.mxu0 0.0
    %5913 = vmatprep.subr.mxu0 0.0
    %5914 = vmatpush2.xpose.msra.mxu0 0.0
    %5915 = vmatprep.subr.mxu0 0.0
    %5916 = vmatpush2.xpose.msra.mxu0 0.0
    %5917 = vmatprep.subr.mxu0 0.0
    %5918 = vmatpush2.xpose.msra.mxu0 0.0
    %5919 = vmatprep.subr.mxu0 0.0
    %5920 = vmatpush2.xpose.msra.mxu0 0.0
    %5921 = vmatprep.mubr.f32.mxu0 0.0
    %v5922 = vand.u32 %v5851, 4294901760
    %v5923 = vsub.f32 %v5851, %v5922
    %v5924 = vand.u32 %v5923, 4294901760
    %v5925 = vsub.f32 %v5923, %v5924
    %v5926 = vand.u32 %v5925, 4294901760
    %5927 = vmatmul.mubr.f32.gmra.mxu0 %v5926
    %v5928 = vpop.f32.mrf.mxu0
    %v5929 = vadd.f32 0.0, %v5928
    %v5930 = vpop.f32.mrf.mxu0
    %5931 = vdwg.mxu0
    %5932 = vmatprep.subr.mxu0 0.0
    %5933 = vmatpush1.xpose.msra.mxu0 0.0
    %5934 = vmatprep.subr.mxu0 0.0
    %5935 = vmatpush1.xpose.msra.mxu0 0.0
    %5936 = vmatprep.subr.mxu0 0.0
    %5937 = vmatpush1.xpose.msra.mxu0 0.0
    %5938 = vmatprep.subr.mxu0 0.0
    %5939 = vmatpush1.xpose.msra.mxu0 0.0
    %5940 = vmatprep.subr.mxu0 0.0
    %5941 = vmatpush1.xpose.msra.mxu0 0.0
    %5942 = vmatprep.subr.mxu0 0.0
    %5943 = vmatpush1.xpose.msra.mxu0 0.0
    %5944 = vmatprep.subr.mxu0 0.0
    %5945 = vmatpush1.xpose.msra.mxu0 0.0
    %5946 = vmatprep.subr.mxu0 0.0
    %5947 = vmatpush1.xpose.msra.mxu0 0.0
    %5948 = vmatprep.subr.mxu0 0.0
    %5949 = vmatpush1.xpose.msra.mxu0 0.0
    %5950 = vmatprep.subr.mxu0 0.0
    %5951 = vmatpush1.xpose.msra.mxu0 0.0
    %5952 = vmatprep.subr.mxu0 0.0
    %5953 = vmatpush1.xpose.msra.mxu0 0.0
    %5954 = vmatprep.subr.mxu0 0.0
    %5955 = vmatpush1.xpose.msra.mxu0 0.0
    %5956 = vmatprep.subr.mxu0 0.0
    %5957 = vmatpush1.xpose.msra.mxu0 0.0
    %5958 = vmatprep.subr.mxu0 0.0
    %5959 = vmatpush1.xpose.msra.mxu0 0.0
    %5960 = vmatprep.subr.mxu0 0.0
    %5961 = vmatpush1.xpose.msra.mxu0 0.0
    %5962 = vmatprep.subr.mxu0 0.0
    %v5963 = vand.u32 %v5854, 4294901760
    %v5964 = vsub.f32 %v5854, %v5963
    %v5965 = vand.u32 %v5964, 4294901760
    %v5966 = vsub.f32 %v5964, %v5965
    %v5967 = vand.u32 %v5966, 4294901760
    %5968 = vmatpush1.xpose.msra.mxu0 %v5967
    %5969 = vmatprep.subr.mxu0 0.0
    %5970 = vmatpush2.xpose.msra.mxu0 0.0
    %5971 = vmatprep.subr.mxu0 0.0
    %5972 = vmatpush2.xpose.msra.mxu0 0.0
    %5973 = vmatprep.subr.mxu0 0.0
    %5974 = vmatpush2.xpose.msra.mxu0 0.0
    %5975 = vmatprep.subr.mxu0 0.0
    %5976 = vmatpush2.xpose.msra.mxu0 0.0
    %5977 = vmatprep.subr.mxu0 0.0
    %5978 = vmatpush2.xpose.msra.mxu0 0.0
    %5979 = vmatprep.subr.mxu0 0.0
    %5980 = vmatpush2.xpose.msra.mxu0 0.0
    %5981 = vmatprep.subr.mxu0 0.0
    %5982 = vmatpush2.xpose.msra.mxu0 0.0
    %5983 = vmatprep.subr.mxu0 0.0
    %5984 = vmatpush2.xpose.msra.mxu0 0.0
    %5985 = vmatprep.subr.mxu0 0.0
    %5986 = vmatpush2.xpose.msra.mxu0 0.0
    %5987 = vmatprep.subr.mxu0 0.0
    %5988 = vmatpush2.xpose.msra.mxu0 0.0
    %5989 = vmatprep.subr.mxu0 0.0
    %5990 = vmatpush2.xpose.msra.mxu0 0.0
    %5991 = vmatprep.subr.mxu0 0.0
    %5992 = vmatpush2.xpose.msra.mxu0 0.0
    %5993 = vmatprep.subr.mxu0 0.0
    %5994 = vmatpush2.xpose.msra.mxu0 0.0
    %5995 = vmatprep.subr.mxu0 0.0
    %5996 = vmatpush2.xpose.msra.mxu0 0.0
    %5997 = vmatprep.subr.mxu0 0.0
    %5998 = vmatpush2.xpose.msra.mxu0 0.0
    %5999 = vmatprep.subr.mxu0 0.0
    %6000 = vmatpush2.xpose.msra.mxu0 0.0
    %6001 = vmatprep.mubr.f32.mxu0 0.0
    %v6002 = vand.u32 %v5851, 4294901760
    %6003 = vmatmul.mubr.f32.gmra.mxu0 %v6002
    %v6004 = vpop.f32.mrf.mxu0
    %v6005 = vadd.f32 %v5929, %v6004
    %v6006 = vpop.f32.mrf.mxu0
    %6007 = vdwg.mxu0
    %6008 = vmatprep.subr.mxu0 0.0
    %6009 = vmatpush1.xpose.msra.mxu0 0.0
    %6010 = vmatprep.subr.mxu0 0.0
    %6011 = vmatpush1.xpose.msra.mxu0 0.0
    %6012 = vmatprep.subr.mxu0 0.0
    %6013 = vmatpush1.xpose.msra.mxu0 0.0
    %6014 = vmatprep.subr.mxu0 0.0
    %6015 = vmatpush1.xpose.msra.mxu0 0.0
    %6016 = vmatprep.subr.mxu0 0.0
    %6017 = vmatpush1.xpose.msra.mxu0 0.0
    %6018 = vmatprep.subr.mxu0 0.0
    %6019 = vmatpush1.xpose.msra.mxu0 0.0
    %6020 = vmatprep.subr.mxu0 0.0
    %6021 = vmatpush1.xpose.msra.mxu0 0.0
    %6022 = vmatprep.subr.mxu0 0.0
    %6023 = vmatpush1.xpose.msra.mxu0 0.0
    %6024 = vmatprep.subr.mxu0 0.0
    %6025 = vmatpush1.xpose.msra.mxu0 0.0
    %6026 = vmatprep.subr.mxu0 0.0
    %6027 = vmatpush1.xpose.msra.mxu0 0.0
    %6028 = vmatprep.subr.mxu0 0.0
    %6029 = vmatpush1.xpose.msra.mxu0 0.0
    %6030 = vmatprep.subr.mxu0 0.0
    %6031 = vmatpush1.xpose.msra.mxu0 0.0
    %6032 = vmatprep.subr.mxu0 0.0
    %6033 = vmatpush1.xpose.msra.mxu0 0.0
    %6034 = vmatprep.subr.mxu0 0.0
    %6035 = vmatpush1.xpose.msra.mxu0 0.0
    %6036 = vmatprep.subr.mxu0 0.0
    %6037 = vmatpush1.xpose.msra.mxu0 0.0
    %6038 = vmatprep.subr.mxu0 0.0
    %v6039 = vand.u32 %v5854, 4294901760
    %v6040 = vsub.f32 %v5854, %v6039
    %6041 = vmatpush1.xpose.msra.mxu0 %v6040
    %6042 = vmatprep.subr.mxu0 0.0
    %6043 = vmatpush2.xpose.msra.mxu0 0.0
    %6044 = vmatprep.subr.mxu0 0.0
    %6045 = vmatpush2.xpose.msra.mxu0 0.0
    %6046 = vmatprep.subr.mxu0 0.0
    %6047 = vmatpush2.xpose.msra.mxu0 0.0
    %6048 = vmatprep.subr.mxu0 0.0
    %6049 = vmatpush2.xpose.msra.mxu0 0.0
    %6050 = vmatprep.subr.mxu0 0.0
    %6051 = vmatpush2.xpose.msra.mxu0 0.0
    %6052 = vmatprep.subr.mxu0 0.0
    %6053 = vmatpush2.xpose.msra.mxu0 0.0
    %6054 = vmatprep.subr.mxu0 0.0
    %6055 = vmatpush2.xpose.msra.mxu0 0.0
    %6056 = vmatprep.subr.mxu0 0.0
    %6057 = vmatpush2.xpose.msra.mxu0 0.0
    %6058 = vmatprep.subr.mxu0 0.0
    %6059 = vmatpush2.xpose.msra.mxu0 0.0
    %6060 = vmatprep.subr.mxu0 0.0
    %6061 = vmatpush2.xpose.msra.mxu0 0.0
    %6062 = vmatprep.subr.mxu0 0.0
    %6063 = vmatpush2.xpose.msra.mxu0 0.0
    %6064 = vmatprep.subr.mxu0 0.0
    %6065 = vmatpush2.xpose.msra.mxu0 0.0
    %6066 = vmatprep.subr.mxu0 0.0
    %6067 = vmatpush2.xpose.msra.mxu0 0.0
    %6068 = vmatprep.subr.mxu0 0.0
    %6069 = vmatpush2.xpose.msra.mxu0 0.0
    %6070 = vmatprep.subr.mxu0 0.0
    %6071 = vmatpush2.xpose.msra.mxu0 0.0
    %6072 = vmatprep.subr.mxu0 0.0
    %6073 = vmatpush2.xpose.msra.mxu0 0.0
    %6074 = vmatprep.mubr.f32.mxu0 0.0
    %v6075 = vand.u32 %v5851, 4294901760
    %v6076 = vsub.f32 %v5851, %v6075
    %6077 = vmatmul.mubr.f32.gmra.mxu0 %v6076
    %v6078 = vpop.f32.mrf.mxu0
    %v6079 = vadd.f32 %v6005, %v6078
    %v6080 = vpop.f32.mrf.mxu0
    %6081 = vdwg.mxu0
    %6082 = vmatprep.subr.mxu0 0.0
    %6083 = vmatpush1.xpose.msra.mxu0 0.0
    %6084 = vmatprep.subr.mxu0 0.0
    %6085 = vmatpush1.xpose.msra.mxu0 0.0
    %6086 = vmatprep.subr.mxu0 0.0
    %6087 = vmatpush1.xpose.msra.mxu0 0.0
    %6088 = vmatprep.subr.mxu0 0.0
    %6089 = vmatpush1.xpose.msra.mxu0 0.0
    %6090 = vmatprep.subr.mxu0 0.0
    %6091 = vmatpush1.xpose.msra.mxu0 0.0
    %6092 = vmatprep.subr.mxu0 0.0
    %6093 = vmatpush1.xpose.msra.mxu0 0.0
    %6094 = vmatprep.subr.mxu0 0.0
    %6095 = vmatpush1.xpose.msra.mxu0 0.0
    %6096 = vmatprep.subr.mxu0 0.0
    %6097 = vmatpush1.xpose.msra.mxu0 0.0
    %6098 = vmatprep.subr.mxu0 0.0
    %6099 = vmatpush1.xpose.msra.mxu0 0.0
    %6100 = vmatprep.subr.mxu0 0.0
    %6101 = vmatpush1.xpose.msra.mxu0 0.0
    %6102 = vmatprep.subr.mxu0 0.0
    %6103 = vmatpush1.xpose.msra.mxu0 0.0
    %6104 = vmatprep.subr.mxu0 0.0
    %6105 = vmatpush1.xpose.msra.mxu0 0.0
    %6106 = vmatprep.subr.mxu0 0.0
    %6107 = vmatpush1.xpose.msra.mxu0 0.0
    %6108 = vmatprep.subr.mxu0 0.0
    %6109 = vmatpush1.xpose.msra.mxu0 0.0
    %6110 = vmatprep.subr.mxu0 0.0
    %6111 = vmatpush1.xpose.msra.mxu0 0.0
    %6112 = vmatprep.subr.mxu0 0.0
    %v6113 = vand.u32 %v5854, 4294901760
    %6114 = vmatpush1.xpose.msra.mxu0 %v6113
    %6115 = vmatprep.subr.mxu0 0.0
    %6116 = vmatpush2.xpose.msra.mxu0 0.0
    %6117 = vmatprep.subr.mxu0 0.0
    %6118 = vmatpush2.xpose.msra.mxu0 0.0
    %6119 = vmatprep.subr.mxu0 0.0
    %6120 = vmatpush2.xpose.msra.mxu0 0.0
    %6121 = vmatprep.subr.mxu0 0.0
    %6122 = vmatpush2.xpose.msra.mxu0 0.0
    %6123 = vmatprep.subr.mxu0 0.0
    %6124 = vmatpush2.xpose.msra.mxu0 0.0
    %6125 = vmatprep.subr.mxu0 0.0
    %6126 = vmatpush2.xpose.msra.mxu0 0.0
    %6127 = vmatprep.subr.mxu0 0.0
    %6128 = vmatpush2.xpose.msra.mxu0 0.0
    %6129 = vmatprep.subr.mxu0 0.0
    %6130 = vmatpush2.xpose.msra.mxu0 0.0
    %6131 = vmatprep.subr.mxu0 0.0
    %6132 = vmatpush2.xpose.msra.mxu0 0.0
    %6133 = vmatprep.subr.mxu0 0.0
    %6134 = vmatpush2.xpose.msra.mxu0 0.0
    %6135 = vmatprep.subr.mxu0 0.0
    %6136 = vmatpush2.xpose.msra.mxu0 0.0
    %6137 = vmatprep.subr.mxu0 0.0
    %6138 = vmatpush2.xpose.msra.mxu0 0.0
    %6139 = vmatprep.subr.mxu0 0.0
    %6140 = vmatpush2.xpose.msra.mxu0 0.0
    %6141 = vmatprep.subr.mxu0 0.0
    %6142 = vmatpush2.xpose.msra.mxu0 0.0
    %6143 = vmatprep.subr.mxu0 0.0
    %6144 = vmatpush2.xpose.msra.mxu0 0.0
    %6145 = vmatprep.subr.mxu0 0.0
    %6146 = vmatpush2.xpose.msra.mxu0 0.0
    %6147 = vmatprep.mubr.f32.mxu0 0.0
    %v6148 = vand.u32 %v5851, 4294901760
    %v6149 = vsub.f32 %v5851, %v6148
    %v6150 = vand.u32 %v6149, 4294901760
    %6151 = vmatmul.mubr.f32.gmra.mxu0 %v6150
    %v6152 = vpop.f32.mrf.mxu0
    %v6153 = vadd.f32 %v6079, %v6152
    %v6154 = vpop.f32.mrf.mxu0
    %6155 = vdwg.mxu0
    %6156 = vmatprep.subr.mxu0 0.0
    %6157 = vmatpush1.xpose.msra.mxu0 0.0
    %6158 = vmatprep.subr.mxu0 0.0
    %6159 = vmatpush1.xpose.msra.mxu0 0.0
    %6160 = vmatprep.subr.mxu0 0.0
    %6161 = vmatpush1.xpose.msra.mxu0 0.0
    %6162 = vmatprep.subr.mxu0 0.0
    %6163 = vmatpush1.xpose.msra.mxu0 0.0
    %6164 = vmatprep.subr.mxu0 0.0
    %6165 = vmatpush1.xpose.msra.mxu0 0.0
    %6166 = vmatprep.subr.mxu0 0.0
    %6167 = vmatpush1.xpose.msra.mxu0 0.0
    %6168 = vmatprep.subr.mxu0 0.0
    %6169 = vmatpush1.xpose.msra.mxu0 0.0
    %6170 = vmatprep.subr.mxu0 0.0
    %6171 = vmatpush1.xpose.msra.mxu0 0.0
    %6172 = vmatprep.subr.mxu0 0.0
    %6173 = vmatpush1.xpose.msra.mxu0 0.0
    %6174 = vmatprep.subr.mxu0 0.0
    %6175 = vmatpush1.xpose.msra.mxu0 0.0
    %6176 = vmatprep.subr.mxu0 0.0
    %6177 = vmatpush1.xpose.msra.mxu0 0.0
    %6178 = vmatprep.subr.mxu0 0.0
    %6179 = vmatpush1.xpose.msra.mxu0 0.0
    %6180 = vmatprep.subr.mxu0 0.0
    %6181 = vmatpush1.xpose.msra.mxu0 0.0
    %6182 = vmatprep.subr.mxu0 0.0
    %6183 = vmatpush1.xpose.msra.mxu0 0.0
    %6184 = vmatprep.subr.mxu0 0.0
    %6185 = vmatpush1.xpose.msra.mxu0 0.0
    %6186 = vmatprep.subr.mxu0 0.0
    %v6187 = vand.u32 %v5854, 4294901760
    %v6188 = vsub.f32 %v5854, %v6187
    %v6189 = vand.u32 %v6188, 4294901760
    %6190 = vmatpush1.xpose.msra.mxu0 %v6189
    %6191 = vmatprep.subr.mxu0 0.0
    %6192 = vmatpush2.xpose.msra.mxu0 0.0
    %6193 = vmatprep.subr.mxu0 0.0
    %6194 = vmatpush2.xpose.msra.mxu0 0.0
    %6195 = vmatprep.subr.mxu0 0.0
    %6196 = vmatpush2.xpose.msra.mxu0 0.0
    %6197 = vmatprep.subr.mxu0 0.0
    %6198 = vmatpush2.xpose.msra.mxu0 0.0
    %6199 = vmatprep.subr.mxu0 0.0
    %6200 = vmatpush2.xpose.msra.mxu0 0.0
    %6201 = vmatprep.subr.mxu0 0.0
    %6202 = vmatpush2.xpose.msra.mxu0 0.0
    %6203 = vmatprep.subr.mxu0 0.0
    %6204 = vmatpush2.xpose.msra.mxu0 0.0
    %6205 = vmatprep.subr.mxu0 0.0
    %6206 = vmatpush2.xpose.msra.mxu0 0.0
    %6207 = vmatprep.subr.mxu0 0.0
    %6208 = vmatpush2.xpose.msra.mxu0 0.0
    %6209 = vmatprep.subr.mxu0 0.0
    %6210 = vmatpush2.xpose.msra.mxu0 0.0
    %6211 = vmatprep.subr.mxu0 0.0
    %6212 = vmatpush2.xpose.msra.mxu0 0.0
    %6213 = vmatprep.subr.mxu0 0.0
    %6214 = vmatpush2.xpose.msra.mxu0 0.0
    %6215 = vmatprep.subr.mxu0 0.0
    %6216 = vmatpush2.xpose.msra.mxu0 0.0
    %6217 = vmatprep.subr.mxu0 0.0
    %6218 = vmatpush2.xpose.msra.mxu0 0.0
    %6219 = vmatprep.subr.mxu0 0.0
    %6220 = vmatpush2.xpose.msra.mxu0 0.0
    %6221 = vmatprep.subr.mxu0 0.0
    %6222 = vmatpush2.xpose.msra.mxu0 0.0
    %6223 = vmatprep.mubr.f32.mxu0 0.0
    %v6224 = vand.u32 %v5851, 4294901760
    %6225 = vmatmul.mubr.f32.gmra.mxu0 %v6224
    %v6226 = vpop.f32.mrf.mxu0
    %v6227 = vadd.f32 %v6153, %v6226
    %v6228 = vpop.f32.mrf.mxu0
    %6229 = vdwg.mxu0
    %6230 = vmatprep.subr.mxu0 0.0
    %6231 = vmatpush1.xpose.msra.mxu0 0.0
    %6232 = vmatprep.subr.mxu0 0.0
    %6233 = vmatpush1.xpose.msra.mxu0 0.0
    %6234 = vmatprep.subr.mxu0 0.0
    %6235 = vmatpush1.xpose.msra.mxu0 0.0
    %6236 = vmatprep.subr.mxu0 0.0
    %6237 = vmatpush1.xpose.msra.mxu0 0.0
    %6238 = vmatprep.subr.mxu0 0.0
    %6239 = vmatpush1.xpose.msra.mxu0 0.0
    %6240 = vmatprep.subr.mxu0 0.0
    %6241 = vmatpush1.xpose.msra.mxu0 0.0
    %6242 = vmatprep.subr.mxu0 0.0
    %6243 = vmatpush1.xpose.msra.mxu0 0.0
    %6244 = vmatprep.subr.mxu0 0.0
    %6245 = vmatpush1.xpose.msra.mxu0 0.0
    %6246 = vmatprep.subr.mxu0 0.0
    %6247 = vmatpush1.xpose.msra.mxu0 0.0
    %6248 = vmatprep.subr.mxu0 0.0
    %6249 = vmatpush1.xpose.msra.mxu0 0.0
    %6250 = vmatprep.subr.mxu0 0.0
    %6251 = vmatpush1.xpose.msra.mxu0 0.0
    %6252 = vmatprep.subr.mxu0 0.0
    %6253 = vmatpush1.xpose.msra.mxu0 0.0
    %6254 = vmatprep.subr.mxu0 0.0
    %6255 = vmatpush1.xpose.msra.mxu0 0.0
    %6256 = vmatprep.subr.mxu0 0.0
    %6257 = vmatpush1.xpose.msra.mxu0 0.0
    %6258 = vmatprep.subr.mxu0 0.0
    %6259 = vmatpush1.xpose.msra.mxu0 0.0
    %6260 = vmatprep.subr.mxu0 0.0
    %v6261 = vand.u32 %v5854, 4294901760
    %6262 = vmatpush1.xpose.msra.mxu0 %v6261
    %6263 = vmatprep.subr.mxu0 0.0
    %6264 = vmatpush2.xpose.msra.mxu0 0.0
    %6265 = vmatprep.subr.mxu0 0.0
    %6266 = vmatpush2.xpose.msra.mxu0 0.0
    %6267 = vmatprep.subr.mxu0 0.0
    %6268 = vmatpush2.xpose.msra.mxu0 0.0
    %6269 = vmatprep.subr.mxu0 0.0
    %6270 = vmatpush2.xpose.msra.mxu0 0.0
    %6271 = vmatprep.subr.mxu0 0.0
    %6272 = vmatpush2.xpose.msra.mxu0 0.0
    %6273 = vmatprep.subr.mxu0 0.0
    %6274 = vmatpush2.xpose.msra.mxu0 0.0
    %6275 = vmatprep.subr.mxu0 0.0
    %6276 = vmatpush2.xpose.msra.mxu0 0.0
    %6277 = vmatprep.subr.mxu0 0.0
    %6278 = vmatpush2.xpose.msra.mxu0 0.0
    %6279 = vmatprep.subr.mxu0 0.0
    %6280 = vmatpush2.xpose.msra.mxu0 0.0
    %6281 = vmatprep.subr.mxu0 0.0
    %6282 = vmatpush2.xpose.msra.mxu0 0.0
    %6283 = vmatprep.subr.mxu0 0.0
    %6284 = vmatpush2.xpose.msra.mxu0 0.0
    %6285 = vmatprep.subr.mxu0 0.0
    %6286 = vmatpush2.xpose.msra.mxu0 0.0
    %6287 = vmatprep.subr.mxu0 0.0
    %6288 = vmatpush2.xpose.msra.mxu0 0.0
    %6289 = vmatprep.subr.mxu0 0.0
    %6290 = vmatpush2.xpose.msra.mxu0 0.0
    %6291 = vmatprep.subr.mxu0 0.0
    %6292 = vmatpush2.xpose.msra.mxu0 0.0
    %6293 = vmatprep.subr.mxu0 0.0
    %6294 = vmatpush2.xpose.msra.mxu0 0.0
    %6295 = vmatprep.mubr.f32.mxu0 0.0
    %v6296 = vand.u32 %v5851, 4294901760
    %6297 = vmatmul.mubr.f32.gmra.mxu0 %v6296
    %v6298 = vpop.f32.mrf.mxu0
    %v6299 = vadd.f32 %v6227, %v6298
    %v6300 = vpop.f32.mrf.mxu0
    %6301 = vdwg.mxu0
    %v6303 = vsel %vm38, %v26, 0
    %v6306 = vsel %vm38, %v4039, 0
    %6308 = vmatprep.subr.mxu0 0.0
    %6309 = vmatpush1.xpose.msra.mxu0 0.0
    %6310 = vmatprep.subr.mxu0 0.0
    %6311 = vmatpush1.xpose.msra.mxu0 0.0
    %6312 = vmatprep.subr.mxu0 0.0
    %6313 = vmatpush1.xpose.msra.mxu0 0.0
    %6314 = vmatprep.subr.mxu0 0.0
    %6315 = vmatpush1.xpose.msra.mxu0 0.0
    %6316 = vmatprep.subr.mxu0 0.0
    %6317 = vmatpush1.xpose.msra.mxu0 0.0
    %6318 = vmatprep.subr.mxu0 0.0
    %6319 = vmatpush1.xpose.msra.mxu0 0.0
    %6320 = vmatprep.subr.mxu0 0.0
    %6321 = vmatpush1.xpose.msra.mxu0 0.0
    %6322 = vmatprep.subr.mxu0 0.0
    %6323 = vmatpush1.xpose.msra.mxu0 0.0
    %6324 = vmatprep.subr.mxu0 0.0
    %6325 = vmatpush1.xpose.msra.mxu0 0.0
    %6326 = vmatprep.subr.mxu0 0.0
    %6327 = vmatpush1.xpose.msra.mxu0 0.0
    %6328 = vmatprep.subr.mxu0 0.0
    %6329 = vmatpush1.xpose.msra.mxu0 0.0
    %6330 = vmatprep.subr.mxu0 0.0
    %6331 = vmatpush1.xpose.msra.mxu0 0.0
    %6332 = vmatprep.subr.mxu0 0.0
    %6333 = vmatpush1.xpose.msra.mxu0 0.0
    %6334 = vmatprep.subr.mxu0 0.0
    %6335 = vmatpush1.xpose.msra.mxu0 0.0
    %6336 = vmatprep.subr.mxu0 0.0
    %6337 = vmatpush1.xpose.msra.mxu0 0.0
    %6338 = vmatprep.subr.mxu0 0.0
    %v6339 = vand.u32 %v6306, 4294901760
    %6340 = vmatpush1.xpose.msra.mxu0 %v6339
    %6341 = vmatprep.subr.mxu0 0.0
    %6342 = vmatpush2.xpose.msra.mxu0 0.0
    %6343 = vmatprep.subr.mxu0 0.0
    %6344 = vmatpush2.xpose.msra.mxu0 0.0
    %6345 = vmatprep.subr.mxu0 0.0
    %6346 = vmatpush2.xpose.msra.mxu0 0.0
    %6347 = vmatprep.subr.mxu0 0.0
    %6348 = vmatpush2.xpose.msra.mxu0 0.0
    %6349 = vmatprep.subr.mxu0 0.0
    %6350 = vmatpush2.xpose.msra.mxu0 0.0
    %6351 = vmatprep.subr.mxu0 0.0
    %6352 = vmatpush2.xpose.msra.mxu0 0.0
    %6353 = vmatprep.subr.mxu0 0.0
    %6354 = vmatpush2.xpose.msra.mxu0 0.0
    %6355 = vmatprep.subr.mxu0 0.0
    %6356 = vmatpush2.xpose.msra.mxu0 0.0
    %6357 = vmatprep.subr.mxu0 0.0
    %6358 = vmatpush2.xpose.msra.mxu0 0.0
    %6359 = vmatprep.subr.mxu0 0.0
    %6360 = vmatpush2.xpose.msra.mxu0 0.0
    %6361 = vmatprep.subr.mxu0 0.0
    %6362 = vmatpush2.xpose.msra.mxu0 0.0
    %6363 = vmatprep.subr.mxu0 0.0
    %6364 = vmatpush2.xpose.msra.mxu0 0.0
    %6365 = vmatprep.subr.mxu0 0.0
    %6366 = vmatpush2.xpose.msra.mxu0 0.0
    %6367 = vmatprep.subr.mxu0 0.0
    %6368 = vmatpush2.xpose.msra.mxu0 0.0
    %6369 = vmatprep.subr.mxu0 0.0
    %6370 = vmatpush2.xpose.msra.mxu0 0.0
    %6371 = vmatprep.subr.mxu0 0.0
    %6372 = vmatpush2.xpose.msra.mxu0 0.0
    %6373 = vmatprep.mubr.f32.mxu0 0.0
    %v6374 = vand.u32 %v6303, 4294901760
    %v6375 = vsub.f32 %v6303, %v6374
    %v6376 = vand.u32 %v6375, 4294901760
    %v6377 = vsub.f32 %v6375, %v6376
    %v6378 = vand.u32 %v6377, 4294901760
    %6379 = vmatmul.mubr.f32.gmra.mxu0 %v6378
    %v6380 = vpop.f32.mrf.mxu0
    %v6381 = vadd.f32 0.0, %v6380
    %v6382 = vpop.f32.mrf.mxu0
    %6383 = vdwg.mxu0
    %6384 = vmatprep.subr.mxu0 0.0
    %6385 = vmatpush1.xpose.msra.mxu0 0.0
    %6386 = vmatprep.subr.mxu0 0.0
    %6387 = vmatpush1.xpose.msra.mxu0 0.0
    %6388 = vmatprep.subr.mxu0 0.0
    %6389 = vmatpush1.xpose.msra.mxu0 0.0
    %6390 = vmatprep.subr.mxu0 0.0
    %6391 = vmatpush1.xpose.msra.mxu0 0.0
    %6392 = vmatprep.subr.mxu0 0.0
    %6393 = vmatpush1.xpose.msra.mxu0 0.0
    %6394 = vmatprep.subr.mxu0 0.0
    %6395 = vmatpush1.xpose.msra.mxu0 0.0
    %6396 = vmatprep.subr.mxu0 0.0
    %6397 = vmatpush1.xpose.msra.mxu0 0.0
    %6398 = vmatprep.subr.mxu0 0.0
    %6399 = vmatpush1.xpose.msra.mxu0 0.0
    %6400 = vmatprep.subr.mxu0 0.0
    %6401 = vmatpush1.xpose.msra.mxu0 0.0
    %6402 = vmatprep.subr.mxu0 0.0
    %6403 = vmatpush1.xpose.msra.mxu0 0.0
    %6404 = vmatprep.subr.mxu0 0.0
    %6405 = vmatpush1.xpose.msra.mxu0 0.0
    %6406 = vmatprep.subr.mxu0 0.0
    %6407 = vmatpush1.xpose.msra.mxu0 0.0
    %6408 = vmatprep.subr.mxu0 0.0
    %6409 = vmatpush1.xpose.msra.mxu0 0.0
    %6410 = vmatprep.subr.mxu0 0.0
    %6411 = vmatpush1.xpose.msra.mxu0 0.0
    %6412 = vmatprep.subr.mxu0 0.0
    %6413 = vmatpush1.xpose.msra.mxu0 0.0
    %6414 = vmatprep.subr.mxu0 0.0
    %v6415 = vand.u32 %v6306, 4294901760
    %v6416 = vsub.f32 %v6306, %v6415
    %v6417 = vand.u32 %v6416, 4294901760
    %v6418 = vsub.f32 %v6416, %v6417
    %v6419 = vand.u32 %v6418, 4294901760
    %6420 = vmatpush1.xpose.msra.mxu0 %v6419
    %6421 = vmatprep.subr.mxu0 0.0
    %6422 = vmatpush2.xpose.msra.mxu0 0.0
    %6423 = vmatprep.subr.mxu0 0.0
    %6424 = vmatpush2.xpose.msra.mxu0 0.0
    %6425 = vmatprep.subr.mxu0 0.0
    %6426 = vmatpush2.xpose.msra.mxu0 0.0
    %6427 = vmatprep.subr.mxu0 0.0
    %6428 = vmatpush2.xpose.msra.mxu0 0.0
    %6429 = vmatprep.subr.mxu0 0.0
    %6430 = vmatpush2.xpose.msra.mxu0 0.0
    %6431 = vmatprep.subr.mxu0 0.0
    %6432 = vmatpush2.xpose.msra.mxu0 0.0
    %6433 = vmatprep.subr.mxu0 0.0
    %6434 = vmatpush2.xpose.msra.mxu0 0.0
    %6435 = vmatprep.subr.mxu0 0.0
    %6436 = vmatpush2.xpose.msra.mxu0 0.0
    %6437 = vmatprep.subr.mxu0 0.0
    %6438 = vmatpush2.xpose.msra.mxu0 0.0
    %6439 = vmatprep.subr.mxu0 0.0
    %6440 = vmatpush2.xpose.msra.mxu0 0.0
    %6441 = vmatprep.subr.mxu0 0.0
    %6442 = vmatpush2.xpose.msra.mxu0 0.0
    %6443 = vmatprep.subr.mxu0 0.0
    %6444 = vmatpush2.xpose.msra.mxu0 0.0
    %6445 = vmatprep.subr.mxu0 0.0
    %6446 = vmatpush2.xpose.msra.mxu0 0.0
    %6447 = vmatprep.subr.mxu0 0.0
    %6448 = vmatpush2.xpose.msra.mxu0 0.0
    %6449 = vmatprep.subr.mxu0 0.0
    %6450 = vmatpush2.xpose.msra.mxu0 0.0
    %6451 = vmatprep.subr.mxu0 0.0
    %6452 = vmatpush2.xpose.msra.mxu0 0.0
    %6453 = vmatprep.mubr.f32.mxu0 0.0
    %v6454 = vand.u32 %v6303, 4294901760
    %6455 = vmatmul.mubr.f32.gmra.mxu0 %v6454
    %v6456 = vpop.f32.mrf.mxu0
    %v6457 = vadd.f32 %v6381, %v6456
    %v6458 = vpop.f32.mrf.mxu0
    %6459 = vdwg.mxu0
    %6460 = vmatprep.subr.mxu0 0.0
    %6461 = vmatpush1.xpose.msra.mxu0 0.0
    %6462 = vmatprep.subr.mxu0 0.0
    %6463 = vmatpush1.xpose.msra.mxu0 0.0
    %6464 = vmatprep.subr.mxu0 0.0
    %6465 = vmatpush1.xpose.msra.mxu0 0.0
    %6466 = vmatprep.subr.mxu0 0.0
    %6467 = vmatpush1.xpose.msra.mxu0 0.0
    %6468 = vmatprep.subr.mxu0 0.0
    %6469 = vmatpush1.xpose.msra.mxu0 0.0
    %6470 = vmatprep.subr.mxu0 0.0
    %6471 = vmatpush1.xpose.msra.mxu0 0.0
    %6472 = vmatprep.subr.mxu0 0.0
    %6473 = vmatpush1.xpose.msra.mxu0 0.0
    %6474 = vmatprep.subr.mxu0 0.0
    %6475 = vmatpush1.xpose.msra.mxu0 0.0
    %6476 = vmatprep.subr.mxu0 0.0
    %6477 = vmatpush1.xpose.msra.mxu0 0.0
    %6478 = vmatprep.subr.mxu0 0.0
    %6479 = vmatpush1.xpose.msra.mxu0 0.0
    %6480 = vmatprep.subr.mxu0 0.0
    %6481 = vmatpush1.xpose.msra.mxu0 0.0
    %6482 = vmatprep.subr.mxu0 0.0
    %6483 = vmatpush1.xpose.msra.mxu0 0.0
    %6484 = vmatprep.subr.mxu0 0.0
    %6485 = vmatpush1.xpose.msra.mxu0 0.0
    %6486 = vmatprep.subr.mxu0 0.0
    %6487 = vmatpush1.xpose.msra.mxu0 0.0
    %6488 = vmatprep.subr.mxu0 0.0
    %6489 = vmatpush1.xpose.msra.mxu0 0.0
    %6490 = vmatprep.subr.mxu0 0.0
    %v6491 = vand.u32 %v6306, 4294901760
    %v6492 = vsub.f32 %v6306, %v6491
    %6493 = vmatpush1.xpose.msra.mxu0 %v6492
    %6494 = vmatprep.subr.mxu0 0.0
    %6495 = vmatpush2.xpose.msra.mxu0 0.0
    %6496 = vmatprep.subr.mxu0 0.0
    %6497 = vmatpush2.xpose.msra.mxu0 0.0
    %6498 = vmatprep.subr.mxu0 0.0
    %6499 = vmatpush2.xpose.msra.mxu0 0.0
    %6500 = vmatprep.subr.mxu0 0.0
    %6501 = vmatpush2.xpose.msra.mxu0 0.0
    %6502 = vmatprep.subr.mxu0 0.0
    %6503 = vmatpush2.xpose.msra.mxu0 0.0
    %6504 = vmatprep.subr.mxu0 0.0
    %6505 = vmatpush2.xpose.msra.mxu0 0.0
    %6506 = vmatprep.subr.mxu0 0.0
    %6507 = vmatpush2.xpose.msra.mxu0 0.0
    %6508 = vmatprep.subr.mxu0 0.0
    %6509 = vmatpush2.xpose.msra.mxu0 0.0
    %6510 = vmatprep.subr.mxu0 0.0
    %6511 = vmatpush2.xpose.msra.mxu0 0.0
    %6512 = vmatprep.subr.mxu0 0.0
    %6513 = vmatpush2.xpose.msra.mxu0 0.0
    %6514 = vmatprep.subr.mxu0 0.0
    %6515 = vmatpush2.xpose.msra.mxu0 0.0
    %6516 = vmatprep.subr.mxu0 0.0
    %6517 = vmatpush2.xpose.msra.mxu0 0.0
    %6518 = vmatprep.subr.mxu0 0.0
    %6519 = vmatpush2.xpose.msra.mxu0 0.0
    %6520 = vmatprep.subr.mxu0 0.0
    %6521 = vmatpush2.xpose.msra.mxu0 0.0
    %6522 = vmatprep.subr.mxu0 0.0
    %6523 = vmatpush2.xpose.msra.mxu0 0.0
    %6524 = vmatprep.subr.mxu0 0.0
    %6525 = vmatpush2.xpose.msra.mxu0 0.0
    %6526 = vmatprep.mubr.f32.mxu0 0.0
    %v6527 = vand.u32 %v6303, 4294901760
    %v6528 = vsub.f32 %v6303, %v6527
    %6529 = vmatmul.mubr.f32.gmra.mxu0 %v6528
    %v6530 = vpop.f32.mrf.mxu0
    %v6531 = vadd.f32 %v6457, %v6530
    %v6532 = vpop.f32.mrf.mxu0
    %6533 = vdwg.mxu0
    %6534 = vmatprep.subr.mxu0 0.0
    %6535 = vmatpush1.xpose.msra.mxu0 0.0
    %6536 = vmatprep.subr.mxu0 0.0
    %6537 = vmatpush1.xpose.msra.mxu0 0.0
    %6538 = vmatprep.subr.mxu0 0.0
    %6539 = vmatpush1.xpose.msra.mxu0 0.0
    %6540 = vmatprep.subr.mxu0 0.0
    %6541 = vmatpush1.xpose.msra.mxu0 0.0
    %6542 = vmatprep.subr.mxu0 0.0
    %6543 = vmatpush1.xpose.msra.mxu0 0.0
    %6544 = vmatprep.subr.mxu0 0.0
    %6545 = vmatpush1.xpose.msra.mxu0 0.0
    %6546 = vmatprep.subr.mxu0 0.0
    %6547 = vmatpush1.xpose.msra.mxu0 0.0
    %6548 = vmatprep.subr.mxu0 0.0
    %6549 = vmatpush1.xpose.msra.mxu0 0.0
    %6550 = vmatprep.subr.mxu0 0.0
    %6551 = vmatpush1.xpose.msra.mxu0 0.0
    %6552 = vmatprep.subr.mxu0 0.0
    %6553 = vmatpush1.xpose.msra.mxu0 0.0
    %6554 = vmatprep.subr.mxu0 0.0
    %6555 = vmatpush1.xpose.msra.mxu0 0.0
    %6556 = vmatprep.subr.mxu0 0.0
    %6557 = vmatpush1.xpose.msra.mxu0 0.0
    %6558 = vmatprep.subr.mxu0 0.0
    %6559 = vmatpush1.xpose.msra.mxu0 0.0
    %6560 = vmatprep.subr.mxu0 0.0
    %6561 = vmatpush1.xpose.msra.mxu0 0.0
    %6562 = vmatprep.subr.mxu0 0.0
    %6563 = vmatpush1.xpose.msra.mxu0 0.0
    %6564 = vmatprep.subr.mxu0 0.0
    %v6565 = vand.u32 %v6306, 4294901760
    %6566 = vmatpush1.xpose.msra.mxu0 %v6565
    %6567 = vmatprep.subr.mxu0 0.0
    %6568 = vmatpush2.xpose.msra.mxu0 0.0
    %6569 = vmatprep.subr.mxu0 0.0
    %6570 = vmatpush2.xpose.msra.mxu0 0.0
    %6571 = vmatprep.subr.mxu0 0.0
    %6572 = vmatpush2.xpose.msra.mxu0 0.0
    %6573 = vmatprep.subr.mxu0 0.0
    %6574 = vmatpush2.xpose.msra.mxu0 0.0
    %6575 = vmatprep.subr.mxu0 0.0
    %6576 = vmatpush2.xpose.msra.mxu0 0.0
    %6577 = vmatprep.subr.mxu0 0.0
    %6578 = vmatpush2.xpose.msra.mxu0 0.0
    %6579 = vmatprep.subr.mxu0 0.0
    %6580 = vmatpush2.xpose.msra.mxu0 0.0
    %6581 = vmatprep.subr.mxu0 0.0
    %6582 = vmatpush2.xpose.msra.mxu0 0.0
    %6583 = vmatprep.subr.mxu0 0.0
    %6584 = vmatpush2.xpose.msra.mxu0 0.0
    %6585 = vmatprep.subr.mxu0 0.0
    %6586 = vmatpush2.xpose.msra.mxu0 0.0
    %6587 = vmatprep.subr.mxu0 0.0
    %6588 = vmatpush2.xpose.msra.mxu0 0.0
    %6589 = vmatprep.subr.mxu0 0.0
    %6590 = vmatpush2.xpose.msra.mxu0 0.0
    %6591 = vmatprep.subr.mxu0 0.0
    %6592 = vmatpush2.xpose.msra.mxu0 0.0
    %6593 = vmatprep.subr.mxu0 0.0
    %6594 = vmatpush2.xpose.msra.mxu0 0.0
    %6595 = vmatprep.subr.mxu0 0.0
    %6596 = vmatpush2.xpose.msra.mxu0 0.0
    %6597 = vmatprep.subr.mxu0 0.0
    %6598 = vmatpush2.xpose.msra.mxu0 0.0
    %6599 = vmatprep.mubr.f32.mxu0 0.0
    %v6600 = vand.u32 %v6303, 4294901760
    %v6601 = vsub.f32 %v6303, %v6600
    %v6602 = vand.u32 %v6601, 4294901760
    %6603 = vmatmul.mubr.f32.gmra.mxu0 %v6602
    %v6604 = vpop.f32.mrf.mxu0
    %v6605 = vadd.f32 %v6531, %v6604
    %v6606 = vpop.f32.mrf.mxu0
    %6607 = vdwg.mxu0
    %6608 = vmatprep.subr.mxu0 0.0
    %6609 = vmatpush1.xpose.msra.mxu0 0.0
    %6610 = vmatprep.subr.mxu0 0.0
    %6611 = vmatpush1.xpose.msra.mxu0 0.0
    %6612 = vmatprep.subr.mxu0 0.0
    %6613 = vmatpush1.xpose.msra.mxu0 0.0
    %6614 = vmatprep.subr.mxu0 0.0
    %6615 = vmatpush1.xpose.msra.mxu0 0.0
    %6616 = vmatprep.subr.mxu0 0.0
    %6617 = vmatpush1.xpose.msra.mxu0 0.0
    %6618 = vmatprep.subr.mxu0 0.0
    %6619 = vmatpush1.xpose.msra.mxu0 0.0
    %6620 = vmatprep.subr.mxu0 0.0
    %6621 = vmatpush1.xpose.msra.mxu0 0.0
    %6622 = vmatprep.subr.mxu0 0.0
    %6623 = vmatpush1.xpose.msra.mxu0 0.0
    %6624 = vmatprep.subr.mxu0 0.0
    %6625 = vmatpush1.xpose.msra.mxu0 0.0
    %6626 = vmatprep.subr.mxu0 0.0
    %6627 = vmatpush1.xpose.msra.mxu0 0.0
    %6628 = vmatprep.subr.mxu0 0.0
    %6629 = vmatpush1.xpose.msra.mxu0 0.0
    %6630 = vmatprep.subr.mxu0 0.0
    %6631 = vmatpush1.xpose.msra.mxu0 0.0
    %6632 = vmatprep.subr.mxu0 0.0
    %6633 = vmatpush1.xpose.msra.mxu0 0.0
    %6634 = vmatprep.subr.mxu0 0.0
    %6635 = vmatpush1.xpose.msra.mxu0 0.0
    %6636 = vmatprep.subr.mxu0 0.0
    %6637 = vmatpush1.xpose.msra.mxu0 0.0
    %6638 = vmatprep.subr.mxu0 0.0
    %v6639 = vand.u32 %v6306, 4294901760
    %v6640 = vsub.f32 %v6306, %v6639
    %v6641 = vand.u32 %v6640, 4294901760
    %6642 = vmatpush1.xpose.msra.mxu0 %v6641
    %6643 = vmatprep.subr.mxu0 0.0
    %6644 = vmatpush2.xpose.msra.mxu0 0.0
    %6645 = vmatprep.subr.mxu0 0.0
    %6646 = vmatpush2.xpose.msra.mxu0 0.0
    %6647 = vmatprep.subr.mxu0 0.0
    %6648 = vmatpush2.xpose.msra.mxu0 0.0
    %6649 = vmatprep.subr.mxu0 0.0
    %6650 = vmatpush2.xpose.msra.mxu0 0.0
    %6651 = vmatprep.subr.mxu0 0.0
    %6652 = vmatpush2.xpose.msra.mxu0 0.0
    %6653 = vmatprep.subr.mxu0 0.0
    %6654 = vmatpush2.xpose.msra.mxu0 0.0
    %6655 = vmatprep.subr.mxu0 0.0
    %6656 = vmatpush2.xpose.msra.mxu0 0.0
    %6657 = vmatprep.subr.mxu0 0.0
    %6658 = vmatpush2.xpose.msra.mxu0 0.0
    %6659 = vmatprep.subr.mxu0 0.0
    %6660 = vmatpush2.xpose.msra.mxu0 0.0
    %6661 = vmatprep.subr.mxu0 0.0
    %6662 = vmatpush2.xpose.msra.mxu0 0.0
    %6663 = vmatprep.subr.mxu0 0.0
    %6664 = vmatpush2.xpose.msra.mxu0 0.0
    %6665 = vmatprep.subr.mxu0 0.0
    %6666 = vmatpush2.xpose.msra.mxu0 0.0
    %6667 = vmatprep.subr.mxu0 0.0
    %6668 = vmatpush2.xpose.msra.mxu0 0.0
    %6669 = vmatprep.subr.mxu0 0.0
    %6670 = vmatpush2.xpose.msra.mxu0 0.0
    %6671 = vmatprep.subr.mxu0 0.0
    %6672 = vmatpush2.xpose.msra.mxu0 0.0
    %6673 = vmatprep.subr.mxu0 0.0
    %6674 = vmatpush2.xpose.msra.mxu0 0.0
    %6675 = vmatprep.mubr.f32.mxu0 0.0
    %v6676 = vand.u32 %v6303, 4294901760
    %6677 = vmatmul.mubr.f32.gmra.mxu0 %v6676
    %v6678 = vpop.f32.mrf.mxu0
    %v6679 = vadd.f32 %v6605, %v6678
    %v6680 = vpop.f32.mrf.mxu0
    %6681 = vdwg.mxu0
    %6682 = vmatprep.subr.mxu0 0.0
    %6683 = vmatpush1.xpose.msra.mxu0 0.0
    %6684 = vmatprep.subr.mxu0 0.0
    %6685 = vmatpush1.xpose.msra.mxu0 0.0
    %6686 = vmatprep.subr.mxu0 0.0
    %6687 = vmatpush1.xpose.msra.mxu0 0.0
    %6688 = vmatprep.subr.mxu0 0.0
    %6689 = vmatpush1.xpose.msra.mxu0 0.0
    %6690 = vmatprep.subr.mxu0 0.0
    %6691 = vmatpush1.xpose.msra.mxu0 0.0
    %6692 = vmatprep.subr.mxu0 0.0
    %6693 = vmatpush1.xpose.msra.mxu0 0.0
    %6694 = vmatprep.subr.mxu0 0.0
    %6695 = vmatpush1.xpose.msra.mxu0 0.0
    %6696 = vmatprep.subr.mxu0 0.0
    %6697 = vmatpush1.xpose.msra.mxu0 0.0
    %6698 = vmatprep.subr.mxu0 0.0
    %6699 = vmatpush1.xpose.msra.mxu0 0.0
    %6700 = vmatprep.subr.mxu0 0.0
    %6701 = vmatpush1.xpose.msra.mxu0 0.0
    %6702 = vmatprep.subr.mxu0 0.0
    %6703 = vmatpush1.xpose.msra.mxu0 0.0
    %6704 = vmatprep.subr.mxu0 0.0
    %6705 = vmatpush1.xpose.msra.mxu0 0.0
    %6706 = vmatprep.subr.mxu0 0.0
    %6707 = vmatpush1.xpose.msra.mxu0 0.0
    %6708 = vmatprep.subr.mxu0 0.0
    %6709 = vmatpush1.xpose.msra.mxu0 0.0
    %6710 = vmatprep.subr.mxu0 0.0
    %6711 = vmatpush1.xpose.msra.mxu0 0.0
    %6712 = vmatprep.subr.mxu0 0.0
    %v6713 = vand.u32 %v6306, 4294901760
    %6714 = vmatpush1.xpose.msra.mxu0 %v6713
    %6715 = vmatprep.subr.mxu0 0.0
    %6716 = vmatpush2.xpose.msra.mxu0 0.0
    %6717 = vmatprep.subr.mxu0 0.0
    %6718 = vmatpush2.xpose.msra.mxu0 0.0
    %6719 = vmatprep.subr.mxu0 0.0
    %6720 = vmatpush2.xpose.msra.mxu0 0.0
    %6721 = vmatprep.subr.mxu0 0.0
    %6722 = vmatpush2.xpose.msra.mxu0 0.0
    %6723 = vmatprep.subr.mxu0 0.0
    %6724 = vmatpush2.xpose.msra.mxu0 0.0
    %6725 = vmatprep.subr.mxu0 0.0
    %6726 = vmatpush2.xpose.msra.mxu0 0.0
    %6727 = vmatprep.subr.mxu0 0.0
    %6728 = vmatpush2.xpose.msra.mxu0 0.0
    %6729 = vmatprep.subr.mxu0 0.0
    %6730 = vmatpush2.xpose.msra.mxu0 0.0
    %6731 = vmatprep.subr.mxu0 0.0
    %6732 = vmatpush2.xpose.msra.mxu0 0.0
    %6733 = vmatprep.subr.mxu0 0.0
    %6734 = vmatpush2.xpose.msra.mxu0 0.0
    %6735 = vmatprep.subr.mxu0 0.0
    %6736 = vmatpush2.xpose.msra.mxu0 0.0
    %6737 = vmatprep.subr.mxu0 0.0
    %6738 = vmatpush2.xpose.msra.mxu0 0.0
    %6739 = vmatprep.subr.mxu0 0.0
    %6740 = vmatpush2.xpose.msra.mxu0 0.0
    %6741 = vmatprep.subr.mxu0 0.0
    %6742 = vmatpush2.xpose.msra.mxu0 0.0
    %6743 = vmatprep.subr.mxu0 0.0
    %6744 = vmatpush2.xpose.msra.mxu0 0.0
    %6745 = vmatprep.subr.mxu0 0.0
    %6746 = vmatpush2.xpose.msra.mxu0 0.0
    %6747 = vmatprep.mubr.f32.mxu0 0.0
    %v6748 = vand.u32 %v6303, 4294901760
    %6749 = vmatmul.mubr.f32.gmra.mxu0 %v6748
    %v6750 = vpop.f32.mrf.mxu0
    %v6751 = vadd.f32 %v6679, %v6750
    %v6752 = vpop.f32.mrf.mxu0
    %6753 = vdwg.mxu0
    %v6755 = vsel %vm38, %v27, 0
    %v6758 = vsel %vm38, %v4040, 0
    %6760 = vmatprep.subr.mxu0 0.0
    %6761 = vmatpush1.xpose.msra.mxu0 0.0
    %6762 = vmatprep.subr.mxu0 0.0
    %6763 = vmatpush1.xpose.msra.mxu0 0.0
    %6764 = vmatprep.subr.mxu0 0.0
    %6765 = vmatpush1.xpose.msra.mxu0 0.0
    %6766 = vmatprep.subr.mxu0 0.0
    %6767 = vmatpush1.xpose.msra.mxu0 0.0
    %6768 = vmatprep.subr.mxu0 0.0
    %6769 = vmatpush1.xpose.msra.mxu0 0.0
    %6770 = vmatprep.subr.mxu0 0.0
    %6771 = vmatpush1.xpose.msra.mxu0 0.0
    %6772 = vmatprep.subr.mxu0 0.0
    %6773 = vmatpush1.xpose.msra.mxu0 0.0
    %6774 = vmatprep.subr.mxu0 0.0
    %6775 = vmatpush1.xpose.msra.mxu0 0.0
    %6776 = vmatprep.subr.mxu0 0.0
    %6777 = vmatpush1.xpose.msra.mxu0 0.0
    %6778 = vmatprep.subr.mxu0 0.0
    %6779 = vmatpush1.xpose.msra.mxu0 0.0
    %6780 = vmatprep.subr.mxu0 0.0
    %6781 = vmatpush1.xpose.msra.mxu0 0.0
    %6782 = vmatprep.subr.mxu0 0.0
    %6783 = vmatpush1.xpose.msra.mxu0 0.0
    %6784 = vmatprep.subr.mxu0 0.0
    %6785 = vmatpush1.xpose.msra.mxu0 0.0
    %6786 = vmatprep.subr.mxu0 0.0
    %6787 = vmatpush1.xpose.msra.mxu0 0.0
    %6788 = vmatprep.subr.mxu0 0.0
    %6789 = vmatpush1.xpose.msra.mxu0 0.0
    %6790 = vmatprep.subr.mxu0 0.0
    %v6791 = vand.u32 %v6758, 4294901760
    %6792 = vmatpush1.xpose.msra.mxu0 %v6791
    %6793 = vmatprep.subr.mxu0 0.0
    %6794 = vmatpush2.xpose.msra.mxu0 0.0
    %6795 = vmatprep.subr.mxu0 0.0
    %6796 = vmatpush2.xpose.msra.mxu0 0.0
    %6797 = vmatprep.subr.mxu0 0.0
    %6798 = vmatpush2.xpose.msra.mxu0 0.0
    %6799 = vmatprep.subr.mxu0 0.0
    %6800 = vmatpush2.xpose.msra.mxu0 0.0
    %6801 = vmatprep.subr.mxu0 0.0
    %6802 = vmatpush2.xpose.msra.mxu0 0.0
    %6803 = vmatprep.subr.mxu0 0.0
    %6804 = vmatpush2.xpose.msra.mxu0 0.0
    %6805 = vmatprep.subr.mxu0 0.0
    %6806 = vmatpush2.xpose.msra.mxu0 0.0
    %6807 = vmatprep.subr.mxu0 0.0
    %6808 = vmatpush2.xpose.msra.mxu0 0.0
    %6809 = vmatprep.subr.mxu0 0.0
    %6810 = vmatpush2.xpose.msra.mxu0 0.0
    %6811 = vmatprep.subr.mxu0 0.0
    %6812 = vmatpush2.xpose.msra.mxu0 0.0
    %6813 = vmatprep.subr.mxu0 0.0
    %6814 = vmatpush2.xpose.msra.mxu0 0.0
    %6815 = vmatprep.subr.mxu0 0.0
    %6816 = vmatpush2.xpose.msra.mxu0 0.0
    %6817 = vmatprep.subr.mxu0 0.0
    %6818 = vmatpush2.xpose.msra.mxu0 0.0
    %6819 = vmatprep.subr.mxu0 0.0
    %6820 = vmatpush2.xpose.msra.mxu0 0.0
    %6821 = vmatprep.subr.mxu0 0.0
    %6822 = vmatpush2.xpose.msra.mxu0 0.0
    %6823 = vmatprep.subr.mxu0 0.0
    %6824 = vmatpush2.xpose.msra.mxu0 0.0
    %6825 = vmatprep.mubr.f32.mxu0 0.0
    %v6826 = vand.u32 %v6755, 4294901760
    %v6827 = vsub.f32 %v6755, %v6826
    %v6828 = vand.u32 %v6827, 4294901760
    %v6829 = vsub.f32 %v6827, %v6828
    %v6830 = vand.u32 %v6829, 4294901760
    %6831 = vmatmul.mubr.f32.gmra.mxu0 %v6830
    %v6832 = vpop.f32.mrf.mxu0
    %v6833 = vadd.f32 0.0, %v6832
    %v6834 = vpop.f32.mrf.mxu0
    %6835 = vdwg.mxu0
    %6836 = vmatprep.subr.mxu0 0.0
    %6837 = vmatpush1.xpose.msra.mxu0 0.0
    %6838 = vmatprep.subr.mxu0 0.0
    %6839 = vmatpush1.xpose.msra.mxu0 0.0
    %6840 = vmatprep.subr.mxu0 0.0
    %6841 = vmatpush1.xpose.msra.mxu0 0.0
    %6842 = vmatprep.subr.mxu0 0.0
    %6843 = vmatpush1.xpose.msra.mxu0 0.0
    %6844 = vmatprep.subr.mxu0 0.0
    %6845 = vmatpush1.xpose.msra.mxu0 0.0
    %6846 = vmatprep.subr.mxu0 0.0
    %6847 = vmatpush1.xpose.msra.mxu0 0.0
    %6848 = vmatprep.subr.mxu0 0.0
    %6849 = vmatpush1.xpose.msra.mxu0 0.0
    %6850 = vmatprep.subr.mxu0 0.0
    %6851 = vmatpush1.xpose.msra.mxu0 0.0
    %6852 = vmatprep.subr.mxu0 0.0
    %6853 = vmatpush1.xpose.msra.mxu0 0.0
    %6854 = vmatprep.subr.mxu0 0.0
    %6855 = vmatpush1.xpose.msra.mxu0 0.0
    %6856 = vmatprep.subr.mxu0 0.0
    %6857 = vmatpush1.xpose.msra.mxu0 0.0
    %6858 = vmatprep.subr.mxu0 0.0
    %6859 = vmatpush1.xpose.msra.mxu0 0.0
    %6860 = vmatprep.subr.mxu0 0.0
    %6861 = vmatpush1.xpose.msra.mxu0 0.0
    %6862 = vmatprep.subr.mxu0 0.0
    %6863 = vmatpush1.xpose.msra.mxu0 0.0
    %6864 = vmatprep.subr.mxu0 0.0
    %6865 = vmatpush1.xpose.msra.mxu0 0.0
    %6866 = vmatprep.subr.mxu0 0.0
    %v6867 = vand.u32 %v6758, 4294901760
    %v6868 = vsub.f32 %v6758, %v6867
    %v6869 = vand.u32 %v6868, 4294901760
    %v6870 = vsub.f32 %v6868, %v6869
    %v6871 = vand.u32 %v6870, 4294901760
    %6872 = vmatpush1.xpose.msra.mxu0 %v6871
    %6873 = vmatprep.subr.mxu0 0.0
    %6874 = vmatpush2.xpose.msra.mxu0 0.0
    %6875 = vmatprep.subr.mxu0 0.0
    %6876 = vmatpush2.xpose.msra.mxu0 0.0
    %6877 = vmatprep.subr.mxu0 0.0
    %6878 = vmatpush2.xpose.msra.mxu0 0.0
    %6879 = vmatprep.subr.mxu0 0.0
    %6880 = vmatpush2.xpose.msra.mxu0 0.0
    %6881 = vmatprep.subr.mxu0 0.0
    %6882 = vmatpush2.xpose.msra.mxu0 0.0
    %6883 = vmatprep.subr.mxu0 0.0
    %6884 = vmatpush2.xpose.msra.mxu0 0.0
    %6885 = vmatprep.subr.mxu0 0.0
    %6886 = vmatpush2.xpose.msra.mxu0 0.0
    %6887 = vmatprep.subr.mxu0 0.0
    %6888 = vmatpush2.xpose.msra.mxu0 0.0
    %6889 = vmatprep.subr.mxu0 0.0
    %6890 = vmatpush2.xpose.msra.mxu0 0.0
    %6891 = vmatprep.subr.mxu0 0.0
    %6892 = vmatpush2.xpose.msra.mxu0 0.0
    %6893 = vmatprep.subr.mxu0 0.0
    %6894 = vmatpush2.xpose.msra.mxu0 0.0
    %6895 = vmatprep.subr.mxu0 0.0
    %6896 = vmatpush2.xpose.msra.mxu0 0.0
    %6897 = vmatprep.subr.mxu0 0.0
    %6898 = vmatpush2.xpose.msra.mxu0 0.0
    %6899 = vmatprep.subr.mxu0 0.0
    %6900 = vmatpush2.xpose.msra.mxu0 0.0
    %6901 = vmatprep.subr.mxu0 0.0
    %6902 = vmatpush2.xpose.msra.mxu0 0.0
    %6903 = vmatprep.subr.mxu0 0.0
    %6904 = vmatpush2.xpose.msra.mxu0 0.0
    %6905 = vmatprep.mubr.f32.mxu0 0.0
    %v6906 = vand.u32 %v6755, 4294901760
    %6907 = vmatmul.mubr.f32.gmra.mxu0 %v6906
    %v6908 = vpop.f32.mrf.mxu0
    %v6909 = vadd.f32 %v6833, %v6908
    %v6910 = vpop.f32.mrf.mxu0
    %6911 = vdwg.mxu0
    %6912 = vmatprep.subr.mxu0 0.0
    %6913 = vmatpush1.xpose.msra.mxu0 0.0
    %6914 = vmatprep.subr.mxu0 0.0
    %6915 = vmatpush1.xpose.msra.mxu0 0.0
    %6916 = vmatprep.subr.mxu0 0.0
    %6917 = vmatpush1.xpose.msra.mxu0 0.0
    %6918 = vmatprep.subr.mxu0 0.0
    %6919 = vmatpush1.xpose.msra.mxu0 0.0
    %6920 = vmatprep.subr.mxu0 0.0
    %6921 = vmatpush1.xpose.msra.mxu0 0.0
    %6922 = vmatprep.subr.mxu0 0.0
    %6923 = vmatpush1.xpose.msra.mxu0 0.0
    %6924 = vmatprep.subr.mxu0 0.0
    %6925 = vmatpush1.xpose.msra.mxu0 0.0
    %6926 = vmatprep.subr.mxu0 0.0
    %6927 = vmatpush1.xpose.msra.mxu0 0.0
    %6928 = vmatprep.subr.mxu0 0.0
    %6929 = vmatpush1.xpose.msra.mxu0 0.0
    %6930 = vmatprep.subr.mxu0 0.0
    %6931 = vmatpush1.xpose.msra.mxu0 0.0
    %6932 = vmatprep.subr.mxu0 0.0
    %6933 = vmatpush1.xpose.msra.mxu0 0.0
    %6934 = vmatprep.subr.mxu0 0.0
    %6935 = vmatpush1.xpose.msra.mxu0 0.0
    %6936 = vmatprep.subr.mxu0 0.0
    %6937 = vmatpush1.xpose.msra.mxu0 0.0
    %6938 = vmatprep.subr.mxu0 0.0
    %6939 = vmatpush1.xpose.msra.mxu0 0.0
    %6940 = vmatprep.subr.mxu0 0.0
    %6941 = vmatpush1.xpose.msra.mxu0 0.0
    %6942 = vmatprep.subr.mxu0 0.0
    %v6943 = vand.u32 %v6758, 4294901760
    %v6944 = vsub.f32 %v6758, %v6943
    %6945 = vmatpush1.xpose.msra.mxu0 %v6944
    %6946 = vmatprep.subr.mxu0 0.0
    %6947 = vmatpush2.xpose.msra.mxu0 0.0
    %6948 = vmatprep.subr.mxu0 0.0
    %6949 = vmatpush2.xpose.msra.mxu0 0.0
    %6950 = vmatprep.subr.mxu0 0.0
    %6951 = vmatpush2.xpose.msra.mxu0 0.0
    %6952 = vmatprep.subr.mxu0 0.0
    %6953 = vmatpush2.xpose.msra.mxu0 0.0
    %6954 = vmatprep.subr.mxu0 0.0
    %6955 = vmatpush2.xpose.msra.mxu0 0.0
    %6956 = vmatprep.subr.mxu0 0.0
    %6957 = vmatpush2.xpose.msra.mxu0 0.0
    %6958 = vmatprep.subr.mxu0 0.0
    %6959 = vmatpush2.xpose.msra.mxu0 0.0
    %6960 = vmatprep.subr.mxu0 0.0
    %6961 = vmatpush2.xpose.msra.mxu0 0.0
    %6962 = vmatprep.subr.mxu0 0.0
    %6963 = vmatpush2.xpose.msra.mxu0 0.0
    %6964 = vmatprep.subr.mxu0 0.0
    %6965 = vmatpush2.xpose.msra.mxu0 0.0
    %6966 = vmatprep.subr.mxu0 0.0
    %6967 = vmatpush2.xpose.msra.mxu0 0.0
    %6968 = vmatprep.subr.mxu0 0.0
    %6969 = vmatpush2.xpose.msra.mxu0 0.0
    %6970 = vmatprep.subr.mxu0 0.0
    %6971 = vmatpush2.xpose.msra.mxu0 0.0
    %6972 = vmatprep.subr.mxu0 0.0
    %6973 = vmatpush2.xpose.msra.mxu0 0.0
    %6974 = vmatprep.subr.mxu0 0.0
    %6975 = vmatpush2.xpose.msra.mxu0 0.0
    %6976 = vmatprep.subr.mxu0 0.0
    %6977 = vmatpush2.xpose.msra.mxu0 0.0
    %6978 = vmatprep.mubr.f32.mxu0 0.0
    %v6979 = vand.u32 %v6755, 4294901760
    %v6980 = vsub.f32 %v6755, %v6979
    %6981 = vmatmul.mubr.f32.gmra.mxu0 %v6980
    %v6982 = vpop.f32.mrf.mxu0
    %v6983 = vadd.f32 %v6909, %v6982
    %v6984 = vpop.f32.mrf.mxu0
    %6985 = vdwg.mxu0
    %6986 = vmatprep.subr.mxu0 0.0
    %6987 = vmatpush1.xpose.msra.mxu0 0.0
    %6988 = vmatprep.subr.mxu0 0.0
    %6989 = vmatpush1.xpose.msra.mxu0 0.0
    %6990 = vmatprep.subr.mxu0 0.0
    %6991 = vmatpush1.xpose.msra.mxu0 0.0
    %6992 = vmatprep.subr.mxu0 0.0
    %6993 = vmatpush1.xpose.msra.mxu0 0.0
    %6994 = vmatprep.subr.mxu0 0.0
    %6995 = vmatpush1.xpose.msra.mxu0 0.0
    %6996 = vmatprep.subr.mxu0 0.0
    %6997 = vmatpush1.xpose.msra.mxu0 0.0
    %6998 = vmatprep.subr.mxu0 0.0
    %6999 = vmatpush1.xpose.msra.mxu0 0.0
    %7000 = vmatprep.subr.mxu0 0.0
    %7001 = vmatpush1.xpose.msra.mxu0 0.0
    %7002 = vmatprep.subr.mxu0 0.0
    %7003 = vmatpush1.xpose.msra.mxu0 0.0
    %7004 = vmatprep.subr.mxu0 0.0
    %7005 = vmatpush1.xpose.msra.mxu0 0.0
    %7006 = vmatprep.subr.mxu0 0.0
    %7007 = vmatpush1.xpose.msra.mxu0 0.0
    %7008 = vmatprep.subr.mxu0 0.0
    %7009 = vmatpush1.xpose.msra.mxu0 0.0
    %7010 = vmatprep.subr.mxu0 0.0
    %7011 = vmatpush1.xpose.msra.mxu0 0.0
    %7012 = vmatprep.subr.mxu0 0.0
    %7013 = vmatpush1.xpose.msra.mxu0 0.0
    %7014 = vmatprep.subr.mxu0 0.0
    %7015 = vmatpush1.xpose.msra.mxu0 0.0
    %7016 = vmatprep.subr.mxu0 0.0
    %v7017 = vand.u32 %v6758, 4294901760
    %7018 = vmatpush1.xpose.msra.mxu0 %v7017
    %7019 = vmatprep.subr.mxu0 0.0
    %7020 = vmatpush2.xpose.msra.mxu0 0.0
    %7021 = vmatprep.subr.mxu0 0.0
    %7022 = vmatpush2.xpose.msra.mxu0 0.0
    %7023 = vmatprep.subr.mxu0 0.0
    %7024 = vmatpush2.xpose.msra.mxu0 0.0
    %7025 = vmatprep.subr.mxu0 0.0
    %7026 = vmatpush2.xpose.msra.mxu0 0.0
    %7027 = vmatprep.subr.mxu0 0.0
    %7028 = vmatpush2.xpose.msra.mxu0 0.0
    %7029 = vmatprep.subr.mxu0 0.0
    %7030 = vmatpush2.xpose.msra.mxu0 0.0
    %7031 = vmatprep.subr.mxu0 0.0
    %7032 = vmatpush2.xpose.msra.mxu0 0.0
    %7033 = vmatprep.subr.mxu0 0.0
    %7034 = vmatpush2.xpose.msra.mxu0 0.0
    %7035 = vmatprep.subr.mxu0 0.0
    %7036 = vmatpush2.xpose.msra.mxu0 0.0
    %7037 = vmatprep.subr.mxu0 0.0
    %7038 = vmatpush2.xpose.msra.mxu0 0.0
    %7039 = vmatprep.subr.mxu0 0.0
    %7040 = vmatpush2.xpose.msra.mxu0 0.0
    %7041 = vmatprep.subr.mxu0 0.0
    %7042 = vmatpush2.xpose.msra.mxu0 0.0
    %7043 = vmatprep.subr.mxu0 0.0
    %7044 = vmatpush2.xpose.msra.mxu0 0.0
    %7045 = vmatprep.subr.mxu0 0.0
    %7046 = vmatpush2.xpose.msra.mxu0 0.0
    %7047 = vmatprep.subr.mxu0 0.0
    %7048 = vmatpush2.xpose.msra.mxu0 0.0
    %7049 = vmatprep.subr.mxu0 0.0
    %7050 = vmatpush2.xpose.msra.mxu0 0.0
    %7051 = vmatprep.mubr.f32.mxu0 0.0
    %v7052 = vand.u32 %v6755, 4294901760
    %v7053 = vsub.f32 %v6755, %v7052
    %v7054 = vand.u32 %v7053, 4294901760
    %7055 = vmatmul.mubr.f32.gmra.mxu0 %v7054
    %v7056 = vpop.f32.mrf.mxu0
    %v7057 = vadd.f32 %v6983, %v7056
    %v7058 = vpop.f32.mrf.mxu0
    %7059 = vdwg.mxu0
    %7060 = vmatprep.subr.mxu0 0.0
    %7061 = vmatpush1.xpose.msra.mxu0 0.0
    %7062 = vmatprep.subr.mxu0 0.0
    %7063 = vmatpush1.xpose.msra.mxu0 0.0
    %7064 = vmatprep.subr.mxu0 0.0
    %7065 = vmatpush1.xpose.msra.mxu0 0.0
    %7066 = vmatprep.subr.mxu0 0.0
    %7067 = vmatpush1.xpose.msra.mxu0 0.0
    %7068 = vmatprep.subr.mxu0 0.0
    %7069 = vmatpush1.xpose.msra.mxu0 0.0
    %7070 = vmatprep.subr.mxu0 0.0
    %7071 = vmatpush1.xpose.msra.mxu0 0.0
    %7072 = vmatprep.subr.mxu0 0.0
    %7073 = vmatpush1.xpose.msra.mxu0 0.0
    %7074 = vmatprep.subr.mxu0 0.0
    %7075 = vmatpush1.xpose.msra.mxu0 0.0
    %7076 = vmatprep.subr.mxu0 0.0
    %7077 = vmatpush1.xpose.msra.mxu0 0.0
    %7078 = vmatprep.subr.mxu0 0.0
    %7079 = vmatpush1.xpose.msra.mxu0 0.0
    %7080 = vmatprep.subr.mxu0 0.0
    %7081 = vmatpush1.xpose.msra.mxu0 0.0
    %7082 = vmatprep.subr.mxu0 0.0
    %7083 = vmatpush1.xpose.msra.mxu0 0.0
    %7084 = vmatprep.subr.mxu0 0.0
    %7085 = vmatpush1.xpose.msra.mxu0 0.0
    %7086 = vmatprep.subr.mxu0 0.0
    %7087 = vmatpush1.xpose.msra.mxu0 0.0
    %7088 = vmatprep.subr.mxu0 0.0
    %7089 = vmatpush1.xpose.msra.mxu0 0.0
    %7090 = vmatprep.subr.mxu0 0.0
    %v7091 = vand.u32 %v6758, 4294901760
    %v7092 = vsub.f32 %v6758, %v7091
    %v7093 = vand.u32 %v7092, 4294901760
    %7094 = vmatpush1.xpose.msra.mxu0 %v7093
    %7095 = vmatprep.subr.mxu0 0.0
    %7096 = vmatpush2.xpose.msra.mxu0 0.0
    %7097 = vmatprep.subr.mxu0 0.0
    %7098 = vmatpush2.xpose.msra.mxu0 0.0
    %7099 = vmatprep.subr.mxu0 0.0
    %7100 = vmatpush2.xpose.msra.mxu0 0.0
    %7101 = vmatprep.subr.mxu0 0.0
    %7102 = vmatpush2.xpose.msra.mxu0 0.0
    %7103 = vmatprep.subr.mxu0 0.0
    %7104 = vmatpush2.xpose.msra.mxu0 0.0
    %7105 = vmatprep.subr.mxu0 0.0
    %7106 = vmatpush2.xpose.msra.mxu0 0.0
    %7107 = vmatprep.subr.mxu0 0.0
    %7108 = vmatpush2.xpose.msra.mxu0 0.0
    %7109 = vmatprep.subr.mxu0 0.0
    %7110 = vmatpush2.xpose.msra.mxu0 0.0
    %7111 = vmatprep.subr.mxu0 0.0
    %7112 = vmatpush2.xpose.msra.mxu0 0.0
    %7113 = vmatprep.subr.mxu0 0.0
    %7114 = vmatpush2.xpose.msra.mxu0 0.0
    %7115 = vmatprep.subr.mxu0 0.0
    %7116 = vmatpush2.xpose.msra.mxu0 0.0
    %7117 = vmatprep.subr.mxu0 0.0
    %7118 = vmatpush2.xpose.msra.mxu0 0.0
    %7119 = vmatprep.subr.mxu0 0.0
    %7120 = vmatpush2.xpose.msra.mxu0 0.0
    %7121 = vmatprep.subr.mxu0 0.0
    %7122 = vmatpush2.xpose.msra.mxu0 0.0
    %7123 = vmatprep.subr.mxu0 0.0
    %7124 = vmatpush2.xpose.msra.mxu0 0.0
    %7125 = vmatprep.subr.mxu0 0.0
    %7126 = vmatpush2.xpose.msra.mxu0 0.0
    %7127 = vmatprep.mubr.f32.mxu0 0.0
    %v7128 = vand.u32 %v6755, 4294901760
    %7129 = vmatmul.mubr.f32.gmra.mxu0 %v7128
    %v7130 = vpop.f32.mrf.mxu0
    %v7131 = vadd.f32 %v7057, %v7130
    %v7132 = vpop.f32.mrf.mxu0
    %7133 = vdwg.mxu0
    %7134 = vmatprep.subr.mxu0 0.0
    %7135 = vmatpush1.xpose.msra.mxu0 0.0
    %7136 = vmatprep.subr.mxu0 0.0
    %7137 = vmatpush1.xpose.msra.mxu0 0.0
    %7138 = vmatprep.subr.mxu0 0.0
    %7139 = vmatpush1.xpose.msra.mxu0 0.0
    %7140 = vmatprep.subr.mxu0 0.0
    %7141 = vmatpush1.xpose.msra.mxu0 0.0
    %7142 = vmatprep.subr.mxu0 0.0
    %7143 = vmatpush1.xpose.msra.mxu0 0.0
    %7144 = vmatprep.subr.mxu0 0.0
    %7145 = vmatpush1.xpose.msra.mxu0 0.0
    %7146 = vmatprep.subr.mxu0 0.0
    %7147 = vmatpush1.xpose.msra.mxu0 0.0
    %7148 = vmatprep.subr.mxu0 0.0
    %7149 = vmatpush1.xpose.msra.mxu0 0.0
    %7150 = vmatprep.subr.mxu0 0.0
    %7151 = vmatpush1.xpose.msra.mxu0 0.0
    %7152 = vmatprep.subr.mxu0 0.0
    %7153 = vmatpush1.xpose.msra.mxu0 0.0
    %7154 = vmatprep.subr.mxu0 0.0
    %7155 = vmatpush1.xpose.msra.mxu0 0.0
    %7156 = vmatprep.subr.mxu0 0.0
    %7157 = vmatpush1.xpose.msra.mxu0 0.0
    %7158 = vmatprep.subr.mxu0 0.0
    %7159 = vmatpush1.xpose.msra.mxu0 0.0
    %7160 = vmatprep.subr.mxu0 0.0
    %7161 = vmatpush1.xpose.msra.mxu0 0.0
    %7162 = vmatprep.subr.mxu0 0.0
    %7163 = vmatpush1.xpose.msra.mxu0 0.0
    %7164 = vmatprep.subr.mxu0 0.0
    %v7165 = vand.u32 %v6758, 4294901760
    %7166 = vmatpush1.xpose.msra.mxu0 %v7165
    %7167 = vmatprep.subr.mxu0 0.0
    %7168 = vmatpush2.xpose.msra.mxu0 0.0
    %7169 = vmatprep.subr.mxu0 0.0
    %7170 = vmatpush2.xpose.msra.mxu0 0.0
    %7171 = vmatprep.subr.mxu0 0.0
    %7172 = vmatpush2.xpose.msra.mxu0 0.0
    %7173 = vmatprep.subr.mxu0 0.0
    %7174 = vmatpush2.xpose.msra.mxu0 0.0
    %7175 = vmatprep.subr.mxu0 0.0
    %7176 = vmatpush2.xpose.msra.mxu0 0.0
    %7177 = vmatprep.subr.mxu0 0.0
    %7178 = vmatpush2.xpose.msra.mxu0 0.0
    %7179 = vmatprep.subr.mxu0 0.0
    %7180 = vmatpush2.xpose.msra.mxu0 0.0
    %7181 = vmatprep.subr.mxu0 0.0
    %7182 = vmatpush2.xpose.msra.mxu0 0.0
    %7183 = vmatprep.subr.mxu0 0.0
    %7184 = vmatpush2.xpose.msra.mxu0 0.0
    %7185 = vmatprep.subr.mxu0 0.0
    %7186 = vmatpush2.xpose.msra.mxu0 0.0
    %7187 = vmatprep.subr.mxu0 0.0
    %7188 = vmatpush2.xpose.msra.mxu0 0.0
    %7189 = vmatprep.subr.mxu0 0.0
    %7190 = vmatpush2.xpose.msra.mxu0 0.0
    %7191 = vmatprep.subr.mxu0 0.0
    %7192 = vmatpush2.xpose.msra.mxu0 0.0
    %7193 = vmatprep.subr.mxu0 0.0
    %7194 = vmatpush2.xpose.msra.mxu0 0.0
    %7195 = vmatprep.subr.mxu0 0.0
    %7196 = vmatpush2.xpose.msra.mxu0 0.0
    %7197 = vmatprep.subr.mxu0 0.0
    %7198 = vmatpush2.xpose.msra.mxu0 0.0
    %7199 = vmatprep.mubr.f32.mxu0 0.0
    %v7200 = vand.u32 %v6755, 4294901760
    %7201 = vmatmul.mubr.f32.gmra.mxu0 %v7200
    %v7202 = vpop.f32.mrf.mxu0
    %v7203 = vadd.f32 %v7131, %v7202
    %v7204 = vpop.f32.mrf.mxu0
    %7205 = vdwg.mxu0
    %v7207 = vsel %vm38, %v28, 0
    %v7210 = vsel %vm38, %v4041, 0
    %7212 = vmatprep.subr.mxu0 0.0
    %7213 = vmatpush1.xpose.msra.mxu0 0.0
    %7214 = vmatprep.subr.mxu0 0.0
    %7215 = vmatpush1.xpose.msra.mxu0 0.0
    %7216 = vmatprep.subr.mxu0 0.0
    %7217 = vmatpush1.xpose.msra.mxu0 0.0
    %7218 = vmatprep.subr.mxu0 0.0
    %7219 = vmatpush1.xpose.msra.mxu0 0.0
    %7220 = vmatprep.subr.mxu0 0.0
    %7221 = vmatpush1.xpose.msra.mxu0 0.0
    %7222 = vmatprep.subr.mxu0 0.0
    %7223 = vmatpush1.xpose.msra.mxu0 0.0
    %7224 = vmatprep.subr.mxu0 0.0
    %7225 = vmatpush1.xpose.msra.mxu0 0.0
    %7226 = vmatprep.subr.mxu0 0.0
    %7227 = vmatpush1.xpose.msra.mxu0 0.0
    %7228 = vmatprep.subr.mxu0 0.0
    %7229 = vmatpush1.xpose.msra.mxu0 0.0
    %7230 = vmatprep.subr.mxu0 0.0
    %7231 = vmatpush1.xpose.msra.mxu0 0.0
    %7232 = vmatprep.subr.mxu0 0.0
    %7233 = vmatpush1.xpose.msra.mxu0 0.0
    %7234 = vmatprep.subr.mxu0 0.0
    %7235 = vmatpush1.xpose.msra.mxu0 0.0
    %7236 = vmatprep.subr.mxu0 0.0
    %7237 = vmatpush1.xpose.msra.mxu0 0.0
    %7238 = vmatprep.subr.mxu0 0.0
    %7239 = vmatpush1.xpose.msra.mxu0 0.0
    %7240 = vmatprep.subr.mxu0 0.0
    %7241 = vmatpush1.xpose.msra.mxu0 0.0
    %7242 = vmatprep.subr.mxu0 0.0
    %v7243 = vand.u32 %v7210, 4294901760
    %7244 = vmatpush1.xpose.msra.mxu0 %v7243
    %7245 = vmatprep.subr.mxu0 0.0
    %7246 = vmatpush2.xpose.msra.mxu0 0.0
    %7247 = vmatprep.subr.mxu0 0.0
    %7248 = vmatpush2.xpose.msra.mxu0 0.0
    %7249 = vmatprep.subr.mxu0 0.0
    %7250 = vmatpush2.xpose.msra.mxu0 0.0
    %7251 = vmatprep.subr.mxu0 0.0
    %7252 = vmatpush2.xpose.msra.mxu0 0.0
    %7253 = vmatprep.subr.mxu0 0.0
    %7254 = vmatpush2.xpose.msra.mxu0 0.0
    %7255 = vmatprep.subr.mxu0 0.0
    %7256 = vmatpush2.xpose.msra.mxu0 0.0
    %7257 = vmatprep.subr.mxu0 0.0
    %7258 = vmatpush2.xpose.msra.mxu0 0.0
    %7259 = vmatprep.subr.mxu0 0.0
    %7260 = vmatpush2.xpose.msra.mxu0 0.0
    %7261 = vmatprep.subr.mxu0 0.0
    %7262 = vmatpush2.xpose.msra.mxu0 0.0
    %7263 = vmatprep.subr.mxu0 0.0
    %7264 = vmatpush2.xpose.msra.mxu0 0.0
    %7265 = vmatprep.subr.mxu0 0.0
    %7266 = vmatpush2.xpose.msra.mxu0 0.0
    %7267 = vmatprep.subr.mxu0 0.0
    %7268 = vmatpush2.xpose.msra.mxu0 0.0
    %7269 = vmatprep.subr.mxu0 0.0
    %7270 = vmatpush2.xpose.msra.mxu0 0.0
    %7271 = vmatprep.subr.mxu0 0.0
    %7272 = vmatpush2.xpose.msra.mxu0 0.0
    %7273 = vmatprep.subr.mxu0 0.0
    %7274 = vmatpush2.xpose.msra.mxu0 0.0
    %7275 = vmatprep.subr.mxu0 0.0
    %7276 = vmatpush2.xpose.msra.mxu0 0.0
    %7277 = vmatprep.mubr.f32.mxu0 0.0
    %v7278 = vand.u32 %v7207, 4294901760
    %v7279 = vsub.f32 %v7207, %v7278
    %v7280 = vand.u32 %v7279, 4294901760
    %v7281 = vsub.f32 %v7279, %v7280
    %v7282 = vand.u32 %v7281, 4294901760
    %7283 = vmatmul.mubr.f32.gmra.mxu0 %v7282
    %v7284 = vpop.f32.mrf.mxu0
    %v7285 = vadd.f32 0.0, %v7284
    %v7286 = vpop.f32.mrf.mxu0
    %7287 = vdwg.mxu0
    %7288 = vmatprep.subr.mxu0 0.0
    %7289 = vmatpush1.xpose.msra.mxu0 0.0
    %7290 = vmatprep.subr.mxu0 0.0
    %7291 = vmatpush1.xpose.msra.mxu0 0.0
    %7292 = vmatprep.subr.mxu0 0.0
    %7293 = vmatpush1.xpose.msra.mxu0 0.0
    %7294 = vmatprep.subr.mxu0 0.0
    %7295 = vmatpush1.xpose.msra.mxu0 0.0
    %7296 = vmatprep.subr.mxu0 0.0
    %7297 = vmatpush1.xpose.msra.mxu0 0.0
    %7298 = vmatprep.subr.mxu0 0.0
    %7299 = vmatpush1.xpose.msra.mxu0 0.0
    %7300 = vmatprep.subr.mxu0 0.0
    %7301 = vmatpush1.xpose.msra.mxu0 0.0
    %7302 = vmatprep.subr.mxu0 0.0
    %7303 = vmatpush1.xpose.msra.mxu0 0.0
    %7304 = vmatprep.subr.mxu0 0.0
    %7305 = vmatpush1.xpose.msra.mxu0 0.0
    %7306 = vmatprep.subr.mxu0 0.0
    %7307 = vmatpush1.xpose.msra.mxu0 0.0
    %7308 = vmatprep.subr.mxu0 0.0
    %7309 = vmatpush1.xpose.msra.mxu0 0.0
    %7310 = vmatprep.subr.mxu0 0.0
    %7311 = vmatpush1.xpose.msra.mxu0 0.0
    %7312 = vmatprep.subr.mxu0 0.0
    %7313 = vmatpush1.xpose.msra.mxu0 0.0
    %7314 = vmatprep.subr.mxu0 0.0
    %7315 = vmatpush1.xpose.msra.mxu0 0.0
    %7316 = vmatprep.subr.mxu0 0.0
    %7317 = vmatpush1.xpose.msra.mxu0 0.0
    %7318 = vmatprep.subr.mxu0 0.0
    %v7319 = vand.u32 %v7210, 4294901760
    %v7320 = vsub.f32 %v7210, %v7319
    %v7321 = vand.u32 %v7320, 4294901760
    %v7322 = vsub.f32 %v7320, %v7321
    %v7323 = vand.u32 %v7322, 4294901760
    %7324 = vmatpush1.xpose.msra.mxu0 %v7323
    %7325 = vmatprep.subr.mxu0 0.0
    %7326 = vmatpush2.xpose.msra.mxu0 0.0
    %7327 = vmatprep.subr.mxu0 0.0
    %7328 = vmatpush2.xpose.msra.mxu0 0.0
    %7329 = vmatprep.subr.mxu0 0.0
    %7330 = vmatpush2.xpose.msra.mxu0 0.0
    %7331 = vmatprep.subr.mxu0 0.0
    %7332 = vmatpush2.xpose.msra.mxu0 0.0
    %7333 = vmatprep.subr.mxu0 0.0
    %7334 = vmatpush2.xpose.msra.mxu0 0.0
    %7335 = vmatprep.subr.mxu0 0.0
    %7336 = vmatpush2.xpose.msra.mxu0 0.0
    %7337 = vmatprep.subr.mxu0 0.0
    %7338 = vmatpush2.xpose.msra.mxu0 0.0
    %7339 = vmatprep.subr.mxu0 0.0
    %7340 = vmatpush2.xpose.msra.mxu0 0.0
    %7341 = vmatprep.subr.mxu0 0.0
    %7342 = vmatpush2.xpose.msra.mxu0 0.0
    %7343 = vmatprep.subr.mxu0 0.0
    %7344 = vmatpush2.xpose.msra.mxu0 0.0
    %7345 = vmatprep.subr.mxu0 0.0
    %7346 = vmatpush2.xpose.msra.mxu0 0.0
    %7347 = vmatprep.subr.mxu0 0.0
    %7348 = vmatpush2.xpose.msra.mxu0 0.0
    %7349 = vmatprep.subr.mxu0 0.0
    %7350 = vmatpush2.xpose.msra.mxu0 0.0
    %7351 = vmatprep.subr.mxu0 0.0
    %7352 = vmatpush2.xpose.msra.mxu0 0.0
    %7353 = vmatprep.subr.mxu0 0.0
    %7354 = vmatpush2.xpose.msra.mxu0 0.0
    %7355 = vmatprep.subr.mxu0 0.0
    %7356 = vmatpush2.xpose.msra.mxu0 0.0
    %7357 = vmatprep.mubr.f32.mxu0 0.0
    %v7358 = vand.u32 %v7207, 4294901760
    %7359 = vmatmul.mubr.f32.gmra.mxu0 %v7358
    %v7360 = vpop.f32.mrf.mxu0
    %v7361 = vadd.f32 %v7285, %v7360
    %v7362 = vpop.f32.mrf.mxu0
    %7363 = vdwg.mxu0
    %7364 = vmatprep.subr.mxu0 0.0
    %7365 = vmatpush1.xpose.msra.mxu0 0.0
    %7366 = vmatprep.subr.mxu0 0.0
    %7367 = vmatpush1.xpose.msra.mxu0 0.0
    %7368 = vmatprep.subr.mxu0 0.0
    %7369 = vmatpush1.xpose.msra.mxu0 0.0
    %7370 = vmatprep.subr.mxu0 0.0
    %7371 = vmatpush1.xpose.msra.mxu0 0.0
    %7372 = vmatprep.subr.mxu0 0.0
    %7373 = vmatpush1.xpose.msra.mxu0 0.0
    %7374 = vmatprep.subr.mxu0 0.0
    %7375 = vmatpush1.xpose.msra.mxu0 0.0
    %7376 = vmatprep.subr.mxu0 0.0
    %7377 = vmatpush1.xpose.msra.mxu0 0.0
    %7378 = vmatprep.subr.mxu0 0.0
    %7379 = vmatpush1.xpose.msra.mxu0 0.0
    %7380 = vmatprep.subr.mxu0 0.0
    %7381 = vmatpush1.xpose.msra.mxu0 0.0
    %7382 = vmatprep.subr.mxu0 0.0
    %7383 = vmatpush1.xpose.msra.mxu0 0.0
    %7384 = vmatprep.subr.mxu0 0.0
    %7385 = vmatpush1.xpose.msra.mxu0 0.0
    %7386 = vmatprep.subr.mxu0 0.0
    %7387 = vmatpush1.xpose.msra.mxu0 0.0
    %7388 = vmatprep.subr.mxu0 0.0
    %7389 = vmatpush1.xpose.msra.mxu0 0.0
    %7390 = vmatprep.subr.mxu0 0.0
    %7391 = vmatpush1.xpose.msra.mxu0 0.0
    %7392 = vmatprep.subr.mxu0 0.0
    %7393 = vmatpush1.xpose.msra.mxu0 0.0
    %7394 = vmatprep.subr.mxu0 0.0
    %v7395 = vand.u32 %v7210, 4294901760
    %v7396 = vsub.f32 %v7210, %v7395
    %7397 = vmatpush1.xpose.msra.mxu0 %v7396
    %7398 = vmatprep.subr.mxu0 0.0
    %7399 = vmatpush2.xpose.msra.mxu0 0.0
    %7400 = vmatprep.subr.mxu0 0.0
    %7401 = vmatpush2.xpose.msra.mxu0 0.0
    %7402 = vmatprep.subr.mxu0 0.0
    %7403 = vmatpush2.xpose.msra.mxu0 0.0
    %7404 = vmatprep.subr.mxu0 0.0
    %7405 = vmatpush2.xpose.msra.mxu0 0.0
    %7406 = vmatprep.subr.mxu0 0.0
    %7407 = vmatpush2.xpose.msra.mxu0 0.0
    %7408 = vmatprep.subr.mxu0 0.0
    %7409 = vmatpush2.xpose.msra.mxu0 0.0
    %7410 = vmatprep.subr.mxu0 0.0
    %7411 = vmatpush2.xpose.msra.mxu0 0.0
    %7412 = vmatprep.subr.mxu0 0.0
    %7413 = vmatpush2.xpose.msra.mxu0 0.0
    %7414 = vmatprep.subr.mxu0 0.0
    %7415 = vmatpush2.xpose.msra.mxu0 0.0
    %7416 = vmatprep.subr.mxu0 0.0
    %7417 = vmatpush2.xpose.msra.mxu0 0.0
    %7418 = vmatprep.subr.mxu0 0.0
    %7419 = vmatpush2.xpose.msra.mxu0 0.0
    %7420 = vmatprep.subr.mxu0 0.0
    %7421 = vmatpush2.xpose.msra.mxu0 0.0
    %7422 = vmatprep.subr.mxu0 0.0
    %7423 = vmatpush2.xpose.msra.mxu0 0.0
    %7424 = vmatprep.subr.mxu0 0.0
    %7425 = vmatpush2.xpose.msra.mxu0 0.0
    %7426 = vmatprep.subr.mxu0 0.0
    %7427 = vmatpush2.xpose.msra.mxu0 0.0
    %7428 = vmatprep.subr.mxu0 0.0
    %7429 = vmatpush2.xpose.msra.mxu0 0.0
    %7430 = vmatprep.mubr.f32.mxu0 0.0
    %v7431 = vand.u32 %v7207, 4294901760
    %v7432 = vsub.f32 %v7207, %v7431
    %7433 = vmatmul.mubr.f32.gmra.mxu0 %v7432
    %v7434 = vpop.f32.mrf.mxu0
    %v7435 = vadd.f32 %v7361, %v7434
    %v7436 = vpop.f32.mrf.mxu0
    %7437 = vdwg.mxu0
    %7438 = vmatprep.subr.mxu0 0.0
    %7439 = vmatpush1.xpose.msra.mxu0 0.0
    %7440 = vmatprep.subr.mxu0 0.0
    %7441 = vmatpush1.xpose.msra.mxu0 0.0
    %7442 = vmatprep.subr.mxu0 0.0
    %7443 = vmatpush1.xpose.msra.mxu0 0.0
    %7444 = vmatprep.subr.mxu0 0.0
    %7445 = vmatpush1.xpose.msra.mxu0 0.0
    %7446 = vmatprep.subr.mxu0 0.0
    %7447 = vmatpush1.xpose.msra.mxu0 0.0
    %7448 = vmatprep.subr.mxu0 0.0
    %7449 = vmatpush1.xpose.msra.mxu0 0.0
    %7450 = vmatprep.subr.mxu0 0.0
    %7451 = vmatpush1.xpose.msra.mxu0 0.0
    %7452 = vmatprep.subr.mxu0 0.0
    %7453 = vmatpush1.xpose.msra.mxu0 0.0
    %7454 = vmatprep.subr.mxu0 0.0
    %7455 = vmatpush1.xpose.msra.mxu0 0.0
    %7456 = vmatprep.subr.mxu0 0.0
    %7457 = vmatpush1.xpose.msra.mxu0 0.0
    %7458 = vmatprep.subr.mxu0 0.0
    %7459 = vmatpush1.xpose.msra.mxu0 0.0
    %7460 = vmatprep.subr.mxu0 0.0
    %7461 = vmatpush1.xpose.msra.mxu0 0.0
    %7462 = vmatprep.subr.mxu0 0.0
    %7463 = vmatpush1.xpose.msra.mxu0 0.0
    %7464 = vmatprep.subr.mxu0 0.0
    %7465 = vmatpush1.xpose.msra.mxu0 0.0
    %7466 = vmatprep.subr.mxu0 0.0
    %7467 = vmatpush1.xpose.msra.mxu0 0.0
    %7468 = vmatprep.subr.mxu0 0.0
    %v7469 = vand.u32 %v7210, 4294901760
    %7470 = vmatpush1.xpose.msra.mxu0 %v7469
    %7471 = vmatprep.subr.mxu0 0.0
    %7472 = vmatpush2.xpose.msra.mxu0 0.0
    %7473 = vmatprep.subr.mxu0 0.0
    %7474 = vmatpush2.xpose.msra.mxu0 0.0
    %7475 = vmatprep.subr.mxu0 0.0
    %7476 = vmatpush2.xpose.msra.mxu0 0.0
    %7477 = vmatprep.subr.mxu0 0.0
    %7478 = vmatpush2.xpose.msra.mxu0 0.0
    %7479 = vmatprep.subr.mxu0 0.0
    %7480 = vmatpush2.xpose.msra.mxu0 0.0
    %7481 = vmatprep.subr.mxu0 0.0
    %7482 = vmatpush2.xpose.msra.mxu0 0.0
    %7483 = vmatprep.subr.mxu0 0.0
    %7484 = vmatpush2.xpose.msra.mxu0 0.0
    %7485 = vmatprep.subr.mxu0 0.0
    %7486 = vmatpush2.xpose.msra.mxu0 0.0
    %7487 = vmatprep.subr.mxu0 0.0
    %7488 = vmatpush2.xpose.msra.mxu0 0.0
    %7489 = vmatprep.subr.mxu0 0.0
    %7490 = vmatpush2.xpose.msra.mxu0 0.0
    %7491 = vmatprep.subr.mxu0 0.0
    %7492 = vmatpush2.xpose.msra.mxu0 0.0
    %7493 = vmatprep.subr.mxu0 0.0
    %7494 = vmatpush2.xpose.msra.mxu0 0.0
    %7495 = vmatprep.subr.mxu0 0.0
    %7496 = vmatpush2.xpose.msra.mxu0 0.0
    %7497 = vmatprep.subr.mxu0 0.0
    %7498 = vmatpush2.xpose.msra.mxu0 0.0
    %7499 = vmatprep.subr.mxu0 0.0
    %7500 = vmatpush2.xpose.msra.mxu0 0.0
    %7501 = vmatprep.subr.mxu0 0.0
    %7502 = vmatpush2.xpose.msra.mxu0 0.0
    %7503 = vmatprep.mubr.f32.mxu0 0.0
    %v7504 = vand.u32 %v7207, 4294901760
    %v7505 = vsub.f32 %v7207, %v7504
    %v7506 = vand.u32 %v7505, 4294901760
    %7507 = vmatmul.mubr.f32.gmra.mxu0 %v7506
    %v7508 = vpop.f32.mrf.mxu0
    %v7509 = vadd.f32 %v7435, %v7508
    %v7510 = vpop.f32.mrf.mxu0
    %7511 = vdwg.mxu0
    %7512 = vmatprep.subr.mxu0 0.0
    %7513 = vmatpush1.xpose.msra.mxu0 0.0
    %7514 = vmatprep.subr.mxu0 0.0
    %7515 = vmatpush1.xpose.msra.mxu0 0.0
    %7516 = vmatprep.subr.mxu0 0.0
    %7517 = vmatpush1.xpose.msra.mxu0 0.0
    %7518 = vmatprep.subr.mxu0 0.0
    %7519 = vmatpush1.xpose.msra.mxu0 0.0
    %7520 = vmatprep.subr.mxu0 0.0
    %7521 = vmatpush1.xpose.msra.mxu0 0.0
    %7522 = vmatprep.subr.mxu0 0.0
    %7523 = vmatpush1.xpose.msra.mxu0 0.0
    %7524 = vmatprep.subr.mxu0 0.0
    %7525 = vmatpush1.xpose.msra.mxu0 0.0
    %7526 = vmatprep.subr.mxu0 0.0
    %7527 = vmatpush1.xpose.msra.mxu0 0.0
    %7528 = vmatprep.subr.mxu0 0.0
    %7529 = vmatpush1.xpose.msra.mxu0 0.0
    %7530 = vmatprep.subr.mxu0 0.0
    %7531 = vmatpush1.xpose.msra.mxu0 0.0
    %7532 = vmatprep.subr.mxu0 0.0
    %7533 = vmatpush1.xpose.msra.mxu0 0.0
    %7534 = vmatprep.subr.mxu0 0.0
    %7535 = vmatpush1.xpose.msra.mxu0 0.0
    %7536 = vmatprep.subr.mxu0 0.0
    %7537 = vmatpush1.xpose.msra.mxu0 0.0
    %7538 = vmatprep.subr.mxu0 0.0
    %7539 = vmatpush1.xpose.msra.mxu0 0.0
    %7540 = vmatprep.subr.mxu0 0.0
    %7541 = vmatpush1.xpose.msra.mxu0 0.0
    %7542 = vmatprep.subr.mxu0 0.0
    %v7543 = vand.u32 %v7210, 4294901760
    %v7544 = vsub.f32 %v7210, %v7543
    %v7545 = vand.u32 %v7544, 4294901760
    %7546 = vmatpush1.xpose.msra.mxu0 %v7545
    %7547 = vmatprep.subr.mxu0 0.0
    %7548 = vmatpush2.xpose.msra.mxu0 0.0
    %7549 = vmatprep.subr.mxu0 0.0
    %7550 = vmatpush2.xpose.msra.mxu0 0.0
    %7551 = vmatprep.subr.mxu0 0.0
    %7552 = vmatpush2.xpose.msra.mxu0 0.0
    %7553 = vmatprep.subr.mxu0 0.0
    %7554 = vmatpush2.xpose.msra.mxu0 0.0
    %7555 = vmatprep.subr.mxu0 0.0
    %7556 = vmatpush2.xpose.msra.mxu0 0.0
    %7557 = vmatprep.subr.mxu0 0.0
    %7558 = vmatpush2.xpose.msra.mxu0 0.0
    %7559 = vmatprep.subr.mxu0 0.0
    %7560 = vmatpush2.xpose.msra.mxu0 0.0
    %7561 = vmatprep.subr.mxu0 0.0
    %7562 = vmatpush2.xpose.msra.mxu0 0.0
    %7563 = vmatprep.subr.mxu0 0.0
    %7564 = vmatpush2.xpose.msra.mxu0 0.0
    %7565 = vmatprep.subr.mxu0 0.0
    %7566 = vmatpush2.xpose.msra.mxu0 0.0
    %7567 = vmatprep.subr.mxu0 0.0
    %7568 = vmatpush2.xpose.msra.mxu0 0.0
    %7569 = vmatprep.subr.mxu0 0.0
    %7570 = vmatpush2.xpose.msra.mxu0 0.0
    %7571 = vmatprep.subr.mxu0 0.0
    %7572 = vmatpush2.xpose.msra.mxu0 0.0
    %7573 = vmatprep.subr.mxu0 0.0
    %7574 = vmatpush2.xpose.msra.mxu0 0.0
    %7575 = vmatprep.subr.mxu0 0.0
    %7576 = vmatpush2.xpose.msra.mxu0 0.0
    %7577 = vmatprep.subr.mxu0 0.0
    %7578 = vmatpush2.xpose.msra.mxu0 0.0
    %7579 = vmatprep.mubr.f32.mxu0 0.0
    %v7580 = vand.u32 %v7207, 4294901760
    %7581 = vmatmul.mubr.f32.gmra.mxu0 %v7580
    %v7582 = vpop.f32.mrf.mxu0
    %v7583 = vadd.f32 %v7509, %v7582
    %v7584 = vpop.f32.mrf.mxu0
    %7585 = vdwg.mxu0
    %7586 = vmatprep.subr.mxu0 0.0
    %7587 = vmatpush1.xpose.msra.mxu0 0.0
    %7588 = vmatprep.subr.mxu0 0.0
    %7589 = vmatpush1.xpose.msra.mxu0 0.0
    %7590 = vmatprep.subr.mxu0 0.0
    %7591 = vmatpush1.xpose.msra.mxu0 0.0
    %7592 = vmatprep.subr.mxu0 0.0
    %7593 = vmatpush1.xpose.msra.mxu0 0.0
    %7594 = vmatprep.subr.mxu0 0.0
    %7595 = vmatpush1.xpose.msra.mxu0 0.0
    %7596 = vmatprep.subr.mxu0 0.0
    %7597 = vmatpush1.xpose.msra.mxu0 0.0
    %7598 = vmatprep.subr.mxu0 0.0
    %7599 = vmatpush1.xpose.msra.mxu0 0.0
    %7600 = vmatprep.subr.mxu0 0.0
    %7601 = vmatpush1.xpose.msra.mxu0 0.0
    %7602 = vmatprep.subr.mxu0 0.0
    %7603 = vmatpush1.xpose.msra.mxu0 0.0
    %7604 = vmatprep.subr.mxu0 0.0
    %7605 = vmatpush1.xpose.msra.mxu0 0.0
    %7606 = vmatprep.subr.mxu0 0.0
    %7607 = vmatpush1.xpose.msra.mxu0 0.0
    %7608 = vmatprep.subr.mxu0 0.0
    %7609 = vmatpush1.xpose.msra.mxu0 0.0
    %7610 = vmatprep.subr.mxu0 0.0
    %7611 = vmatpush1.xpose.msra.mxu0 0.0
    %7612 = vmatprep.subr.mxu0 0.0
    %7613 = vmatpush1.xpose.msra.mxu0 0.0
    %7614 = vmatprep.subr.mxu0 0.0
    %7615 = vmatpush1.xpose.msra.mxu0 0.0
    %7616 = vmatprep.subr.mxu0 0.0
    %v7617 = vand.u32 %v7210, 4294901760
    %7618 = vmatpush1.xpose.msra.mxu0 %v7617
    %7619 = vmatprep.subr.mxu0 0.0
    %7620 = vmatpush2.xpose.msra.mxu0 0.0
    %7621 = vmatprep.subr.mxu0 0.0
    %7622 = vmatpush2.xpose.msra.mxu0 0.0
    %7623 = vmatprep.subr.mxu0 0.0
    %7624 = vmatpush2.xpose.msra.mxu0 0.0
    %7625 = vmatprep.subr.mxu0 0.0
    %7626 = vmatpush2.xpose.msra.mxu0 0.0
    %7627 = vmatprep.subr.mxu0 0.0
    %7628 = vmatpush2.xpose.msra.mxu0 0.0
    %7629 = vmatprep.subr.mxu0 0.0
    %7630 = vmatpush2.xpose.msra.mxu0 0.0
    %7631 = vmatprep.subr.mxu0 0.0
    %7632 = vmatpush2.xpose.msra.mxu0 0.0
    %7633 = vmatprep.subr.mxu0 0.0
    %7634 = vmatpush2.xpose.msra.mxu0 0.0
    %7635 = vmatprep.subr.mxu0 0.0
    %7636 = vmatpush2.xpose.msra.mxu0 0.0
    %7637 = vmatprep.subr.mxu0 0.0
    %7638 = vmatpush2.xpose.msra.mxu0 0.0
    %7639 = vmatprep.subr.mxu0 0.0
    %7640 = vmatpush2.xpose.msra.mxu0 0.0
    %7641 = vmatprep.subr.mxu0 0.0
    %7642 = vmatpush2.xpose.msra.mxu0 0.0
    %7643 = vmatprep.subr.mxu0 0.0
    %7644 = vmatpush2.xpose.msra.mxu0 0.0
    %7645 = vmatprep.subr.mxu0 0.0
    %7646 = vmatpush2.xpose.msra.mxu0 0.0
    %7647 = vmatprep.subr.mxu0 0.0
    %7648 = vmatpush2.xpose.msra.mxu0 0.0
    %7649 = vmatprep.subr.mxu0 0.0
    %7650 = vmatpush2.xpose.msra.mxu0 0.0
    %7651 = vmatprep.mubr.f32.mxu0 0.0
    %v7652 = vand.u32 %v7207, 4294901760
    %7653 = vmatmul.mubr.f32.gmra.mxu0 %v7652
    %v7654 = vpop.f32.mrf.mxu0
    %v7655 = vadd.f32 %v7583, %v7654
    %v7656 = vpop.f32.mrf.mxu0
    %7657 = vdwg.mxu0
    %v7658 = vmul.f32 %v29, %v4034
    %v7659 = vmul.f32 %v30, %v4035
    %v7660 = vmul.f32 %v31, %v4036
    %v7661 = vmul.f32 %v32, %v4037
    %v7662 = vmul.f32 %v33, %v4038
    %v7663 = vmul.f32 %v34, %v4039
    %v7664 = vmul.f32 %v35, %v4040
    %v7665 = vmul.f32 %v36, %v4041
    %vm7666 = vcmask 257024
    %v7667 = vsel %vm7666, %v7658, 0.0
    %7668 = vadd.xlane.f32.xlu0 %v7667
    %v7669 = vpop.xlane.xlu0 %7668
    %v7670 = vsel %vm7666, %v7659, 0.0
    %7671 = vadd.xlane.f32.xlu0 %v7670
    %v7672 = vpop.xlane.xlu0 %7671
    %v7673 = vsel %vm7666, %v7660, 0.0
    %7674 = vadd.xlane.f32.xlu0 %v7673
    %v7675 = vpop.xlane.xlu0 %7674
    %v7676 = vsel %vm7666, %v7661, 0.0
    %7677 = vadd.xlane.f32.xlu0 %v7676
    %v7678 = vpop.xlane.xlu0 %7677
    %v7679 = vsel %vm7666, %v7662, 0.0
    %7680 = vadd.xlane.f32.xlu0 %v7679
    %v7681 = vpop.xlane.xlu0 %7680
    %v7682 = vsel %vm7666, %v7663, 0.0
    %7683 = vadd.xlane.f32.xlu0 %v7682
    %v7684 = vpop.xlane.xlu0 %7683
    %v7685 = vsel %vm7666, %v7664, 0.0
    %7686 = vadd.xlane.f32.xlu0 %v7685
    %v7687 = vpop.xlane.xlu0 %7686
    %v7688 = vsel %vm7666, %v7665, 0.0
    %7689 = vadd.xlane.f32.xlu0 %v7688
    %v7690 = vpop.xlane.xlu0 %7689
    %v7691 = vsub.f32 %v4491, %v41
    %v7692 = vsub.f32 %v4943, %v44
    %v7693 = vsub.f32 %v5395, %v47
    %v7694 = vsub.f32 %v5847, %v50
    %v7695 = vsub.f32 %v6299, %v53
    %v7696 = vsub.f32 %v6751, %v56
    %v7697 = vsub.f32 %v7203, %v59
    %v7698 = vsub.f32 %v7655, %v62
    %v7699 = vsub.f32 %v7669, %v66
    %v7700 = vsub.f32 %v7672, %v69
    %v7701 = vsub.f32 %v7675, %v72
    %v7702 = vsub.f32 %v7678, %v75
    %v7703 = vsub.f32 %v7681, %v78
    %v7704 = vsub.f32 %v7684, %v81
    %v7705 = vsub.f32 %v7687, %v84
    %v7706 = vsub.f32 %v7690, %v87
    %v7715 = vlaneseq
    %v7716 = vshrl.u32 %v7715, 7
    %v7717 = vsub.s32 %v3841, %v7716
    %v7718 = vrot.slane %v7699, %v7717
    %v7719 = vlaneseq
    %v7720 = vshrl.u32 %v7719, 7
    %v7721 = vsub.s32 %v3841, %v7720
    %v7722 = vrot.slane %v7700, %v7721
    %v7723 = vlaneseq
    %v7724 = vshrl.u32 %v7723, 7
    %v7725 = vsub.s32 %v3841, %v7724
    %v7726 = vrot.slane %v7701, %v7725
    %v7727 = vlaneseq
    %v7728 = vshrl.u32 %v7727, 7
    %v7729 = vsub.s32 %v3841, %v7728
    %v7730 = vrot.slane %v7702, %v7729
    %v7731 = vlaneseq
    %v7732 = vshrl.u32 %v7731, 7
    %v7733 = vsub.s32 %v3841, %v7732
    %v7734 = vrot.slane %v7703, %v7733
    %v7735 = vlaneseq
    %v7736 = vshrl.u32 %v7735, 7
    %v7737 = vsub.s32 %v3841, %v7736
    %v7738 = vrot.slane %v7704, %v7737
    %v7739 = vlaneseq
    %v7740 = vshrl.u32 %v7739, 7
    %v7741 = vsub.s32 %v3841, %v7740
    %v7742 = vrot.slane %v7705, %v7741
    %v7743 = vlaneseq
    %v7744 = vshrl.u32 %v7743, 7
    %v7745 = vsub.s32 %v3841, %v7744
    %v7746 = vrot.slane %v7706, %v7745
    %v7747 = vsel %vm3875, %v7718, %v7718
    %v7748 = vsel %vm3877, %v7718, %v7747
    %v7749 = vsel %vm3879, %v7718, %v7748
    %v7750 = vsel %vm3881, %v7718, %v7749
    %v7751 = vsel %vm3883, %v7718, %v7750
    %v7752 = vsel %vm3885, %v7718, %v7751
    %v7753 = vsel %vm3875, %v7722, %v7722
    %v7754 = vsel %vm3877, %v7722, %v7753
    %v7755 = vsel %vm3879, %v7722, %v7754
    %v7756 = vsel %vm3881, %v7722, %v7755
    %v7757 = vsel %vm3883, %v7722, %v7756
    %v7758 = vsel %vm3885, %v7722, %v7757
    %v7759 = vsel %vm3875, %v7726, %v7726
    %v7760 = vsel %vm3877, %v7726, %v7759
    %v7761 = vsel %vm3879, %v7726, %v7760
    %v7762 = vsel %vm3881, %v7726, %v7761
    %v7763 = vsel %vm3883, %v7726, %v7762
    %v7764 = vsel %vm3885, %v7726, %v7763
    %v7765 = vsel %vm3875, %v7730, %v7730
    %v7766 = vsel %vm3877, %v7730, %v7765
    %v7767 = vsel %vm3879, %v7730, %v7766
    %v7768 = vsel %vm3881, %v7730, %v7767
    %v7769 = vsel %vm3883, %v7730, %v7768
    %v7770 = vsel %vm3885, %v7730, %v7769
    %v7771 = vsel %vm3875, %v7734, %v7734
    %v7772 = vsel %vm3877, %v7734, %v7771
    %v7773 = vsel %vm3879, %v7734, %v7772
    %v7774 = vsel %vm3881, %v7734, %v7773
    %v7775 = vsel %vm3883, %v7734, %v7774
    %v7776 = vsel %vm3885, %v7734, %v7775
    %v7777 = vsel %vm3875, %v7738, %v7738
    %v7778 = vsel %vm3877, %v7738, %v7777
    %v7779 = vsel %vm3879, %v7738, %v7778
    %v7780 = vsel %vm3881, %v7738, %v7779
    %v7781 = vsel %vm3883, %v7738, %v7780
    %v7782 = vsel %vm3885, %v7738, %v7781
    %v7783 = vsel %vm3875, %v7742, %v7742
    %v7784 = vsel %vm3877, %v7742, %v7783
    %v7785 = vsel %vm3879, %v7742, %v7784
    %v7786 = vsel %vm3881, %v7742, %v7785
    %v7787 = vsel %vm3883, %v7742, %v7786
    %v7788 = vsel %vm3885, %v7742, %v7787
    %v7789 = vsel %vm3875, %v7746, %v7746
    %v7790 = vsel %vm3877, %v7746, %v7789
    %v7791 = vsel %vm3879, %v7746, %v7790
    %v7792 = vsel %vm3881, %v7746, %v7791
    %v7793 = vsel %vm3883, %v7746, %v7792
    %v7794 = vsel %vm3885, %v7746, %v7793
    %v7803 = vadd.f32 %v7691, %v7752
    %v7804 = vadd.f32 %v7692, %v7758
    %v7805 = vadd.f32 %v7693, %v7764
    %v7806 = vadd.f32 %v7694, %v7770
    %v7807 = vadd.f32 %v7695, %v7776
    %v7808 = vadd.f32 %v7696, %v7782
    %v7809 = vadd.f32 %v7697, %v7788
    %v7810 = vadd.f32 %v7698, %v7794
    %v7811 = vsub.f32 %v7803, %v3753
    %v7812 = vsub.f32 %v7804, %v3755
    %v7813 = vsub.f32 %v7805, %v3757
    %v7814 = vsub.f32 %v7806, %v3759
    %v7815 = vsub.f32 %v7807, %v3761
    %v7816 = vsub.f32 %v7808, %v3763
    %v7817 = vsub.f32 %v7809, %v3765
    %v7818 = vsub.f32 %v7810, %v3767
    %vm7819 = vcmask 31744
    %7820 = vst.msk [vmem:[#allocation3] sm:$0xff] %vm7819, %v7811
    %7821 = vst.msk [vmem:[#allocation3 + $0x8] sm:$0xff] %vm7819, %v7812
    %7822 = vst.msk [vmem:[#allocation3 + $0x10] sm:$0xff] %vm7819, %v7813
    %7823 = vst.msk [vmem:[#allocation3 + $0x18] sm:$0xff] %vm7819, %v7814
    %7824 = vst.msk [vmem:[#allocation3 + $0x20] sm:$0xff] %vm7819, %v7815
    %7825 = vst.msk [vmem:[#allocation3 + $0x28] sm:$0xff] %vm7819, %v7816
    %7826 = vst.msk [vmem:[#allocation3 + $0x30] sm:$0xff] %vm7819, %v7817
    %7827 = vst.msk [vmem:[#allocation3 + $0x38] sm:$0xff] %vm7819, %v7818
    %v7828 = vld [vmem:[%s3] sm:$0x1]
    %v7829 = vsub.s32 %v7828, 1
    %v7830 = vld [vmem:[%s4] sm:$0x1]
    %v7831 = vlaneseq
    %v7832 = vshrl.u32 %v7831, 7
    %v7833 = vld [vmem:[#allocation2] sm:$0x1]
    %v7834 = vld [vmem:[#allocation2 + $0x8] sm:$0x1]
    %v7835 = vld [vmem:[#allocation2 + $0x10] sm:$0x1]
    %v7836 = vld [vmem:[#allocation2 + $0x18] sm:$0x1]
    %v7837 = vld [vmem:[#allocation2 + $0x20] sm:$0x1]
    %v7838 = vld [vmem:[#allocation2 + $0x28] sm:$0x1]
    %v7839 = vld [vmem:[#allocation2 + $0x30] sm:$0x1]
    %v7840 = vld [vmem:[#allocation2 + $0x38] sm:$0x1]
    %v7849 = vrot.slane %v7834, 7
    %v7850 = vsel %vm3874, %v7849, %v7833
    %v7851 = vrot.slane %v7835, 6
    %v7852 = vsel %vm3875, %v7851, %v7850
    %v7853 = vrot.slane %v7836, 5
    %v7854 = vsel %vm3877, %v7853, %v7852
    %v7855 = vrot.slane %v7837, 4
    %v7856 = vsel %vm3879, %v7855, %v7854
    %v7857 = vrot.slane %v7838, 3
    %v7858 = vsel %vm3881, %v7857, %v7856
    %v7859 = vrot.slane %v7839, 2
    %v7860 = vsel %vm3883, %v7859, %v7858
    %v7861 = vrot.slane %v7840, 1
    %v7862 = vsel %vm3885, %v7861, %v7860
    %7864 = vxpose.xlu0.b32.start [1/16] %v7862, 128
    %7865 = vxpose.xlu0.b32.cont [2/16] 0.0, 128
    %7866 = vxpose.xlu0.b32.cont [3/16] 0.0, 128
    %7867 = vxpose.xlu0.b32.cont [4/16] 0.0, 128
    %7868 = vxpose.xlu0.b32.cont [5/16] 0.0, 128
    %7869 = vxpose.xlu0.b32.cont [6/16] 0.0, 128
    %7870 = vxpose.xlu0.b32.cont [7/16] 0.0, 128
    %7871 = vxpose.xlu0.b32.cont [8/16] 0.0, 128
    %7872 = vxpose.xlu0.b32.cont [9/16] 0.0, 128
    %7873 = vxpose.xlu0.b32.cont [10/16] 0.0, 128
    %7874 = vxpose.xlu0.b32.cont [11/16] 0.0, 128
    %7875 = vxpose.xlu0.b32.cont [12/16] 0.0, 128
    %7876 = vxpose.xlu0.b32.cont [13/16] 0.0, 128
    %7877 = vxpose.xlu0.b32.cont [14/16] 0.0, 128
    %7878 = vxpose.xlu0.b32.cont [15/16] 0.0, 128
    %7879 = vxpose.xlu0.b32.end [16/16] 0.0, 128
    %v7880 = vpop.trf.xlu0
    %v7881 = vpop.trf.xlu0
    %v7882 = vpop.trf.xlu0
    %v7883 = vpop.trf.xlu0
    %v7884 = vpop.trf.xlu0
    %v7885 = vpop.trf.xlu0
    %v7886 = vpop.trf.xlu0
    %v7887 = vpop.trf.xlu0
    %v7888 = vpop.trf.xlu0
    %v7889 = vpop.trf.xlu0
    %v7890 = vpop.trf.xlu0
    %v7891 = vpop.trf.xlu0
    %v7892 = vpop.trf.xlu0
    %v7893 = vpop.trf.xlu0
    %v7894 = vpop.trf.xlu0
    %v7895 = vpop.trf.xlu0
    %v7896 = vld [vmem:[#allocation3] sm:$0x1]
    %v7897 = vld [vmem:[#allocation3 + $0x8] sm:$0x1]
    %v7898 = vld [vmem:[#allocation3 + $0x10] sm:$0x1]
    %v7899 = vld [vmem:[#allocation3 + $0x18] sm:$0x1]
    %v7900 = vld [vmem:[#allocation3 + $0x20] sm:$0x1]
    %v7901 = vld [vmem:[#allocation3 + $0x28] sm:$0x1]
    %v7902 = vld [vmem:[#allocation3 + $0x30] sm:$0x1]
    %v7903 = vld [vmem:[#allocation3 + $0x38] sm:$0x1]
    %v7912 = vrot.slane %v7897, 7
    %v7913 = vsel %vm3874, %v7912, %v7896
    %v7914 = vrot.slane %v7898, 6
    %v7915 = vsel %vm3875, %v7914, %v7913
    %v7916 = vrot.slane %v7899, 5
    %v7917 = vsel %vm3877, %v7916, %v7915
    %v7918 = vrot.slane %v7900, 4
    %v7919 = vsel %vm3879, %v7918, %v7917
    %v7920 = vrot.slane %v7901, 3
    %v7921 = vsel %vm3881, %v7920, %v7919
    %v7922 = vrot.slane %v7902, 2
    %v7923 = vsel %vm3883, %v7922, %v7921
    %v7924 = vrot.slane %v7903, 1
    %v7925 = vsel %vm3885, %v7924, %v7923
    %7927 = vxpose.xlu0.b32.start [1/16] %v7925, 128
    %7928 = vxpose.xlu0.b32.cont [2/16] 0.0, 128
    %7929 = vxpose.xlu0.b32.cont [3/16] 0.0, 128
    %7930 = vxpose.xlu0.b32.cont [4/16] 0.0, 128
    %7931 = vxpose.xlu0.b32.cont [5/16] 0.0, 128
    %7932 = vxpose.xlu0.b32.cont [6/16] 0.0, 128
    %7933 = vxpose.xlu0.b32.cont [7/16] 0.0, 128
    %7934 = vxpose.xlu0.b32.cont [8/16] 0.0, 128
    %7935 = vxpose.xlu0.b32.cont [9/16] 0.0, 128
    %7936 = vxpose.xlu0.b32.cont [10/16] 0.0, 128
    %7937 = vxpose.xlu0.b32.cont [11/16] 0.0, 128
    %7938 = vxpose.xlu0.b32.cont [12/16] 0.0, 128
    %7939 = vxpose.xlu0.b32.cont [13/16] 0.0, 128
    %7940 = vxpose.xlu0.b32.cont [14/16] 0.0, 128
    %7941 = vxpose.xlu0.b32.cont [15/16] 0.0, 128
    %7942 = vxpose.xlu0.b32.end [16/16] 0.0, 128
    %v7943 = vpop.trf.xlu0
    %v7944 = vpop.trf.xlu0
    %v7945 = vpop.trf.xlu0
    %v7946 = vpop.trf.xlu0
    %v7947 = vpop.trf.xlu0
    %v7948 = vpop.trf.xlu0
    %v7949 = vpop.trf.xlu0
    %v7950 = vpop.trf.xlu0
    %v7951 = vpop.trf.xlu0
    %v7952 = vpop.trf.xlu0
    %v7953 = vpop.trf.xlu0
    %v7954 = vpop.trf.xlu0
    %v7955 = vpop.trf.xlu0
    %v7956 = vpop.trf.xlu0
    %v7957 = vpop.trf.xlu0
    %v7958 = vpop.trf.xlu0
    %v7959 = vadd.f32 %v7943, 0.0
    %v7961 = vrot.slane %v7943, 1
    %v7963 = vadd.f32 %v7959, %v7961
    %v7964 = vrot.slane %v7943, 2
    %v7966 = vadd.f32 %v7963, %v7964
    %v7967 = vrot.slane %v7943, 3
    %v7969 = vadd.f32 %v7966, %v7967
    %v7971 = vrot.slane %v7959, 7
    %v7974 = vrot.slane %v7963, 6
    %v7977 = vrot.slane %v7966, 5
    %v7980 = vrot.slane %v7969, 4
    %vm7982 = vcmask 1040384
    %v7983 = vsel %vm7982, 0.0, %v7971
    %vm7984 = vcmask 1041408
    %v7985 = vsel %vm7984, %v7983, %v7974
    %vm7986 = vcmask 1042432
    %v7987 = vsel %vm7986, %v7985, %v7977
    %vm7988 = vcmask 1043456
    %v7989 = vsel %vm7988, %v7987, %v7980
    %vm7990 = vcmp.eq.s32.totalorder %v7829, 0
    %v7991 = vlaneseq
    %v7992 = vshrl.u32 %v7991, 7
    %v7993 = vsub.s32 0, %v7992
    %v7994 = vrot.slane %v7830, %v7993
    %vm7995 = vcmp.eq.s32.totalorder %v7832, %v7994
    %v7996 = vsel %vm7990, 1, 0
    %v7997 = vlaneseq
    %v7998 = vshrl.u32 %v7997, 7
    %v7999 = vsub.s32 0, %v7998
    %v8000 = vrot.slane %v7996, %v7999
    %vm8001 = vcmp.eq.s32.totalorder %v8000, 1
    %vm8002 = vmand %vm8001, %vm7995
    %v8003 = vadd.f32 %v7989, %v7880
    %v8004 = vsel %vm8002, %v8003, 0.0
    %vm8005 = vcmask 61440
    %v8006 = vsel %vm8005, %v8004, 0.0
    %v8007 = vrot.slane %v8006, 4
    %v8008 = vadd.f32 %v8006, %v8007
    %v8009 = vrot.slane %v8008, 2
    %v8010 = vadd.f32 %v8008, %v8009
    %v8011 = vrot.slane %v8010, 1
    %v8012 = vadd.f32 %v8010, %v8011
    %v8013 = vadd.f32 %v8012, 0.0
    loop: start=1, step=1, limit=8
    $region22: #{tpu_custom_call.1} parent=1 // loop_pre_header
      _
    $region23: #{tpu_custom_call.1} parent=1 // loop_header
      %s8015 = sphi 1, %s8019
      %p8016 = scmp.ge.s32.totalorder %s8015, 8
      %v8020 = vphi %v7989, %v8239
      %v8021 = vphi %v7880, %v8071
      %v8022 = vphi %v8013, %v8258
    $region24: #{tpu_custom_call.1} parent=1 // loop_header_branch
      %8018 = sbr.rel (%p8016) target = $region28
    $region25: #{tpu_custom_call.1} parent=1 // loop_body
      %s8023 = scalar_lea.vmem [#allocation2], %s8015
      %v8024 = vld [vmem:[%s8023] sm:$0x1]
      %v8025 = vld [vmem:[%s8023 + $0x8] sm:$0x1]
      %v8026 = vld [vmem:[%s8023 + $0x10] sm:$0x1]
      %v8027 = vld [vmem:[%s8023 + $0x18] sm:$0x1]
      %v8028 = vld [vmem:[%s8023 + $0x20] sm:$0x1]
      %v8029 = vld [vmem:[%s8023 + $0x28] sm:$0x1]
      %v8030 = vld [vmem:[%s8023 + $0x30] sm:$0x1]
      %v8031 = vld [vmem:[%s8023 + $0x38] sm:$0x1]
      %v8040 = vrot.slane %v8025, 7
      %v8041 = vsel %vm3874, %v8040, %v8024
      %v8042 = vrot.slane %v8026, 6
      %v8043 = vsel %vm3875, %v8042, %v8041
      %v8044 = vrot.slane %v8027, 5
      %v8045 = vsel %vm3877, %v8044, %v8043
      %v8046 = vrot.slane %v8028, 4
      %v8047 = vsel %vm3879, %v8046, %v8045
      %v8048 = vrot.slane %v8029, 3
      %v8049 = vsel %vm3881, %v8048, %v8047
      %v8050 = vrot.slane %v8030, 2
      %v8051 = vsel %vm3883, %v8050, %v8049
      %v8052 = vrot.slane %v8031, 1
      %v8053 = vsel %vm3885, %v8052, %v8051
      %8055 = vxpose.xlu0.b32.start [1/16] %v8053, 128
      %8056 = vxpose.xlu0.b32.cont [2/16] 0.0, 128
      %8057 = vxpose.xlu0.b32.cont [3/16] 0.0, 128
      %8058 = vxpose.xlu0.b32.cont [4/16] 0.0, 128
      %8059 = vxpose.xlu0.b32.cont [5/16] 0.0, 128
      %8060 = vxpose.xlu0.b32.cont [6/16] 0.0, 128
      %8061 = vxpose.xlu0.b32.cont [7/16] 0.0, 128
      %8062 = vxpose.xlu0.b32.cont [8/16] 0.0, 128
      %8063 = vxpose.xlu0.b32.cont [9/16] 0.0, 128
      %8064 = vxpose.xlu0.b32.cont [10/16] 0.0, 128
      %8065 = vxpose.xlu0.b32.cont [11/16] 0.0, 128
      %8066 = vxpose.xlu0.b32.cont [12/16] 0.0, 128
      %8067 = vxpose.xlu0.b32.cont [13/16] 0.0, 128
      %8068 = vxpose.xlu0.b32.cont [14/16] 0.0, 128
      %8069 = vxpose.xlu0.b32.cont [15/16] 0.0, 128
      %8070 = vxpose.xlu0.b32.end [16/16] 0.0, 128
      %v8071 = vpop.trf.xlu0
      %v8072 = vpop.trf.xlu0
      %v8073 = vpop.trf.xlu0
      %v8074 = vpop.trf.xlu0
      %v8075 = vpop.trf.xlu0
      %v8076 = vpop.trf.xlu0
      %v8077 = vpop.trf.xlu0
      %v8078 = vpop.trf.xlu0
      %v8079 = vpop.trf.xlu0
      %v8080 = vpop.trf.xlu0
      %v8081 = vpop.trf.xlu0
      %v8082 = vpop.trf.xlu0
      %v8083 = vpop.trf.xlu0
      %v8084 = vpop.trf.xlu0
      %v8085 = vpop.trf.xlu0
      %v8086 = vpop.trf.xlu0
      %s8087 = scalar_lea.vmem [#allocation3], %s8015
      %v8088 = vld [vmem:[%s8087] sm:$0x1]
      %v8089 = vld [vmem:[%s8087 + $0x8] sm:$0x1]
      %v8090 = vld [vmem:[%s8087 + $0x10] sm:$0x1]
      %v8091 = vld [vmem:[%s8087 + $0x18] sm:$0x1]
      %v8092 = vld [vmem:[%s8087 + $0x20] sm:$0x1]
      %v8093 = vld [vmem:[%s8087 + $0x28] sm:$0x1]
      %v8094 = vld [vmem:[%s8087 + $0x30] sm:$0x1]
      %v8095 = vld [vmem:[%s8087 + $0x38] sm:$0x1]
      %v8104 = vrot.slane %v8089, 7
      %v8105 = vsel %vm3874, %v8104, %v8088
      %v8106 = vrot.slane %v8090, 6
      %v8107 = vsel %vm3875, %v8106, %v8105
      %v8108 = vrot.slane %v8091, 5
      %v8109 = vsel %vm3877, %v8108, %v8107
      %v8110 = vrot.slane %v8092, 4
      %v8111 = vsel %vm3879, %v8110, %v8109
      %v8112 = vrot.slane %v8093, 3
      %v8113 = vsel %vm3881, %v8112, %v8111
      %v8114 = vrot.slane %v8094, 2
      %v8115 = vsel %vm3883, %v8114, %v8113
      %v8116 = vrot.slane %v8095, 1
      %v8117 = vsel %vm3885, %v8116, %v8115
      %8119 = vxpose.xlu0.b32.start [1/16] %v8117, 128
      %8120 = vxpose.xlu0.b32.cont [2/16] 0.0, 128
      %8121 = vxpose.xlu0.b32.cont [3/16] 0.0, 128
      %8122 = vxpose.xlu0.b32.cont [4/16] 0.0, 128
      %8123 = vxpose.xlu0.b32.cont [5/16] 0.0, 128
      %8124 = vxpose.xlu0.b32.cont [6/16] 0.0, 128
      %8125 = vxpose.xlu0.b32.cont [7/16] 0.0, 128
      %8126 = vxpose.xlu0.b32.cont [8/16] 0.0, 128
      %8127 = vxpose.xlu0.b32.cont [9/16] 0.0, 128
      %8128 = vxpose.xlu0.b32.cont [10/16] 0.0, 128
      %8129 = vxpose.xlu0.b32.cont [11/16] 0.0, 128
      %8130 = vxpose.xlu0.b32.cont [12/16] 0.0, 128
      %8131 = vxpose.xlu0.b32.cont [13/16] 0.0, 128
      %8132 = vxpose.xlu0.b32.cont [14/16] 0.0, 128
      %8133 = vxpose.xlu0.b32.cont [15/16] 0.0, 128
      %8134 = vxpose.xlu0.b32.end [16/16] 0.0, 128
      %v8135 = vpop.trf.xlu0
      %v8136 = vpop.trf.xlu0
      %v8137 = vpop.trf.xlu0
      %v8138 = vpop.trf.xlu0
      %v8139 = vpop.trf.xlu0
      %v8140 = vpop.trf.xlu0
      %v8141 = vpop.trf.xlu0
      %v8142 = vpop.trf.xlu0
      %v8143 = vpop.trf.xlu0
      %v8144 = vpop.trf.xlu0
      %v8145 = vpop.trf.xlu0
      %v8146 = vpop.trf.xlu0
      %v8147 = vpop.trf.xlu0
      %v8148 = vpop.trf.xlu0
      %v8149 = vpop.trf.xlu0
      %v8150 = vpop.trf.xlu0
      %v8151 = vadd.f32 %v8020, %v8021
      %v8152 = vadd.f32 %v8151, %v8135
      %v8154 = vrot.slane %v8152, 7
      %v8156 = vmax.f32 %v8151, %v8154
      %v8157 = vsub.f32 %v8151, %v8156
      %v8158 = vmul.f32 %v8157, 1.442695
      %v8159 = vpow.pop %v8158
      %v8161 = vrot.slane %v8156, 1
      %v8163 = vsub.f32 %v8152, %v8161
      %v8164 = vmul.f32 %v8163, 1.442695
      %v8165 = vpow.pop %v8164
      %v8167 = vrot.slane %v8165, 7
      %v8169 = vadd.f32 %v8159, %v8167
      %v8170 = vlog2.pop %v8169
      %v8171 = vmul.f32 %v8170, 0.6931472
      %v8172 = vadd.f32 %v8156, %v8171
      %v8173 = vadd.f32 %v8172, %v8135
      %v8175 = vrot.slane %v8173, 7
      %v8177 = vmax.f32 %v8151, %v8175
      %v8178 = vsub.f32 %v8151, %v8177
      %v8179 = vmul.f32 %v8178, 1.442695
      %v8180 = vpow.pop %v8179
      %v8182 = vrot.slane %v8177, 1
      %v8184 = vsub.f32 %v8173, %v8182
      %v8185 = vmul.f32 %v8184, 1.442695
      %v8186 = vpow.pop %v8185
      %v8188 = vrot.slane %v8186, 7
      %v8190 = vadd.f32 %v8180, %v8188
      %v8191 = vlog2.pop %v8190
      %v8192 = vmul.f32 %v8191, 0.6931472
      %v8193 = vadd.f32 %v8177, %v8192
      %v8194 = vadd.f32 %v8193, %v8135
      %v8196 = vrot.slane %v8194, 7
      %v8198 = vmax.f32 %v8151, %v8196
      %v8199 = vsub.f32 %v8151, %v8198
      %v8200 = vmul.f32 %v8199, 1.442695
      %v8201 = vpow.pop %v8200
      %v8203 = vrot.slane %v8198, 1
      %v8205 = vsub.f32 %v8194, %v8203
      %v8206 = vmul.f32 %v8205, 1.442695
      %v8207 = vpow.pop %v8206
      %v8209 = vrot.slane %v8207, 7
      %v8211 = vadd.f32 %v8201, %v8209
      %v8212 = vlog2.pop %v8211
      %v8213 = vmul.f32 %v8212, 0.6931472
      %v8214 = vadd.f32 %v8198, %v8213
      %v8215 = vadd.f32 %v8214, %v8135
      %v8217 = vrot.slane %v8215, 7
      %v8219 = vmax.f32 %v8151, %v8217
      %v8220 = vsub.f32 %v8151, %v8219
      %v8221 = vmul.f32 %v8220, 1.442695
      %v8222 = vpow.pop %v8221
      %v8224 = vrot.slane %v8219, 1
      %v8226 = vsub.f32 %v8215, %v8224
      %v8227 = vmul.f32 %v8226, 1.442695
      %v8228 = vpow.pop %v8227
      %v8230 = vrot.slane %v8228, 7
      %v8232 = vadd.f32 %v8222, %v8230
      %v8233 = vlog2.pop %v8232
      %v8234 = vmul.f32 %v8233, 0.6931472
      %v8235 = vadd.f32 %v8219, %v8234
      %v8236 = vsel %vm7982, %v8151, %v8172
      %v8237 = vsel %vm7984, %v8236, %v8193
      %v8238 = vsel %vm7986, %v8237, %v8214
      %v8239 = vsel %vm7988, %v8238, %v8235
      %v8240 = vstv %s8015
      %vm8241 = vcmp.eq.s32.totalorder %v7829, %v8240
      %v8242 = vsel %vm8241, 1, 0
      %v8243 = vlaneseq
      %v8244 = vshrl.u32 %v8243, 7
      %v8245 = vsub.s32 0, %v8244
      %v8246 = vrot.slane %v8242, %v8245
      %vm8247 = vcmp.eq.s32.totalorder %v8246, 1
      %vm8248 = vmand %vm8247, %vm7995
      %v8249 = vadd.f32 %v8239, %v8071
      %v8250 = vsel %vm8248, %v8249, 0.0
      %v8251 = vsel %vm8005, %v8250, 0.0
      %v8252 = vrot.slane %v8251, 4
      %v8253 = vadd.f32 %v8251, %v8252
      %v8254 = vrot.slane %v8253, 2
      %v8255 = vadd.f32 %v8253, %v8254
      %v8256 = vrot.slane %v8255, 1
      %v8257 = vadd.f32 %v8255, %v8256
      %v8258 = vadd.f32 %v8022, %v8257
    $region26: #{tpu_custom_call.1} parent=1 // loop_footer
      %s8019 = sadd.s32 1, %s8015
    $region27: #{tpu_custom_call.1} parent=1 // loop_footer_branch
      %8014 = sbr.rel target = $region23
    $region28: #{tpu_custom_call.1} parent=1 // loop_exit
      _
    %v8259 = vsub.f32 0.0, %v8022
    %vm8260 = vcmask 57344
    %8261 = vst.msk [vmem:[#allocation4] sm:$0x1] %vm8260, %v8259
    // Predicated region
    $region29: #{tpu_custom_call.1} parent=1 // pred_check
      _
    $region30: #{tpu_custom_call.1} parent=1 // pred_check_branch
      %8263 = sbr.rel (0) target = $region32
    $region31: #{tpu_custom_call.1} parent=1 // pred_region
      %s8265 = ssub.s32 16, 16
      %8266 = vsyncadd [#allocation5], %s8265
      %s8268 = sshll.u32 [#allocation4], 4
      %s8269 = int_to_ptr.vmem [resolvable:$true] %s8268
      %8271 = dma.vmem_to_hbm [thread:$0]  %s8269, 16, %s5, [#allocation5]
    $region32: #{tpu_custom_call.1} parent=1 // pred_fallthru
      _
    // Predicated region
    $region33: #{tpu_custom_call.1} parent=1 // pred_check
      _
    $region34: #{tpu_custom_call.1} parent=1 // pred_check_branch
      %8273 = sbr.rel (0) target = $region36
    $region35: #{tpu_custom_call.1} parent=1 // pred_region
      %8274 = dma.done [#allocation5], 16
    $region36: #{tpu_custom_call.1} parent=1 // pred_fallthru
      _
    %8275 = vsyncpa [#allocation5], 1

</llo_original>
